<compile_context>
chip_gen: v7x
topology: tpu7x:2x2x1
jax: 0.10.0
libtpu: 0.0.40
codegen_flags: <defaults>
</compile_context>

<pallas_src>
from functools import partial

import jax
import jax.numpy as jnp
from jax import lax
from jax.experimental import pallas as pl
from jax.experimental.pallas import tpu as pltpu


# ----------------------------- fused kernel ---------------------------------

def _inception_kernel(x_ref, w1_ref, w23_ref, w4_ref, sc_ref, bs_ref,
                      o_ref, xpad_ref, ypad_ref, *,
                      H, W, Cin, C1, C23r, C35, Cp):
    c123 = C1 + C23r

    # Padded scratch buffers.  Borders are (re)written every grid step so the
    # kernel is correct no matter how grid steps are split across TensorCores.
    xpad_ref[...] = jnp.full_like(xpad_ref, -jnp.inf)   # -inf border for maxpool
    ypad_ref[...] = jnp.zeros_like(ypad_ref)            # zero border for the 3x3s

    x3d = x_ref[0]                                       # (H, W, Cin), bf16
    xpad_ref[1:H + 1, 1:W + 1, :] = x3d

    # ---- fused shared-input 1x1 convs: [branch1 | branch2-reduce | branch3-reduce]
    x_flat = x3d.reshape(H * W, Cin)
    y = jnp.dot(x_flat, w1_ref[...], preferred_element_type=jnp.float32)
    y = jnp.maximum(y * sc_ref[:, 0:c123] + bs_ref[:, 0:c123], 0.0)
    y_bf = y.astype(jnp.bfloat16)

    # branch1 goes straight into its lane slice of the output block
    o_ref[0, :, 0:C1] = y_bf[:, 0:C1]

    # reduce channels into the zero-bordered scratch (doubles as the 3x3 zero pad)
    ypad_ref[1:H + 1, 1:W + 1, :] = y_bf[:, C1:c123].reshape(H, W, C23r)

    # ---- branch2 + branch3 fused 3x3: 9 shifted taps, block-diagonal weights,
    #      f32 accumulation, no im2col materialization.
    acc = jnp.zeros((H * W, C35), jnp.float32)
    for k in range(9):
        dy, dx = k // 3, k % 3
        tap = ypad_ref[dy:dy + H, dx:dx + W, :].reshape(H * W, C23r)
        acc = acc + jnp.dot(tap, w23_ref[k], preferred_element_type=jnp.float32)
    b23 = jnp.maximum(acc * sc_ref[:, c123:c123 + C35] +
                      bs_ref[:, c123:c123 + C35], 0.0)
    o_ref[0, :, C1:C1 + C35] = b23.astype(jnp.bfloat16)

    # ---- branch4: 3x3 maxpool (stride 1, pad 1; padded values never win) + 1x1.
    # Invariant: the running max is SEEDED with the centre tap (always real x),
    # so the -inf border values can never reach the matmul.
    m = xpad_ref[1:H + 1, 1:W + 1, :]
    for k in range(9):
        dy, dx = k // 3, k % 3
        if dy == 1 and dx == 1:
            continue
        m = jnp.maximum(m, xpad_ref[dy:dy + H, dx:dx + W, :])
    z4 = jnp.dot(m.reshape(H * W, Cin), w4_ref[...],
                 preferred_element_type=jnp.float32)
    b4 = jnp.maximum(z4 * sc_ref[:, c123 + C35:c123 + C35 + Cp] +
                     bs_ref[:, c123 + C35:c123 + C35 + Cp], 0.0)
    o_ref[0, :, C1 + C35:C1 + C35 + Cp] = b4.astype(jnp.bfloat16)


# ------------------------------- wrapper -------------------------------------

def inception_forward(x_nchw, params):
    N, Cin, H, W = x_nchw.shape
    w1, w23, w4 = params["w1"], params["w23"], params["w4"]
    scales, biases = params["scales"], params["biases"]

    # All block sizes are derived from (static) weight shapes -> plain Python
    # ints under jit (this was the previous trace-time failure).
    c123 = w1.shape[1]
    C23r, C35 = w23.shape[1], w23.shape[2]
    C1 = c123 - C23r
    Cp = w4.shape[1]
    Ctot = C1 + C35 + Cp
    Csb = scales.shape[1]

    # Single HBM pass over x: NCHW -> NHWC and f32 -> bf16 (halves input DMA).
    # No padded copy is materialized in HBM.
    x = jnp.transpose(x_nchw, (0, 2, 3, 1)).astype(jnp.bfloat16)

    flops = 2 * N * H * W * (Cin * c123 + 9 * C23r * C35 + Cin * Cp)
    bytes_accessed = (x.size * 2 + N * H * W * Ctot * 2 +
                      (w1.size + w23.size + w4.size) * 2 +
                      (scales.size + biases.size) * 4)

    kern = partial(_inception_kernel, H=H, W=W, Cin=Cin, C1=C1,
                   C23r=C23r, C35=C35, Cp=Cp)

    out = pl.pallas_call(
        kern,
        out_shape=jax.ShapeDtypeStruct((N, H * W, Ctot), jnp.bfloat16),
        grid=(N,),
        in_specs=[
            pl.BlockSpec((1, H, W, Cin), lambda n: (n, 0, 0, 0)),
            pl.BlockSpec((Cin, c123), lambda n: (0, 0)),
            pl.BlockSpec((9, C23r, C35), lambda n: (0, 0, 0)),
            pl.BlockSpec((Cin, Cp), lambda n: (0, 0)),
            pl.BlockSpec((1, Csb), lambda n: (0, 0)),
            pl.BlockSpec((1, Csb), lambda n: (0, 0)),
        ],
        out_specs=pl.BlockSpec((1, H * W, Ctot), lambda n: (n, 0, 0)),
        scratch_shapes=[
            pltpu.VMEM((H + 2, W + 2, Cin), jnp.bfloat16),    # -inf-bordered x
            pltpu.VMEM((H + 2, W + 2, C23r), jnp.bfloat16),   # zero-bordered 1x1 out
        ],
        compiler_params=pltpu.CompilerParams(
            dimension_semantics=("parallel",),
            vmem_limit_bytes=32 * 1024 * 1024),
        cost_estimate=pl.CostEstimate(flops=flops, transcendentals=0,
                                      bytes_accessed=bytes_accessed),
    )(x, w1, w23, w4, scales, biases)

    out = out.reshape(N, H, W, Ctot)
    # Return NCHW f32 to match the PyTorch module; the convert fuses into the
    # transpose pass (kernel-side stores stay bf16).
    return jnp.transpose(out, (0, 3, 1, 2)).astype(jnp.float32)


# --------------------------- parameter setup ---------------------------------

def make_conv_bn(key, cin, cout, k):
    """Deterministic BasicConv2d params; BN (eval mode) folded to scale/bias."""
    k1, k2, k3, k4, k5 = jax.random.split(key, 5)
    w = jax.random.normal(k1, (cout, cin, k, k), jnp.float32) * 0.1   # torch OIHW
    gamma = 1.0 + 0.1 * jax.random.normal(k2, (cout,), jnp.float32)
    beta = 0.1 * jax.random.normal(k3, (cout,), jnp.float32)
    mean = 0.1 * jax.random.normal(k4, (cout,), jnp.float32)
    var = 1.0 + 0.1 * jax.random.uniform(k5, (cout,), jnp.float32)
    eps = 1e-5
    scale = gamma / jnp.sqrt(var + eps)
    bias = beta - mean * scale
    if k == 1:
        w_mat = w[:, :, 0, 0].T                                       # (cin, cout)
    else:
        w_mat = jnp.transpose(w, (2, 3, 1, 0)).reshape(k * k * cin, cout)
    return (w_mat.astype(jnp.bfloat16),
            scale.reshape(1, cout), bias.reshape(1, cout))


def make_inception_params(key, in_channels, ch1x1, ch3x3red, ch3x3,
                          ch5x5red, ch5x5, pool_proj):
    keys = jax.random.split(key, 6)
    b1 = make_conv_bn(keys[0], in_channels, ch1x1, 1)
    b2a = make_conv_bn(keys[1], in_channels, ch3x3red, 1)
    b2b = make_conv_bn(keys[2], ch3x3red, ch3x3, 3)
    b3a = make_conv_bn(keys[3], in_channels, ch5x5red, 1)
    b3b = make_conv_bn(keys[4], ch5x5red, ch5x5, 3)     # 3x3, as in torch code
    b4 = make_conv_bn(keys[5], in_channels, pool_proj, 1)

    # fuse the three shared-input 1x1 convs along Cout: [b1 | b2-reduce | b3-reduce]
    w1 = jnp.concatenate([b1[0], b2a[0], b3a[0]], axis=1)
    s1 = jnp.concatenate([b1[1], b2a[1], b3a[1]], axis=1)
    c1 = jnp.concatenate([b1[2], b2a[2], b3a[2]], axis=1)

    # fuse the two 3x3 convs into one block-diagonal per-tap weight
    w2t = b2b[0].reshape(9, ch3x3red, ch3x3)
    w3t = b3b[0].reshape(9, ch5x5red, ch5x5)
    w23 = jnp.concatenate(
        [jnp.concatenate([w2t, jnp.zeros((9, ch3x3red, ch5x5), jnp.bfloat16)], axis=2),
         jnp.concatenate([jnp.zeros((9, ch5x5red, ch3x3), jnp.bfloat16), w3t], axis=2)],
        axis=1)
    s23 = jnp.concatenate([b2b[1], b3b[1]], axis=1)
    c23 = jnp.concatenate([b2b[2], b3b[2]], axis=1)

    # pack all fused scales / biases into two operands (fewer kernel args)
    scales = jnp.concatenate([s1, s23, b4[1]], axis=1)
    biases = jnp.concatenate([c1, c23, b4[2]], axis=1)

    kernel_params = {"w1": w1, "w23": w23, "w4": b4[0],
                     "scales": scales, "biases": biases}
    # unfused copies are kept separately, only for the pure-JAX reference check
    ref_params = {"b1": b1, "b2a": b2a, "b2b": b2b,
                  "b3a": b3a, "b3b": b3b, "b4": b4}
    return kernel_params, ref_params


# ---------------------------- pure-JAX reference ------------------------------

def _ref_pw(x, w, s, c):
    y = jnp.einsum('nhwc,cd->nhwd', x.astype(jnp.bfloat16), w,
                   preferred_element_type=jnp.float32)
    return jnp.maximum(y * s.reshape(1, 1, 1, -1) + c.reshape(1, 1, 1, -1), 0.0)


def _ref_conv3x3(x, w, s, c):
    cin, cout = x.shape[-1], w.shape[-1]
    w4 = w.reshape(3, 3, cin, cout)
    y = lax.conv_general_dilated(
        x.astype(jnp.bfloat16), w4, window_strides=(1, 1),
        padding=((1, 1), (1, 1)),
        dimension_numbers=('NHWC', 'HWIO', 'NHWC'),
        preferred_element_type=jnp.float32)
    return jnp.maximum(y * s.reshape(1, 1, 1, -1) + c.reshape(1, 1, 1, -1), 0.0)


def inception_reference(x_nchw, params):
    x = jnp.transpose(x_nchw, (0, 2, 3, 1))
    b1 = _ref_pw(x, *params["b1"])
    b2 = _ref_conv3x3(_ref_pw(x, *params["b2a"]), *params["b2b"])
    b3 = _ref_conv3x3(_ref_pw(x, *params["b3a"]), *params["b3b"])
    mp = lax.reduce_window(x, -jnp.inf, lax.max, (1, 3, 3, 1), (1, 1, 1, 1),
                           padding=((0, 0), (1, 1), (1, 1), (0, 0)))
    b4 = _ref_pw(mp, *params["b4"])
    out = jnp.concatenate([b1, b2, b3, b4], axis=-1)
    return jnp.transpose(out, (0, 3, 1, 2))


# ------------------------------- main ----------------------------------------

if __name__ == "__main__":
    key = jax.random.PRNGKey(0)
    kx, kp = jax.random.split(key)

    N, Cin, H, W = 2, 4, 16, 16
    x = jax.random.normal(kx, (N, Cin, H, W), jnp.float32)

    kernel_params, ref_params = make_inception_params(
        kp, in_channels=Cin, ch1x1=8, ch3x3red=4, ch3x3=8,
        ch5x5red=4, ch5x5=8, pool_proj=8)

    out = jax.jit(inception_forward)(x, kernel_params)
    out = jax.block_until_ready(out)
    assert out.shape == (N, 8 + 8 + 8 + 8, H, W), out.shape

    ref = jax.block_until_ready(inception_reference(x, ref_params))
    err = float(jnp.max(jnp.abs(out - ref)))
    assert jnp.allclose(out, ref, atol=3e-2, rtol=3e-2), err

    print("KERNEL_OK")
</pallas_src>

<mosaic_0001>
module attributes {stable_mosaic.version = 11 : i64} {
  func.func @_inception_kernel(%arg0: i32, %arg1: memref<1x16x16x4xbf16, #tpu.memory_space<vmem>>, %arg2: memref<4x16xbf16, #tpu.memory_space<vmem>>, %arg3: memref<9x8x16xbf16, #tpu.memory_space<vmem>>, %arg4: memref<4x8xbf16, #tpu.memory_space<vmem>>, %arg5: memref<1x40xf32, #tpu.memory_space<vmem>>, %arg6: memref<1x40xf32, #tpu.memory_space<vmem>>, %arg7: memref<1x256x32xbf16, #tpu.memory_space<vmem>>, %arg8: memref<18x18x4xbf16, #tpu.memory_space<vmem>>, %arg9: memref<18x18x8xbf16, #tpu.memory_space<vmem>>) attributes {dimension_semantics = [#tpu.dimension_semantics<parallel>], iteration_bounds = array<i64: 2>, scalar_prefetch = 0 : i64, scratch_operands = 2 : i64, tpu.core_type = #tpu.core_type<tc>, window_params = [{transform_indices = @transform_0, window_bounds = array<i64: 1, 16, 16, 4>}, {pipeline_mode = #tpu.pipeline_mode<synchronous>, transform_indices = @transform_1, window_bounds = array<i64: 4, 16>}, {pipeline_mode = #tpu.pipeline_mode<synchronous>, transform_indices = @transform_2, window_bounds = array<i64: 9, 8, 16>}, {pipeline_mode = #tpu.pipeline_mode<synchronous>, transform_indices = @transform_3, window_bounds = array<i64: 4, 8>}, {pipeline_mode = #tpu.pipeline_mode<synchronous>, transform_indices = @transform_4, window_bounds = array<i64: 1, 40>}, {pipeline_mode = #tpu.pipeline_mode<synchronous>, transform_indices = @transform_5, window_bounds = array<i64: 1, 40>}, {transform_indices = @transform_6, window_bounds = array<i64: 1, 256, 32>}]} {
    %cst = arith.constant 0xFF80 : bf16
    %0 = vector.broadcast %cst : bf16 to vector<18x18x4xbf16>
    %c0 = arith.constant 0 : index
    %c0_0 = arith.constant 0 : index
    %c0_1 = arith.constant 0 : index
    %1 = vector.load %arg8[%c0, %c0_0, %c0_1] : memref<18x18x4xbf16, #tpu.memory_space<vmem>>, vector<18x18x4xbf16>
    tpu.vector_store %arg8[%c0, %c0_0, %c0_1], %0 {strides = array<i32>} : memref<18x18x4xbf16, #tpu.memory_space<vmem>>, vector<18x18x4xbf16>,
    %cst_2 = arith.constant 0.000000e+00 : bf16
    %2 = vector.broadcast %cst_2 : bf16 to vector<18x18x8xbf16>
    %c0_3 = arith.constant 0 : index
    %c0_4 = arith.constant 0 : index
    %c0_5 = arith.constant 0 : index
    %3 = vector.load %arg9[%c0_3, %c0_4, %c0_5] : memref<18x18x8xbf16, #tpu.memory_space<vmem>>, vector<18x18x8xbf16>
    tpu.vector_store %arg9[%c0_3, %c0_4, %c0_5], %2 {strides = array<i32>} : memref<18x18x8xbf16, #tpu.memory_space<vmem>>, vector<18x18x8xbf16>,
    %c0_6 = arith.constant 0 : index
    %c0_7 = arith.constant 0 : index
    %c0_8 = arith.constant 0 : index
    %c0_9 = arith.constant 0 : index
    %4 = vector.load %arg1[%c0_6, %c0_7, %c0_8, %c0_9] : memref<1x16x16x4xbf16, #tpu.memory_space<vmem>>, vector<1x16x16x4xbf16>
    %5 = vector.shape_cast %4 : vector<1x16x16x4xbf16> to vector<16x16x4xbf16>
    %c1 = arith.constant 1 : index
    %c1_10 = arith.constant 1 : index
    %c0_11 = arith.constant 0 : index
    %6 = vector.load %arg8[%c1, %c1_10, %c0_11] : memref<18x18x4xbf16, #tpu.memory_space<vmem>>, vector<16x16x4xbf16>
    tpu.vector_store %arg8[%c1, %c1_10, %c0_11], %5 {strides = array<i32>} : memref<18x18x4xbf16, #tpu.memory_space<vmem>>, vector<16x16x4xbf16>,
    %7 = vector.shape_cast %5 : vector<16x16x4xbf16> to vector<256x4xbf16>
    %c0_12 = arith.constant 0 : index
    %c0_13 = arith.constant 0 : index
    %8 = vector.load %arg2[%c0_12, %c0_13] : memref<4x16xbf16, #tpu.memory_space<vmem>>, vector<4x16xbf16>
    %cst_14 = arith.constant dense<0.000000e+00> : vector<256x16xf32>
    %9 = tpu.matmul %7, %8, %cst_14 {dimension_numbers = #tpu.dot_dimension_numbers<[1], [0], [0], [1], [0, 0, 1, 1], [], []>} : vector<256x4xbf16>, vector<4x16xbf16>, vector<256x16xf32> -> vector<256x16xf32>
    %c0_15 = arith.constant 0 : index
    %c0_16 = arith.constant 0 : index
    %10 = vector.load %arg5[%c0_15, %c0_16] : memref<1x40xf32, #tpu.memory_space<vmem>>, vector<1x16xf32>
    %11 = vector.broadcast %10 : vector<1x16xf32> to vector<256x16xf32>
    %12 = arith.mulf %9, %11 : vector<256x16xf32>
    %c0_17 = arith.constant 0 : index
    %c0_18 = arith.constant 0 : index
    %13 = vector.load %arg6[%c0_17, %c0_18] : memref<1x40xf32, #tpu.memory_space<vmem>>, vector<1x16xf32>
    %14 = vector.broadcast %13 : vector<1x16xf32> to vector<256x16xf32>
    %15 = arith.addf %12, %14 : vector<256x16xf32>
    %cst_19 = arith.constant 0.000000e+00 : f32
    %16 = vector.broadcast %cst_19 : f32 to vector<256x16xf32>
    %17 = arith.maximumf %15, %16 : vector<256x16xf32>
    %18 = arith.truncf %17 : vector<256x16xf32> to vector<256x16xbf16>
    %19 = vector.extract_strided_slice %18 {offsets = [0, 0], sizes = [256, 8], strides = [1, 1]} : vector<256x16xbf16> to vector<256x8xbf16>
    %c0_20 = arith.constant 0 : index
    %c0_21 = arith.constant 0 : index
    %c0_22 = arith.constant 0 : index
    %20 = vector.load %arg7[%c0_20, %c0_21, %c0_22] : memref<1x256x32xbf16, #tpu.memory_space<vmem>>, vector<1x256x8xbf16>
    %21 = vector.shape_cast %20 : vector<1x256x8xbf16> to vector<256x8xbf16>
    %22 = vector.shape_cast %19 : vector<256x8xbf16> to vector<1x256x8xbf16>
    tpu.vector_store %arg7[%c0_20, %c0_21, %c0_22], %22 {strides = array<i32>} : memref<1x256x32xbf16, #tpu.memory_space<vmem>>, vector<1x256x8xbf16>,
    %23 = vector.extract_strided_slice %18 {offsets = [0, 8], sizes = [256, 8], strides = [1, 1]} : vector<256x16xbf16> to vector<256x8xbf16>
    %24 = vector.shape_cast %23 : vector<256x8xbf16> to vector<16x16x8xbf16>
    %c1_23 = arith.constant 1 : index
    %c1_24 = arith.constant 1 : index
    %c0_25 = arith.constant 0 : index
    %25 = vector.load %arg9[%c1_23, %c1_24, %c0_25] : memref<18x18x8xbf16, #tpu.memory_space<vmem>>, vector<16x16x8xbf16>
    tpu.vector_store %arg9[%c1_23, %c1_24, %c0_25], %24 {strides = array<i32>} : memref<18x18x8xbf16, #tpu.memory_space<vmem>>, vector<16x16x8xbf16>,
    %cst_26 = arith.constant 0.000000e+00 : f32
    %26 = vector.broadcast %cst_26 : f32 to vector<256x16xf32>
    %c0_27 = arith.constant 0 : index
    %c0_28 = arith.constant 0 : index
    %c0_29 = arith.constant 0 : index
    %27 = vector.load %arg9[%c0_27, %c0_28, %c0_29] : memref<18x18x8xbf16, #tpu.memory_space<vmem>>, vector<16x16x8xbf16>
    %28 = vector.shape_cast %27 : vector<16x16x8xbf16> to vector<256x8xbf16>
    %c0_30 = arith.constant 0 : index
    %c0_31 = arith.constant 0 : index
    %c0_32 = arith.constant 0 : index
    %29 = vector.load %arg3[%c0_30, %c0_31, %c0_32] : memref<9x8x16xbf16, #tpu.memory_space<vmem>>, vector<1x8x16xbf16>
    %30 = vector.shape_cast %29 : vector<1x8x16xbf16> to vector<8x16xbf16>
    %cst_33 = arith.constant dense<0.000000e+00> : vector<256x16xf32>
    %31 = tpu.matmul %28, %30, %cst_33 {dimension_numbers = #tpu.dot_dimension_numbers<[1], [0], [0], [1], [0, 0, 1, 1], [], []>} : vector<256x8xbf16>, vector<8x16xbf16>, vector<256x16xf32> -> vector<256x16xf32>
    %32 = arith.addf %26, %31 : vector<256x16xf32>
    %c0_34 = arith.constant 0 : index
    %c1_35 = arith.constant 1 : index
    %c0_36 = arith.constant 0 : index
    %33 = vector.load %arg9[%c0_34, %c1_35, %c0_36] : memref<18x18x8xbf16, #tpu.memory_space<vmem>>, vector<16x16x8xbf16>
    %34 = vector.shape_cast %33 : vector<16x16x8xbf16> to vector<256x8xbf16>
    %c1_37 = arith.constant 1 : index
    %c0_38 = arith.constant 0 : index
    %c0_39 = arith.constant 0 : index
    %35 = vector.load %arg3[%c1_37, %c0_38, %c0_39] : memref<9x8x16xbf16, #tpu.memory_space<vmem>>, vector<1x8x16xbf16>
    %36 = vector.shape_cast %35 : vector<1x8x16xbf16> to vector<8x16xbf16>
    %cst_40 = arith.constant dense<0.000000e+00> : vector<256x16xf32>
    %37 = tpu.matmul %34, %36, %cst_40 {dimension_numbers = #tpu.dot_dimension_numbers<[1], [0], [0], [1], [0, 0, 1, 1], [], []>} : vector<256x8xbf16>, vector<8x16xbf16>, vector<256x16xf32> -> vector<256x16xf32>
    %38 = arith.addf %32, %37 : vector<256x16xf32>
    %c0_41 = arith.constant 0 : index
    %c2 = arith.constant 2 : index
    %c0_42 = arith.constant 0 : index
    %39 = vector.load %arg9[%c0_41, %c2, %c0_42] : memref<18x18x8xbf16, #tpu.memory_space<vmem>>, vector<16x16x8xbf16>
    %40 = vector.shape_cast %39 : vector<16x16x8xbf16> to vector<256x8xbf16>
    %c2_43 = arith.constant 2 : index
    %c0_44 = arith.constant 0 : index
    %c0_45 = arith.constant 0 : index
    %41 = vector.load %arg3[%c2_43, %c0_44, %c0_45] : memref<9x8x16xbf16, #tpu.memory_space<vmem>>, vector<1x8x16xbf16>
    %42 = vector.shape_cast %41 : vector<1x8x16xbf16> to vector<8x16xbf16>
    %cst_46 = arith.constant dense<0.000000e+00> : vector<256x16xf32>
    %43 = tpu.matmul %40, %42, %cst_46 {dimension_numbers = #tpu.dot_dimension_numbers<[1], [0], [0], [1], [0, 0, 1, 1], [], []>} : vector<256x8xbf16>, vector<8x16xbf16>, vector<256x16xf32> -> vector<256x16xf32>
    %44 = arith.addf %38, %43 : vector<256x16xf32>
    %c1_47 = arith.constant 1 : index
    %c0_48 = arith.constant 0 : index
    %c0_49 = arith.constant 0 : index
    %45 = vector.load %arg9[%c1_47, %c0_48, %c0_49] : memref<18x18x8xbf16, #tpu.memory_space<vmem>>, vector<16x16x8xbf16>
    %46 = vector.shape_cast %45 : vector<16x16x8xbf16> to vector<256x8xbf16>
    %c3 = arith.constant 3 : index
    %c0_50 = arith.constant 0 : index
    %c0_51 = arith.constant 0 : index
    %47 = vector.load %arg3[%c3, %c0_50, %c0_51] : memref<9x8x16xbf16, #tpu.memory_space<vmem>>, vector<1x8x16xbf16>
    %48 = vector.shape_cast %47 : vector<1x8x16xbf16> to vector<8x16xbf16>
    %cst_52 = arith.constant dense<0.000000e+00> : vector<256x16xf32>
    %49 = tpu.matmul %46, %48, %cst_52 {dimension_numbers = #tpu.dot_dimension_numbers<[1], [0], [0], [1], [0, 0, 1, 1], [], []>} : vector<256x8xbf16>, vector<8x16xbf16>, vector<256x16xf32> -> vector<256x16xf32>
    %50 = arith.addf %44, %49 : vector<256x16xf32>
    %c1_53 = arith.constant 1 : index
    %c1_54 = arith.constant 1 : index
    %c0_55 = arith.constant 0 : index
    %51 = vector.load %arg9[%c1_53, %c1_54, %c0_55] : memref<18x18x8xbf16, #tpu.memory_space<vmem>>, vector<16x16x8xbf16>
    %52 = vector.shape_cast %51 : vector<16x16x8xbf16> to vector<256x8xbf16>
    %c4 = arith.constant 4 : index
    %c0_56 = arith.constant 0 : index
    %c0_57 = arith.constant 0 : index
    %53 = vector.load %arg3[%c4, %c0_56, %c0_57] : memref<9x8x16xbf16, #tpu.memory_space<vmem>>, vector<1x8x16xbf16>
    %54 = vector.shape_cast %53 : vector<1x8x16xbf16> to vector<8x16xbf16>
    %cst_58 = arith.constant dense<0.000000e+00> : vector<256x16xf32>
    %55 = tpu.matmul %52, %54, %cst_58 {dimension_numbers = #tpu.dot_dimension_numbers<[1], [0], [0], [1], [0, 0, 1, 1], [], []>} : vector<256x8xbf16>, vector<8x16xbf16>, vector<256x16xf32> -> vector<256x16xf32>
    %56 = arith.addf %50, %55 : vector<256x16xf32>
    %c1_59 = arith.constant 1 : index
    %c2_60 = arith.constant 2 : index
    %c0_61 = arith.constant 0 : index
    %57 = vector.load %arg9[%c1_59, %c2_60, %c0_61] : memref<18x18x8xbf16, #tpu.memory_space<vmem>>, vector<16x16x8xbf16>
    %58 = vector.shape_cast %57 : vector<16x16x8xbf16> to vector<256x8xbf16>
    %c5 = arith.constant 5 : index
    %c0_62 = arith.constant 0 : index
    %c0_63 = arith.constant 0 : index
    %59 = vector.load %arg3[%c5, %c0_62, %c0_63] : memref<9x8x16xbf16, #tpu.memory_space<vmem>>, vector<1x8x16xbf16>
    %60 = vector.shape_cast %59 : vector<1x8x16xbf16> to vector<8x16xbf16>
    %cst_64 = arith.constant dense<0.000000e+00> : vector<256x16xf32>
    %61 = tpu.matmul %58, %60, %cst_64 {dimension_numbers = #tpu.dot_dimension_numbers<[1], [0], [0], [1], [0, 0, 1, 1], [], []>} : vector<256x8xbf16>, vector<8x16xbf16>, vector<256x16xf32> -> vector<256x16xf32>
    %62 = arith.addf %56, %61 : vector<256x16xf32>
    %c2_65 = arith.constant 2 : index
    %c0_66 = arith.constant 0 : index
    %c0_67 = arith.constant 0 : index
    %63 = vector.load %arg9[%c2_65, %c0_66, %c0_67] : memref<18x18x8xbf16, #tpu.memory_space<vmem>>, vector<16x16x8xbf16>
    %64 = vector.shape_cast %63 : vector<16x16x8xbf16> to vector<256x8xbf16>
    %c6 = arith.constant 6 : index
    %c0_68 = arith.constant 0 : index
    %c0_69 = arith.constant 0 : index
    %65 = vector.load %arg3[%c6, %c0_68, %c0_69] : memref<9x8x16xbf16, #tpu.memory_space<vmem>>, vector<1x8x16xbf16>
    %66 = vector.shape_cast %65 : vector<1x8x16xbf16> to vector<8x16xbf16>
    %cst_70 = arith.constant dense<0.000000e+00> : vector<256x16xf32>
    %67 = tpu.matmul %64, %66, %cst_70 {dimension_numbers = #tpu.dot_dimension_numbers<[1], [0], [0], [1], [0, 0, 1, 1], [], []>} : vector<256x8xbf16>, vector<8x16xbf16>, vector<256x16xf32> -> vector<256x16xf32>
    %68 = arith.addf %62, %67 : vector<256x16xf32>
    %c2_71 = arith.constant 2 : index
    %c1_72 = arith.constant 1 : index
    %c0_73 = arith.constant 0 : index
    %69 = vector.load %arg9[%c2_71, %c1_72, %c0_73] : memref<18x18x8xbf16, #tpu.memory_space<vmem>>, vector<16x16x8xbf16>
    %70 = vector.shape_cast %69 : vector<16x16x8xbf16> to vector<256x8xbf16>
    %c7 = arith.constant 7 : index
    %c0_74 = arith.constant 0 : index
    %c0_75 = arith.constant 0 : index
    %71 = vector.load %arg3[%c7, %c0_74, %c0_75] : memref<9x8x16xbf16, #tpu.memory_space<vmem>>, vector<1x8x16xbf16>
    %72 = vector.shape_cast %71 : vector<1x8x16xbf16> to vector<8x16xbf16>
    %cst_76 = arith.constant dense<0.000000e+00> : vector<256x16xf32>
    %73 = tpu.matmul %70, %72, %cst_76 {dimension_numbers = #tpu.dot_dimension_numbers<[1], [0], [0], [1], [0, 0, 1, 1], [], []>} : vector<256x8xbf16>, vector<8x16xbf16>, vector<256x16xf32> -> vector<256x16xf32>
    %74 = arith.addf %68, %73 : vector<256x16xf32>
    %c2_77 = arith.constant 2 : index
    %c2_78 = arith.constant 2 : index
    %c0_79 = arith.constant 0 : index
    %75 = vector.load %arg9[%c2_77, %c2_78, %c0_79] : memref<18x18x8xbf16, #tpu.memory_space<vmem>>, vector<16x16x8xbf16>
    %76 = vector.shape_cast %75 : vector<16x16x8xbf16> to vector<256x8xbf16>
    %c8 = arith.constant 8 : index
    %c0_80 = arith.constant 0 : index
    %c0_81 = arith.constant 0 : index
    %77 = vector.load %arg3[%c8, %c0_80, %c0_81] : memref<9x8x16xbf16, #tpu.memory_space<vmem>>, vector<1x8x16xbf16>
    %78 = vector.shape_cast %77 : vector<1x8x16xbf16> to vector<8x16xbf16>
    %cst_82 = arith.constant dense<0.000000e+00> : vector<256x16xf32>
    %79 = tpu.matmul %76, %78, %cst_82 {dimension_numbers = #tpu.dot_dimension_numbers<[1], [0], [0], [1], [0, 0, 1, 1], [], []>} : vector<256x8xbf16>, vector<8x16xbf16>, vector<256x16xf32> -> vector<256x16xf32>
    %80 = arith.addf %74, %79 : vector<256x16xf32>
    %c0_83 = arith.constant 0 : index
    %c16 = arith.constant 16 : index
    %81 = vector.load %arg5[%c0_83, %c16] : memref<1x40xf32, #tpu.memory_space<vmem>>, vector<1x16xf32>
    %82 = vector.broadcast %81 : vector<1x16xf32> to vector<256x16xf32>
    %83 = arith.mulf %80, %82 : vector<256x16xf32>
    %c0_84 = arith.constant 0 : index
    %c16_85 = arith.constant 16 : index
    %84 = vector.load %arg6[%c0_84, %c16_85] : memref<1x40xf32, #tpu.memory_space<vmem>>, vector<1x16xf32>
    %85 = vector.broadcast %84 : vector<1x16xf32> to vector<256x16xf32>
    %86 = arith.addf %83, %85 : vector<256x16xf32>
    %cst_86 = arith.constant 0.000000e+00 : f32
    %87 = vector.broadcast %cst_86 : f32 to vector<256x16xf32>
    %88 = arith.maximumf %86, %87 : vector<256x16xf32>
    %89 = arith.truncf %88 : vector<256x16xf32> to vector<256x16xbf16>
    %c0_87 = arith.constant 0 : index
    %c0_88 = arith.constant 0 : index
    %c8_89 = arith.constant 8 : index
    %90 = vector.load %arg7[%c0_87, %c0_88, %c8_89] : memref<1x256x32xbf16, #tpu.memory_space<vmem>>, vector<1x256x16xbf16>
    %91 = vector.shape_cast %90 : vector<1x256x16xbf16> to vector<256x16xbf16>
    %92 = vector.shape_cast %89 : vector<256x16xbf16> to vector<1x256x16xbf16>
    tpu.vector_store %arg7[%c0_87, %c0_88, %c8_89], %92 {strides = array<i32>} : memref<1x256x32xbf16, #tpu.memory_space<vmem>>, vector<1x256x16xbf16>,
    %c1_90 = arith.constant 1 : index
    %c1_91 = arith.constant 1 : index
    %c0_92 = arith.constant 0 : index
    %93 = vector.load %arg8[%c1_90, %c1_91, %c0_92] : memref<18x18x4xbf16, #tpu.memory_space<vmem>>, vector<16x16x4xbf16>
    %c0_93 = arith.constant 0 : index
    %c0_94 = arith.constant 0 : index
    %c0_95 = arith.constant 0 : index
    %94 = vector.load %arg8[%c0_93, %c0_94, %c0_95] : memref<18x18x4xbf16, #tpu.memory_space<vmem>>, vector<16x16x4xbf16>
    %95 = arith.maximumf %93, %94 : vector<16x16x4xbf16>
    %c0_96 = arith.constant 0 : index
    %c1_97 = arith.constant 1 : index
    %c0_98 = arith.constant 0 : index
    %96 = vector.load %arg8[%c0_96, %c1_97, %c0_98] : memref<18x18x4xbf16, #tpu.memory_space<vmem>>, vector<16x16x4xbf16>
    %97 = arith.maximumf %95, %96 : vector<16x16x4xbf16>
    %c0_99 = arith.constant 0 : index
    %c2_100 = arith.constant 2 : index
    %c0_101 = arith.constant 0 : index
    %98 = vector.load %arg8[%c0_99, %c2_100, %c0_101] : memref<18x18x4xbf16, #tpu.memory_space<vmem>>, vector<16x16x4xbf16>
    %99 = arith.maximumf %97, %98 : vector<16x16x4xbf16>
    %c1_102 = arith.constant 1 : index
    %c0_103 = arith.constant 0 : index
    %c0_104 = arith.constant 0 : index
    %100 = vector.load %arg8[%c1_102, %c0_103, %c0_104] : memref<18x18x4xbf16, #tpu.memory_space<vmem>>, vector<16x16x4xbf16>
    %101 = arith.maximumf %99, %100 : vector<16x16x4xbf16>
    %c1_105 = arith.constant 1 : index
    %c2_106 = arith.constant 2 : index
    %c0_107 = arith.constant 0 : index
    %102 = vector.load %arg8[%c1_105, %c2_106, %c0_107] : memref<18x18x4xbf16, #tpu.memory_space<vmem>>, vector<16x16x4xbf16>
    %103 = arith.maximumf %101, %102 : vector<16x16x4xbf16>
    %c2_108 = arith.constant 2 : index
    %c0_109 = arith.constant 0 : index
    %c0_110 = arith.constant 0 : index
    %104 = vector.load %arg8[%c2_108, %c0_109, %c0_110] : memref<18x18x4xbf16, #tpu.memory_space<vmem>>, vector<16x16x4xbf16>
    %105 = arith.maximumf %103, %104 : vector<16x16x4xbf16>
    %c2_111 = arith.constant 2 : index
    %c1_112 = arith.constant 1 : index
    %c0_113 = arith.constant 0 : index
    %106 = vector.load %arg8[%c2_111, %c1_112, %c0_113] : memref<18x18x4xbf16, #tpu.memory_space<vmem>>, vector<16x16x4xbf16>
    %107 = arith.maximumf %105, %106 : vector<16x16x4xbf16>
    %c2_114 = arith.constant 2 : index
    %c2_115 = arith.constant 2 : index
    %c0_116 = arith.constant 0 : index
    %108 = vector.load %arg8[%c2_114, %c2_115, %c0_116] : memref<18x18x4xbf16, #tpu.memory_space<vmem>>, vector<16x16x4xbf16>
    %109 = arith.maximumf %107, %108 : vector<16x16x4xbf16>
    %110 = vector.shape_cast %109 : vector<16x16x4xbf16> to vector<256x4xbf16>
    %c0_117 = arith.constant 0 : index
    %c0_118 = arith.constant 0 : index
    %111 = vector.load %arg4[%c0_117, %c0_118] : memref<4x8xbf16, #tpu.memory_space<vmem>>, vector<4x8xbf16>
    %cst_119 = arith.constant dense<0.000000e+00> : vector<256x8xf32>
    %112 = tpu.matmul %110, %111, %cst_119 {dimension_numbers = #tpu.dot_dimension_numbers<[1], [0], [0], [1], [0, 0, 1, 1], [], []>} : vector<256x4xbf16>, vector<4x8xbf16>, vector<256x8xf32> -> vector<256x8xf32>
    %c0_120 = arith.constant 0 : index
    %c32 = arith.constant 32 : index
    %113 = vector.load %arg5[%c0_120, %c32] : memref<1x40xf32, #tpu.memory_space<vmem>>, vector<1x8xf32>
    %114 = vector.broadcast %113 : vector<1x8xf32> to vector<256x8xf32>
    %115 = arith.mulf %112, %114 : vector<256x8xf32>
    %c0_121 = arith.constant 0 : index
    %c32_122 = arith.constant 32 : index
    %116 = vector.load %arg6[%c0_121, %c32_122] : memref<1x40xf32, #tpu.memory_space<vmem>>, vector<1x8xf32>
    %117 = vector.broadcast %116 : vector<1x8xf32> to vector<256x8xf32>
    %118 = arith.addf %115, %117 : vector<256x8xf32>
    %cst_123 = arith.constant 0.000000e+00 : f32
    %119 = vector.broadcast %cst_123 : f32 to vector<256x8xf32>
    %120 = arith.maximumf %118, %119 : vector<256x8xf32>
    %121 = arith.truncf %120 : vector<256x8xf32> to vector<256x8xbf16>
    %c0_124 = arith.constant 0 : index
    %c0_125 = arith.constant 0 : index
    %c24 = arith.constant 24 : index
    %122 = vector.load %arg7[%c0_124, %c0_125, %c24] : memref<1x256x32xbf16, #tpu.memory_space<vmem>>, vector<1x256x8xbf16>
    %123 = vector.shape_cast %122 : vector<1x256x8xbf16> to vector<256x8xbf16>
    %124 = vector.shape_cast %121 : vector<256x8xbf16> to vector<1x256x8xbf16>
    tpu.vector_store %arg7[%c0_124, %c0_125, %c24], %124 {strides = array<i32>} : memref<1x256x32xbf16, #tpu.memory_space<vmem>>, vector<1x256x8xbf16>,
    return
  }
  func.func @transform_0(%arg0: i32) -> (i32, i32, i32, i32) {
    %c0_i32 = arith.constant 0 : i32
    %c0_i32_0 = arith.constant 0 : i32
    %c0_i32_1 = arith.constant 0 : i32
    %c0_i32_2 = arith.constant 0 : i32
    return %arg0, %c0_i32, %c0_i32_0, %c0_i32_1 : i32, i32, i32, i32
  }
  func.func @transform_1(%arg0: i32) -> (i32, i32) {
    %c0_i32 = arith.constant 0 : i32
    %c0_i32_0 = arith.constant 0 : i32
    %c0_i32_1 = arith.constant 0 : i32
    return %c0_i32, %c0_i32_0 : i32, i32
  }
  func.func @transform_2(%arg0: i32) -> (i32, i32, i32) {
    %c0_i32 = arith.constant 0 : i32
    %c0_i32_0 = arith.constant 0 : i32
    %c0_i32_1 = arith.constant 0 : i32
    %c0_i32_2 = arith.constant 0 : i32
    return %c0_i32, %c0_i32_0, %c0_i32_1 : i32, i32, i32
  }
  func.func @transform_3(%arg0: i32) -> (i32, i32) {
    %c0_i32 = arith.constant 0 : i32
    %c0_i32_0 = arith.constant 0 : i32
    %c0_i32_1 = arith.constant 0 : i32
    return %c0_i32, %c0_i32_0 : i32, i32
  }
  func.func @transform_4(%arg0: i32) -> (i32, i32) {
    %c0_i32 = arith.constant 0 : i32
    %c0_i32_0 = arith.constant 0 : i32
    %c0_i32_1 = arith.constant 0 : i32
    return %c0_i32, %c0_i32_0 : i32, i32
  }
  func.func @transform_5(%arg0: i32) -> (i32, i32) {
    %c0_i32 = arith.constant 0 : i32
    %c0_i32_0 = arith.constant 0 : i32
    %c0_i32_1 = arith.constant 0 : i32
    return %c0_i32, %c0_i32_0 : i32, i32
  }
  func.func @transform_6(%arg0: i32) -> (i32, i32, i32) {
    %c0_i32 = arith.constant 0 : i32
    %c0_i32_0 = arith.constant 0 : i32
    %c0_i32_1 = arith.constant 0 : i32
    return %arg0, %c0_i32, %c0_i32_0 : i32, i32, i32
  }
}

</mosaic_0001>

<llo_original>
// kernel: inception_forward.1
$region0: #{inception_forward.1}
  #allocation0 [shape = 'u32[]', space=smem, size = 0x4, offset = 0x4, fixed_abs, tag = 'smem constant byte address 0x4 - core index']
  #allocation1 [shape = 'u32[144,128]{1,0:T(1,128)}', space=vmem, size = 0x12000, scoped, tag = 'internal scratch']
  #allocation2 [shape = 'bf16[18,18,4]{2,1,0:T(8,128)(2,1)}', space=vmem, size = 0x1b000, scoped, tag = 'scratch operand']
  #allocation3 [shape = 'bf16[18,18,8]{2,1,0:T(8,128)(2,1)}', space=vmem, size = 0x1b000, scoped, tag = 'scratch operand']
  %s0 = inlined_call_operand.vmem [shape: bf16[2,16,16,4], index: 0, kind: input, shape index: {}]
  %s1 = inlined_call_operand.vmem [shape: bf16[4,16], index: 1, kind: input, shape index: {}]
  %s2 = inlined_call_operand.vmem [shape: bf16[9,8,16], index: 2, kind: input, shape index: {}]
  %s3 = inlined_call_operand.vmem [shape: bf16[4,8], index: 3, kind: input, shape index: {}]
  %s4 = inlined_call_operand.vmem [shape: f32[1,40], index: 4, kind: input, shape index: {}]
  %s5 = inlined_call_operand.vmem [shape: f32[1,40], index: 5, kind: input, shape index: {}]
  %s6 = inlined_call_operand.vmem [shape: bf16[2,256,32], index: 6, kind: output, shape index: {}]
  %s7 = sld [smem:[#allocation0]]
  $region57: #{inception_forward.1} parent=0
    _
  %s9 = ssub.s32 1, %s7
  %s10 = scalar_select 0, %s9, %s7
  loop: start=0, step=1, limit=4
  $region2: #{inception_forward.1} parent=0 // loop_pre_header
    _
  $region3: #{inception_forward.1} parent=0 // loop_header
    %s12 = sphi 0, %s16
    %p13 = scmp.ge.s32.totalorder %s12, 4
    %s22 = sphi 0, %s24
    %s25 = sphi 0, %s22
    %s26 = sphi 0, %s25
    %s42 = sphi 0, %s26
    %s46 = sphi 0, %s46
    %s48 = sphi 0, %s46
    %s49 = sphi 0, %s48
    %s63 = sphi 0, %s49
    %s67 = sphi 0, %s67
    %s69 = sphi 0, %s67
    %s70 = sphi 0, %s69
    %s84 = sphi 0, %s70
    %s88 = sphi 0, %s88
    %s90 = sphi 0, %s88
    %s91 = sphi 0, %s90
    %s105 = sphi 0, %s91
    %s109 = sphi 0, %s109
    %s111 = sphi 0, %s109
    %s112 = sphi 0, %s111
    %s126 = sphi 0, %s112
    %s130 = sphi 0, %s130
    %s132 = sphi 0, %s130
    %s133 = sphi 0, %s132
    %s147 = sphi 0, %s133
    %s153 = sphi 0, %s155
    %s156 = sphi 0, %s153
    %s157 = sphi 0, %s156
    %s173 = sphi 0, %s157
  $region4: #{inception_forward.1} parent=0 // loop_header_branch
    %15 = sbr.rel (%p13) target = $region8
  $region5: #{inception_forward.1} parent=0 // loop_body
    %s17 = ssub.s32 %s12, 1
    %s18 = ssub.s32 %s12, 2
    %s19 = sadd.s32 %s12, 1
    %s20 = ssub.s32 %s12, %s19
    %p21 = scmp.eq.s32.totalorder %s20, 0
    %s23 = sadd.s32 %s22, 1
    %s24 = scalar_select %p21, %s22, %s23
    %p27 = pneg %p21
    %p28 = scmp.eq.s32.totalorder %s12, 1
    %p29 = por %p27, %p28
    %p30 = scmp.ne.s32.totalorder %s22, %s25
    %p31 = scmp.eq.s32.totalorder %s12, 0
    %p32 = por %p30, %p31
    %p33 = scmp.ne.s32.totalorder %s22, %s25
    %p34 = scmp.eq.s32.totalorder %s17, 1
    %p35 = por %p33, %p34
    %p36 = scmp.ne.s32.totalorder %s25, %s26
    %p37 = scmp.eq.s32.totalorder %s17, 0
    %p38 = por %p36, %p37
    %p39 = scmp.ne.s32.totalorder %s25, %s26
    %p40 = scmp.eq.s32.totalorder %s18, 1
    %p41 = por %p39, %p40
    %p43 = scmp.ne.s32.totalorder %s26, %s42
    %p44 = scmp.eq.s32.totalorder %s18, 0
    %p45 = por %p43, %p44
    %s47 = sadd.s32 %s46, 1
    %p50 = scmp.eq.s32.totalorder %s12, 1
    %p51 = scmp.ne.s32.totalorder %s46, %s48
    %p52 = scmp.eq.s32.totalorder %s12, 0
    %p53 = por %p51, %p52
    %p54 = scmp.ne.s32.totalorder %s46, %s48
    %p55 = scmp.eq.s32.totalorder %s17, 1
    %p56 = por %p54, %p55
    %p57 = scmp.ne.s32.totalorder %s48, %s49
    %p58 = scmp.eq.s32.totalorder %s17, 0
    %p59 = por %p57, %p58
    %p60 = scmp.ne.s32.totalorder %s48, %s49
    %p61 = scmp.eq.s32.totalorder %s18, 1
    %p62 = por %p60, %p61
    %p64 = scmp.ne.s32.totalorder %s49, %s63
    %p65 = scmp.eq.s32.totalorder %s18, 0
    %p66 = por %p64, %p65
    %s68 = sadd.s32 %s67, 1
    %p71 = scmp.eq.s32.totalorder %s12, 1
    %p72 = scmp.ne.s32.totalorder %s67, %s69
    %p73 = scmp.eq.s32.totalorder %s12, 0
    %p74 = por %p72, %p73
    %p75 = scmp.ne.s32.totalorder %s67, %s69
    %p76 = scmp.eq.s32.totalorder %s17, 1
    %p77 = por %p75, %p76
    %p78 = scmp.ne.s32.totalorder %s69, %s70
    %p79 = scmp.eq.s32.totalorder %s17, 0
    %p80 = por %p78, %p79
    %p81 = scmp.ne.s32.totalorder %s69, %s70
    %p82 = scmp.eq.s32.totalorder %s18, 1
    %p83 = por %p81, %p82
    %p85 = scmp.ne.s32.totalorder %s70, %s84
    %p86 = scmp.eq.s32.totalorder %s18, 0
    %p87 = por %p85, %p86
    %s89 = sadd.s32 %s88, 1
    %p92 = scmp.eq.s32.totalorder %s12, 1
    %p93 = scmp.ne.s32.totalorder %s88, %s90
    %p94 = scmp.eq.s32.totalorder %s12, 0
    %p95 = por %p93, %p94
    %p96 = scmp.ne.s32.totalorder %s88, %s90
    %p97 = scmp.eq.s32.totalorder %s17, 1
    %p98 = por %p96, %p97
    %p99 = scmp.ne.s32.totalorder %s90, %s91
    %p100 = scmp.eq.s32.totalorder %s17, 0
    %p101 = por %p99, %p100
    %p102 = scmp.ne.s32.totalorder %s90, %s91
    %p103 = scmp.eq.s32.totalorder %s18, 1
    %p104 = por %p102, %p103
    %p106 = scmp.ne.s32.totalorder %s91, %s105
    %p107 = scmp.eq.s32.totalorder %s18, 0
    %p108 = por %p106, %p107
    %s110 = sadd.s32 %s109, 1
    %p113 = scmp.eq.s32.totalorder %s12, 1
    %p114 = scmp.ne.s32.totalorder %s109, %s111
    %p115 = scmp.eq.s32.totalorder %s12, 0
    %p116 = por %p114, %p115
    %p117 = scmp.ne.s32.totalorder %s109, %s111
    %p118 = scmp.eq.s32.totalorder %s17, 1
    %p119 = por %p117, %p118
    %p120 = scmp.ne.s32.totalorder %s111, %s112
    %p121 = scmp.eq.s32.totalorder %s17, 0
    %p122 = por %p120, %p121
    %p123 = scmp.ne.s32.totalorder %s111, %s112
    %p124 = scmp.eq.s32.totalorder %s18, 1
    %p125 = por %p123, %p124
    %p127 = scmp.ne.s32.totalorder %s112, %s126
    %p128 = scmp.eq.s32.totalorder %s18, 0
    %p129 = por %p127, %p128
    %s131 = sadd.s32 %s130, 1
    %p134 = scmp.eq.s32.totalorder %s12, 1
    %p135 = scmp.ne.s32.totalorder %s130, %s132
    %p136 = scmp.eq.s32.totalorder %s12, 0
    %p137 = por %p135, %p136
    %p138 = scmp.ne.s32.totalorder %s130, %s132
    %p139 = scmp.eq.s32.totalorder %s17, 1
    %p140 = por %p138, %p139
    %p141 = scmp.ne.s32.totalorder %s132, %s133
    %p142 = scmp.eq.s32.totalorder %s17, 0
    %p143 = por %p141, %p142
    %p144 = scmp.ne.s32.totalorder %s132, %s133
    %p145 = scmp.eq.s32.totalorder %s18, 1
    %p146 = por %p144, %p145
    %p148 = scmp.ne.s32.totalorder %s133, %s147
    %p149 = scmp.eq.s32.totalorder %s18, 0
    %p150 = por %p148, %p149
    %s151 = ssub.s32 %s12, %s19
    %p152 = scmp.eq.s32.totalorder %s151, 0
    %s154 = sadd.s32 %s153, 1
    %s155 = scalar_select %p152, %s153, %s154
    %p158 = pneg %p152
    %p159 = scmp.eq.s32.totalorder %s12, 1
    %p160 = por %p158, %p159
    %p161 = scmp.ne.s32.totalorder %s153, %s156
    %p162 = scmp.eq.s32.totalorder %s12, 0
    %p163 = por %p161, %p162
    %p164 = scmp.ne.s32.totalorder %s153, %s156
    %p165 = scmp.eq.s32.totalorder %s17, 1
    %p166 = por %p164, %p165
    %p167 = scmp.ne.s32.totalorder %s156, %s157
    %p168 = scmp.eq.s32.totalorder %s17, 0
    %p169 = por %p167, %p168
    %p170 = scmp.ne.s32.totalorder %s156, %s157
    %p171 = scmp.eq.s32.totalorder %s18, 1
    %p172 = por %p170, %p171
    %p174 = scmp.ne.s32.totalorder %s157, %s173
    %p175 = scmp.eq.s32.totalorder %s18, 0
    %p176 = por %p174, %p175
    %p177 = scmp.le.s32.totalorder 1, %s12
    %p178 = scmp.lt.s32.totalorder %s12, 3
    %p179 = pnand %p177, %p178
    %p180 = pneg %p179
    // Predicated region
    $region9: #{inception_forward.1} parent=5 // pred_check
      _
    $region10: #{inception_forward.1} parent=5 // pred_check_branch
      %182 = sbr.rel (%p179) target = $region12
    $region11: #{inception_forward.1} parent=5 // pred_region
      %s183 = ssub.s32 %s12, 1
      // Predicated region
      $region13: #{inception_forward.1} parent=11 // pred_check
        %p184 = pneg %p59
      $region14: #{inception_forward.1} parent=11 // pred_check_branch
        %186 = sbr.rel (%p184) target = $region16
      $region15: #{inception_forward.1} parent=11 // pred_region
        _
      $region16: #{inception_forward.1} parent=11 // pred_fallthru
        _
      // Predicated region
      $region17: #{inception_forward.1} parent=11 // pred_check
        %p187 = pneg %p80
      $region18: #{inception_forward.1} parent=11 // pred_check_branch
        %189 = sbr.rel (%p187) target = $region20
      $region19: #{inception_forward.1} parent=11 // pred_region
        _
      $region20: #{inception_forward.1} parent=11 // pred_fallthru
        _
      // Predicated region
      $region21: #{inception_forward.1} parent=11 // pred_check
        %p190 = pneg %p101
      $region22: #{inception_forward.1} parent=11 // pred_check_branch
        %192 = sbr.rel (%p190) target = $region24
      $region23: #{inception_forward.1} parent=11 // pred_region
        _
      $region24: #{inception_forward.1} parent=11 // pred_fallthru
        _
      // Predicated region
      $region25: #{inception_forward.1} parent=11 // pred_check
        %p193 = pneg %p122
      $region26: #{inception_forward.1} parent=11 // pred_check_branch
        %195 = sbr.rel (%p193) target = $region28
      $region27: #{inception_forward.1} parent=11 // pred_region
        _
      $region28: #{inception_forward.1} parent=11 // pred_fallthru
        _
      // Predicated region
      $region29: #{inception_forward.1} parent=11 // pred_check
        %p196 = pneg %p143
      $region30: #{inception_forward.1} parent=11 // pred_check_branch
        %198 = sbr.rel (%p196) target = $region32
      $region31: #{inception_forward.1} parent=11 // pred_region
        _
      $region32: #{inception_forward.1} parent=11 // pred_fallthru
        _
    $region12: #{inception_forward.1} parent=5 // pred_fallthru
      _
    %p199 = scmp.lt.s32.totalorder %s12, 2
    // Predicated region
    $region33: #{inception_forward.1} parent=5 // pred_check
      %p200 = pneg %p199
    $region34: #{inception_forward.1} parent=5 // pred_check_branch
      %202 = sbr.rel (%p200) target = $region36
    $region35: #{inception_forward.1} parent=5 // pred_region
      // Predicated region
      $region37: #{inception_forward.1} parent=35 // pred_check
        %p203 = pneg %p32
      $region38: #{inception_forward.1} parent=35 // pred_check_branch
        %205 = sbr.rel (%p203) target = $region40
      $region39: #{inception_forward.1} parent=35 // pred_region
        %p206 = scmp.lt.s32.totalorder %s12, 1
        %s207 = scalar_select %p206, %s12, 1
        %s208 = smul.addr %s207, 32
        %s209 = smul.addr %s208, 4
        %s210 = scalar_lea.vmem %s0, %s209
      $region40: #{inception_forward.1} parent=35 // pred_fallthru
        _
    $region36: #{inception_forward.1} parent=5 // pred_fallthru
      _
    %p211 = scmp.le.s32.totalorder 1, %s12
    %p212 = scmp.lt.s32.totalorder %s12, 3
    %p213 = pnand %p211, %p212
    %p214 = pneg %p213
    // Predicated region
    $region41: #{inception_forward.1} parent=5 // pred_check
      _
    $region42: #{inception_forward.1} parent=5 // pred_check_branch
      %216 = sbr.rel (%p213) target = $region44
    $region43: #{inception_forward.1} parent=5 // pred_region
      %s217 = ssub.s32 %s12, 1
      %p218 = scmp.lt.s32.totalorder %s17, 1
      %s219 = scalar_select %p218, %s17, 1
      %s220 = smul.addr %s219, 32
      %s221 = smul.addr %s220, 4
      %s222 = scalar_lea.vmem %s0, %s221
      %p223 = pneg %p38
      %p224 = pneg %p35
      %p225 = pneg %p59
      %p226 = pneg %p56
      %p227 = pneg %p80
      %p228 = pneg %p77
      %p229 = pneg %p101
      %p230 = pneg %p98
      %p231 = pneg %p122
      %p232 = pneg %p119
      %p233 = pneg %p143
      %p234 = pneg %p140
      %p235 = pneg %p169
      %p236 = pneg %p166
      %p237 = scmp.lt.s32.totalorder %s17, 1
      %s238 = scalar_select %p237, %s17, 1
      %s239 = smul.addr %s238, 32
      %s240 = smul.addr %s239, 4
      %s241 = scalar_lea.vmem %s6, %s240
      %p242 = scmp.lt.s32.totalorder %s17, 1
      %s243 = scalar_select %p242, %s17, 1
      %s244 = smul.addr %s243, 32
      %s245 = smul.addr %s244, 4
      %s246 = scalar_lea.vmem %s0, %s245
      %p247 = scmp.lt.s32.totalorder %s17, 1
      %s248 = scalar_select %p247, %s17, 1
      %s249 = smul.addr %s248, 32
      %s250 = smul.addr %s249, 4
      %s251 = scalar_lea.vmem %s6, %s250
      %vm254 = vcmask 27648
      %255 = vst.msk [vmem:[#allocation2] sm:$0xf] %vm254, 4286644096
      %256 = vst.msk [vmem:[#allocation2 + $0x4] sm:$0xf] %vm254, 4286644096
      %vm257 = vcmask 24576
      %258 = vst.msk [vmem:[#allocation2 + $0x8] sm:$0x1] %vm257, 4286644096
      %259 = vst.msk [vmem:[#allocation2 + $0xc] sm:$0xf] %vm254, 4286644096
      %260 = vst.msk [vmem:[#allocation2 + $0x10] sm:$0xf] %vm254, 4286644096
      %261 = vst.msk [vmem:[#allocation2 + $0x14] sm:$0x1] %vm257, 4286644096
      %262 = vst.msk [vmem:[#allocation2 + $0x18] sm:$0xf] %vm254, 4286644096
      %263 = vst.msk [vmem:[#allocation2 + $0x1c] sm:$0xf] %vm254, 4286644096
      %264 = vst.msk [vmem:[#allocation2 + $0x20] sm:$0x1] %vm257, 4286644096
      %265 = vst.msk [vmem:[#allocation2 + $0x24] sm:$0xf] %vm254, 4286644096
      %266 = vst.msk [vmem:[#allocation2 + $0x28] sm:$0xf] %vm254, 4286644096
      %267 = vst.msk [vmem:[#allocation2 + $0x2c] sm:$0x1] %vm257, 4286644096
      %268 = vst.msk [vmem:[#allocation2 + $0x30] sm:$0xf] %vm254, 4286644096
      %269 = vst.msk [vmem:[#allocation2 + $0x34] sm:$0xf] %vm254, 4286644096
      %270 = vst.msk [vmem:[#allocation2 + $0x38] sm:$0x1] %vm257, 4286644096
      %271 = vst.msk [vmem:[#allocation2 + $0x3c] sm:$0xf] %vm254, 4286644096
      %272 = vst.msk [vmem:[#allocation2 + $0x40] sm:$0xf] %vm254, 4286644096
      %273 = vst.msk [vmem:[#allocation2 + $0x44] sm:$0x1] %vm257, 4286644096
      %274 = vst.msk [vmem:[#allocation2 + $0x48] sm:$0xf] %vm254, 4286644096
      %275 = vst.msk [vmem:[#allocation2 + $0x4c] sm:$0xf] %vm254, 4286644096
      %276 = vst.msk [vmem:[#allocation2 + $0x50] sm:$0x1] %vm257, 4286644096
      %277 = vst.msk [vmem:[#allocation2 + $0x54] sm:$0xf] %vm254, 4286644096
      %278 = vst.msk [vmem:[#allocation2 + $0x58] sm:$0xf] %vm254, 4286644096
      %279 = vst.msk [vmem:[#allocation2 + $0x5c] sm:$0x1] %vm257, 4286644096
      %280 = vst.msk [vmem:[#allocation2 + $0x60] sm:$0xf] %vm254, 4286644096
      %281 = vst.msk [vmem:[#allocation2 + $0x64] sm:$0xf] %vm254, 4286644096
      %282 = vst.msk [vmem:[#allocation2 + $0x68] sm:$0x1] %vm257, 4286644096
      %283 = vst.msk [vmem:[#allocation2 + $0x6c] sm:$0xf] %vm254, 4286644096
      %284 = vst.msk [vmem:[#allocation2 + $0x70] sm:$0xf] %vm254, 4286644096
      %285 = vst.msk [vmem:[#allocation2 + $0x74] sm:$0x1] %vm257, 4286644096
      %286 = vst.msk [vmem:[#allocation2 + $0x78] sm:$0xf] %vm254, 4286644096
      %287 = vst.msk [vmem:[#allocation2 + $0x7c] sm:$0xf] %vm254, 4286644096
      %288 = vst.msk [vmem:[#allocation2 + $0x80] sm:$0x1] %vm257, 4286644096
      %289 = vst.msk [vmem:[#allocation2 + $0x84] sm:$0xf] %vm254, 4286644096
      %290 = vst.msk [vmem:[#allocation2 + $0x88] sm:$0xf] %vm254, 4286644096
      %291 = vst.msk [vmem:[#allocation2 + $0x8c] sm:$0x1] %vm257, 4286644096
      %292 = vst.msk [vmem:[#allocation2 + $0x90] sm:$0xf] %vm254, 4286644096
      %293 = vst.msk [vmem:[#allocation2 + $0x94] sm:$0xf] %vm254, 4286644096
      %294 = vst.msk [vmem:[#allocation2 + $0x98] sm:$0x1] %vm257, 4286644096
      %295 = vst.msk [vmem:[#allocation2 + $0x9c] sm:$0xf] %vm254, 4286644096
      %296 = vst.msk [vmem:[#allocation2 + $0xa0] sm:$0xf] %vm254, 4286644096
      %297 = vst.msk [vmem:[#allocation2 + $0xa4] sm:$0x1] %vm257, 4286644096
      %298 = vst.msk [vmem:[#allocation2 + $0xa8] sm:$0xf] %vm254, 4286644096
      %299 = vst.msk [vmem:[#allocation2 + $0xac] sm:$0xf] %vm254, 4286644096
      %300 = vst.msk [vmem:[#allocation2 + $0xb0] sm:$0x1] %vm257, 4286644096
      %301 = vst.msk [vmem:[#allocation2 + $0xb4] sm:$0xf] %vm254, 4286644096
      %302 = vst.msk [vmem:[#allocation2 + $0xb8] sm:$0xf] %vm254, 4286644096
      %303 = vst.msk [vmem:[#allocation2 + $0xbc] sm:$0x1] %vm257, 4286644096
      %304 = vst.msk [vmem:[#allocation2 + $0xc0] sm:$0xf] %vm254, 4286644096
      %305 = vst.msk [vmem:[#allocation2 + $0xc4] sm:$0xf] %vm254, 4286644096
      %306 = vst.msk [vmem:[#allocation2 + $0xc8] sm:$0x1] %vm257, 4286644096
      %307 = vst.msk [vmem:[#allocation2 + $0xcc] sm:$0xf] %vm254, 4286644096
      %308 = vst.msk [vmem:[#allocation2 + $0xd0] sm:$0xf] %vm254, 4286644096
      %309 = vst.msk [vmem:[#allocation2 + $0xd4] sm:$0x1] %vm257, 4286644096
      %vm310 = vcmask 60416
      %311 = vst.msk [vmem:[#allocation3] sm:$0xf] %vm310, 0
      %312 = vst.msk [vmem:[#allocation3 + $0x4] sm:$0xf] %vm310, 0
      %vm313 = vcmask 57344
      %314 = vst.msk [vmem:[#allocation3 + $0x8] sm:$0x1] %vm313, 0
      %315 = vst.msk [vmem:[#allocation3 + $0xc] sm:$0xf] %vm310, 0
      %316 = vst.msk [vmem:[#allocation3 + $0x10] sm:$0xf] %vm310, 0
      %317 = vst.msk [vmem:[#allocation3 + $0x14] sm:$0x1] %vm313, 0
      %318 = vst.msk [vmem:[#allocation3 + $0x18] sm:$0xf] %vm310, 0
      %319 = vst.msk [vmem:[#allocation3 + $0x1c] sm:$0xf] %vm310, 0
      %320 = vst.msk [vmem:[#allocation3 + $0x20] sm:$0x1] %vm313, 0
      %321 = vst.msk [vmem:[#allocation3 + $0x24] sm:$0xf] %vm310, 0
      %322 = vst.msk [vmem:[#allocation3 + $0x28] sm:$0xf] %vm310, 0
      %323 = vst.msk [vmem:[#allocation3 + $0x2c] sm:$0x1] %vm313, 0
      %324 = vst.msk [vmem:[#allocation3 + $0x30] sm:$0xf] %vm310, 0
      %325 = vst.msk [vmem:[#allocation3 + $0x34] sm:$0xf] %vm310, 0
      %326 = vst.msk [vmem:[#allocation3 + $0x38] sm:$0x1] %vm313, 0
      %327 = vst.msk [vmem:[#allocation3 + $0x3c] sm:$0xf] %vm310, 0
      %328 = vst.msk [vmem:[#allocation3 + $0x40] sm:$0xf] %vm310, 0
      %329 = vst.msk [vmem:[#allocation3 + $0x44] sm:$0x1] %vm313, 0
      %330 = vst.msk [vmem:[#allocation3 + $0x48] sm:$0xf] %vm310, 0
      %331 = vst.msk [vmem:[#allocation3 + $0x4c] sm:$0xf] %vm310, 0
      %332 = vst.msk [vmem:[#allocation3 + $0x50] sm:$0x1] %vm313, 0
      %333 = vst.msk [vmem:[#allocation3 + $0x54] sm:$0xf] %vm310, 0
      %334 = vst.msk [vmem:[#allocation3 + $0x58] sm:$0xf] %vm310, 0
      %335 = vst.msk [vmem:[#allocation3 + $0x5c] sm:$0x1] %vm313, 0
      %336 = vst.msk [vmem:[#allocation3 + $0x60] sm:$0xf] %vm310, 0
      %337 = vst.msk [vmem:[#allocation3 + $0x64] sm:$0xf] %vm310, 0
      %338 = vst.msk [vmem:[#allocation3 + $0x68] sm:$0x1] %vm313, 0
      %339 = vst.msk [vmem:[#allocation3 + $0x6c] sm:$0xf] %vm310, 0
      %340 = vst.msk [vmem:[#allocation3 + $0x70] sm:$0xf] %vm310, 0
      %341 = vst.msk [vmem:[#allocation3 + $0x74] sm:$0x1] %vm313, 0
      %342 = vst.msk [vmem:[#allocation3 + $0x78] sm:$0xf] %vm310, 0
      %343 = vst.msk [vmem:[#allocation3 + $0x7c] sm:$0xf] %vm310, 0
      %344 = vst.msk [vmem:[#allocation3 + $0x80] sm:$0x1] %vm313, 0
      %345 = vst.msk [vmem:[#allocation3 + $0x84] sm:$0xf] %vm310, 0
      %346 = vst.msk [vmem:[#allocation3 + $0x88] sm:$0xf] %vm310, 0
      %347 = vst.msk [vmem:[#allocation3 + $0x8c] sm:$0x1] %vm313, 0
      %348 = vst.msk [vmem:[#allocation3 + $0x90] sm:$0xf] %vm310, 0
      %349 = vst.msk [vmem:[#allocation3 + $0x94] sm:$0xf] %vm310, 0
      %350 = vst.msk [vmem:[#allocation3 + $0x98] sm:$0x1] %vm313, 0
      %351 = vst.msk [vmem:[#allocation3 + $0x9c] sm:$0xf] %vm310, 0
      %352 = vst.msk [vmem:[#allocation3 + $0xa0] sm:$0xf] %vm310, 0
      %353 = vst.msk [vmem:[#allocation3 + $0xa4] sm:$0x1] %vm313, 0
      %354 = vst.msk [vmem:[#allocation3 + $0xa8] sm:$0xf] %vm310, 0
      %355 = vst.msk [vmem:[#allocation3 + $0xac] sm:$0xf] %vm310, 0
      %356 = vst.msk [vmem:[#allocation3 + $0xb0] sm:$0x1] %vm313, 0
      %357 = vst.msk [vmem:[#allocation3 + $0xb4] sm:$0xf] %vm310, 0
      %358 = vst.msk [vmem:[#allocation3 + $0xb8] sm:$0xf] %vm310, 0
      %359 = vst.msk [vmem:[#allocation3 + $0xbc] sm:$0x1] %vm313, 0
      %360 = vst.msk [vmem:[#allocation3 + $0xc0] sm:$0xf] %vm310, 0
      %361 = vst.msk [vmem:[#allocation3 + $0xc4] sm:$0xf] %vm310, 0
      %362 = vst.msk [vmem:[#allocation3 + $0xc8] sm:$0x1] %vm313, 0
      %363 = vst.msk [vmem:[#allocation3 + $0xcc] sm:$0xf] %vm310, 0
      %364 = vst.msk [vmem:[#allocation3 + $0xd0] sm:$0xf] %vm310, 0
      %365 = vst.msk [vmem:[#allocation3 + $0xd4] sm:$0x1] %vm313, 0
      %v366 = vld [vmem:[%s246] sm:$0xf]
      %v367 = vld [vmem:[%s246 + $0x4] sm:$0xf]
      %v368 = vld [vmem:[%s246 + $0x8] sm:$0xf]
      %v369 = vld [vmem:[%s246 + $0xc] sm:$0xf]
      %v370 = vld [vmem:[%s246 + $0x10] sm:$0xf]
      %v371 = vld [vmem:[%s246 + $0x14] sm:$0xf]
      %v372 = vld [vmem:[%s246 + $0x18] sm:$0xf]
      %v373 = vld [vmem:[%s246 + $0x1c] sm:$0xf]
      %v374 = vld [vmem:[%s246 + $0x20] sm:$0xf]
      %v375 = vld [vmem:[%s246 + $0x24] sm:$0xf]
      %v376 = vld [vmem:[%s246 + $0x28] sm:$0xf]
      %v377 = vld [vmem:[%s246 + $0x2c] sm:$0xf]
      %v378 = vld [vmem:[%s246 + $0x30] sm:$0xf]
      %v379 = vld [vmem:[%s246 + $0x34] sm:$0xf]
      %v380 = vld [vmem:[%s246 + $0x38] sm:$0xf]
      %v381 = vld [vmem:[%s246 + $0x3c] sm:$0xf]
      %v382 = vld [vmem:[%s246 + $0x40] sm:$0xf]
      %v383 = vld [vmem:[%s246 + $0x44] sm:$0xf]
      %v384 = vld [vmem:[%s246 + $0x48] sm:$0xf]
      %v385 = vld [vmem:[%s246 + $0x4c] sm:$0xf]
      %v386 = vld [vmem:[%s246 + $0x50] sm:$0xf]
      %v387 = vld [vmem:[%s246 + $0x54] sm:$0xf]
      %v388 = vld [vmem:[%s246 + $0x58] sm:$0xf]
      %v389 = vld [vmem:[%s246 + $0x5c] sm:$0xf]
      %v390 = vld [vmem:[%s246 + $0x60] sm:$0xf]
      %v391 = vld [vmem:[%s246 + $0x64] sm:$0xf]
      %v392 = vld [vmem:[%s246 + $0x68] sm:$0xf]
      %v393 = vld [vmem:[%s246 + $0x6c] sm:$0xf]
      %v394 = vld [vmem:[%s246 + $0x70] sm:$0xf]
      %v395 = vld [vmem:[%s246 + $0x74] sm:$0xf]
      %v396 = vld [vmem:[%s246 + $0x78] sm:$0xf]
      %v397 = vld [vmem:[%s246 + $0x7c] sm:$0xf]
      %vm398 = vsmask.f32 256
      %vm399 = vsmask.f32 4368
      %vm400 = vmor %vm398, %vm399
      %v402 = vshrl.u32 %v366, 16
      %v404 = vrot.slane %v402, 7
      %v405 = vshll.u32 %v366, 16
      %v407 = vor.u32 %v404, %v405
      %v408 = vrot.slane %v404, 4
      %v410 = vshrl.u32 %v367, 16
      %v412 = vrot.slane %v410, 7
      %v413 = vshll.u32 %v367, 16
      %v415 = vor.u32 %v412, %v413
      %v416 = vsel %vm400, %v408, %v415
      %v417 = vrot.slane %v412, 4
      %v419 = vshrl.u32 %v368, 16
      %v421 = vrot.slane %v419, 7
      %v422 = vshll.u32 %v368, 16
      %v424 = vor.u32 %v421, %v422
      %v425 = vrot.slane %v421, 4
      %v427 = vshrl.u32 %v369, 16
      %v429 = vrot.slane %v427, 7
      %v430 = vshll.u32 %v369, 16
      %v432 = vor.u32 %v429, %v430
      %v433 = vsel %vm400, %v425, %v432
      %v434 = vrot.slane %v429, 4
      %v436 = vshrl.u32 %v370, 16
      %v438 = vrot.slane %v436, 7
      %v439 = vshll.u32 %v370, 16
      %v441 = vor.u32 %v438, %v439
      %v442 = vrot.slane %v438, 4
      %v444 = vshrl.u32 %v371, 16
      %v446 = vrot.slane %v444, 7
      %v447 = vshll.u32 %v371, 16
      %v449 = vor.u32 %v446, %v447
      %v450 = vsel %vm400, %v442, %v449
      %v451 = vrot.slane %v446, 4
      %v453 = vshrl.u32 %v372, 16
      %v455 = vrot.slane %v453, 7
      %v456 = vshll.u32 %v372, 16
      %v458 = vor.u32 %v455, %v456
      %v459 = vrot.slane %v455, 4
      %v461 = vshrl.u32 %v373, 16
      %v463 = vrot.slane %v461, 7
      %v464 = vshll.u32 %v373, 16
      %v466 = vor.u32 %v463, %v464
      %v467 = vsel %vm400, %v459, %v466
      %v468 = vrot.slane %v463, 4
      %v470 = vshrl.u32 %v374, 16
      %v472 = vrot.slane %v470, 7
      %v473 = vshll.u32 %v374, 16
      %v475 = vor.u32 %v472, %v473
      %v476 = vrot.slane %v472, 4
      %v478 = vshrl.u32 %v375, 16
      %v480 = vrot.slane %v478, 7
      %v481 = vshll.u32 %v375, 16
      %v483 = vor.u32 %v480, %v481
      %v484 = vsel %vm400, %v476, %v483
      %v485 = vrot.slane %v480, 4
      %v487 = vshrl.u32 %v376, 16
      %v489 = vrot.slane %v487, 7
      %v490 = vshll.u32 %v376, 16
      %v492 = vor.u32 %v489, %v490
      %v493 = vrot.slane %v489, 4
      %v495 = vshrl.u32 %v377, 16
      %v497 = vrot.slane %v495, 7
      %v498 = vshll.u32 %v377, 16
      %v500 = vor.u32 %v497, %v498
      %v501 = vsel %vm400, %v493, %v500
      %v502 = vrot.slane %v497, 4
      %v504 = vshrl.u32 %v378, 16
      %v506 = vrot.slane %v504, 7
      %v507 = vshll.u32 %v378, 16
      %v509 = vor.u32 %v506, %v507
      %v510 = vrot.slane %v506, 4
      %v512 = vshrl.u32 %v379, 16
      %v514 = vrot.slane %v512, 7
      %v515 = vshll.u32 %v379, 16
      %v517 = vor.u32 %v514, %v515
      %v518 = vsel %vm400, %v510, %v517
      %v519 = vrot.slane %v514, 4
      %v521 = vshrl.u32 %v380, 16
      %v523 = vrot.slane %v521, 7
      %v524 = vshll.u32 %v380, 16
      %v526 = vor.u32 %v523, %v524
      %v527 = vrot.slane %v523, 4
      %v529 = vshrl.u32 %v381, 16
      %v531 = vrot.slane %v529, 7
      %v532 = vshll.u32 %v381, 16
      %v534 = vor.u32 %v531, %v532
      %v535 = vsel %vm400, %v527, %v534
      %v536 = vrot.slane %v531, 4
      %v538 = vshrl.u32 %v382, 16
      %v540 = vrot.slane %v538, 7
      %v541 = vshll.u32 %v382, 16
      %v543 = vor.u32 %v540, %v541
      %v544 = vrot.slane %v540, 4
      %v546 = vshrl.u32 %v383, 16
      %v548 = vrot.slane %v546, 7
      %v549 = vshll.u32 %v383, 16
      %v551 = vor.u32 %v548, %v549
      %v552 = vsel %vm400, %v544, %v551
      %v553 = vrot.slane %v548, 4
      %v555 = vshrl.u32 %v384, 16
      %v557 = vrot.slane %v555, 7
      %v558 = vshll.u32 %v384, 16
      %v560 = vor.u32 %v557, %v558
      %v561 = vrot.slane %v557, 4
      %v563 = vshrl.u32 %v385, 16
      %v565 = vrot.slane %v563, 7
      %v566 = vshll.u32 %v385, 16
      %v568 = vor.u32 %v565, %v566
      %v569 = vsel %vm400, %v561, %v568
      %v570 = vrot.slane %v565, 4
      %v572 = vshrl.u32 %v386, 16
      %v574 = vrot.slane %v572, 7
      %v575 = vshll.u32 %v386, 16
      %v577 = vor.u32 %v574, %v575
      %v578 = vrot.slane %v574, 4
      %v580 = vshrl.u32 %v387, 16
      %v582 = vrot.slane %v580, 7
      %v583 = vshll.u32 %v387, 16
      %v585 = vor.u32 %v582, %v583
      %v586 = vsel %vm400, %v578, %v585
      %v587 = vrot.slane %v582, 4
      %v589 = vshrl.u32 %v388, 16
      %v591 = vrot.slane %v589, 7
      %v592 = vshll.u32 %v388, 16
      %v594 = vor.u32 %v591, %v592
      %v595 = vrot.slane %v591, 4
      %v597 = vshrl.u32 %v389, 16
      %v599 = vrot.slane %v597, 7
      %v600 = vshll.u32 %v389, 16
      %v602 = vor.u32 %v599, %v600
      %v603 = vsel %vm400, %v595, %v602
      %v604 = vrot.slane %v599, 4
      %v606 = vshrl.u32 %v390, 16
      %v608 = vrot.slane %v606, 7
      %v609 = vshll.u32 %v390, 16
      %v611 = vor.u32 %v608, %v609
      %v612 = vrot.slane %v608, 4
      %v614 = vshrl.u32 %v391, 16
      %v616 = vrot.slane %v614, 7
      %v617 = vshll.u32 %v391, 16
      %v619 = vor.u32 %v616, %v617
      %v620 = vsel %vm400, %v612, %v619
      %v621 = vrot.slane %v616, 4
      %v623 = vshrl.u32 %v392, 16
      %v625 = vrot.slane %v623, 7
      %v626 = vshll.u32 %v392, 16
      %v628 = vor.u32 %v625, %v626
      %v629 = vrot.slane %v625, 4
      %v631 = vshrl.u32 %v393, 16
      %v633 = vrot.slane %v631, 7
      %v634 = vshll.u32 %v393, 16
      %v636 = vor.u32 %v633, %v634
      %v637 = vsel %vm400, %v629, %v636
      %v638 = vrot.slane %v633, 4
      %v640 = vshrl.u32 %v394, 16
      %v642 = vrot.slane %v640, 7
      %v643 = vshll.u32 %v394, 16
      %v645 = vor.u32 %v642, %v643
      %v646 = vrot.slane %v642, 4
      %v648 = vshrl.u32 %v395, 16
      %v650 = vrot.slane %v648, 7
      %v651 = vshll.u32 %v395, 16
      %v653 = vor.u32 %v650, %v651
      %v654 = vsel %vm400, %v646, %v653
      %v655 = vrot.slane %v650, 4
      %v657 = vshrl.u32 %v396, 16
      %v659 = vrot.slane %v657, 7
      %v660 = vshll.u32 %v396, 16
      %v662 = vor.u32 %v659, %v660
      %v663 = vrot.slane %v659, 4
      %v665 = vshrl.u32 %v397, 16
      %v667 = vrot.slane %v665, 7
      %v668 = vshll.u32 %v397, 16
      %v670 = vor.u32 %v667, %v668
      %v671 = vsel %vm400, %v663, %v670
      %v672 = vrot.slane %v667, 4
      %s721 = scalar_lea.vmem [#allocation2], 12
      %vm722 = vcmask 27648
      %vm723 = vsmask.f32 7938
      %vm724 = vmand %vm722, %vm723
      %v725 = vld [vmem:[%s721] sm:$0xf]
      %v726 = vsel %vm724, %v407, %v725
      %727 = vst [vmem:[%s721] sm:$0xf] %v726
      %728 = vst.msk [vmem:[%s721 + $0x4] sm:$0xf] %vm254, %v416
      %vm729 = vcmask 24576
      %vm730 = vmand %vm729, %vm398
      %v731 = vld [vmem:[%s721 + $0x8] sm:$0x1]
      %v732 = vsel %vm730, %v417, %v731
      %733 = vst [vmem:[%s721 + $0x8] sm:$0x1] %v732
      %v734 = vld [vmem:[%s721 + $0xc] sm:$0xf]
      %v735 = vsel %vm724, %v424, %v734
      %736 = vst [vmem:[%s721 + $0xc] sm:$0xf] %v735
      %737 = vst.msk [vmem:[%s721 + $0x10] sm:$0xf] %vm254, %v433
      %v738 = vld [vmem:[%s721 + $0x14] sm:$0x1]
      %v739 = vsel %vm730, %v434, %v738
      %740 = vst [vmem:[%s721 + $0x14] sm:$0x1] %v739
      %v741 = vld [vmem:[%s721 + $0x18] sm:$0xf]
      %v742 = vsel %vm724, %v441, %v741
      %743 = vst [vmem:[%s721 + $0x18] sm:$0xf] %v742
      %744 = vst.msk [vmem:[%s721 + $0x1c] sm:$0xf] %vm254, %v450
      %v745 = vld [vmem:[%s721 + $0x20] sm:$0x1]
      %v746 = vsel %vm730, %v451, %v745
      %747 = vst [vmem:[%s721 + $0x20] sm:$0x1] %v746
      %v748 = vld [vmem:[%s721 + $0x24] sm:$0xf]
      %v749 = vsel %vm724, %v458, %v748
      %750 = vst [vmem:[%s721 + $0x24] sm:$0xf] %v749
      %751 = vst.msk [vmem:[%s721 + $0x28] sm:$0xf] %vm254, %v467
      %v752 = vld [vmem:[%s721 + $0x2c] sm:$0x1]
      %v753 = vsel %vm730, %v468, %v752
      %754 = vst [vmem:[%s721 + $0x2c] sm:$0x1] %v753
      %v755 = vld [vmem:[%s721 + $0x30] sm:$0xf]
      %v756 = vsel %vm724, %v475, %v755
      %757 = vst [vmem:[%s721 + $0x30] sm:$0xf] %v756
      %758 = vst.msk [vmem:[%s721 + $0x34] sm:$0xf] %vm254, %v484
      %v759 = vld [vmem:[%s721 + $0x38] sm:$0x1]
      %v760 = vsel %vm730, %v485, %v759
      %761 = vst [vmem:[%s721 + $0x38] sm:$0x1] %v760
      %v762 = vld [vmem:[%s721 + $0x3c] sm:$0xf]
      %v763 = vsel %vm724, %v492, %v762
      %764 = vst [vmem:[%s721 + $0x3c] sm:$0xf] %v763
      %765 = vst.msk [vmem:[%s721 + $0x40] sm:$0xf] %vm254, %v501
      %v766 = vld [vmem:[%s721 + $0x44] sm:$0x1]
      %v767 = vsel %vm730, %v502, %v766
      %768 = vst [vmem:[%s721 + $0x44] sm:$0x1] %v767
      %v769 = vld [vmem:[%s721 + $0x48] sm:$0xf]
      %v770 = vsel %vm724, %v509, %v769
      %771 = vst [vmem:[%s721 + $0x48] sm:$0xf] %v770
      %772 = vst.msk [vmem:[%s721 + $0x4c] sm:$0xf] %vm254, %v518
      %v773 = vld [vmem:[%s721 + $0x50] sm:$0x1]
      %v774 = vsel %vm730, %v519, %v773
      %775 = vst [vmem:[%s721 + $0x50] sm:$0x1] %v774
      %v776 = vld [vmem:[%s721 + $0x54] sm:$0xf]
      %v777 = vsel %vm724, %v526, %v776
      %778 = vst [vmem:[%s721 + $0x54] sm:$0xf] %v777
      %779 = vst.msk [vmem:[%s721 + $0x58] sm:$0xf] %vm254, %v535
      %v780 = vld [vmem:[%s721 + $0x5c] sm:$0x1]
      %v781 = vsel %vm730, %v536, %v780
      %782 = vst [vmem:[%s721 + $0x5c] sm:$0x1] %v781
      %v783 = vld [vmem:[%s721 + $0x60] sm:$0xf]
      %v784 = vsel %vm724, %v543, %v783
      %785 = vst [vmem:[%s721 + $0x60] sm:$0xf] %v784
      %786 = vst.msk [vmem:[%s721 + $0x64] sm:$0xf] %vm254, %v552
      %v787 = vld [vmem:[%s721 + $0x68] sm:$0x1]
      %v788 = vsel %vm730, %v553, %v787
      %789 = vst [vmem:[%s721 + $0x68] sm:$0x1] %v788
      %v790 = vld [vmem:[%s721 + $0x6c] sm:$0xf]
      %v791 = vsel %vm724, %v560, %v790
      %792 = vst [vmem:[%s721 + $0x6c] sm:$0xf] %v791
      %793 = vst.msk [vmem:[%s721 + $0x70] sm:$0xf] %vm254, %v569
      %v794 = vld [vmem:[%s721 + $0x74] sm:$0x1]
      %v795 = vsel %vm730, %v570, %v794
      %796 = vst [vmem:[%s721 + $0x74] sm:$0x1] %v795
      %v797 = vld [vmem:[%s721 + $0x78] sm:$0xf]
      %v798 = vsel %vm724, %v577, %v797
      %799 = vst [vmem:[%s721 + $0x78] sm:$0xf] %v798
      %800 = vst.msk [vmem:[%s721 + $0x7c] sm:$0xf] %vm254, %v586
      %v801 = vld [vmem:[%s721 + $0x80] sm:$0x1]
      %v802 = vsel %vm730, %v587, %v801
      %803 = vst [vmem:[%s721 + $0x80] sm:$0x1] %v802
      %v804 = vld [vmem:[%s721 + $0x84] sm:$0xf]
      %v805 = vsel %vm724, %v594, %v804
      %806 = vst [vmem:[%s721 + $0x84] sm:$0xf] %v805
      %807 = vst.msk [vmem:[%s721 + $0x88] sm:$0xf] %vm254, %v603
      %v808 = vld [vmem:[%s721 + $0x8c] sm:$0x1]
      %v809 = vsel %vm730, %v604, %v808
      %810 = vst [vmem:[%s721 + $0x8c] sm:$0x1] %v809
      %v811 = vld [vmem:[%s721 + $0x90] sm:$0xf]
      %v812 = vsel %vm724, %v611, %v811
      %813 = vst [vmem:[%s721 + $0x90] sm:$0xf] %v812
      %814 = vst.msk [vmem:[%s721 + $0x94] sm:$0xf] %vm254, %v620
      %v815 = vld [vmem:[%s721 + $0x98] sm:$0x1]
      %v816 = vsel %vm730, %v621, %v815
      %817 = vst [vmem:[%s721 + $0x98] sm:$0x1] %v816
      %v818 = vld [vmem:[%s721 + $0x9c] sm:$0xf]
      %v819 = vsel %vm724, %v628, %v818
      %820 = vst [vmem:[%s721 + $0x9c] sm:$0xf] %v819
      %821 = vst.msk [vmem:[%s721 + $0xa0] sm:$0xf] %vm254, %v637
      %v822 = vld [vmem:[%s721 + $0xa4] sm:$0x1]
      %v823 = vsel %vm730, %v638, %v822
      %824 = vst [vmem:[%s721 + $0xa4] sm:$0x1] %v823
      %v825 = vld [vmem:[%s721 + $0xa8] sm:$0xf]
      %v826 = vsel %vm724, %v645, %v825
      %827 = vst [vmem:[%s721 + $0xa8] sm:$0xf] %v826
      %828 = vst.msk [vmem:[%s721 + $0xac] sm:$0xf] %vm254, %v654
      %v829 = vld [vmem:[%s721 + $0xb0] sm:$0x1]
      %v830 = vsel %vm730, %v655, %v829
      %831 = vst [vmem:[%s721 + $0xb0] sm:$0x1] %v830
      %v832 = vld [vmem:[%s721 + $0xb4] sm:$0xf]
      %v833 = vsel %vm724, %v662, %v832
      %834 = vst [vmem:[%s721 + $0xb4] sm:$0xf] %v833
      %835 = vst.msk [vmem:[%s721 + $0xb8] sm:$0xf] %vm254, %v671
      %v836 = vld [vmem:[%s721 + $0xbc] sm:$0x1]
      %v837 = vsel %vm730, %v672, %v836
      %838 = vst [vmem:[%s721 + $0xbc] sm:$0x1] %v837
      %v839 = vld [vmem:[%s1] sm:$0x3]
      %v872 = vunpack.c.l.b16 %v366
      %v873 = vunpack.c.l.b16 %v367
      %v874 = vunpack.c.l.b16 %v368
      %v875 = vunpack.c.l.b16 %v369
      %v876 = vunpack.c.l.b16 %v370
      %v877 = vunpack.c.l.b16 %v371
      %v878 = vunpack.c.l.b16 %v372
      %v879 = vunpack.c.l.b16 %v373
      %v880 = vunpack.c.l.b16 %v374
      %v881 = vunpack.c.l.b16 %v375
      %v882 = vunpack.c.l.b16 %v376
      %v883 = vunpack.c.l.b16 %v377
      %v884 = vunpack.c.l.b16 %v378
      %v885 = vunpack.c.l.b16 %v379
      %v886 = vunpack.c.l.b16 %v380
      %v887 = vunpack.c.l.b16 %v381
      %v888 = vunpack.c.l.b16 %v382
      %v889 = vunpack.c.l.b16 %v383
      %v890 = vunpack.c.l.b16 %v384
      %v891 = vunpack.c.l.b16 %v385
      %v892 = vunpack.c.l.b16 %v386
      %v893 = vunpack.c.l.b16 %v387
      %v894 = vunpack.c.l.b16 %v388
      %v895 = vunpack.c.l.b16 %v389
      %v896 = vunpack.c.l.b16 %v390
      %v897 = vunpack.c.l.b16 %v391
      %v898 = vunpack.c.l.b16 %v392
      %v899 = vunpack.c.l.b16 %v393
      %v900 = vunpack.c.l.b16 %v394
      %v901 = vunpack.c.l.b16 %v395
      %v902 = vunpack.c.l.b16 %v396
      %v903 = vunpack.c.l.b16 %v397
      %v904 = vpack.c.b16 %v873, %v872
      %v905 = vpack.c.b16 %v875, %v874
      %v906 = vpack.c.b16 %v877, %v876
      %v907 = vpack.c.b16 %v879, %v878
      %v908 = vpack.c.b16 %v881, %v880
      %v909 = vpack.c.b16 %v883, %v882
      %v910 = vpack.c.b16 %v885, %v884
      %v911 = vpack.c.b16 %v887, %v886
      %v912 = vpack.c.b16 %v889, %v888
      %v913 = vpack.c.b16 %v891, %v890
      %v914 = vpack.c.b16 %v893, %v892
      %v915 = vpack.c.b16 %v895, %v894
      %v916 = vpack.c.b16 %v897, %v896
      %v917 = vpack.c.b16 %v899, %v898
      %v918 = vpack.c.b16 %v901, %v900
      %v919 = vpack.c.b16 %v903, %v902
      %vm920 = vcmask 31744
      %v922 = vsel %vm920, %v904, 0
      %v925 = vsel %vm920, %v905, 0
      %v928 = vsel %vm920, %v906, 0
      %v931 = vsel %vm920, %v907, 0
      %v934 = vsel %vm920, %v908, 0
      %v937 = vsel %vm920, %v909, 0
      %v940 = vsel %vm920, %v910, 0
      %v943 = vsel %vm920, %v911, 0
      %v946 = vsel %vm920, %v912, 0
      %v949 = vsel %vm920, %v913, 0
      %v952 = vsel %vm920, %v914, 0
      %v955 = vsel %vm920, %v915, 0
      %v958 = vsel %vm920, %v916, 0
      %v961 = vsel %vm920, %v917, 0
      %v964 = vsel %vm920, %v918, 0
      %v967 = vsel %vm920, %v919, 0
      %vm969 = vcmask 1041408
      %v971 = vsel %vm969, %v839, 0
      %973 = vmatprep.subr.bf16.mxu0 0
      %974 = vmatpush1.bf16.msra.mxu0 %v971
      %975 = vmatprep.subr.bf16.mxu0 0
      %976 = vmatpush1.bf16.msra.mxu0 0
      %977 = vmatprep.subr.bf16.mxu0 0
      %978 = vmatpush1.bf16.msra.mxu0 0
      %979 = vmatprep.subr.bf16.mxu0 0
      %980 = vmatpush1.bf16.msra.mxu0 0
      %981 = vmatprep.subr.bf16.mxu0 0
      %982 = vmatpush1.bf16.msra.mxu0 0
      %983 = vmatprep.subr.bf16.mxu0 0
      %984 = vmatpush1.bf16.msra.mxu0 0
      %985 = vmatprep.subr.bf16.mxu0 0
      %986 = vmatpush1.bf16.msra.mxu0 0
      %987 = vmatprep.subr.bf16.mxu0 0
      %988 = vmatpush1.bf16.msra.mxu0 0
      %989 = vmatprep.subr.bf16.mxu0 0
      %990 = vmatpush1.bf16.msra.mxu0 0
      %991 = vmatprep.subr.bf16.mxu0 0
      %992 = vmatpush1.bf16.msra.mxu0 0
      %993 = vmatprep.subr.bf16.mxu0 0
      %994 = vmatpush1.bf16.msra.mxu0 0
      %995 = vmatprep.subr.bf16.mxu0 0
      %996 = vmatpush1.bf16.msra.mxu0 0
      %997 = vmatprep.subr.bf16.mxu0 0
      %998 = vmatpush1.bf16.msra.mxu0 0
      %999 = vmatprep.subr.bf16.mxu0 0
      %1000 = vmatpush1.bf16.msra.mxu0 0
      %1001 = vmatprep.subr.bf16.mxu0 0
      %1002 = vmatpush1.bf16.msra.mxu0 0
      %1003 = vmatprep.subr.bf16.mxu0 0
      %1004 = vmatpush1.bf16.msra.mxu0 0
      %1005 = vmatprep.mubr.bf16.mxu0 0
      %1006 = vmatmul.mubr.bf16.gmra.mrb[0].mxu0 %v922
      %v1007 = vpop.f32.mrb[0].mxu0
      %v1008 = vadd.f32 0.0, %v1007
      %v1009 = vpop.f32.mrb[0].mxu0
      %v1010 = vpop.f32.mrb[0].mxu0
      %v1011 = vadd.f32 0.0, %v1010
      %v1012 = vpop.f32.mrb[0].mxu0
      %1013 = vmatprep.mubr.bf16.mxu0 0
      %1014 = vmatmul.mubr.bf16.gmra.mrb[0].mxu0 %v925
      %v1015 = vpop.f32.mrb[0].mxu0
      %v1016 = vadd.f32 0.0, %v1015
      %v1017 = vpop.f32.mrb[0].mxu0
      %v1018 = vpop.f32.mrb[0].mxu0
      %v1019 = vadd.f32 0.0, %v1018
      %v1020 = vpop.f32.mrb[0].mxu0
      %1021 = vmatprep.mubr.bf16.mxu0 0
      %1022 = vmatmul.mubr.bf16.gmra.mrb[0].mxu0 %v928
      %v1023 = vpop.f32.mrb[0].mxu0
      %v1024 = vadd.f32 0.0, %v1023
      %v1025 = vpop.f32.mrb[0].mxu0
      %v1026 = vpop.f32.mrb[0].mxu0
      %v1027 = vadd.f32 0.0, %v1026
      %v1028 = vpop.f32.mrb[0].mxu0
      %1029 = vmatprep.mubr.bf16.mxu0 0
      %1030 = vmatmul.mubr.bf16.gmra.mrb[0].mxu0 %v931
      %v1031 = vpop.f32.mrb[0].mxu0
      %v1032 = vadd.f32 0.0, %v1031
      %v1033 = vpop.f32.mrb[0].mxu0
      %v1034 = vpop.f32.mrb[0].mxu0
      %v1035 = vadd.f32 0.0, %v1034
      %v1036 = vpop.f32.mrb[0].mxu0
      %1037 = vmatprep.mubr.bf16.mxu0 0
      %1038 = vmatmul.mubr.bf16.gmra.mrb[0].mxu0 %v934
      %v1039 = vpop.f32.mrb[0].mxu0
      %v1040 = vadd.f32 0.0, %v1039
      %v1041 = vpop.f32.mrb[0].mxu0
      %v1042 = vpop.f32.mrb[0].mxu0
      %v1043 = vadd.f32 0.0, %v1042
      %v1044 = vpop.f32.mrb[0].mxu0
      %1045 = vmatprep.mubr.bf16.mxu0 0
      %1046 = vmatmul.mubr.bf16.gmra.mrb[0].mxu0 %v937
      %v1047 = vpop.f32.mrb[0].mxu0
      %v1048 = vadd.f32 0.0, %v1047
      %v1049 = vpop.f32.mrb[0].mxu0
      %v1050 = vpop.f32.mrb[0].mxu0
      %v1051 = vadd.f32 0.0, %v1050
      %v1052 = vpop.f32.mrb[0].mxu0
      %1053 = vmatprep.mubr.bf16.mxu0 0
      %1054 = vmatmul.mubr.bf16.gmra.mrb[0].mxu0 %v940
      %v1055 = vpop.f32.mrb[0].mxu0
      %v1056 = vadd.f32 0.0, %v1055
      %v1057 = vpop.f32.mrb[0].mxu0
      %v1058 = vpop.f32.mrb[0].mxu0
      %v1059 = vadd.f32 0.0, %v1058
      %v1060 = vpop.f32.mrb[0].mxu0
      %1061 = vmatprep.mubr.bf16.mxu0 0
      %1062 = vmatmul.mubr.bf16.gmra.mrb[0].mxu0 %v943
      %v1063 = vpop.f32.mrb[0].mxu0
      %v1064 = vadd.f32 0.0, %v1063
      %v1065 = vpop.f32.mrb[0].mxu0
      %v1066 = vpop.f32.mrb[0].mxu0
      %v1067 = vadd.f32 0.0, %v1066
      %v1068 = vpop.f32.mrb[0].mxu0
      %1069 = vmatprep.mubr.bf16.mxu0 0
      %1070 = vmatmul.mubr.bf16.gmra.mrb[0].mxu0 %v946
      %v1071 = vpop.f32.mrb[0].mxu0
      %v1072 = vadd.f32 0.0, %v1071
      %v1073 = vpop.f32.mrb[0].mxu0
      %v1074 = vpop.f32.mrb[0].mxu0
      %v1075 = vadd.f32 0.0, %v1074
      %v1076 = vpop.f32.mrb[0].mxu0
      %1077 = vmatprep.mubr.bf16.mxu0 0
      %1078 = vmatmul.mubr.bf16.gmra.mrb[0].mxu0 %v949
      %v1079 = vpop.f32.mrb[0].mxu0
      %v1080 = vadd.f32 0.0, %v1079
      %v1081 = vpop.f32.mrb[0].mxu0
      %v1082 = vpop.f32.mrb[0].mxu0
      %v1083 = vadd.f32 0.0, %v1082
      %v1084 = vpop.f32.mrb[0].mxu0
      %1085 = vmatprep.mubr.bf16.mxu0 0
      %1086 = vmatmul.mubr.bf16.gmra.mrb[0].mxu0 %v952
      %v1087 = vpop.f32.mrb[0].mxu0
      %v1088 = vadd.f32 0.0, %v1087
      %v1089 = vpop.f32.mrb[0].mxu0
      %v1090 = vpop.f32.mrb[0].mxu0
      %v1091 = vadd.f32 0.0, %v1090
      %v1092 = vpop.f32.mrb[0].mxu0
      %1093 = vmatprep.mubr.bf16.mxu0 0
      %1094 = vmatmul.mubr.bf16.gmra.mrb[0].mxu0 %v955
      %v1095 = vpop.f32.mrb[0].mxu0
      %v1096 = vadd.f32 0.0, %v1095
      %v1097 = vpop.f32.mrb[0].mxu0
      %v1098 = vpop.f32.mrb[0].mxu0
      %v1099 = vadd.f32 0.0, %v1098
      %v1100 = vpop.f32.mrb[0].mxu0
      %1101 = vmatprep.mubr.bf16.mxu0 0
      %1102 = vmatmul.mubr.bf16.gmra.mrb[0].mxu0 %v958
      %v1103 = vpop.f32.mrb[0].mxu0
      %v1104 = vadd.f32 0.0, %v1103
      %v1105 = vpop.f32.mrb[0].mxu0
      %v1106 = vpop.f32.mrb[0].mxu0
      %v1107 = vadd.f32 0.0, %v1106
      %v1108 = vpop.f32.mrb[0].mxu0
      %1109 = vmatprep.mubr.bf16.mxu0 0
      %1110 = vmatmul.mubr.bf16.gmra.mrb[0].mxu0 %v961
      %v1111 = vpop.f32.mrb[0].mxu0
      %v1112 = vadd.f32 0.0, %v1111
      %v1113 = vpop.f32.mrb[0].mxu0
      %v1114 = vpop.f32.mrb[0].mxu0
      %v1115 = vadd.f32 0.0, %v1114
      %v1116 = vpop.f32.mrb[0].mxu0
      %1117 = vmatprep.mubr.bf16.mxu0 0
      %1118 = vmatmul.mubr.bf16.gmra.mrb[0].mxu0 %v964
      %v1119 = vpop.f32.mrb[0].mxu0
      %v1120 = vadd.f32 0.0, %v1119
      %v1121 = vpop.f32.mrb[0].mxu0
      %v1122 = vpop.f32.mrb[0].mxu0
      %v1123 = vadd.f32 0.0, %v1122
      %v1124 = vpop.f32.mrb[0].mxu0
      %1125 = vmatprep.mubr.bf16.mxu0 0
      %1126 = vmatmul.mubr.bf16.gmra.mrb[0].mxu0 %v967
      %v1127 = vpop.f32.mrb[0].mxu0
      %v1128 = vadd.f32 0.0, %v1127
      %v1129 = vpop.f32.mrb[0].mxu0
      %v1130 = vpop.f32.mrb[0].mxu0
      %v1131 = vadd.f32 0.0, %v1130
      %v1132 = vpop.f32.mrb[0].mxu0
      %1133 = vdwg.mxu0
      %v1134 = vld [vmem:[%s4] sm:$0x1]
      %v1136 = vlaneseq
      %v1137 = vshrl.u32 %v1136, 7
      %v1138 = vsub.s32 0, %v1137
      %v1139 = vrot.slane %v1134, %v1138
      %v1141 = vmul.f32 %v1008, %v1139
      %v1142 = vmul.f32 %v1011, %v1139
      %v1143 = vmul.f32 %v1016, %v1139
      %v1144 = vmul.f32 %v1019, %v1139
      %v1145 = vmul.f32 %v1024, %v1139
      %v1146 = vmul.f32 %v1027, %v1139
      %v1147 = vmul.f32 %v1032, %v1139
      %v1148 = vmul.f32 %v1035, %v1139
      %v1149 = vmul.f32 %v1040, %v1139
      %v1150 = vmul.f32 %v1043, %v1139
      %v1151 = vmul.f32 %v1048, %v1139
      %v1152 = vmul.f32 %v1051, %v1139
      %v1153 = vmul.f32 %v1056, %v1139
      %v1154 = vmul.f32 %v1059, %v1139
      %v1155 = vmul.f32 %v1064, %v1139
      %v1156 = vmul.f32 %v1067, %v1139
      %v1157 = vmul.f32 %v1072, %v1139
      %v1158 = vmul.f32 %v1075, %v1139
      %v1159 = vmul.f32 %v1080, %v1139
      %v1160 = vmul.f32 %v1083, %v1139
      %v1161 = vmul.f32 %v1088, %v1139
      %v1162 = vmul.f32 %v1091, %v1139
      %v1163 = vmul.f32 %v1096, %v1139
      %v1164 = vmul.f32 %v1099, %v1139
      %v1165 = vmul.f32 %v1104, %v1139
      %v1166 = vmul.f32 %v1107, %v1139
      %v1167 = vmul.f32 %v1112, %v1139
      %v1168 = vmul.f32 %v1115, %v1139
      %v1169 = vmul.f32 %v1120, %v1139
      %v1170 = vmul.f32 %v1123, %v1139
      %v1171 = vmul.f32 %v1128, %v1139
      %v1172 = vmul.f32 %v1131, %v1139
      %v1173 = vld [vmem:[%s5] sm:$0x1]
      %v1175 = vlaneseq
      %v1176 = vshrl.u32 %v1175, 7
      %v1177 = vsub.s32 0, %v1176
      %v1178 = vrot.slane %v1173, %v1177
      %v1180 = vadd.f32 %v1141, %v1178
      %v1181 = vadd.f32 %v1142, %v1178
      %v1182 = vadd.f32 %v1143, %v1178
      %v1183 = vadd.f32 %v1144, %v1178
      %v1184 = vadd.f32 %v1145, %v1178
      %v1185 = vadd.f32 %v1146, %v1178
      %v1186 = vadd.f32 %v1147, %v1178
      %v1187 = vadd.f32 %v1148, %v1178
      %v1188 = vadd.f32 %v1149, %v1178
      %v1189 = vadd.f32 %v1150, %v1178
      %v1190 = vadd.f32 %v1151, %v1178
      %v1191 = vadd.f32 %v1152, %v1178
      %v1192 = vadd.f32 %v1153, %v1178
      %v1193 = vadd.f32 %v1154, %v1178
      %v1194 = vadd.f32 %v1155, %v1178
      %v1195 = vadd.f32 %v1156, %v1178
      %v1196 = vadd.f32 %v1157, %v1178
      %v1197 = vadd.f32 %v1158, %v1178
      %v1198 = vadd.f32 %v1159, %v1178
      %v1199 = vadd.f32 %v1160, %v1178
      %v1200 = vadd.f32 %v1161, %v1178
      %v1201 = vadd.f32 %v1162, %v1178
      %v1202 = vadd.f32 %v1163, %v1178
      %v1203 = vadd.f32 %v1164, %v1178
      %v1204 = vadd.f32 %v1165, %v1178
      %v1205 = vadd.f32 %v1166, %v1178
      %v1206 = vadd.f32 %v1167, %v1178
      %v1207 = vadd.f32 %v1168, %v1178
      %v1208 = vadd.f32 %v1169, %v1178
      %v1209 = vadd.f32 %v1170, %v1178
      %v1210 = vadd.f32 %v1171, %v1178
      %v1211 = vadd.f32 %v1172, %v1178
      %v1212 = vmax.f32 %v1180, 0.0
      %v1213 = vmax.f32 %v1181, 0.0
      %v1214 = vmax.f32 %v1182, 0.0
      %v1215 = vmax.f32 %v1183, 0.0
      %v1216 = vmax.f32 %v1184, 0.0
      %v1217 = vmax.f32 %v1185, 0.0
      %v1218 = vmax.f32 %v1186, 0.0
      %v1219 = vmax.f32 %v1187, 0.0
      %v1220 = vmax.f32 %v1188, 0.0
      %v1221 = vmax.f32 %v1189, 0.0
      %v1222 = vmax.f32 %v1190, 0.0
      %v1223 = vmax.f32 %v1191, 0.0
      %v1224 = vmax.f32 %v1192, 0.0
      %v1225 = vmax.f32 %v1193, 0.0
      %v1226 = vmax.f32 %v1194, 0.0
      %v1227 = vmax.f32 %v1195, 0.0
      %v1228 = vmax.f32 %v1196, 0.0
      %v1229 = vmax.f32 %v1197, 0.0
      %v1230 = vmax.f32 %v1198, 0.0
      %v1231 = vmax.f32 %v1199, 0.0
      %v1232 = vmax.f32 %v1200, 0.0
      %v1233 = vmax.f32 %v1201, 0.0
      %v1234 = vmax.f32 %v1202, 0.0
      %v1235 = vmax.f32 %v1203, 0.0
      %v1236 = vmax.f32 %v1204, 0.0
      %v1237 = vmax.f32 %v1205, 0.0
      %v1238 = vmax.f32 %v1206, 0.0
      %v1239 = vmax.f32 %v1207, 0.0
      %v1240 = vmax.f32 %v1208, 0.0
      %v1241 = vmax.f32 %v1209, 0.0
      %v1242 = vmax.f32 %v1210, 0.0
      %v1243 = vmax.f32 %v1211, 0.0
      %v1244 = vpack.c.bf16 %v1213, %v1212
      %v1245 = vpack.c.bf16 %v1215, %v1214
      %v1246 = vpack.c.bf16 %v1217, %v1216
      %v1247 = vpack.c.bf16 %v1219, %v1218
      %v1248 = vpack.c.bf16 %v1221, %v1220
      %v1249 = vpack.c.bf16 %v1223, %v1222
      %v1250 = vpack.c.bf16 %v1225, %v1224
      %v1251 = vpack.c.bf16 %v1227, %v1226
      %v1252 = vpack.c.bf16 %v1229, %v1228
      %v1253 = vpack.c.bf16 %v1231, %v1230
      %v1254 = vpack.c.bf16 %v1233, %v1232
      %v1255 = vpack.c.bf16 %v1235, %v1234
      %v1256 = vpack.c.bf16 %v1237, %v1236
      %v1257 = vpack.c.bf16 %v1239, %v1238
      %v1258 = vpack.c.bf16 %v1241, %v1240
      %v1259 = vpack.c.bf16 %v1243, %v1242
      %v1276 = vunpack.c.l.b16 %v1244
      %v1277 = vunpack.c.h.b16 %v1244
      %v1278 = vunpack.c.l.b16 %v1245
      %v1279 = vunpack.c.h.b16 %v1245
      %v1280 = vunpack.c.l.b16 %v1246
      %v1281 = vunpack.c.h.b16 %v1246
      %v1282 = vunpack.c.l.b16 %v1247
      %v1283 = vunpack.c.h.b16 %v1247
      %v1284 = vunpack.c.l.b16 %v1248
      %v1285 = vunpack.c.h.b16 %v1248
      %v1286 = vunpack.c.l.b16 %v1249
      %v1287 = vunpack.c.h.b16 %v1249
      %v1288 = vunpack.c.l.b16 %v1250
      %v1289 = vunpack.c.h.b16 %v1250
      %v1290 = vunpack.c.l.b16 %v1251
      %v1291 = vunpack.c.h.b16 %v1251
      %v1292 = vunpack.c.l.b16 %v1252
      %v1293 = vunpack.c.h.b16 %v1252
      %v1294 = vunpack.c.l.b16 %v1253
      %v1295 = vunpack.c.h.b16 %v1253
      %v1296 = vunpack.c.l.b16 %v1254
      %v1297 = vunpack.c.h.b16 %v1254
      %v1298 = vunpack.c.l.b16 %v1255
      %v1299 = vunpack.c.h.b16 %v1255
      %v1300 = vunpack.c.l.b16 %v1256
      %v1301 = vunpack.c.h.b16 %v1256
      %v1302 = vunpack.c.l.b16 %v1257
      %v1303 = vunpack.c.h.b16 %v1257
      %v1304 = vunpack.c.l.b16 %v1258
      %v1305 = vunpack.c.h.b16 %v1258
      %v1306 = vunpack.c.l.b16 %v1259
      %v1307 = vunpack.c.h.b16 %v1259
      %v1308 = vpack.c.b16 %v1276, %v1276
      %v1309 = vpack.c.b16 %v1277, %v1277
      %v1310 = vpack.c.b16 %v1278, %v1278
      %v1311 = vpack.c.b16 %v1279, %v1279
      %v1312 = vpack.c.b16 %v1280, %v1280
      %v1313 = vpack.c.b16 %v1281, %v1281
      %v1314 = vpack.c.b16 %v1282, %v1282
      %v1315 = vpack.c.b16 %v1283, %v1283
      %v1316 = vpack.c.b16 %v1284, %v1284
      %v1317 = vpack.c.b16 %v1285, %v1285
      %v1318 = vpack.c.b16 %v1286, %v1286
      %v1319 = vpack.c.b16 %v1287, %v1287
      %v1320 = vpack.c.b16 %v1288, %v1288
      %v1321 = vpack.c.b16 %v1289, %v1289
      %v1322 = vpack.c.b16 %v1290, %v1290
      %v1323 = vpack.c.b16 %v1291, %v1291
      %v1324 = vpack.c.b16 %v1292, %v1292
      %v1325 = vpack.c.b16 %v1293, %v1293
      %v1326 = vpack.c.b16 %v1294, %v1294
      %v1327 = vpack.c.b16 %v1295, %v1295
      %v1328 = vpack.c.b16 %v1296, %v1296
      %v1329 = vpack.c.b16 %v1297, %v1297
      %v1330 = vpack.c.b16 %v1298, %v1298
      %v1331 = vpack.c.b16 %v1299, %v1299
      %v1332 = vpack.c.b16 %v1300, %v1300
      %v1333 = vpack.c.b16 %v1301, %v1301
      %v1334 = vpack.c.b16 %v1302, %v1302
      %v1335 = vpack.c.b16 %v1303, %v1303
      %v1336 = vpack.c.b16 %v1304, %v1304
      %v1337 = vpack.c.b16 %v1305, %v1305
      %v1338 = vpack.c.b16 %v1306, %v1306
      %v1339 = vpack.c.b16 %v1307, %v1307
      %1372 = vst.msk [vmem:[%s251] sm:$0xf] %vm310, %v1308
      %1373 = vst.msk [vmem:[%s251 + $0x4] sm:$0xf] %vm310, %v1309
      %1374 = vst.msk [vmem:[%s251 + $0x8] sm:$0xf] %vm310, %v1310
      %1375 = vst.msk [vmem:[%s251 + $0xc] sm:$0xf] %vm310, %v1311
      %1376 = vst.msk [vmem:[%s251 + $0x10] sm:$0xf] %vm310, %v1312
      %1377 = vst.msk [vmem:[%s251 + $0x14] sm:$0xf] %vm310, %v1313
      %1378 = vst.msk [vmem:[%s251 + $0x18] sm:$0xf] %vm310, %v1314
      %1379 = vst.msk [vmem:[%s251 + $0x1c] sm:$0xf] %vm310, %v1315
      %1380 = vst.msk [vmem:[%s251 + $0x20] sm:$0xf] %vm310, %v1316
      %1381 = vst.msk [vmem:[%s251 + $0x24] sm:$0xf] %vm310, %v1317
      %1382 = vst.msk [vmem:[%s251 + $0x28] sm:$0xf] %vm310, %v1318
      %1383 = vst.msk [vmem:[%s251 + $0x2c] sm:$0xf] %vm310, %v1319
      %1384 = vst.msk [vmem:[%s251 + $0x30] sm:$0xf] %vm310, %v1320
      %1385 = vst.msk [vmem:[%s251 + $0x34] sm:$0xf] %vm310, %v1321
      %1386 = vst.msk [vmem:[%s251 + $0x38] sm:$0xf] %vm310, %v1322
      %1387 = vst.msk [vmem:[%s251 + $0x3c] sm:$0xf] %vm310, %v1323
      %1388 = vst.msk [vmem:[%s251 + $0x40] sm:$0xf] %vm310, %v1324
      %1389 = vst.msk [vmem:[%s251 + $0x44] sm:$0xf] %vm310, %v1325
      %1390 = vst.msk [vmem:[%s251 + $0x48] sm:$0xf] %vm310, %v1326
      %1391 = vst.msk [vmem:[%s251 + $0x4c] sm:$0xf] %vm310, %v1327
      %1392 = vst.msk [vmem:[%s251 + $0x50] sm:$0xf] %vm310, %v1328
      %1393 = vst.msk [vmem:[%s251 + $0x54] sm:$0xf] %vm310, %v1329
      %1394 = vst.msk [vmem:[%s251 + $0x58] sm:$0xf] %vm310, %v1330
      %1395 = vst.msk [vmem:[%s251 + $0x5c] sm:$0xf] %vm310, %v1331
      %1396 = vst.msk [vmem:[%s251 + $0x60] sm:$0xf] %vm310, %v1332
      %1397 = vst.msk [vmem:[%s251 + $0x64] sm:$0xf] %vm310, %v1333
      %1398 = vst.msk [vmem:[%s251 + $0x68] sm:$0xf] %vm310, %v1334
      %1399 = vst.msk [vmem:[%s251 + $0x6c] sm:$0xf] %vm310, %v1335
      %1400 = vst.msk [vmem:[%s251 + $0x70] sm:$0xf] %vm310, %v1336
      %1401 = vst.msk [vmem:[%s251 + $0x74] sm:$0xf] %vm310, %v1337
      %1402 = vst.msk [vmem:[%s251 + $0x78] sm:$0xf] %vm310, %v1338
      %1403 = vst.msk [vmem:[%s251 + $0x7c] sm:$0xf] %vm310, %v1339
      %v1405 = vshrl.u32 %v1308, 16
      %v1407 = vrot.slane %v1405, 7
      %v1408 = vshll.u32 %v1308, 16
      %v1410 = vor.u32 %v1407, %v1408
      %v1411 = vrot.slane %v1407, 4
      %v1413 = vshrl.u32 %v1309, 16
      %v1415 = vrot.slane %v1413, 7
      %v1416 = vshll.u32 %v1309, 16
      %v1418 = vor.u32 %v1415, %v1416
      %v1419 = vsel %vm400, %v1411, %v1418
      %v1420 = vrot.slane %v1415, 4
      %v1422 = vshrl.u32 %v1310, 16
      %v1424 = vrot.slane %v1422, 7
      %v1425 = vshll.u32 %v1310, 16
      %v1427 = vor.u32 %v1424, %v1425
      %v1428 = vrot.slane %v1424, 4
      %v1430 = vshrl.u32 %v1311, 16
      %v1432 = vrot.slane %v1430, 7
      %v1433 = vshll.u32 %v1311, 16
      %v1435 = vor.u32 %v1432, %v1433
      %v1436 = vsel %vm400, %v1428, %v1435
      %v1437 = vrot.slane %v1432, 4
      %v1439 = vshrl.u32 %v1312, 16
      %v1441 = vrot.slane %v1439, 7
      %v1442 = vshll.u32 %v1312, 16
      %v1444 = vor.u32 %v1441, %v1442
      %v1445 = vrot.slane %v1441, 4
      %v1447 = vshrl.u32 %v1313, 16
      %v1449 = vrot.slane %v1447, 7
      %v1450 = vshll.u32 %v1313, 16
      %v1452 = vor.u32 %v1449, %v1450
      %v1453 = vsel %vm400, %v1445, %v1452
      %v1454 = vrot.slane %v1449, 4
      %v1456 = vshrl.u32 %v1314, 16
      %v1458 = vrot.slane %v1456, 7
      %v1459 = vshll.u32 %v1314, 16
      %v1461 = vor.u32 %v1458, %v1459
      %v1462 = vrot.slane %v1458, 4
      %v1464 = vshrl.u32 %v1315, 16
      %v1466 = vrot.slane %v1464, 7
      %v1467 = vshll.u32 %v1315, 16
      %v1469 = vor.u32 %v1466, %v1467
      %v1470 = vsel %vm400, %v1462, %v1469
      %v1471 = vrot.slane %v1466, 4
      %v1473 = vshrl.u32 %v1316, 16
      %v1475 = vrot.slane %v1473, 7
      %v1476 = vshll.u32 %v1316, 16
      %v1478 = vor.u32 %v1475, %v1476
      %v1479 = vrot.slane %v1475, 4
      %v1481 = vshrl.u32 %v1317, 16
      %v1483 = vrot.slane %v1481, 7
      %v1484 = vshll.u32 %v1317, 16
      %v1486 = vor.u32 %v1483, %v1484
      %v1487 = vsel %vm400, %v1479, %v1486
      %v1488 = vrot.slane %v1483, 4
      %v1490 = vshrl.u32 %v1318, 16
      %v1492 = vrot.slane %v1490, 7
      %v1493 = vshll.u32 %v1318, 16
      %v1495 = vor.u32 %v1492, %v1493
      %v1496 = vrot.slane %v1492, 4
      %v1498 = vshrl.u32 %v1319, 16
      %v1500 = vrot.slane %v1498, 7
      %v1501 = vshll.u32 %v1319, 16
      %v1503 = vor.u32 %v1500, %v1501
      %v1504 = vsel %vm400, %v1496, %v1503
      %v1505 = vrot.slane %v1500, 4
      %v1507 = vshrl.u32 %v1320, 16
      %v1509 = vrot.slane %v1507, 7
      %v1510 = vshll.u32 %v1320, 16
      %v1512 = vor.u32 %v1509, %v1510
      %v1513 = vrot.slane %v1509, 4
      %v1515 = vshrl.u32 %v1321, 16
      %v1517 = vrot.slane %v1515, 7
      %v1518 = vshll.u32 %v1321, 16
      %v1520 = vor.u32 %v1517, %v1518
      %v1521 = vsel %vm400, %v1513, %v1520
      %v1522 = vrot.slane %v1517, 4
      %v1524 = vshrl.u32 %v1322, 16
      %v1526 = vrot.slane %v1524, 7
      %v1527 = vshll.u32 %v1322, 16
      %v1529 = vor.u32 %v1526, %v1527
      %v1530 = vrot.slane %v1526, 4
      %v1532 = vshrl.u32 %v1323, 16
      %v1534 = vrot.slane %v1532, 7
      %v1535 = vshll.u32 %v1323, 16
      %v1537 = vor.u32 %v1534, %v1535
      %v1538 = vsel %vm400, %v1530, %v1537
      %v1539 = vrot.slane %v1534, 4
      %v1541 = vshrl.u32 %v1324, 16
      %v1543 = vrot.slane %v1541, 7
      %v1544 = vshll.u32 %v1324, 16
      %v1546 = vor.u32 %v1543, %v1544
      %v1547 = vrot.slane %v1543, 4
      %v1549 = vshrl.u32 %v1325, 16
      %v1551 = vrot.slane %v1549, 7
      %v1552 = vshll.u32 %v1325, 16
      %v1554 = vor.u32 %v1551, %v1552
      %v1555 = vsel %vm400, %v1547, %v1554
      %v1556 = vrot.slane %v1551, 4
      %v1558 = vshrl.u32 %v1326, 16
      %v1560 = vrot.slane %v1558, 7
      %v1561 = vshll.u32 %v1326, 16
      %v1563 = vor.u32 %v1560, %v1561
      %v1564 = vrot.slane %v1560, 4
      %v1566 = vshrl.u32 %v1327, 16
      %v1568 = vrot.slane %v1566, 7
      %v1569 = vshll.u32 %v1327, 16
      %v1571 = vor.u32 %v1568, %v1569
      %v1572 = vsel %vm400, %v1564, %v1571
      %v1573 = vrot.slane %v1568, 4
      %v1575 = vshrl.u32 %v1328, 16
      %v1577 = vrot.slane %v1575, 7
      %v1578 = vshll.u32 %v1328, 16
      %v1580 = vor.u32 %v1577, %v1578
      %v1581 = vrot.slane %v1577, 4
      %v1583 = vshrl.u32 %v1329, 16
      %v1585 = vrot.slane %v1583, 7
      %v1586 = vshll.u32 %v1329, 16
      %v1588 = vor.u32 %v1585, %v1586
      %v1589 = vsel %vm400, %v1581, %v1588
      %v1590 = vrot.slane %v1585, 4
      %v1592 = vshrl.u32 %v1330, 16
      %v1594 = vrot.slane %v1592, 7
      %v1595 = vshll.u32 %v1330, 16
      %v1597 = vor.u32 %v1594, %v1595
      %v1598 = vrot.slane %v1594, 4
      %v1600 = vshrl.u32 %v1331, 16
      %v1602 = vrot.slane %v1600, 7
      %v1603 = vshll.u32 %v1331, 16
      %v1605 = vor.u32 %v1602, %v1603
      %v1606 = vsel %vm400, %v1598, %v1605
      %v1607 = vrot.slane %v1602, 4
      %v1609 = vshrl.u32 %v1332, 16
      %v1611 = vrot.slane %v1609, 7
      %v1612 = vshll.u32 %v1332, 16
      %v1614 = vor.u32 %v1611, %v1612
      %v1615 = vrot.slane %v1611, 4
      %v1617 = vshrl.u32 %v1333, 16
      %v1619 = vrot.slane %v1617, 7
      %v1620 = vshll.u32 %v1333, 16
      %v1622 = vor.u32 %v1619, %v1620
      %v1623 = vsel %vm400, %v1615, %v1622
      %v1624 = vrot.slane %v1619, 4
      %v1626 = vshrl.u32 %v1334, 16
      %v1628 = vrot.slane %v1626, 7
      %v1629 = vshll.u32 %v1334, 16
      %v1631 = vor.u32 %v1628, %v1629
      %v1632 = vrot.slane %v1628, 4
      %v1634 = vshrl.u32 %v1335, 16
      %v1636 = vrot.slane %v1634, 7
      %v1637 = vshll.u32 %v1335, 16
      %v1639 = vor.u32 %v1636, %v1637
      %v1640 = vsel %vm400, %v1632, %v1639
      %v1641 = vrot.slane %v1636, 4
      %v1643 = vshrl.u32 %v1336, 16
      %v1645 = vrot.slane %v1643, 7
      %v1646 = vshll.u32 %v1336, 16
      %v1648 = vor.u32 %v1645, %v1646
      %v1649 = vrot.slane %v1645, 4
      %v1651 = vshrl.u32 %v1337, 16
      %v1653 = vrot.slane %v1651, 7
      %v1654 = vshll.u32 %v1337, 16
      %v1656 = vor.u32 %v1653, %v1654
      %v1657 = vsel %vm400, %v1649, %v1656
      %v1658 = vrot.slane %v1653, 4
      %v1660 = vshrl.u32 %v1338, 16
      %v1662 = vrot.slane %v1660, 7
      %v1663 = vshll.u32 %v1338, 16
      %v1665 = vor.u32 %v1662, %v1663
      %v1666 = vrot.slane %v1662, 4
      %v1668 = vshrl.u32 %v1339, 16
      %v1670 = vrot.slane %v1668, 7
      %v1671 = vshll.u32 %v1339, 16
      %v1673 = vor.u32 %v1670, %v1671
      %v1674 = vsel %vm400, %v1666, %v1673
      %v1675 = vrot.slane %v1670, 4
      %1676 = vrot.lane.b32.xlu0 %v1410, 120
      %v1677 = vpop.permute.xlu0 %1676
      %1678 = vrot.lane.b32.xlu0 %v1419, 120
      %v1679 = vpop.permute.xlu0 %1678
      %1680 = vrot.lane.b32.xlu0 %v1420, 120
      %v1681 = vpop.permute.xlu0 %1680
      %1682 = vrot.lane.b32.xlu0 %v1427, 120
      %v1683 = vpop.permute.xlu0 %1682
      %1684 = vrot.lane.b32.xlu0 %v1436, 120
      %v1685 = vpop.permute.xlu0 %1684
      %1686 = vrot.lane.b32.xlu0 %v1437, 120
      %v1687 = vpop.permute.xlu0 %1686
      %1688 = vrot.lane.b32.xlu0 %v1444, 120
      %v1689 = vpop.permute.xlu0 %1688
      %1690 = vrot.lane.b32.xlu0 %v1453, 120
      %v1691 = vpop.permute.xlu0 %1690
      %1692 = vrot.lane.b32.xlu0 %v1454, 120
      %v1693 = vpop.permute.xlu0 %1692
      %1694 = vrot.lane.b32.xlu0 %v1461, 120
      %v1695 = vpop.permute.xlu0 %1694
      %1696 = vrot.lane.b32.xlu0 %v1470, 120
      %v1697 = vpop.permute.xlu0 %1696
      %1698 = vrot.lane.b32.xlu0 %v1471, 120
      %v1699 = vpop.permute.xlu0 %1698
      %1700 = vrot.lane.b32.xlu0 %v1478, 120
      %v1701 = vpop.permute.xlu0 %1700
      %1702 = vrot.lane.b32.xlu0 %v1487, 120
      %v1703 = vpop.permute.xlu0 %1702
      %1704 = vrot.lane.b32.xlu0 %v1488, 120
      %v1705 = vpop.permute.xlu0 %1704
      %1706 = vrot.lane.b32.xlu0 %v1495, 120
      %v1707 = vpop.permute.xlu0 %1706
      %1708 = vrot.lane.b32.xlu0 %v1504, 120
      %v1709 = vpop.permute.xlu0 %1708
      %1710 = vrot.lane.b32.xlu0 %v1505, 120
      %v1711 = vpop.permute.xlu0 %1710
      %1712 = vrot.lane.b32.xlu0 %v1512, 120
      %v1713 = vpop.permute.xlu0 %1712
      %1714 = vrot.lane.b32.xlu0 %v1521, 120
      %v1715 = vpop.permute.xlu0 %1714
      %1716 = vrot.lane.b32.xlu0 %v1522, 120
      %v1717 = vpop.permute.xlu0 %1716
      %1718 = vrot.lane.b32.xlu0 %v1529, 120
      %v1719 = vpop.permute.xlu0 %1718
      %1720 = vrot.lane.b32.xlu0 %v1538, 120
      %v1721 = vpop.permute.xlu0 %1720
      %1722 = vrot.lane.b32.xlu0 %v1539, 120
      %v1723 = vpop.permute.xlu0 %1722
      %1724 = vrot.lane.b32.xlu0 %v1546, 120
      %v1725 = vpop.permute.xlu0 %1724
      %1726 = vrot.lane.b32.xlu0 %v1555, 120
      %v1727 = vpop.permute.xlu0 %1726
      %1728 = vrot.lane.b32.xlu0 %v1556, 120
      %v1729 = vpop.permute.xlu0 %1728
      %1730 = vrot.lane.b32.xlu0 %v1563, 120
      %v1731 = vpop.permute.xlu0 %1730
      %1732 = vrot.lane.b32.xlu0 %v1572, 120
      %v1733 = vpop.permute.xlu0 %1732
      %1734 = vrot.lane.b32.xlu0 %v1573, 120
      %v1735 = vpop.permute.xlu0 %1734
      %1736 = vrot.lane.b32.xlu0 %v1580, 120
      %v1737 = vpop.permute.xlu0 %1736
      %1738 = vrot.lane.b32.xlu0 %v1589, 120
      %v1739 = vpop.permute.xlu0 %1738
      %1740 = vrot.lane.b32.xlu0 %v1590, 120
      %v1741 = vpop.permute.xlu0 %1740
      %1742 = vrot.lane.b32.xlu0 %v1597, 120
      %v1743 = vpop.permute.xlu0 %1742
      %1744 = vrot.lane.b32.xlu0 %v1606, 120
      %v1745 = vpop.permute.xlu0 %1744
      %1746 = vrot.lane.b32.xlu0 %v1607, 120
      %v1747 = vpop.permute.xlu0 %1746
      %1748 = vrot.lane.b32.xlu0 %v1614, 120
      %v1749 = vpop.permute.xlu0 %1748
      %1750 = vrot.lane.b32.xlu0 %v1623, 120
      %v1751 = vpop.permute.xlu0 %1750
      %1752 = vrot.lane.b32.xlu0 %v1624, 120
      %v1753 = vpop.permute.xlu0 %1752
      %1754 = vrot.lane.b32.xlu0 %v1631, 120
      %v1755 = vpop.permute.xlu0 %1754
      %1756 = vrot.lane.b32.xlu0 %v1640, 120
      %v1757 = vpop.permute.xlu0 %1756
      %1758 = vrot.lane.b32.xlu0 %v1641, 120
      %v1759 = vpop.permute.xlu0 %1758
      %1760 = vrot.lane.b32.xlu0 %v1648, 120
      %v1761 = vpop.permute.xlu0 %1760
      %1762 = vrot.lane.b32.xlu0 %v1657, 120
      %v1763 = vpop.permute.xlu0 %1762
      %1764 = vrot.lane.b32.xlu0 %v1658, 120
      %v1765 = vpop.permute.xlu0 %1764
      %1766 = vrot.lane.b32.xlu0 %v1665, 120
      %v1767 = vpop.permute.xlu0 %1766
      %1768 = vrot.lane.b32.xlu0 %v1674, 120
      %v1769 = vpop.permute.xlu0 %1768
      %1770 = vrot.lane.b32.xlu0 %v1675, 120
      %v1771 = vpop.permute.xlu0 %1770
      %s1820 = scalar_lea.vmem [#allocation3], 12
      %vm1821 = vcmask 60416
      %vm1822 = vmand %vm1821, %vm723
      %v1823 = vld [vmem:[%s1820] sm:$0xf]
      %v1824 = vsel %vm1822, %v1677, %v1823
      %1825 = vst [vmem:[%s1820] sm:$0xf] %v1824
      %1826 = vst.msk [vmem:[%s1820 + $0x4] sm:$0xf] %vm310, %v1679
      %vm1827 = vcmask 57344
      %vm1828 = vmand %vm1827, %vm398
      %v1829 = vld [vmem:[%s1820 + $0x8] sm:$0x1]
      %v1830 = vsel %vm1828, %v1681, %v1829
      %1831 = vst [vmem:[%s1820 + $0x8] sm:$0x1] %v1830
      %v1832 = vld [vmem:[%s1820 + $0xc] sm:$0xf]
      %v1833 = vsel %vm1822, %v1683, %v1832
      %1834 = vst [vmem:[%s1820 + $0xc] sm:$0xf] %v1833
      %1835 = vst.msk [vmem:[%s1820 + $0x10] sm:$0xf] %vm310, %v1685
      %v1836 = vld [vmem:[%s1820 + $0x14] sm:$0x1]
      %v1837 = vsel %vm1828, %v1687, %v1836
      %1838 = vst [vmem:[%s1820 + $0x14] sm:$0x1] %v1837
      %v1839 = vld [vmem:[%s1820 + $0x18] sm:$0xf]
      %v1840 = vsel %vm1822, %v1689, %v1839
      %1841 = vst [vmem:[%s1820 + $0x18] sm:$0xf] %v1840
      %1842 = vst.msk [vmem:[%s1820 + $0x1c] sm:$0xf] %vm310, %v1691
      %v1843 = vld [vmem:[%s1820 + $0x20] sm:$0x1]
      %v1844 = vsel %vm1828, %v1693, %v1843
      %1845 = vst [vmem:[%s1820 + $0x20] sm:$0x1] %v1844
      %v1846 = vld [vmem:[%s1820 + $0x24] sm:$0xf]
      %v1847 = vsel %vm1822, %v1695, %v1846
      %1848 = vst [vmem:[%s1820 + $0x24] sm:$0xf] %v1847
      %1849 = vst.msk [vmem:[%s1820 + $0x28] sm:$0xf] %vm310, %v1697
      %v1850 = vld [vmem:[%s1820 + $0x2c] sm:$0x1]
      %v1851 = vsel %vm1828, %v1699, %v1850
      %1852 = vst [vmem:[%s1820 + $0x2c] sm:$0x1] %v1851
      %v1853 = vld [vmem:[%s1820 + $0x30] sm:$0xf]
      %v1854 = vsel %vm1822, %v1701, %v1853
      %1855 = vst [vmem:[%s1820 + $0x30] sm:$0xf] %v1854
      %1856 = vst.msk [vmem:[%s1820 + $0x34] sm:$0xf] %vm310, %v1703
      %v1857 = vld [vmem:[%s1820 + $0x38] sm:$0x1]
      %v1858 = vsel %vm1828, %v1705, %v1857
      %1859 = vst [vmem:[%s1820 + $0x38] sm:$0x1] %v1858
      %v1860 = vld [vmem:[%s1820 + $0x3c] sm:$0xf]
      %v1861 = vsel %vm1822, %v1707, %v1860
      %1862 = vst [vmem:[%s1820 + $0x3c] sm:$0xf] %v1861
      %1863 = vst.msk [vmem:[%s1820 + $0x40] sm:$0xf] %vm310, %v1709
      %v1864 = vld [vmem:[%s1820 + $0x44] sm:$0x1]
      %v1865 = vsel %vm1828, %v1711, %v1864
      %1866 = vst [vmem:[%s1820 + $0x44] sm:$0x1] %v1865
      %v1867 = vld [vmem:[%s1820 + $0x48] sm:$0xf]
      %v1868 = vsel %vm1822, %v1713, %v1867
      %1869 = vst [vmem:[%s1820 + $0x48] sm:$0xf] %v1868
      %1870 = vst.msk [vmem:[%s1820 + $0x4c] sm:$0xf] %vm310, %v1715
      %v1871 = vld [vmem:[%s1820 + $0x50] sm:$0x1]
      %v1872 = vsel %vm1828, %v1717, %v1871
      %1873 = vst [vmem:[%s1820 + $0x50] sm:$0x1] %v1872
      %v1874 = vld [vmem:[%s1820 + $0x54] sm:$0xf]
      %v1875 = vsel %vm1822, %v1719, %v1874
      %1876 = vst [vmem:[%s1820 + $0x54] sm:$0xf] %v1875
      %1877 = vst.msk [vmem:[%s1820 + $0x58] sm:$0xf] %vm310, %v1721
      %v1878 = vld [vmem:[%s1820 + $0x5c] sm:$0x1]
      %v1879 = vsel %vm1828, %v1723, %v1878
      %1880 = vst [vmem:[%s1820 + $0x5c] sm:$0x1] %v1879
      %v1881 = vld [vmem:[%s1820 + $0x60] sm:$0xf]
      %v1882 = vsel %vm1822, %v1725, %v1881
      %1883 = vst [vmem:[%s1820 + $0x60] sm:$0xf] %v1882
      %1884 = vst.msk [vmem:[%s1820 + $0x64] sm:$0xf] %vm310, %v1727
      %v1885 = vld [vmem:[%s1820 + $0x68] sm:$0x1]
      %v1886 = vsel %vm1828, %v1729, %v1885
      %1887 = vst [vmem:[%s1820 + $0x68] sm:$0x1] %v1886
      %v1888 = vld [vmem:[%s1820 + $0x6c] sm:$0xf]
      %v1889 = vsel %vm1822, %v1731, %v1888
      %1890 = vst [vmem:[%s1820 + $0x6c] sm:$0xf] %v1889
      %1891 = vst.msk [vmem:[%s1820 + $0x70] sm:$0xf] %vm310, %v1733
      %v1892 = vld [vmem:[%s1820 + $0x74] sm:$0x1]
      %v1893 = vsel %vm1828, %v1735, %v1892
      %1894 = vst [vmem:[%s1820 + $0x74] sm:$0x1] %v1893
      %v1895 = vld [vmem:[%s1820 + $0x78] sm:$0xf]
      %v1896 = vsel %vm1822, %v1737, %v1895
      %1897 = vst [vmem:[%s1820 + $0x78] sm:$0xf] %v1896
      %1898 = vst.msk [vmem:[%s1820 + $0x7c] sm:$0xf] %vm310, %v1739
      %v1899 = vld [vmem:[%s1820 + $0x80] sm:$0x1]
      %v1900 = vsel %vm1828, %v1741, %v1899
      %1901 = vst [vmem:[%s1820 + $0x80] sm:$0x1] %v1900
      %v1902 = vld [vmem:[%s1820 + $0x84] sm:$0xf]
      %v1903 = vsel %vm1822, %v1743, %v1902
      %1904 = vst [vmem:[%s1820 + $0x84] sm:$0xf] %v1903
      %1905 = vst.msk [vmem:[%s1820 + $0x88] sm:$0xf] %vm310, %v1745
      %v1906 = vld [vmem:[%s1820 + $0x8c] sm:$0x1]
      %v1907 = vsel %vm1828, %v1747, %v1906
      %1908 = vst [vmem:[%s1820 + $0x8c] sm:$0x1] %v1907
      %v1909 = vld [vmem:[%s1820 + $0x90] sm:$0xf]
      %v1910 = vsel %vm1822, %v1749, %v1909
      %1911 = vst [vmem:[%s1820 + $0x90] sm:$0xf] %v1910
      %1912 = vst.msk [vmem:[%s1820 + $0x94] sm:$0xf] %vm310, %v1751
      %v1913 = vld [vmem:[%s1820 + $0x98] sm:$0x1]
      %v1914 = vsel %vm1828, %v1753, %v1913
      %1915 = vst [vmem:[%s1820 + $0x98] sm:$0x1] %v1914
      %v1916 = vld [vmem:[%s1820 + $0x9c] sm:$0xf]
      %v1917 = vsel %vm1822, %v1755, %v1916
      %1918 = vst [vmem:[%s1820 + $0x9c] sm:$0xf] %v1917
      %1919 = vst.msk [vmem:[%s1820 + $0xa0] sm:$0xf] %vm310, %v1757
      %v1920 = vld [vmem:[%s1820 + $0xa4] sm:$0x1]
      %v1921 = vsel %vm1828, %v1759, %v1920
      %1922 = vst [vmem:[%s1820 + $0xa4] sm:$0x1] %v1921
      %v1923 = vld [vmem:[%s1820 + $0xa8] sm:$0xf]
      %v1924 = vsel %vm1822, %v1761, %v1923
      %1925 = vst [vmem:[%s1820 + $0xa8] sm:$0xf] %v1924
      %1926 = vst.msk [vmem:[%s1820 + $0xac] sm:$0xf] %vm310, %v1763
      %v1927 = vld [vmem:[%s1820 + $0xb0] sm:$0x1]
      %v1928 = vsel %vm1828, %v1765, %v1927
      %1929 = vst [vmem:[%s1820 + $0xb0] sm:$0x1] %v1928
      %v1930 = vld [vmem:[%s1820 + $0xb4] sm:$0xf]
      %v1931 = vsel %vm1822, %v1767, %v1930
      %1932 = vst [vmem:[%s1820 + $0xb4] sm:$0xf] %v1931
      %1933 = vst.msk [vmem:[%s1820 + $0xb8] sm:$0xf] %vm310, %v1769
      %v1934 = vld [vmem:[%s1820 + $0xbc] sm:$0x1]
      %v1935 = vsel %vm1828, %v1771, %v1934
      %1936 = vst [vmem:[%s1820 + $0xbc] sm:$0x1] %v1935
      %v1937 = vld [vmem:[#allocation3] sm:$0xf]
      %v1938 = vld [vmem:[#allocation3 + $0x4] sm:$0xf]
      %v1939 = vld [vmem:[#allocation3 + $0xc] sm:$0xf]
      %v1940 = vld [vmem:[#allocation3 + $0x10] sm:$0xf]
      %v1941 = vld [vmem:[#allocation3 + $0x18] sm:$0xf]
      %v1942 = vld [vmem:[#allocation3 + $0x1c] sm:$0xf]
      %v1943 = vld [vmem:[#allocation3 + $0x24] sm:$0xf]
      %v1944 = vld [vmem:[#allocation3 + $0x28] sm:$0xf]
      %v1945 = vld [vmem:[#allocation3 + $0x30] sm:$0xf]
      %v1946 = vld [vmem:[#allocation3 + $0x34] sm:$0xf]
      %v1947 = vld [vmem:[#allocation3 + $0x3c] sm:$0xf]
      %v1948 = vld [vmem:[#allocation3 + $0x40] sm:$0xf]
      %v1949 = vld [vmem:[#allocation3 + $0x48] sm:$0xf]
      %v1950 = vld [vmem:[#allocation3 + $0x4c] sm:$0xf]
      %v1951 = vld [vmem:[#allocation3 + $0x54] sm:$0xf]
      %v1952 = vld [vmem:[#allocation3 + $0x58] sm:$0xf]
      %v1953 = vld [vmem:[#allocation3 + $0x60] sm:$0xf]
      %v1954 = vld [vmem:[#allocation3 + $0x64] sm:$0xf]
      %v1955 = vld [vmem:[#allocation3 + $0x6c] sm:$0xf]
      %v1956 = vld [vmem:[#allocation3 + $0x70] sm:$0xf]
      %v1957 = vld [vmem:[#allocation3 + $0x78] sm:$0xf]
      %v1958 = vld [vmem:[#allocation3 + $0x7c] sm:$0xf]
      %v1959 = vld [vmem:[#allocation3 + $0x84] sm:$0xf]
      %v1960 = vld [vmem:[#allocation3 + $0x88] sm:$0xf]
      %v1961 = vld [vmem:[#allocation3 + $0x90] sm:$0xf]
      %v1962 = vld [vmem:[#allocation3 + $0x94] sm:$0xf]
      %v1963 = vld [vmem:[#allocation3 + $0x9c] sm:$0xf]
      %v1964 = vld [vmem:[#allocation3 + $0xa0] sm:$0xf]
      %v1965 = vld [vmem:[#allocation3 + $0xa8] sm:$0xf]
      %v1966 = vld [vmem:[#allocation3 + $0xac] sm:$0xf]
      %v1967 = vld [vmem:[#allocation3 + $0xb4] sm:$0xf]
      %v1968 = vld [vmem:[#allocation3 + $0xb8] sm:$0xf]
      %v1969 = vld [vmem:[%s2] sm:$0xf]
      %v1970 = vld [vmem:[#allocation3 + $0x8] sm:$0x1]
      %v1971 = vld [vmem:[#allocation3 + $0x14] sm:$0x1]
      %v1972 = vld [vmem:[#allocation3 + $0x20] sm:$0x1]
      %v1973 = vld [vmem:[#allocation3 + $0x2c] sm:$0x1]
      %v1974 = vld [vmem:[#allocation3 + $0x38] sm:$0x1]
      %v1975 = vld [vmem:[#allocation3 + $0x44] sm:$0x1]
      %v1976 = vld [vmem:[#allocation3 + $0x50] sm:$0x1]
      %v1977 = vld [vmem:[#allocation3 + $0x5c] sm:$0x1]
      %v1978 = vld [vmem:[#allocation3 + $0x68] sm:$0x1]
      %v1979 = vld [vmem:[#allocation3 + $0x74] sm:$0x1]
      %v1980 = vld [vmem:[#allocation3 + $0x80] sm:$0x1]
      %v1981 = vld [vmem:[#allocation3 + $0x8c] sm:$0x1]
      %v1982 = vld [vmem:[#allocation3 + $0x98] sm:$0x1]
      %v1983 = vld [vmem:[#allocation3 + $0xa4] sm:$0x1]
      %v1984 = vld [vmem:[#allocation3 + $0xb0] sm:$0x1]
      %v1985 = vld [vmem:[#allocation3 + $0xbc] sm:$0x1]
      %vm1986 = vsmask.f32 3328
      %vm1987 = vsmask.f32 7440
      %vm1988 = vmor %vm1986, %vm1987
      %v1990 = vshrl.u32 %v1937, 16
      %v1992 = vrot.slane %v1990, 4
      %v1993 = vshll.u32 %v1937, 16
      %v1995 = vrot.slane %v1993, 5
      %v1996 = vor.u32 %v1992, %v1995
      %v1997 = vrot.slane %v1996, 4
      %v1999 = vshll.u32 %v1938, 16
      %v2001 = vrot.slane %v1999, 5
      %v2002 = vsel %vm1988, %v1997, %v2001
      %v2003 = vshrl.u32 %v1938, 16
      %v2005 = vrot.slane %v2003, 4
      %v2006 = vor.u32 %v2005, %v2001
      %v2007 = vrot.slane %v2006, 4
      %v2009 = vshll.u32 %v1970, 16
      %v2011 = vrot.slane %v2009, 5
      %v2012 = vsel %vm1988, %v2007, %v2011
      %v2014 = vshrl.u32 %v1939, 16
      %v2016 = vrot.slane %v2014, 4
      %v2017 = vshll.u32 %v1939, 16
      %v2019 = vrot.slane %v2017, 5
      %v2020 = vor.u32 %v2016, %v2019
      %v2021 = vrot.slane %v2020, 4
      %v2023 = vshll.u32 %v1940, 16
      %v2025 = vrot.slane %v2023, 5
      %v2026 = vsel %vm1988, %v2021, %v2025
      %v2027 = vshrl.u32 %v1940, 16
      %v2029 = vrot.slane %v2027, 4
      %v2030 = vor.u32 %v2029, %v2025
      %v2031 = vrot.slane %v2030, 4
      %v2033 = vshll.u32 %v1971, 16
      %v2035 = vrot.slane %v2033, 5
      %v2036 = vsel %vm1988, %v2031, %v2035
      %v2038 = vshrl.u32 %v1941, 16
      %v2040 = vrot.slane %v2038, 4
      %v2041 = vshll.u32 %v1941, 16
      %v2043 = vrot.slane %v2041, 5
      %v2044 = vor.u32 %v2040, %v2043
      %v2045 = vrot.slane %v2044, 4
      %v2047 = vshll.u32 %v1942, 16
      %v2049 = vrot.slane %v2047, 5
      %v2050 = vsel %vm1988, %v2045, %v2049
      %v2051 = vshrl.u32 %v1942, 16
      %v2053 = vrot.slane %v2051, 4
      %v2054 = vor.u32 %v2053, %v2049
      %v2055 = vrot.slane %v2054, 4
      %v2057 = vshll.u32 %v1972, 16
      %v2059 = vrot.slane %v2057, 5
      %v2060 = vsel %vm1988, %v2055, %v2059
      %v2062 = vshrl.u32 %v1943, 16
      %v2064 = vrot.slane %v2062, 4
      %v2065 = vshll.u32 %v1943, 16
      %v2067 = vrot.slane %v2065, 5
      %v2068 = vor.u32 %v2064, %v2067
      %v2069 = vrot.slane %v2068, 4
      %v2071 = vshll.u32 %v1944, 16
      %v2073 = vrot.slane %v2071, 5
      %v2074 = vsel %vm1988, %v2069, %v2073
      %v2075 = vshrl.u32 %v1944, 16
      %v2077 = vrot.slane %v2075, 4
      %v2078 = vor.u32 %v2077, %v2073
      %v2079 = vrot.slane %v2078, 4
      %v2081 = vshll.u32 %v1973, 16
      %v2083 = vrot.slane %v2081, 5
      %v2084 = vsel %vm1988, %v2079, %v2083
      %v2086 = vshrl.u32 %v1945, 16
      %v2088 = vrot.slane %v2086, 4
      %v2089 = vshll.u32 %v1945, 16
      %v2091 = vrot.slane %v2089, 5
      %v2092 = vor.u32 %v2088, %v2091
      %v2093 = vrot.slane %v2092, 4
      %v2095 = vshll.u32 %v1946, 16
      %v2097 = vrot.slane %v2095, 5
      %v2098 = vsel %vm1988, %v2093, %v2097
      %v2099 = vshrl.u32 %v1946, 16
      %v2101 = vrot.slane %v2099, 4
      %v2102 = vor.u32 %v2101, %v2097
      %v2103 = vrot.slane %v2102, 4
      %v2105 = vshll.u32 %v1974, 16
      %v2107 = vrot.slane %v2105, 5
      %v2108 = vsel %vm1988, %v2103, %v2107
      %v2110 = vshrl.u32 %v1947, 16
      %v2112 = vrot.slane %v2110, 4
      %v2113 = vshll.u32 %v1947, 16
      %v2115 = vrot.slane %v2113, 5
      %v2116 = vor.u32 %v2112, %v2115
      %v2117 = vrot.slane %v2116, 4
      %v2119 = vshll.u32 %v1948, 16
      %v2121 = vrot.slane %v2119, 5
      %v2122 = vsel %vm1988, %v2117, %v2121
      %v2123 = vshrl.u32 %v1948, 16
      %v2125 = vrot.slane %v2123, 4
      %v2126 = vor.u32 %v2125, %v2121
      %v2127 = vrot.slane %v2126, 4
      %v2129 = vshll.u32 %v1975, 16
      %v2131 = vrot.slane %v2129, 5
      %v2132 = vsel %vm1988, %v2127, %v2131
      %v2134 = vshrl.u32 %v1949, 16
      %v2136 = vrot.slane %v2134, 4
      %v2137 = vshll.u32 %v1949, 16
      %v2139 = vrot.slane %v2137, 5
      %v2140 = vor.u32 %v2136, %v2139
      %v2141 = vrot.slane %v2140, 4
      %v2143 = vshll.u32 %v1950, 16
      %v2145 = vrot.slane %v2143, 5
      %v2146 = vsel %vm1988, %v2141, %v2145
      %v2147 = vshrl.u32 %v1950, 16
      %v2149 = vrot.slane %v2147, 4
      %v2150 = vor.u32 %v2149, %v2145
      %v2151 = vrot.slane %v2150, 4
      %v2153 = vshll.u32 %v1976, 16
      %v2155 = vrot.slane %v2153, 5
      %v2156 = vsel %vm1988, %v2151, %v2155
      %v2158 = vshrl.u32 %v1951, 16
      %v2160 = vrot.slane %v2158, 4
      %v2161 = vshll.u32 %v1951, 16
      %v2163 = vrot.slane %v2161, 5
      %v2164 = vor.u32 %v2160, %v2163
      %v2165 = vrot.slane %v2164, 4
      %v2167 = vshll.u32 %v1952, 16
      %v2169 = vrot.slane %v2167, 5
      %v2170 = vsel %vm1988, %v2165, %v2169
      %v2171 = vshrl.u32 %v1952, 16
      %v2173 = vrot.slane %v2171, 4
      %v2174 = vor.u32 %v2173, %v2169
      %v2175 = vrot.slane %v2174, 4
      %v2177 = vshll.u32 %v1977, 16
      %v2179 = vrot.slane %v2177, 5
      %v2180 = vsel %vm1988, %v2175, %v2179
      %v2182 = vshrl.u32 %v1953, 16
      %v2184 = vrot.slane %v2182, 4
      %v2185 = vshll.u32 %v1953, 16
      %v2187 = vrot.slane %v2185, 5
      %v2188 = vor.u32 %v2184, %v2187
      %v2189 = vrot.slane %v2188, 4
      %v2191 = vshll.u32 %v1954, 16
      %v2193 = vrot.slane %v2191, 5
      %v2194 = vsel %vm1988, %v2189, %v2193
      %v2195 = vshrl.u32 %v1954, 16
      %v2197 = vrot.slane %v2195, 4
      %v2198 = vor.u32 %v2197, %v2193
      %v2199 = vrot.slane %v2198, 4
      %v2201 = vshll.u32 %v1978, 16
      %v2203 = vrot.slane %v2201, 5
      %v2204 = vsel %vm1988, %v2199, %v2203
      %v2206 = vshrl.u32 %v1955, 16
      %v2208 = vrot.slane %v2206, 4
      %v2209 = vshll.u32 %v1955, 16
      %v2211 = vrot.slane %v2209, 5
      %v2212 = vor.u32 %v2208, %v2211
      %v2213 = vrot.slane %v2212, 4
      %v2215 = vshll.u32 %v1956, 16
      %v2217 = vrot.slane %v2215, 5
      %v2218 = vsel %vm1988, %v2213, %v2217
      %v2219 = vshrl.u32 %v1956, 16
      %v2221 = vrot.slane %v2219, 4
      %v2222 = vor.u32 %v2221, %v2217
      %v2223 = vrot.slane %v2222, 4
      %v2225 = vshll.u32 %v1979, 16
      %v2227 = vrot.slane %v2225, 5
      %v2228 = vsel %vm1988, %v2223, %v2227
      %v2230 = vshrl.u32 %v1957, 16
      %v2232 = vrot.slane %v2230, 4
      %v2233 = vshll.u32 %v1957, 16
      %v2235 = vrot.slane %v2233, 5
      %v2236 = vor.u32 %v2232, %v2235
      %v2237 = vrot.slane %v2236, 4
      %v2239 = vshll.u32 %v1958, 16
      %v2241 = vrot.slane %v2239, 5
      %v2242 = vsel %vm1988, %v2237, %v2241
      %v2243 = vshrl.u32 %v1958, 16
      %v2245 = vrot.slane %v2243, 4
      %v2246 = vor.u32 %v2245, %v2241
      %v2247 = vrot.slane %v2246, 4
      %v2249 = vshll.u32 %v1980, 16
      %v2251 = vrot.slane %v2249, 5
      %v2252 = vsel %vm1988, %v2247, %v2251
      %v2254 = vshrl.u32 %v1959, 16
      %v2256 = vrot.slane %v2254, 4
      %v2257 = vshll.u32 %v1959, 16
      %v2259 = vrot.slane %v2257, 5
      %v2260 = vor.u32 %v2256, %v2259
      %v2261 = vrot.slane %v2260, 4
      %v2263 = vshll.u32 %v1960, 16
      %v2265 = vrot.slane %v2263, 5
      %v2266 = vsel %vm1988, %v2261, %v2265
      %v2267 = vshrl.u32 %v1960, 16
      %v2269 = vrot.slane %v2267, 4
      %v2270 = vor.u32 %v2269, %v2265
      %v2271 = vrot.slane %v2270, 4
      %v2273 = vshll.u32 %v1981, 16
      %v2275 = vrot.slane %v2273, 5
      %v2276 = vsel %vm1988, %v2271, %v2275
      %v2278 = vshrl.u32 %v1961, 16
      %v2280 = vrot.slane %v2278, 4
      %v2281 = vshll.u32 %v1961, 16
      %v2283 = vrot.slane %v2281, 5
      %v2284 = vor.u32 %v2280, %v2283
      %v2285 = vrot.slane %v2284, 4
      %v2287 = vshll.u32 %v1962, 16
      %v2289 = vrot.slane %v2287, 5
      %v2290 = vsel %vm1988, %v2285, %v2289
      %v2291 = vshrl.u32 %v1962, 16
      %v2293 = vrot.slane %v2291, 4
      %v2294 = vor.u32 %v2293, %v2289
      %v2295 = vrot.slane %v2294, 4
      %v2297 = vshll.u32 %v1982, 16
      %v2299 = vrot.slane %v2297, 5
      %v2300 = vsel %vm1988, %v2295, %v2299
      %v2302 = vshrl.u32 %v1963, 16
      %v2304 = vrot.slane %v2302, 4
      %v2305 = vshll.u32 %v1963, 16
      %v2307 = vrot.slane %v2305, 5
      %v2308 = vor.u32 %v2304, %v2307
      %v2309 = vrot.slane %v2308, 4
      %v2311 = vshll.u32 %v1964, 16
      %v2313 = vrot.slane %v2311, 5
      %v2314 = vsel %vm1988, %v2309, %v2313
      %v2315 = vshrl.u32 %v1964, 16
      %v2317 = vrot.slane %v2315, 4
      %v2318 = vor.u32 %v2317, %v2313
      %v2319 = vrot.slane %v2318, 4
      %v2321 = vshll.u32 %v1983, 16
      %v2323 = vrot.slane %v2321, 5
      %v2324 = vsel %vm1988, %v2319, %v2323
      %v2326 = vshrl.u32 %v1965, 16
      %v2328 = vrot.slane %v2326, 4
      %v2329 = vshll.u32 %v1965, 16
      %v2331 = vrot.slane %v2329, 5
      %v2332 = vor.u32 %v2328, %v2331
      %v2333 = vrot.slane %v2332, 4
      %v2335 = vshll.u32 %v1966, 16
      %v2337 = vrot.slane %v2335, 5
      %v2338 = vsel %vm1988, %v2333, %v2337
      %v2339 = vshrl.u32 %v1966, 16
      %v2341 = vrot.slane %v2339, 4
      %v2342 = vor.u32 %v2341, %v2337
      %v2343 = vrot.slane %v2342, 4
      %v2345 = vshll.u32 %v1984, 16
      %v2347 = vrot.slane %v2345, 5
      %v2348 = vsel %vm1988, %v2343, %v2347
      %v2350 = vshrl.u32 %v1967, 16
      %v2352 = vrot.slane %v2350, 4
      %v2353 = vshll.u32 %v1967, 16
      %v2355 = vrot.slane %v2353, 5
      %v2356 = vor.u32 %v2352, %v2355
      %v2357 = vrot.slane %v2356, 4
      %v2359 = vshll.u32 %v1968, 16
      %v2361 = vrot.slane %v2359, 5
      %v2362 = vsel %vm1988, %v2357, %v2361
      %v2363 = vshrl.u32 %v1968, 16
      %v2365 = vrot.slane %v2363, 4
      %v2366 = vor.u32 %v2365, %v2361
      %v2367 = vrot.slane %v2366, 4
      %v2369 = vshll.u32 %v1985, 16
      %v2371 = vrot.slane %v2369, 5
      %v2372 = vsel %vm1988, %v2367, %v2371
      %s2373 = scalar_lea.vmem %s2, 4
      %v2374 = vld [vmem:[%s2373] sm:$0xf]
      %v2375 = vunpack.c.l.b16 %v2002
      %v2376 = vunpack.c.l.b16 %v2012
      %v2377 = vunpack.c.l.b16 %v2026
      %v2378 = vunpack.c.l.b16 %v2036
      %v2379 = vunpack.c.l.b16 %v2050
      %v2380 = vunpack.c.l.b16 %v2060
      %v2381 = vunpack.c.l.b16 %v2074
      %v2382 = vunpack.c.l.b16 %v2084
      %v2383 = vunpack.c.l.b16 %v2098
      %v2384 = vunpack.c.l.b16 %v2108
      %v2385 = vunpack.c.l.b16 %v2122
      %v2386 = vunpack.c.l.b16 %v2132
      %v2387 = vunpack.c.l.b16 %v2146
      %v2388 = vunpack.c.l.b16 %v2156
      %v2389 = vunpack.c.l.b16 %v2170
      %v2390 = vunpack.c.l.b16 %v2180
      %v2391 = vunpack.c.l.b16 %v2194
      %v2392 = vunpack.c.l.b16 %v2204
      %v2393 = vunpack.c.l.b16 %v2218
      %v2394 = vunpack.c.l.b16 %v2228
      %v2395 = vunpack.c.l.b16 %v2242
      %v2396 = vunpack.c.l.b16 %v2252
      %v2397 = vunpack.c.l.b16 %v2266
      %v2398 = vunpack.c.l.b16 %v2276
      %v2399 = vunpack.c.l.b16 %v2290
      %v2400 = vunpack.c.l.b16 %v2300
      %v2401 = vunpack.c.l.b16 %v2314
      %v2402 = vunpack.c.l.b16 %v2324
      %v2403 = vunpack.c.l.b16 %v2338
      %v2404 = vunpack.c.l.b16 %v2348
      %v2405 = vunpack.c.l.b16 %v2362
      %v2406 = vunpack.c.l.b16 %v2372
      %v2407 = vpack.c.b16 %v2376, %v2375
      %v2408 = vpack.c.b16 %v2378, %v2377
      %v2409 = vpack.c.b16 %v2380, %v2379
      %v2410 = vpack.c.b16 %v2382, %v2381
      %v2411 = vpack.c.b16 %v2384, %v2383
      %v2412 = vpack.c.b16 %v2386, %v2385
      %v2413 = vpack.c.b16 %v2388, %v2387
      %v2414 = vpack.c.b16 %v2390, %v2389
      %v2415 = vpack.c.b16 %v2392, %v2391
      %v2416 = vpack.c.b16 %v2394, %v2393
      %v2417 = vpack.c.b16 %v2396, %v2395
      %v2418 = vpack.c.b16 %v2398, %v2397
      %v2419 = vpack.c.b16 %v2400, %v2399
      %v2420 = vpack.c.b16 %v2402, %v2401
      %v2421 = vpack.c.b16 %v2404, %v2403
      %v2422 = vpack.c.b16 %v2406, %v2405
      %vm2423 = vcmask 64512
      %v2425 = vsel %vm2423, %v2407, 0
      %v2428 = vsel %vm2423, %v2408, 0
      %v2431 = vsel %vm2423, %v2409, 0
      %v2434 = vsel %vm2423, %v2410, 0
      %v2437 = vsel %vm2423, %v2411, 0
      %v2440 = vsel %vm2423, %v2412, 0
      %v2443 = vsel %vm2423, %v2413, 0
      %v2446 = vsel %vm2423, %v2414, 0
      %v2449 = vsel %vm2423, %v2415, 0
      %v2452 = vsel %vm2423, %v2416, 0
      %v2455 = vsel %vm2423, %v2417, 0
      %v2458 = vsel %vm2423, %v2418, 0
      %v2461 = vsel %vm2423, %v2419, 0
      %v2464 = vsel %vm2423, %v2420, 0
      %v2467 = vsel %vm2423, %v2421, 0
      %v2470 = vsel %vm2423, %v2422, 0
      %vm2472 = vcmask 1043456
      %v2474 = vsel %vm2472, %v2374, 0
      %2476 = vmatprep.subr.bf16.mxu0 0
      %2477 = vmatpush1.bf16.msra.mxu0 %v2474
      %2478 = vmatprep.subr.bf16.mxu0 0
      %2479 = vmatpush1.bf16.msra.mxu0 0
      %2480 = vmatprep.subr.bf16.mxu0 0
      %2481 = vmatpush1.bf16.msra.mxu0 0
      %2482 = vmatprep.subr.bf16.mxu0 0
      %2483 = vmatpush1.bf16.msra.mxu0 0
      %2484 = vmatprep.subr.bf16.mxu0 0
      %2485 = vmatpush1.bf16.msra.mxu0 0
      %2486 = vmatprep.subr.bf16.mxu0 0
      %2487 = vmatpush1.bf16.msra.mxu0 0
      %2488 = vmatprep.subr.bf16.mxu0 0
      %2489 = vmatpush1.bf16.msra.mxu0 0
      %2490 = vmatprep.subr.bf16.mxu0 0
      %2491 = vmatpush1.bf16.msra.mxu0 0
      %2492 = vmatprep.subr.bf16.mxu0 0
      %2493 = vmatpush1.bf16.msra.mxu0 0
      %2494 = vmatprep.subr.bf16.mxu0 0
      %2495 = vmatpush1.bf16.msra.mxu0 0
      %2496 = vmatprep.subr.bf16.mxu0 0
      %2497 = vmatpush1.bf16.msra.mxu0 0
      %2498 = vmatprep.subr.bf16.mxu0 0
      %2499 = vmatpush1.bf16.msra.mxu0 0
      %2500 = vmatprep.subr.bf16.mxu0 0
      %2501 = vmatpush1.bf16.msra.mxu0 0
      %2502 = vmatprep.subr.bf16.mxu0 0
      %2503 = vmatpush1.bf16.msra.mxu0 0
      %2504 = vmatprep.subr.bf16.mxu0 0
      %2505 = vmatpush1.bf16.msra.mxu0 0
      %2506 = vmatprep.subr.bf16.mxu0 0
      %2507 = vmatpush1.bf16.msra.mxu0 0
      %2508 = vmatprep.mubr.bf16.mxu0 0
      %2509 = vmatmul.mubr.bf16.gmra.mrb[0].mxu0 %v2425
      %v2510 = vpop.f32.mrb[0].mxu0
      %v2511 = vadd.f32 0.0, %v2510
      %v2512 = vpop.f32.mrb[0].mxu0
      %v2513 = vpop.f32.mrb[0].mxu0
      %v2514 = vadd.f32 0.0, %v2513
      %v2515 = vpop.f32.mrb[0].mxu0
      %2516 = vmatprep.mubr.bf16.mxu0 0
      %2517 = vmatmul.mubr.bf16.gmra.mrb[0].mxu0 %v2428
      %v2518 = vpop.f32.mrb[0].mxu0
      %v2519 = vadd.f32 0.0, %v2518
      %v2520 = vpop.f32.mrb[0].mxu0
      %v2521 = vpop.f32.mrb[0].mxu0
      %v2522 = vadd.f32 0.0, %v2521
      %v2523 = vpop.f32.mrb[0].mxu0
      %2524 = vmatprep.mubr.bf16.mxu0 0
      %2525 = vmatmul.mubr.bf16.gmra.mrb[0].mxu0 %v2431
      %v2526 = vpop.f32.mrb[0].mxu0
      %v2527 = vadd.f32 0.0, %v2526
      %v2528 = vpop.f32.mrb[0].mxu0
      %v2529 = vpop.f32.mrb[0].mxu0
      %v2530 = vadd.f32 0.0, %v2529
      %v2531 = vpop.f32.mrb[0].mxu0
      %2532 = vmatprep.mubr.bf16.mxu0 0
      %2533 = vmatmul.mubr.bf16.gmra.mrb[0].mxu0 %v2434
      %v2534 = vpop.f32.mrb[0].mxu0
      %v2535 = vadd.f32 0.0, %v2534
      %v2536 = vpop.f32.mrb[0].mxu0
      %v2537 = vpop.f32.mrb[0].mxu0
      %v2538 = vadd.f32 0.0, %v2537
      %v2539 = vpop.f32.mrb[0].mxu0
      %2540 = vmatprep.mubr.bf16.mxu0 0
      %2541 = vmatmul.mubr.bf16.gmra.mrb[0].mxu0 %v2437
      %v2542 = vpop.f32.mrb[0].mxu0
      %v2543 = vadd.f32 0.0, %v2542
      %v2544 = vpop.f32.mrb[0].mxu0
      %v2545 = vpop.f32.mrb[0].mxu0
      %v2546 = vadd.f32 0.0, %v2545
      %v2547 = vpop.f32.mrb[0].mxu0
      %2548 = vmatprep.mubr.bf16.mxu0 0
      %2549 = vmatmul.mubr.bf16.gmra.mrb[0].mxu0 %v2440
      %v2550 = vpop.f32.mrb[0].mxu0
      %v2551 = vadd.f32 0.0, %v2550
      %v2552 = vpop.f32.mrb[0].mxu0
      %v2553 = vpop.f32.mrb[0].mxu0
      %v2554 = vadd.f32 0.0, %v2553
      %v2555 = vpop.f32.mrb[0].mxu0
      %2556 = vmatprep.mubr.bf16.mxu0 0
      %2557 = vmatmul.mubr.bf16.gmra.mrb[0].mxu0 %v2443
      %v2558 = vpop.f32.mrb[0].mxu0
      %v2559 = vadd.f32 0.0, %v2558
      %v2560 = vpop.f32.mrb[0].mxu0
      %v2561 = vpop.f32.mrb[0].mxu0
      %v2562 = vadd.f32 0.0, %v2561
      %v2563 = vpop.f32.mrb[0].mxu0
      %2564 = vmatprep.mubr.bf16.mxu0 0
      %2565 = vmatmul.mubr.bf16.gmra.mrb[0].mxu0 %v2446
      %v2566 = vpop.f32.mrb[0].mxu0
      %v2567 = vadd.f32 0.0, %v2566
      %v2568 = vpop.f32.mrb[0].mxu0
      %v2569 = vpop.f32.mrb[0].mxu0
      %v2570 = vadd.f32 0.0, %v2569
      %v2571 = vpop.f32.mrb[0].mxu0
      %2572 = vmatprep.mubr.bf16.mxu0 0
      %2573 = vmatmul.mubr.bf16.gmra.mrb[0].mxu0 %v2449
      %v2574 = vpop.f32.mrb[0].mxu0
      %v2575 = vadd.f32 0.0, %v2574
      %v2576 = vpop.f32.mrb[0].mxu0
      %v2577 = vpop.f32.mrb[0].mxu0
      %v2578 = vadd.f32 0.0, %v2577
      %v2579 = vpop.f32.mrb[0].mxu0
      %2580 = vmatprep.mubr.bf16.mxu0 0
      %2581 = vmatmul.mubr.bf16.gmra.mrb[0].mxu0 %v2452
      %v2582 = vpop.f32.mrb[0].mxu0
      %v2583 = vadd.f32 0.0, %v2582
      %v2584 = vpop.f32.mrb[0].mxu0
      %v2585 = vpop.f32.mrb[0].mxu0
      %v2586 = vadd.f32 0.0, %v2585
      %v2587 = vpop.f32.mrb[0].mxu0
      %2588 = vmatprep.mubr.bf16.mxu0 0
      %2589 = vmatmul.mubr.bf16.gmra.mrb[0].mxu0 %v2455
      %v2590 = vpop.f32.mrb[0].mxu0
      %v2591 = vadd.f32 0.0, %v2590
      %v2592 = vpop.f32.mrb[0].mxu0
      %v2593 = vpop.f32.mrb[0].mxu0
      %v2594 = vadd.f32 0.0, %v2593
      %v2595 = vpop.f32.mrb[0].mxu0
      %2596 = vmatprep.mubr.bf16.mxu0 0
      %2597 = vmatmul.mubr.bf16.gmra.mrb[0].mxu0 %v2458
      %v2598 = vpop.f32.mrb[0].mxu0
      %v2599 = vadd.f32 0.0, %v2598
      %v2600 = vpop.f32.mrb[0].mxu0
      %v2601 = vpop.f32.mrb[0].mxu0
      %v2602 = vadd.f32 0.0, %v2601
      %v2603 = vpop.f32.mrb[0].mxu0
      %2604 = vmatprep.mubr.bf16.mxu0 0
      %2605 = vmatmul.mubr.bf16.gmra.mrb[0].mxu0 %v2461
      %v2606 = vpop.f32.mrb[0].mxu0
      %v2607 = vadd.f32 0.0, %v2606
      %v2608 = vpop.f32.mrb[0].mxu0
      %v2609 = vpop.f32.mrb[0].mxu0
      %v2610 = vadd.f32 0.0, %v2609
      %v2611 = vpop.f32.mrb[0].mxu0
      %2612 = vmatprep.mubr.bf16.mxu0 0
      %2613 = vmatmul.mubr.bf16.gmra.mrb[0].mxu0 %v2464
      %v2614 = vpop.f32.mrb[0].mxu0
      %v2615 = vadd.f32 0.0, %v2614
      %v2616 = vpop.f32.mrb[0].mxu0
      %v2617 = vpop.f32.mrb[0].mxu0
      %v2618 = vadd.f32 0.0, %v2617
      %v2619 = vpop.f32.mrb[0].mxu0
      %2620 = vmatprep.mubr.bf16.mxu0 0
      %2621 = vmatmul.mubr.bf16.gmra.mrb[0].mxu0 %v2467
      %v2622 = vpop.f32.mrb[0].mxu0
      %v2623 = vadd.f32 0.0, %v2622
      %v2624 = vpop.f32.mrb[0].mxu0
      %v2625 = vpop.f32.mrb[0].mxu0
      %v2626 = vadd.f32 0.0, %v2625
      %v2627 = vpop.f32.mrb[0].mxu0
      %2628 = vmatprep.mubr.bf16.mxu0 0
      %2629 = vmatmul.mubr.bf16.gmra.mrb[0].mxu0 %v2470
      %v2630 = vpop.f32.mrb[0].mxu0
      %v2631 = vadd.f32 0.0, %v2630
      %v2632 = vpop.f32.mrb[0].mxu0
      %v2633 = vpop.f32.mrb[0].mxu0
      %v2634 = vadd.f32 0.0, %v2633
      %v2635 = vpop.f32.mrb[0].mxu0
      %2636 = vdwg.mxu0
      %v2669 = vunpack.c.l.b16 %v1937
      %v2670 = vunpack.c.l.b16 %v1938
      %v2671 = vunpack.c.l.b16 %v1939
      %v2672 = vunpack.c.l.b16 %v1940
      %v2673 = vunpack.c.l.b16 %v1941
      %v2674 = vunpack.c.l.b16 %v1942
      %v2675 = vunpack.c.l.b16 %v1943
      %v2676 = vunpack.c.l.b16 %v1944
      %v2677 = vunpack.c.l.b16 %v1945
      %v2678 = vunpack.c.l.b16 %v1946
      %v2679 = vunpack.c.l.b16 %v1947
      %v2680 = vunpack.c.l.b16 %v1948
      %v2681 = vunpack.c.l.b16 %v1949
      %v2682 = vunpack.c.l.b16 %v1950
      %v2683 = vunpack.c.l.b16 %v1951
      %v2684 = vunpack.c.l.b16 %v1952
      %v2685 = vunpack.c.l.b16 %v1953
      %v2686 = vunpack.c.l.b16 %v1954
      %v2687 = vunpack.c.l.b16 %v1955
      %v2688 = vunpack.c.l.b16 %v1956
      %v2689 = vunpack.c.l.b16 %v1957
      %v2690 = vunpack.c.l.b16 %v1958
      %v2691 = vunpack.c.l.b16 %v1959
      %v2692 = vunpack.c.l.b16 %v1960
      %v2693 = vunpack.c.l.b16 %v1961
      %v2694 = vunpack.c.l.b16 %v1962
      %v2695 = vunpack.c.l.b16 %v1963
      %v2696 = vunpack.c.l.b16 %v1964
      %v2697 = vunpack.c.l.b16 %v1965
      %v2698 = vunpack.c.l.b16 %v1966
      %v2699 = vunpack.c.l.b16 %v1967
      %v2700 = vunpack.c.l.b16 %v1968
      %v2701 = vpack.c.b16 %v2670, %v2669
      %v2702 = vpack.c.b16 %v2672, %v2671
      %v2703 = vpack.c.b16 %v2674, %v2673
      %v2704 = vpack.c.b16 %v2676, %v2675
      %v2705 = vpack.c.b16 %v2678, %v2677
      %v2706 = vpack.c.b16 %v2680, %v2679
      %v2707 = vpack.c.b16 %v2682, %v2681
      %v2708 = vpack.c.b16 %v2684, %v2683
      %v2709 = vpack.c.b16 %v2686, %v2685
      %v2710 = vpack.c.b16 %v2688, %v2687
      %v2711 = vpack.c.b16 %v2690, %v2689
      %v2712 = vpack.c.b16 %v2692, %v2691
      %v2713 = vpack.c.b16 %v2694, %v2693
      %v2714 = vpack.c.b16 %v2696, %v2695
      %v2715 = vpack.c.b16 %v2698, %v2697
      %v2716 = vpack.c.b16 %v2700, %v2699
      %v2718 = vsel %vm2423, %v2701, 0
      %v2721 = vsel %vm2423, %v2702, 0
      %v2724 = vsel %vm2423, %v2703, 0
      %v2727 = vsel %vm2423, %v2704, 0
      %v2730 = vsel %vm2423, %v2705, 0
      %v2733 = vsel %vm2423, %v2706, 0
      %v2736 = vsel %vm2423, %v2707, 0
      %v2739 = vsel %vm2423, %v2708, 0
      %v2742 = vsel %vm2423, %v2709, 0
      %v2745 = vsel %vm2423, %v2710, 0
      %v2748 = vsel %vm2423, %v2711, 0
      %v2751 = vsel %vm2423, %v2712, 0
      %v2754 = vsel %vm2423, %v2713, 0
      %v2757 = vsel %vm2423, %v2714, 0
      %v2760 = vsel %vm2423, %v2715, 0
      %v2763 = vsel %vm2423, %v2716, 0
      %v2766 = vsel %vm2472, %v1969, 0
      %2768 = vmatprep.subr.bf16.mxu0 0
      %2769 = vmatpush1.bf16.msra.mxu0 %v2766
      %2770 = vmatprep.subr.bf16.mxu0 0
      %2771 = vmatpush1.bf16.msra.mxu0 0
      %2772 = vmatprep.subr.bf16.mxu0 0
      %2773 = vmatpush1.bf16.msra.mxu0 0
      %2774 = vmatprep.subr.bf16.mxu0 0
      %2775 = vmatpush1.bf16.msra.mxu0 0
      %2776 = vmatprep.subr.bf16.mxu0 0
      %2777 = vmatpush1.bf16.msra.mxu0 0
      %2778 = vmatprep.subr.bf16.mxu0 0
      %2779 = vmatpush1.bf16.msra.mxu0 0
      %2780 = vmatprep.subr.bf16.mxu0 0
      %2781 = vmatpush1.bf16.msra.mxu0 0
      %2782 = vmatprep.subr.bf16.mxu0 0
      %2783 = vmatpush1.bf16.msra.mxu0 0
      %2784 = vmatprep.subr.bf16.mxu0 0
      %2785 = vmatpush1.bf16.msra.mxu0 0
      %2786 = vmatprep.subr.bf16.mxu0 0
      %2787 = vmatpush1.bf16.msra.mxu0 0
      %2788 = vmatprep.subr.bf16.mxu0 0
      %2789 = vmatpush1.bf16.msra.mxu0 0
      %2790 = vmatprep.subr.bf16.mxu0 0
      %2791 = vmatpush1.bf16.msra.mxu0 0
      %2792 = vmatprep.subr.bf16.mxu0 0
      %2793 = vmatpush1.bf16.msra.mxu0 0
      %2794 = vmatprep.subr.bf16.mxu0 0
      %2795 = vmatpush1.bf16.msra.mxu0 0
      %2796 = vmatprep.subr.bf16.mxu0 0
      %2797 = vmatpush1.bf16.msra.mxu0 0
      %2798 = vmatprep.subr.bf16.mxu0 0
      %2799 = vmatpush1.bf16.msra.mxu0 0
      %2800 = vmatprep.mubr.bf16.mxu0 0
      %2801 = vmatmul.mubr.bf16.gmra.mrb[0].mxu0 %v2718
      %v2802 = vpop.f32.mrb[0].mxu0
      %v2803 = vadd.f32 %v2511, %v2802
      %v2804 = vpop.f32.mrb[0].mxu0
      %v2805 = vpop.f32.mrb[0].mxu0
      %v2806 = vadd.f32 %v2514, %v2805
      %v2807 = vpop.f32.mrb[0].mxu0
      %2808 = vmatprep.mubr.bf16.mxu0 0
      %2809 = vmatmul.mubr.bf16.gmra.mrb[0].mxu0 %v2721
      %v2810 = vpop.f32.mrb[0].mxu0
      %v2811 = vadd.f32 %v2519, %v2810
      %v2812 = vpop.f32.mrb[0].mxu0
      %v2813 = vpop.f32.mrb[0].mxu0
      %v2814 = vadd.f32 %v2522, %v2813
      %v2815 = vpop.f32.mrb[0].mxu0
      %2816 = vmatprep.mubr.bf16.mxu0 0
      %2817 = vmatmul.mubr.bf16.gmra.mrb[0].mxu0 %v2724
      %v2818 = vpop.f32.mrb[0].mxu0
      %v2819 = vadd.f32 %v2527, %v2818
      %v2820 = vpop.f32.mrb[0].mxu0
      %v2821 = vpop.f32.mrb[0].mxu0
      %v2822 = vadd.f32 %v2530, %v2821
      %v2823 = vpop.f32.mrb[0].mxu0
      %2824 = vmatprep.mubr.bf16.mxu0 0
      %2825 = vmatmul.mubr.bf16.gmra.mrb[0].mxu0 %v2727
      %v2826 = vpop.f32.mrb[0].mxu0
      %v2827 = vadd.f32 %v2535, %v2826
      %v2828 = vpop.f32.mrb[0].mxu0
      %v2829 = vpop.f32.mrb[0].mxu0
      %v2830 = vadd.f32 %v2538, %v2829
      %v2831 = vpop.f32.mrb[0].mxu0
      %2832 = vmatprep.mubr.bf16.mxu0 0
      %2833 = vmatmul.mubr.bf16.gmra.mrb[0].mxu0 %v2730
      %v2834 = vpop.f32.mrb[0].mxu0
      %v2835 = vadd.f32 %v2543, %v2834
      %v2836 = vpop.f32.mrb[0].mxu0
      %v2837 = vpop.f32.mrb[0].mxu0
      %v2838 = vadd.f32 %v2546, %v2837
      %v2839 = vpop.f32.mrb[0].mxu0
      %2840 = vmatprep.mubr.bf16.mxu0 0
      %2841 = vmatmul.mubr.bf16.gmra.mrb[0].mxu0 %v2733
      %v2842 = vpop.f32.mrb[0].mxu0
      %v2843 = vadd.f32 %v2551, %v2842
      %v2844 = vpop.f32.mrb[0].mxu0
      %v2845 = vpop.f32.mrb[0].mxu0
      %v2846 = vadd.f32 %v2554, %v2845
      %v2847 = vpop.f32.mrb[0].mxu0
      %2848 = vmatprep.mubr.bf16.mxu0 0
      %2849 = vmatmul.mubr.bf16.gmra.mrb[0].mxu0 %v2736
      %v2850 = vpop.f32.mrb[0].mxu0
      %v2851 = vadd.f32 %v2559, %v2850
      %v2852 = vpop.f32.mrb[0].mxu0
      %v2853 = vpop.f32.mrb[0].mxu0
      %v2854 = vadd.f32 %v2562, %v2853
      %v2855 = vpop.f32.mrb[0].mxu0
      %2856 = vmatprep.mubr.bf16.mxu0 0
      %2857 = vmatmul.mubr.bf16.gmra.mrb[0].mxu0 %v2739
      %v2858 = vpop.f32.mrb[0].mxu0
      %v2859 = vadd.f32 %v2567, %v2858
      %v2860 = vpop.f32.mrb[0].mxu0
      %v2861 = vpop.f32.mrb[0].mxu0
      %v2862 = vadd.f32 %v2570, %v2861
      %v2863 = vpop.f32.mrb[0].mxu0
      %2864 = vmatprep.mubr.bf16.mxu0 0
      %2865 = vmatmul.mubr.bf16.gmra.mrb[0].mxu0 %v2742
      %v2866 = vpop.f32.mrb[0].mxu0
      %v2867 = vadd.f32 %v2575, %v2866
      %v2868 = vpop.f32.mrb[0].mxu0
      %v2869 = vpop.f32.mrb[0].mxu0
      %v2870 = vadd.f32 %v2578, %v2869
      %v2871 = vpop.f32.mrb[0].mxu0
      %2872 = vmatprep.mubr.bf16.mxu0 0
      %2873 = vmatmul.mubr.bf16.gmra.mrb[0].mxu0 %v2745
      %v2874 = vpop.f32.mrb[0].mxu0
      %v2875 = vadd.f32 %v2583, %v2874
      %v2876 = vpop.f32.mrb[0].mxu0
      %v2877 = vpop.f32.mrb[0].mxu0
      %v2878 = vadd.f32 %v2586, %v2877
      %v2879 = vpop.f32.mrb[0].mxu0
      %2880 = vmatprep.mubr.bf16.mxu0 0
      %2881 = vmatmul.mubr.bf16.gmra.mrb[0].mxu0 %v2748
      %v2882 = vpop.f32.mrb[0].mxu0
      %v2883 = vadd.f32 %v2591, %v2882
      %v2884 = vpop.f32.mrb[0].mxu0
      %v2885 = vpop.f32.mrb[0].mxu0
      %v2886 = vadd.f32 %v2594, %v2885
      %v2887 = vpop.f32.mrb[0].mxu0
      %2888 = vmatprep.mubr.bf16.mxu0 0
      %2889 = vmatmul.mubr.bf16.gmra.mrb[0].mxu0 %v2751
      %v2890 = vpop.f32.mrb[0].mxu0
      %v2891 = vadd.f32 %v2599, %v2890
      %v2892 = vpop.f32.mrb[0].mxu0
      %v2893 = vpop.f32.mrb[0].mxu0
      %v2894 = vadd.f32 %v2602, %v2893
      %v2895 = vpop.f32.mrb[0].mxu0
      %2896 = vmatprep.mubr.bf16.mxu0 0
      %2897 = vmatmul.mubr.bf16.gmra.mrb[0].mxu0 %v2754
      %v2898 = vpop.f32.mrb[0].mxu0
      %v2899 = vadd.f32 %v2607, %v2898
      %v2900 = vpop.f32.mrb[0].mxu0
      %v2901 = vpop.f32.mrb[0].mxu0
      %v2902 = vadd.f32 %v2610, %v2901
      %v2903 = vpop.f32.mrb[0].mxu0
      %2904 = vmatprep.mubr.bf16.mxu0 0
      %2905 = vmatmul.mubr.bf16.gmra.mrb[0].mxu0 %v2757
      %v2906 = vpop.f32.mrb[0].mxu0
      %v2907 = vadd.f32 %v2615, %v2906
      %v2908 = vpop.f32.mrb[0].mxu0
      %v2909 = vpop.f32.mrb[0].mxu0
      %v2910 = vadd.f32 %v2618, %v2909
      %v2911 = vpop.f32.mrb[0].mxu0
      %2912 = vmatprep.mubr.bf16.mxu0 0
      %2913 = vmatmul.mubr.bf16.gmra.mrb[0].mxu0 %v2760
      %v2914 = vpop.f32.mrb[0].mxu0
      %v2915 = vadd.f32 %v2623, %v2914
      %v2916 = vpop.f32.mrb[0].mxu0
      %v2917 = vpop.f32.mrb[0].mxu0
      %v2918 = vadd.f32 %v2626, %v2917
      %v2919 = vpop.f32.mrb[0].mxu0
      %2920 = vmatprep.mubr.bf16.mxu0 0
      %2921 = vmatmul.mubr.bf16.gmra.mrb[0].mxu0 %v2763
      %v2922 = vpop.f32.mrb[0].mxu0
      %v2923 = vadd.f32 %v2631, %v2922
      %v2924 = vpop.f32.mrb[0].mxu0
      %v2925 = vpop.f32.mrb[0].mxu0
      %v2926 = vadd.f32 %v2634, %v2925
      %v2927 = vpop.f32.mrb[0].mxu0
      %2928 = vdwg.mxu0
      %v2929 = vld [vmem:[#allocation3] sm:$0xe]
      %v2930 = vld [vmem:[#allocation3 + $0xc] sm:$0xe]
      %v2931 = vld [vmem:[#allocation3 + $0x18] sm:$0xe]
      %v2932 = vld [vmem:[#allocation3 + $0x24] sm:$0xe]
      %v2933 = vld [vmem:[#allocation3 + $0x30] sm:$0xe]
      %v2934 = vld [vmem:[#allocation3 + $0x3c] sm:$0xe]
      %v2935 = vld [vmem:[#allocation3 + $0x48] sm:$0xe]
      %v2936 = vld [vmem:[#allocation3 + $0x54] sm:$0xe]
      %v2937 = vld [vmem:[#allocation3 + $0x60] sm:$0xe]
      %v2938 = vld [vmem:[#allocation3 + $0x6c] sm:$0xe]
      %v2939 = vld [vmem:[#allocation3 + $0x78] sm:$0xe]
      %v2940 = vld [vmem:[#allocation3 + $0x84] sm:$0xe]
      %v2941 = vld [vmem:[#allocation3 + $0x90] sm:$0xe]
      %v2942 = vld [vmem:[#allocation3 + $0x9c] sm:$0xe]
      %v2943 = vld [vmem:[#allocation3 + $0xa8] sm:$0xe]
      %v2944 = vld [vmem:[#allocation3 + $0xb4] sm:$0xe]
      %vm2977 = vcmask 1042432
      %vm2978 = vcmask 1046532
      %vm2979 = vmor %vm2977, %vm2978
      %v2980 = vrot.slane %v2929, 5
      %v2981 = vrot.slane %v2980, 4
      %v2982 = vrot.slane %v1938, 5
      %v2983 = vsel %vm2979, %v2981, %v2982
      %v2984 = vrot.slane %v2982, 4
      %v2985 = vrot.slane %v1970, 5
      %v2986 = vsel %vm2979, %v2984, %v2985
      %v2987 = vrot.slane %v2930, 5
      %v2988 = vrot.slane %v2987, 4
      %v2989 = vrot.slane %v1940, 5
      %v2990 = vsel %vm2979, %v2988, %v2989
      %v2991 = vrot.slane %v2989, 4
      %v2992 = vrot.slane %v1971, 5
      %v2993 = vsel %vm2979, %v2991, %v2992
      %v2994 = vrot.slane %v2931, 5
      %v2995 = vrot.slane %v2994, 4
      %v2996 = vrot.slane %v1942, 5
      %v2997 = vsel %vm2979, %v2995, %v2996
      %v2998 = vrot.slane %v2996, 4
      %v2999 = vrot.slane %v1972, 5
      %v3000 = vsel %vm2979, %v2998, %v2999
      %v3001 = vrot.slane %v2932, 5
      %v3002 = vrot.slane %v3001, 4
      %v3003 = vrot.slane %v1944, 5
      %v3004 = vsel %vm2979, %v3002, %v3003
      %v3005 = vrot.slane %v3003, 4
      %v3006 = vrot.slane %v1973, 5
      %v3007 = vsel %vm2979, %v3005, %v3006
      %v3008 = vrot.slane %v2933, 5
      %v3009 = vrot.slane %v3008, 4
      %v3010 = vrot.slane %v1946, 5
      %v3011 = vsel %vm2979, %v3009, %v3010
      %v3012 = vrot.slane %v3010, 4
      %v3013 = vrot.slane %v1974, 5
      %v3014 = vsel %vm2979, %v3012, %v3013
      %v3015 = vrot.slane %v2934, 5
      %v3016 = vrot.slane %v3015, 4
      %v3017 = vrot.slane %v1948, 5
      %v3018 = vsel %vm2979, %v3016, %v3017
      %v3019 = vrot.slane %v3017, 4
      %v3020 = vrot.slane %v1975, 5
      %v3021 = vsel %vm2979, %v3019, %v3020
      %v3022 = vrot.slane %v2935, 5
      %v3023 = vrot.slane %v3022, 4
      %v3024 = vrot.slane %v1950, 5
      %v3025 = vsel %vm2979, %v3023, %v3024
      %v3026 = vrot.slane %v3024, 4
      %v3027 = vrot.slane %v1976, 5
      %v3028 = vsel %vm2979, %v3026, %v3027
      %v3029 = vrot.slane %v2936, 5
      %v3030 = vrot.slane %v3029, 4
      %v3031 = vrot.slane %v1952, 5
      %v3032 = vsel %vm2979, %v3030, %v3031
      %v3033 = vrot.slane %v3031, 4
      %v3034 = vrot.slane %v1977, 5
      %v3035 = vsel %vm2979, %v3033, %v3034
      %v3036 = vrot.slane %v2937, 5
      %v3037 = vrot.slane %v3036, 4
      %v3038 = vrot.slane %v1954, 5
      %v3039 = vsel %vm2979, %v3037, %v3038
      %v3040 = vrot.slane %v3038, 4
      %v3041 = vrot.slane %v1978, 5
      %v3042 = vsel %vm2979, %v3040, %v3041
      %v3043 = vrot.slane %v2938, 5
      %v3044 = vrot.slane %v3043, 4
      %v3045 = vrot.slane %v1956, 5
      %v3046 = vsel %vm2979, %v3044, %v3045
      %v3047 = vrot.slane %v3045, 4
      %v3048 = vrot.slane %v1979, 5
      %v3049 = vsel %vm2979, %v3047, %v3048
      %v3050 = vrot.slane %v2939, 5
      %v3051 = vrot.slane %v3050, 4
      %v3052 = vrot.slane %v1958, 5
      %v3053 = vsel %vm2979, %v3051, %v3052
      %v3054 = vrot.slane %v3052, 4
      %v3055 = vrot.slane %v1980, 5
      %v3056 = vsel %vm2979, %v3054, %v3055
      %v3057 = vrot.slane %v2940, 5
      %v3058 = vrot.slane %v3057, 4
      %v3059 = vrot.slane %v1960, 5
      %v3060 = vsel %vm2979, %v3058, %v3059
      %v3061 = vrot.slane %v3059, 4
      %v3062 = vrot.slane %v1981, 5
      %v3063 = vsel %vm2979, %v3061, %v3062
      %v3064 = vrot.slane %v2941, 5
      %v3065 = vrot.slane %v3064, 4
      %v3066 = vrot.slane %v1962, 5
      %v3067 = vsel %vm2979, %v3065, %v3066
      %v3068 = vrot.slane %v3066, 4
      %v3069 = vrot.slane %v1982, 5
      %v3070 = vsel %vm2979, %v3068, %v3069
      %v3071 = vrot.slane %v2942, 5
      %v3072 = vrot.slane %v3071, 4
      %v3073 = vrot.slane %v1964, 5
      %v3074 = vsel %vm2979, %v3072, %v3073
      %v3075 = vrot.slane %v3073, 4
      %v3076 = vrot.slane %v1983, 5
      %v3077 = vsel %vm2979, %v3075, %v3076
      %v3078 = vrot.slane %v2943, 5
      %v3079 = vrot.slane %v3078, 4
      %v3080 = vrot.slane %v1966, 5
      %v3081 = vsel %vm2979, %v3079, %v3080
      %v3082 = vrot.slane %v3080, 4
      %v3083 = vrot.slane %v1984, 5
      %v3084 = vsel %vm2979, %v3082, %v3083
      %v3085 = vrot.slane %v2944, 5
      %v3086 = vrot.slane %v3085, 4
      %v3087 = vrot.slane %v1968, 5
      %v3088 = vsel %vm2979, %v3086, %v3087
      %v3089 = vrot.slane %v3087, 4
      %v3090 = vrot.slane %v1985, 5
      %v3091 = vsel %vm2979, %v3089, %v3090
      %s3092 = scalar_lea.vmem %s2, 8
      %v3093 = vld [vmem:[%s3092] sm:$0xf]
      %v3094 = vunpack.c.l.b16 %v2983
      %v3095 = vunpack.c.l.b16 %v2986
      %v3096 = vunpack.c.l.b16 %v2990
      %v3097 = vunpack.c.l.b16 %v2993
      %v3098 = vunpack.c.l.b16 %v2997
      %v3099 = vunpack.c.l.b16 %v3000
      %v3100 = vunpack.c.l.b16 %v3004
      %v3101 = vunpack.c.l.b16 %v3007
      %v3102 = vunpack.c.l.b16 %v3011
      %v3103 = vunpack.c.l.b16 %v3014
      %v3104 = vunpack.c.l.b16 %v3018
      %v3105 = vunpack.c.l.b16 %v3021
      %v3106 = vunpack.c.l.b16 %v3025
      %v3107 = vunpack.c.l.b16 %v3028
      %v3108 = vunpack.c.l.b16 %v3032
      %v3109 = vunpack.c.l.b16 %v3035
      %v3110 = vunpack.c.l.b16 %v3039
      %v3111 = vunpack.c.l.b16 %v3042
      %v3112 = vunpack.c.l.b16 %v3046
      %v3113 = vunpack.c.l.b16 %v3049
      %v3114 = vunpack.c.l.b16 %v3053
      %v3115 = vunpack.c.l.b16 %v3056
      %v3116 = vunpack.c.l.b16 %v3060
      %v3117 = vunpack.c.l.b16 %v3063
      %v3118 = vunpack.c.l.b16 %v3067
      %v3119 = vunpack.c.l.b16 %v3070
      %v3120 = vunpack.c.l.b16 %v3074
      %v3121 = vunpack.c.l.b16 %v3077
      %v3122 = vunpack.c.l.b16 %v3081
      %v3123 = vunpack.c.l.b16 %v3084
      %v3124 = vunpack.c.l.b16 %v3088
      %v3125 = vunpack.c.l.b16 %v3091
      %v3126 = vpack.c.b16 %v3095, %v3094
      %v3127 = vpack.c.b16 %v3097, %v3096
      %v3128 = vpack.c.b16 %v3099, %v3098
      %v3129 = vpack.c.b16 %v3101, %v3100
      %v3130 = vpack.c.b16 %v3103, %v3102
      %v3131 = vpack.c.b16 %v3105, %v3104
      %v3132 = vpack.c.b16 %v3107, %v3106
      %v3133 = vpack.c.b16 %v3109, %v3108
      %v3134 = vpack.c.b16 %v3111, %v3110
      %v3135 = vpack.c.b16 %v3113, %v3112
      %v3136 = vpack.c.b16 %v3115, %v3114
      %v3137 = vpack.c.b16 %v3117, %v3116
      %v3138 = vpack.c.b16 %v3119, %v3118
      %v3139 = vpack.c.b16 %v3121, %v3120
      %v3140 = vpack.c.b16 %v3123, %v3122
      %v3141 = vpack.c.b16 %v3125, %v3124
      %v3143 = vsel %vm2423, %v3126, 0
      %v3146 = vsel %vm2423, %v3127, 0
      %v3149 = vsel %vm2423, %v3128, 0
      %v3152 = vsel %vm2423, %v3129, 0
      %v3155 = vsel %vm2423, %v3130, 0
      %v3158 = vsel %vm2423, %v3131, 0
      %v3161 = vsel %vm2423, %v3132, 0
      %v3164 = vsel %vm2423, %v3133, 0
      %v3167 = vsel %vm2423, %v3134, 0
      %v3170 = vsel %vm2423, %v3135, 0
      %v3173 = vsel %vm2423, %v3136, 0
      %v3176 = vsel %vm2423, %v3137, 0
      %v3179 = vsel %vm2423, %v3138, 0
      %v3182 = vsel %vm2423, %v3139, 0
      %v3185 = vsel %vm2423, %v3140, 0
      %v3188 = vsel %vm2423, %v3141, 0
      %v3191 = vsel %vm2472, %v3093, 0
      %3193 = vmatprep.subr.bf16.mxu0 0
      %3194 = vmatpush1.bf16.msra.mxu0 %v3191
      %3195 = vmatprep.subr.bf16.mxu0 0
      %3196 = vmatpush1.bf16.msra.mxu0 0
      %3197 = vmatprep.subr.bf16.mxu0 0
      %3198 = vmatpush1.bf16.msra.mxu0 0
      %3199 = vmatprep.subr.bf16.mxu0 0
      %3200 = vmatpush1.bf16.msra.mxu0 0
      %3201 = vmatprep.subr.bf16.mxu0 0
      %3202 = vmatpush1.bf16.msra.mxu0 0
      %3203 = vmatprep.subr.bf16.mxu0 0
      %3204 = vmatpush1.bf16.msra.mxu0 0
      %3205 = vmatprep.subr.bf16.mxu0 0
      %3206 = vmatpush1.bf16.msra.mxu0 0
      %3207 = vmatprep.subr.bf16.mxu0 0
      %3208 = vmatpush1.bf16.msra.mxu0 0
      %3209 = vmatprep.subr.bf16.mxu0 0
      %3210 = vmatpush1.bf16.msra.mxu0 0
      %3211 = vmatprep.subr.bf16.mxu0 0
      %3212 = vmatpush1.bf16.msra.mxu0 0
      %3213 = vmatprep.subr.bf16.mxu0 0
      %3214 = vmatpush1.bf16.msra.mxu0 0
      %3215 = vmatprep.subr.bf16.mxu0 0
      %3216 = vmatpush1.bf16.msra.mxu0 0
      %3217 = vmatprep.subr.bf16.mxu0 0
      %3218 = vmatpush1.bf16.msra.mxu0 0
      %3219 = vmatprep.subr.bf16.mxu0 0
      %3220 = vmatpush1.bf16.msra.mxu0 0
      %3221 = vmatprep.subr.bf16.mxu0 0
      %3222 = vmatpush1.bf16.msra.mxu0 0
      %3223 = vmatprep.subr.bf16.mxu0 0
      %3224 = vmatpush1.bf16.msra.mxu0 0
      %3225 = vmatprep.mubr.bf16.mxu0 0
      %3226 = vmatmul.mubr.bf16.gmra.mrb[0].mxu0 %v3143
      %v3227 = vpop.f32.mrb[0].mxu0
      %v3228 = vadd.f32 0.0, %v3227
      %v3229 = vpop.f32.mrb[0].mxu0
      %v3230 = vpop.f32.mrb[0].mxu0
      %v3231 = vadd.f32 0.0, %v3230
      %v3232 = vpop.f32.mrb[0].mxu0
      %3233 = vmatprep.mubr.bf16.mxu0 0
      %3234 = vmatmul.mubr.bf16.gmra.mrb[0].mxu0 %v3146
      %v3235 = vpop.f32.mrb[0].mxu0
      %v3236 = vadd.f32 0.0, %v3235
      %v3237 = vpop.f32.mrb[0].mxu0
      %v3238 = vpop.f32.mrb[0].mxu0
      %v3239 = vadd.f32 0.0, %v3238
      %v3240 = vpop.f32.mrb[0].mxu0
      %3241 = vmatprep.mubr.bf16.mxu0 0
      %3242 = vmatmul.mubr.bf16.gmra.mrb[0].mxu0 %v3149
      %v3243 = vpop.f32.mrb[0].mxu0
      %v3244 = vadd.f32 0.0, %v3243
      %v3245 = vpop.f32.mrb[0].mxu0
      %v3246 = vpop.f32.mrb[0].mxu0
      %v3247 = vadd.f32 0.0, %v3246
      %v3248 = vpop.f32.mrb[0].mxu0
      %3249 = vmatprep.mubr.bf16.mxu0 0
      %3250 = vmatmul.mubr.bf16.gmra.mrb[0].mxu0 %v3152
      %v3251 = vpop.f32.mrb[0].mxu0
      %v3252 = vadd.f32 0.0, %v3251
      %v3253 = vpop.f32.mrb[0].mxu0
      %v3254 = vpop.f32.mrb[0].mxu0
      %v3255 = vadd.f32 0.0, %v3254
      %v3256 = vpop.f32.mrb[0].mxu0
      %3257 = vmatprep.mubr.bf16.mxu0 0
      %3258 = vmatmul.mubr.bf16.gmra.mrb[0].mxu0 %v3155
      %v3259 = vpop.f32.mrb[0].mxu0
      %v3260 = vadd.f32 0.0, %v3259
      %v3261 = vpop.f32.mrb[0].mxu0
      %v3262 = vpop.f32.mrb[0].mxu0
      %v3263 = vadd.f32 0.0, %v3262
      %v3264 = vpop.f32.mrb[0].mxu0
      %3265 = vmatprep.mubr.bf16.mxu0 0
      %3266 = vmatmul.mubr.bf16.gmra.mrb[0].mxu0 %v3158
      %v3267 = vpop.f32.mrb[0].mxu0
      %v3268 = vadd.f32 0.0, %v3267
      %v3269 = vpop.f32.mrb[0].mxu0
      %v3270 = vpop.f32.mrb[0].mxu0
      %v3271 = vadd.f32 0.0, %v3270
      %v3272 = vpop.f32.mrb[0].mxu0
      %3273 = vmatprep.mubr.bf16.mxu0 0
      %3274 = vmatmul.mubr.bf16.gmra.mrb[0].mxu0 %v3161
      %v3275 = vpop.f32.mrb[0].mxu0
      %v3276 = vadd.f32 0.0, %v3275
      %v3277 = vpop.f32.mrb[0].mxu0
      %v3278 = vpop.f32.mrb[0].mxu0
      %v3279 = vadd.f32 0.0, %v3278
      %v3280 = vpop.f32.mrb[0].mxu0
      %3281 = vmatprep.mubr.bf16.mxu0 0
      %3282 = vmatmul.mubr.bf16.gmra.mrb[0].mxu0 %v3164
      %v3283 = vpop.f32.mrb[0].mxu0
      %v3284 = vadd.f32 0.0, %v3283
      %v3285 = vpop.f32.mrb[0].mxu0
      %v3286 = vpop.f32.mrb[0].mxu0
      %v3287 = vadd.f32 0.0, %v3286
      %v3288 = vpop.f32.mrb[0].mxu0
      %3289 = vmatprep.mubr.bf16.mxu0 0
      %3290 = vmatmul.mubr.bf16.gmra.mrb[0].mxu0 %v3167
      %v3291 = vpop.f32.mrb[0].mxu0
      %v3292 = vadd.f32 0.0, %v3291
      %v3293 = vpop.f32.mrb[0].mxu0
      %v3294 = vpop.f32.mrb[0].mxu0
      %v3295 = vadd.f32 0.0, %v3294
      %v3296 = vpop.f32.mrb[0].mxu0
      %3297 = vmatprep.mubr.bf16.mxu0 0
      %3298 = vmatmul.mubr.bf16.gmra.mrb[0].mxu0 %v3170
      %v3299 = vpop.f32.mrb[0].mxu0
      %v3300 = vadd.f32 0.0, %v3299
      %v3301 = vpop.f32.mrb[0].mxu0
      %v3302 = vpop.f32.mrb[0].mxu0
      %v3303 = vadd.f32 0.0, %v3302
      %v3304 = vpop.f32.mrb[0].mxu0
      %3305 = vmatprep.mubr.bf16.mxu0 0
      %3306 = vmatmul.mubr.bf16.gmra.mrb[0].mxu0 %v3173
      %v3307 = vpop.f32.mrb[0].mxu0
      %v3308 = vadd.f32 0.0, %v3307
      %v3309 = vpop.f32.mrb[0].mxu0
      %v3310 = vpop.f32.mrb[0].mxu0
      %v3311 = vadd.f32 0.0, %v3310
      %v3312 = vpop.f32.mrb[0].mxu0
      %3313 = vmatprep.mubr.bf16.mxu0 0
      %3314 = vmatmul.mubr.bf16.gmra.mrb[0].mxu0 %v3176
      %v3315 = vpop.f32.mrb[0].mxu0
      %v3316 = vadd.f32 0.0, %v3315
      %v3317 = vpop.f32.mrb[0].mxu0
      %v3318 = vpop.f32.mrb[0].mxu0
      %v3319 = vadd.f32 0.0, %v3318
      %v3320 = vpop.f32.mrb[0].mxu0
      %3321 = vmatprep.mubr.bf16.mxu0 0
      %3322 = vmatmul.mubr.bf16.gmra.mrb[0].mxu0 %v3179
      %v3323 = vpop.f32.mrb[0].mxu0
      %v3324 = vadd.f32 0.0, %v3323
      %v3325 = vpop.f32.mrb[0].mxu0
      %v3326 = vpop.f32.mrb[0].mxu0
      %v3327 = vadd.f32 0.0, %v3326
      %v3328 = vpop.f32.mrb[0].mxu0
      %3329 = vmatprep.mubr.bf16.mxu0 0
      %3330 = vmatmul.mubr.bf16.gmra.mrb[0].mxu0 %v3182
      %v3331 = vpop.f32.mrb[0].mxu0
      %v3332 = vadd.f32 0.0, %v3331
      %v3333 = vpop.f32.mrb[0].mxu0
      %v3334 = vpop.f32.mrb[0].mxu0
      %v3335 = vadd.f32 0.0, %v3334
      %v3336 = vpop.f32.mrb[0].mxu0
      %3337 = vmatprep.mubr.bf16.mxu0 0
      %3338 = vmatmul.mubr.bf16.gmra.mrb[0].mxu0 %v3185
      %v3339 = vpop.f32.mrb[0].mxu0
      %v3340 = vadd.f32 0.0, %v3339
      %v3341 = vpop.f32.mrb[0].mxu0
      %v3342 = vpop.f32.mrb[0].mxu0
      %v3343 = vadd.f32 0.0, %v3342
      %v3344 = vpop.f32.mrb[0].mxu0
      %3345 = vmatprep.mubr.bf16.mxu0 0
      %3346 = vmatmul.mubr.bf16.gmra.mrb[0].mxu0 %v3188
      %v3347 = vpop.f32.mrb[0].mxu0
      %v3348 = vadd.f32 0.0, %v3347
      %v3349 = vpop.f32.mrb[0].mxu0
      %v3350 = vpop.f32.mrb[0].mxu0
      %v3351 = vadd.f32 0.0, %v3350
      %v3352 = vpop.f32.mrb[0].mxu0
      %3353 = vdwg.mxu0
      %v3354 = vadd.f32 %v2803, %v3228
      %v3355 = vadd.f32 %v2806, %v3231
      %v3356 = vadd.f32 %v2811, %v3236
      %v3357 = vadd.f32 %v2814, %v3239
      %v3358 = vadd.f32 %v2819, %v3244
      %v3359 = vadd.f32 %v2822, %v3247
      %v3360 = vadd.f32 %v2827, %v3252
      %v3361 = vadd.f32 %v2830, %v3255
      %v3362 = vadd.f32 %v2835, %v3260
      %v3363 = vadd.f32 %v2838, %v3263
      %v3364 = vadd.f32 %v2843, %v3268
      %v3365 = vadd.f32 %v2846, %v3271
      %v3366 = vadd.f32 %v2851, %v3276
      %v3367 = vadd.f32 %v2854, %v3279
      %v3368 = vadd.f32 %v2859, %v3284
      %v3369 = vadd.f32 %v2862, %v3287
      %v3370 = vadd.f32 %v2867, %v3292
      %v3371 = vadd.f32 %v2870, %v3295
      %v3372 = vadd.f32 %v2875, %v3300
      %v3373 = vadd.f32 %v2878, %v3303
      %v3374 = vadd.f32 %v2883, %v3308
      %v3375 = vadd.f32 %v2886, %v3311
      %v3376 = vadd.f32 %v2891, %v3316
      %v3377 = vadd.f32 %v2894, %v3319
      %v3378 = vadd.f32 %v2899, %v3324
      %v3379 = vadd.f32 %v2902, %v3327
      %v3380 = vadd.f32 %v2907, %v3332
      %v3381 = vadd.f32 %v2910, %v3335
      %v3382 = vadd.f32 %v2915, %v3340
      %v3383 = vadd.f32 %v2918, %v3343
      %v3384 = vadd.f32 %v2923, %v3348
      %v3385 = vadd.f32 %v2926, %v3351
      %v3386 = vld [vmem:[%s1820] sm:$0xf]
      %v3387 = vld [vmem:[%s1820 + $0x4] sm:$0xf]
      %v3388 = vld [vmem:[%s1820 + $0xc] sm:$0xf]
      %v3389 = vld [vmem:[%s1820 + $0x10] sm:$0xf]
      %v3390 = vld [vmem:[%s1820 + $0x18] sm:$0xf]
      %v3391 = vld [vmem:[%s1820 + $0x1c] sm:$0xf]
      %v3392 = vld [vmem:[%s1820 + $0x24] sm:$0xf]
      %v3393 = vld [vmem:[%s1820 + $0x28] sm:$0xf]
      %v3394 = vld [vmem:[%s1820 + $0x30] sm:$0xf]
      %v3395 = vld [vmem:[%s1820 + $0x34] sm:$0xf]
      %v3396 = vld [vmem:[%s1820 + $0x3c] sm:$0xf]
      %v3397 = vld [vmem:[%s1820 + $0x40] sm:$0xf]
      %v3398 = vld [vmem:[%s1820 + $0x48] sm:$0xf]
      %v3399 = vld [vmem:[%s1820 + $0x4c] sm:$0xf]
      %v3400 = vld [vmem:[%s1820 + $0x54] sm:$0xf]
      %v3401 = vld [vmem:[%s1820 + $0x58] sm:$0xf]
      %v3402 = vld [vmem:[%s1820 + $0x60] sm:$0xf]
      %v3403 = vld [vmem:[%s1820 + $0x64] sm:$0xf]
      %v3404 = vld [vmem:[%s1820 + $0x6c] sm:$0xf]
      %v3405 = vld [vmem:[%s1820 + $0x70] sm:$0xf]
      %v3406 = vld [vmem:[%s1820 + $0x78] sm:$0xf]
      %v3407 = vld [vmem:[%s1820 + $0x7c] sm:$0xf]
      %v3408 = vld [vmem:[%s1820 + $0x84] sm:$0xf]
      %v3409 = vld [vmem:[%s1820 + $0x88] sm:$0xf]
      %v3410 = vld [vmem:[%s1820 + $0x90] sm:$0xf]
      %v3411 = vld [vmem:[%s1820 + $0x94] sm:$0xf]
      %v3412 = vld [vmem:[%s1820 + $0x9c] sm:$0xf]
      %v3413 = vld [vmem:[%s1820 + $0xa0] sm:$0xf]
      %v3414 = vld [vmem:[%s1820 + $0xa8] sm:$0xf]
      %v3415 = vld [vmem:[%s1820 + $0xac] sm:$0xf]
      %v3416 = vld [vmem:[%s1820 + $0xb4] sm:$0xf]
      %v3417 = vld [vmem:[%s1820 + $0xb8] sm:$0xf]
      %s3418 = scalar_lea.vmem %s2, 12
      %v3419 = vld [vmem:[%s3418] sm:$0xf]
      %v3452 = vunpack.c.l.b16 %v3386
      %v3453 = vunpack.c.l.b16 %v3387
      %v3454 = vunpack.c.l.b16 %v3388
      %v3455 = vunpack.c.l.b16 %v3389
      %v3456 = vunpack.c.l.b16 %v3390
      %v3457 = vunpack.c.l.b16 %v3391
      %v3458 = vunpack.c.l.b16 %v3392
      %v3459 = vunpack.c.l.b16 %v3393
      %v3460 = vunpack.c.l.b16 %v3394
      %v3461 = vunpack.c.l.b16 %v3395
      %v3462 = vunpack.c.l.b16 %v3396
      %v3463 = vunpack.c.l.b16 %v3397
      %v3464 = vunpack.c.l.b16 %v3398
      %v3465 = vunpack.c.l.b16 %v3399
      %v3466 = vunpack.c.l.b16 %v3400
      %v3467 = vunpack.c.l.b16 %v3401
      %v3468 = vunpack.c.l.b16 %v3402
      %v3469 = vunpack.c.l.b16 %v3403
      %v3470 = vunpack.c.l.b16 %v3404
      %v3471 = vunpack.c.l.b16 %v3405
      %v3472 = vunpack.c.l.b16 %v3406
      %v3473 = vunpack.c.l.b16 %v3407
      %v3474 = vunpack.c.l.b16 %v3408
      %v3475 = vunpack.c.l.b16 %v3409
      %v3476 = vunpack.c.l.b16 %v3410
      %v3477 = vunpack.c.l.b16 %v3411
      %v3478 = vunpack.c.l.b16 %v3412
      %v3479 = vunpack.c.l.b16 %v3413
      %v3480 = vunpack.c.l.b16 %v3414
      %v3481 = vunpack.c.l.b16 %v3415
      %v3482 = vunpack.c.l.b16 %v3416
      %v3483 = vunpack.c.l.b16 %v3417
      %v3484 = vpack.c.b16 %v3453, %v3452
      %v3485 = vpack.c.b16 %v3455, %v3454
      %v3486 = vpack.c.b16 %v3457, %v3456
      %v3487 = vpack.c.b16 %v3459, %v3458
      %v3488 = vpack.c.b16 %v3461, %v3460
      %v3489 = vpack.c.b16 %v3463, %v3462
      %v3490 = vpack.c.b16 %v3465, %v3464
      %v3491 = vpack.c.b16 %v3467, %v3466
      %v3492 = vpack.c.b16 %v3469, %v3468
      %v3493 = vpack.c.b16 %v3471, %v3470
      %v3494 = vpack.c.b16 %v3473, %v3472
      %v3495 = vpack.c.b16 %v3475, %v3474
      %v3496 = vpack.c.b16 %v3477, %v3476
      %v3497 = vpack.c.b16 %v3479, %v3478
      %v3498 = vpack.c.b16 %v3481, %v3480
      %v3499 = vpack.c.b16 %v3483, %v3482
      %v3501 = vsel %vm2423, %v3484, 0
      %v3504 = vsel %vm2423, %v3485, 0
      %v3507 = vsel %vm2423, %v3486, 0
      %v3510 = vsel %vm2423, %v3487, 0
      %v3513 = vsel %vm2423, %v3488, 0
      %v3516 = vsel %vm2423, %v3489, 0
      %v3519 = vsel %vm2423, %v3490, 0
      %v3522 = vsel %vm2423, %v3491, 0
      %v3525 = vsel %vm2423, %v3492, 0
      %v3528 = vsel %vm2423, %v3493, 0
      %v3531 = vsel %vm2423, %v3494, 0
      %v3534 = vsel %vm2423, %v3495, 0
      %v3537 = vsel %vm2423, %v3496, 0
      %v3540 = vsel %vm2423, %v3497, 0
      %v3543 = vsel %vm2423, %v3498, 0
      %v3546 = vsel %vm2423, %v3499, 0
      %v3549 = vsel %vm2472, %v3419, 0
      %3551 = vmatprep.subr.bf16.mxu0 0
      %3552 = vmatpush1.bf16.msra.mxu0 %v3549
      %3553 = vmatprep.subr.bf16.mxu0 0
      %3554 = vmatpush1.bf16.msra.mxu0 0
      %3555 = vmatprep.subr.bf16.mxu0 0
      %3556 = vmatpush1.bf16.msra.mxu0 0
      %3557 = vmatprep.subr.bf16.mxu0 0
      %3558 = vmatpush1.bf16.msra.mxu0 0
      %3559 = vmatprep.subr.bf16.mxu0 0
      %3560 = vmatpush1.bf16.msra.mxu0 0
      %3561 = vmatprep.subr.bf16.mxu0 0
      %3562 = vmatpush1.bf16.msra.mxu0 0
      %3563 = vmatprep.subr.bf16.mxu0 0
      %3564 = vmatpush1.bf16.msra.mxu0 0
      %3565 = vmatprep.subr.bf16.mxu0 0
      %3566 = vmatpush1.bf16.msra.mxu0 0
      %3567 = vmatprep.subr.bf16.mxu0 0
      %3568 = vmatpush1.bf16.msra.mxu0 0
      %3569 = vmatprep.subr.bf16.mxu0 0
      %3570 = vmatpush1.bf16.msra.mxu0 0
      %3571 = vmatprep.subr.bf16.mxu0 0
      %3572 = vmatpush1.bf16.msra.mxu0 0
      %3573 = vmatprep.subr.bf16.mxu0 0
      %3574 = vmatpush1.bf16.msra.mxu0 0
      %3575 = vmatprep.subr.bf16.mxu0 0
      %3576 = vmatpush1.bf16.msra.mxu0 0
      %3577 = vmatprep.subr.bf16.mxu0 0
      %3578 = vmatpush1.bf16.msra.mxu0 0
      %3579 = vmatprep.subr.bf16.mxu0 0
      %3580 = vmatpush1.bf16.msra.mxu0 0
      %3581 = vmatprep.subr.bf16.mxu0 0
      %3582 = vmatpush1.bf16.msra.mxu0 0
      %3583 = vmatprep.mubr.bf16.mxu0 0
      %3584 = vmatmul.mubr.bf16.gmra.mrb[0].mxu0 %v3501
      %v3585 = vpop.f32.mrb[0].mxu0
      %v3586 = vadd.f32 0.0, %v3585
      %v3587 = vpop.f32.mrb[0].mxu0
      %v3588 = vpop.f32.mrb[0].mxu0
      %v3589 = vadd.f32 0.0, %v3588
      %v3590 = vpop.f32.mrb[0].mxu0
      %3591 = vmatprep.mubr.bf16.mxu0 0
      %3592 = vmatmul.mubr.bf16.gmra.mrb[0].mxu0 %v3504
      %v3593 = vpop.f32.mrb[0].mxu0
      %v3594 = vadd.f32 0.0, %v3593
      %v3595 = vpop.f32.mrb[0].mxu0
      %v3596 = vpop.f32.mrb[0].mxu0
      %v3597 = vadd.f32 0.0, %v3596
      %v3598 = vpop.f32.mrb[0].mxu0
      %3599 = vmatprep.mubr.bf16.mxu0 0
      %3600 = vmatmul.mubr.bf16.gmra.mrb[0].mxu0 %v3507
      %v3601 = vpop.f32.mrb[0].mxu0
      %v3602 = vadd.f32 0.0, %v3601
      %v3603 = vpop.f32.mrb[0].mxu0
      %v3604 = vpop.f32.mrb[0].mxu0
      %v3605 = vadd.f32 0.0, %v3604
      %v3606 = vpop.f32.mrb[0].mxu0
      %3607 = vmatprep.mubr.bf16.mxu0 0
      %3608 = vmatmul.mubr.bf16.gmra.mrb[0].mxu0 %v3510
      %v3609 = vpop.f32.mrb[0].mxu0
      %v3610 = vadd.f32 0.0, %v3609
      %v3611 = vpop.f32.mrb[0].mxu0
      %v3612 = vpop.f32.mrb[0].mxu0
      %v3613 = vadd.f32 0.0, %v3612
      %v3614 = vpop.f32.mrb[0].mxu0
      %3615 = vmatprep.mubr.bf16.mxu0 0
      %3616 = vmatmul.mubr.bf16.gmra.mrb[0].mxu0 %v3513
      %v3617 = vpop.f32.mrb[0].mxu0
      %v3618 = vadd.f32 0.0, %v3617
      %v3619 = vpop.f32.mrb[0].mxu0
      %v3620 = vpop.f32.mrb[0].mxu0
      %v3621 = vadd.f32 0.0, %v3620
      %v3622 = vpop.f32.mrb[0].mxu0
      %3623 = vmatprep.mubr.bf16.mxu0 0
      %3624 = vmatmul.mubr.bf16.gmra.mrb[0].mxu0 %v3516
      %v3625 = vpop.f32.mrb[0].mxu0
      %v3626 = vadd.f32 0.0, %v3625
      %v3627 = vpop.f32.mrb[0].mxu0
      %v3628 = vpop.f32.mrb[0].mxu0
      %v3629 = vadd.f32 0.0, %v3628
      %v3630 = vpop.f32.mrb[0].mxu0
      %3631 = vmatprep.mubr.bf16.mxu0 0
      %3632 = vmatmul.mubr.bf16.gmra.mrb[0].mxu0 %v3519
      %v3633 = vpop.f32.mrb[0].mxu0
      %v3634 = vadd.f32 0.0, %v3633
      %v3635 = vpop.f32.mrb[0].mxu0
      %v3636 = vpop.f32.mrb[0].mxu0
      %v3637 = vadd.f32 0.0, %v3636
      %v3638 = vpop.f32.mrb[0].mxu0
      %3639 = vmatprep.mubr.bf16.mxu0 0
      %3640 = vmatmul.mubr.bf16.gmra.mrb[0].mxu0 %v3522
      %v3641 = vpop.f32.mrb[0].mxu0
      %v3642 = vadd.f32 0.0, %v3641
      %v3643 = vpop.f32.mrb[0].mxu0
      %v3644 = vpop.f32.mrb[0].mxu0
      %v3645 = vadd.f32 0.0, %v3644
      %v3646 = vpop.f32.mrb[0].mxu0
      %3647 = vmatprep.mubr.bf16.mxu0 0
      %3648 = vmatmul.mubr.bf16.gmra.mrb[0].mxu0 %v3525
      %v3649 = vpop.f32.mrb[0].mxu0
      %v3650 = vadd.f32 0.0, %v3649
      %v3651 = vpop.f32.mrb[0].mxu0
      %v3652 = vpop.f32.mrb[0].mxu0
      %v3653 = vadd.f32 0.0, %v3652
      %v3654 = vpop.f32.mrb[0].mxu0
      %3655 = vmatprep.mubr.bf16.mxu0 0
      %3656 = vmatmul.mubr.bf16.gmra.mrb[0].mxu0 %v3528
      %v3657 = vpop.f32.mrb[0].mxu0
      %v3658 = vadd.f32 0.0, %v3657
      %v3659 = vpop.f32.mrb[0].mxu0
      %v3660 = vpop.f32.mrb[0].mxu0
      %v3661 = vadd.f32 0.0, %v3660
      %v3662 = vpop.f32.mrb[0].mxu0
      %3663 = vmatprep.mubr.bf16.mxu0 0
      %3664 = vmatmul.mubr.bf16.gmra.mrb[0].mxu0 %v3531
      %v3665 = vpop.f32.mrb[0].mxu0
      %v3666 = vadd.f32 0.0, %v3665
      %v3667 = vpop.f32.mrb[0].mxu0
      %v3668 = vpop.f32.mrb[0].mxu0
      %v3669 = vadd.f32 0.0, %v3668
      %v3670 = vpop.f32.mrb[0].mxu0
      %3671 = vmatprep.mubr.bf16.mxu0 0
      %3672 = vmatmul.mubr.bf16.gmra.mrb[0].mxu0 %v3534
      %v3673 = vpop.f32.mrb[0].mxu0
      %v3674 = vadd.f32 0.0, %v3673
      %v3675 = vpop.f32.mrb[0].mxu0
      %v3676 = vpop.f32.mrb[0].mxu0
      %v3677 = vadd.f32 0.0, %v3676
      %v3678 = vpop.f32.mrb[0].mxu0
      %3679 = vmatprep.mubr.bf16.mxu0 0
      %3680 = vmatmul.mubr.bf16.gmra.mrb[0].mxu0 %v3537
      %v3681 = vpop.f32.mrb[0].mxu0
      %v3682 = vadd.f32 0.0, %v3681
      %v3683 = vpop.f32.mrb[0].mxu0
      %v3684 = vpop.f32.mrb[0].mxu0
      %v3685 = vadd.f32 0.0, %v3684
      %v3686 = vpop.f32.mrb[0].mxu0
      %3687 = vmatprep.mubr.bf16.mxu0 0
      %3688 = vmatmul.mubr.bf16.gmra.mrb[0].mxu0 %v3540
      %v3689 = vpop.f32.mrb[0].mxu0
      %v3690 = vadd.f32 0.0, %v3689
      %v3691 = vpop.f32.mrb[0].mxu0
      %v3692 = vpop.f32.mrb[0].mxu0
      %v3693 = vadd.f32 0.0, %v3692
      %v3694 = vpop.f32.mrb[0].mxu0
      %3695 = vmatprep.mubr.bf16.mxu0 0
      %3696 = vmatmul.mubr.bf16.gmra.mrb[0].mxu0 %v3543
      %v3697 = vpop.f32.mrb[0].mxu0
      %v3698 = vadd.f32 0.0, %v3697
      %v3699 = vpop.f32.mrb[0].mxu0
      %v3700 = vpop.f32.mrb[0].mxu0
      %v3701 = vadd.f32 0.0, %v3700
      %v3702 = vpop.f32.mrb[0].mxu0
      %3703 = vmatprep.mubr.bf16.mxu0 0
      %3704 = vmatmul.mubr.bf16.gmra.mrb[0].mxu0 %v3546
      %v3705 = vpop.f32.mrb[0].mxu0
      %v3706 = vadd.f32 0.0, %v3705
      %v3707 = vpop.f32.mrb[0].mxu0
      %v3708 = vpop.f32.mrb[0].mxu0
      %v3709 = vadd.f32 0.0, %v3708
      %v3710 = vpop.f32.mrb[0].mxu0
      %3711 = vdwg.mxu0
      %v3712 = vadd.f32 %v3354, %v3586
      %v3713 = vadd.f32 %v3355, %v3589
      %v3714 = vadd.f32 %v3356, %v3594
      %v3715 = vadd.f32 %v3357, %v3597
      %v3716 = vadd.f32 %v3358, %v3602
      %v3717 = vadd.f32 %v3359, %v3605
      %v3718 = vadd.f32 %v3360, %v3610
      %v3719 = vadd.f32 %v3361, %v3613
      %v3720 = vadd.f32 %v3362, %v3618
      %v3721 = vadd.f32 %v3363, %v3621
      %v3722 = vadd.f32 %v3364, %v3626
      %v3723 = vadd.f32 %v3365, %v3629
      %v3724 = vadd.f32 %v3366, %v3634
      %v3725 = vadd.f32 %v3367, %v3637
      %v3726 = vadd.f32 %v3368, %v3642
      %v3727 = vadd.f32 %v3369, %v3645
      %v3728 = vadd.f32 %v3370, %v3650
      %v3729 = vadd.f32 %v3371, %v3653
      %v3730 = vadd.f32 %v3372, %v3658
      %v3731 = vadd.f32 %v3373, %v3661
      %v3732 = vadd.f32 %v3374, %v3666
      %v3733 = vadd.f32 %v3375, %v3669
      %v3734 = vadd.f32 %v3376, %v3674
      %v3735 = vadd.f32 %v3377, %v3677
      %v3736 = vadd.f32 %v3378, %v3682
      %v3737 = vadd.f32 %v3379, %v3685
      %v3738 = vadd.f32 %v3380, %v3690
      %v3739 = vadd.f32 %v3381, %v3693
      %v3740 = vadd.f32 %v3382, %v3698
      %v3741 = vadd.f32 %v3383, %v3701
      %v3742 = vadd.f32 %v3384, %v3706
      %v3743 = vadd.f32 %v3385, %v3709
      %v3744 = vld [vmem:[%s1820] sm:$0xf]
      %v3745 = vld [vmem:[%s1820 + $0x4] sm:$0xf]
      %v3746 = vld [vmem:[%s1820 + $0x8] sm:$0x1]
      %v3747 = vld [vmem:[%s1820 + $0xc] sm:$0xf]
      %v3748 = vld [vmem:[%s1820 + $0x10] sm:$0xf]
      %v3749 = vld [vmem:[%s1820 + $0x14] sm:$0x1]
      %v3750 = vld [vmem:[%s1820 + $0x18] sm:$0xf]
      %v3751 = vld [vmem:[%s1820 + $0x1c] sm:$0xf]
      %v3752 = vld [vmem:[%s1820 + $0x20] sm:$0x1]
      %v3753 = vld [vmem:[%s1820 + $0x24] sm:$0xf]
      %v3754 = vld [vmem:[%s1820 + $0x28] sm:$0xf]
      %v3755 = vld [vmem:[%s1820 + $0x2c] sm:$0x1]
      %v3756 = vld [vmem:[%s1820 + $0x30] sm:$0xf]
      %v3757 = vld [vmem:[%s1820 + $0x34] sm:$0xf]
      %v3758 = vld [vmem:[%s1820 + $0x38] sm:$0x1]
      %v3759 = vld [vmem:[%s1820 + $0x3c] sm:$0xf]
      %v3760 = vld [vmem:[%s1820 + $0x40] sm:$0xf]
      %v3761 = vld [vmem:[%s1820 + $0x44] sm:$0x1]
      %v3762 = vld [vmem:[%s1820 + $0x48] sm:$0xf]
      %v3763 = vld [vmem:[%s1820 + $0x4c] sm:$0xf]
      %v3764 = vld [vmem:[%s1820 + $0x50] sm:$0x1]
      %v3765 = vld [vmem:[%s1820 + $0x54] sm:$0xf]
      %v3766 = vld [vmem:[%s1820 + $0x58] sm:$0xf]
      %v3767 = vld [vmem:[%s1820 + $0x5c] sm:$0x1]
      %v3768 = vld [vmem:[%s1820 + $0x60] sm:$0xf]
      %v3769 = vld [vmem:[%s1820 + $0x64] sm:$0xf]
      %v3770 = vld [vmem:[%s1820 + $0x68] sm:$0x1]
      %v3771 = vld [vmem:[%s1820 + $0x6c] sm:$0xf]
      %v3772 = vld [vmem:[%s1820 + $0x70] sm:$0xf]
      %v3773 = vld [vmem:[%s1820 + $0x74] sm:$0x1]
      %v3774 = vld [vmem:[%s1820 + $0x78] sm:$0xf]
      %v3775 = vld [vmem:[%s1820 + $0x7c] sm:$0xf]
      %v3776 = vld [vmem:[%s1820 + $0x80] sm:$0x1]
      %v3777 = vld [vmem:[%s1820 + $0x84] sm:$0xf]
      %v3778 = vld [vmem:[%s1820 + $0x88] sm:$0xf]
      %v3779 = vld [vmem:[%s1820 + $0x8c] sm:$0x1]
      %v3780 = vld [vmem:[%s1820 + $0x90] sm:$0xf]
      %v3781 = vld [vmem:[%s1820 + $0x94] sm:$0xf]
      %v3782 = vld [vmem:[%s1820 + $0x98] sm:$0x1]
      %v3783 = vld [vmem:[%s1820 + $0x9c] sm:$0xf]
      %v3784 = vld [vmem:[%s1820 + $0xa0] sm:$0xf]
      %v3785 = vld [vmem:[%s1820 + $0xa4] sm:$0x1]
      %v3786 = vld [vmem:[%s1820 + $0xa8] sm:$0xf]
      %v3787 = vld [vmem:[%s1820 + $0xac] sm:$0xf]
      %v3788 = vld [vmem:[%s1820 + $0xb0] sm:$0x1]
      %v3789 = vld [vmem:[%s1820 + $0xb4] sm:$0xf]
      %v3790 = vld [vmem:[%s1820 + $0xb8] sm:$0xf]
      %v3791 = vld [vmem:[%s1820 + $0xbc] sm:$0x1]
      %v3793 = vshrl.u32 %v3744, 16
      %v3795 = vrot.slane %v3793, 4
      %v3796 = vshll.u32 %v3744, 16
      %v3798 = vrot.slane %v3796, 5
      %v3799 = vor.u32 %v3795, %v3798
      %v3800 = vrot.slane %v3799, 4
      %v3802 = vshll.u32 %v3745, 16
      %v3804 = vrot.slane %v3802, 5
      %v3805 = vsel %vm1988, %v3800, %v3804
      %v3806 = vshrl.u32 %v3745, 16
      %v3808 = vrot.slane %v3806, 4
      %v3809 = vor.u32 %v3808, %v3804
      %v3810 = vrot.slane %v3809, 4
      %v3812 = vshll.u32 %v3746, 16
      %v3814 = vrot.slane %v3812, 5
      %v3815 = vsel %vm1988, %v3810, %v3814
      %v3817 = vshrl.u32 %v3747, 16
      %v3819 = vrot.slane %v3817, 4
      %v3820 = vshll.u32 %v3747, 16
      %v3822 = vrot.slane %v3820, 5
      %v3823 = vor.u32 %v3819, %v3822
      %v3824 = vrot.slane %v3823, 4
      %v3826 = vshll.u32 %v3748, 16
      %v3828 = vrot.slane %v3826, 5
      %v3829 = vsel %vm1988, %v3824, %v3828
      %v3830 = vshrl.u32 %v3748, 16
      %v3832 = vrot.slane %v3830, 4
      %v3833 = vor.u32 %v3832, %v3828
      %v3834 = vrot.slane %v3833, 4
      %v3836 = vshll.u32 %v3749, 16
      %v3838 = vrot.slane %v3836, 5
      %v3839 = vsel %vm1988, %v3834, %v3838
      %v3841 = vshrl.u32 %v3750, 16
      %v3843 = vrot.slane %v3841, 4
      %v3844 = vshll.u32 %v3750, 16
      %v3846 = vrot.slane %v3844, 5
      %v3847 = vor.u32 %v3843, %v3846
      %v3848 = vrot.slane %v3847, 4
      %v3850 = vshll.u32 %v3751, 16
      %v3852 = vrot.slane %v3850, 5
      %v3853 = vsel %vm1988, %v3848, %v3852
      %v3854 = vshrl.u32 %v3751, 16
      %v3856 = vrot.slane %v3854, 4
      %v3857 = vor.u32 %v3856, %v3852
      %v3858 = vrot.slane %v3857, 4
      %v3860 = vshll.u32 %v3752, 16
      %v3862 = vrot.slane %v3860, 5
      %v3863 = vsel %vm1988, %v3858, %v3862
      %v3865 = vshrl.u32 %v3753, 16
      %v3867 = vrot.slane %v3865, 4
      %v3868 = vshll.u32 %v3753, 16
      %v3870 = vrot.slane %v3868, 5
      %v3871 = vor.u32 %v3867, %v3870
      %v3872 = vrot.slane %v3871, 4
      %v3874 = vshll.u32 %v3754, 16
      %v3876 = vrot.slane %v3874, 5
      %v3877 = vsel %vm1988, %v3872, %v3876
      %v3878 = vshrl.u32 %v3754, 16
      %v3880 = vrot.slane %v3878, 4
      %v3881 = vor.u32 %v3880, %v3876
      %v3882 = vrot.slane %v3881, 4
      %v3884 = vshll.u32 %v3755, 16
      %v3886 = vrot.slane %v3884, 5
      %v3887 = vsel %vm1988, %v3882, %v3886
      %v3889 = vshrl.u32 %v3756, 16
      %v3891 = vrot.slane %v3889, 4
      %v3892 = vshll.u32 %v3756, 16
      %v3894 = vrot.slane %v3892, 5
      %v3895 = vor.u32 %v3891, %v3894
      %v3896 = vrot.slane %v3895, 4
      %v3898 = vshll.u32 %v3757, 16
      %v3900 = vrot.slane %v3898, 5
      %v3901 = vsel %vm1988, %v3896, %v3900
      %v3902 = vshrl.u32 %v3757, 16
      %v3904 = vrot.slane %v3902, 4
      %v3905 = vor.u32 %v3904, %v3900
      %v3906 = vrot.slane %v3905, 4
      %v3908 = vshll.u32 %v3758, 16
      %v3910 = vrot.slane %v3908, 5
      %v3911 = vsel %vm1988, %v3906, %v3910
      %v3913 = vshrl.u32 %v3759, 16
      %v3915 = vrot.slane %v3913, 4
      %v3916 = vshll.u32 %v3759, 16
      %v3918 = vrot.slane %v3916, 5
      %v3919 = vor.u32 %v3915, %v3918
      %v3920 = vrot.slane %v3919, 4
      %v3922 = vshll.u32 %v3760, 16
      %v3924 = vrot.slane %v3922, 5
      %v3925 = vsel %vm1988, %v3920, %v3924
      %v3926 = vshrl.u32 %v3760, 16
      %v3928 = vrot.slane %v3926, 4
      %v3929 = vor.u32 %v3928, %v3924
      %v3930 = vrot.slane %v3929, 4
      %v3932 = vshll.u32 %v3761, 16
      %v3934 = vrot.slane %v3932, 5
      %v3935 = vsel %vm1988, %v3930, %v3934
      %v3937 = vshrl.u32 %v3762, 16
      %v3939 = vrot.slane %v3937, 4
      %v3940 = vshll.u32 %v3762, 16
      %v3942 = vrot.slane %v3940, 5
      %v3943 = vor.u32 %v3939, %v3942
      %v3944 = vrot.slane %v3943, 4
      %v3946 = vshll.u32 %v3763, 16
      %v3948 = vrot.slane %v3946, 5
      %v3949 = vsel %vm1988, %v3944, %v3948
      %v3950 = vshrl.u32 %v3763, 16
      %v3952 = vrot.slane %v3950, 4
      %v3953 = vor.u32 %v3952, %v3948
      %v3954 = vrot.slane %v3953, 4
      %v3956 = vshll.u32 %v3764, 16
      %v3958 = vrot.slane %v3956, 5
      %v3959 = vsel %vm1988, %v3954, %v3958
      %v3961 = vshrl.u32 %v3765, 16
      %v3963 = vrot.slane %v3961, 4
      %v3964 = vshll.u32 %v3765, 16
      %v3966 = vrot.slane %v3964, 5
      %v3967 = vor.u32 %v3963, %v3966
      %v3968 = vrot.slane %v3967, 4
      %v3970 = vshll.u32 %v3766, 16
      %v3972 = vrot.slane %v3970, 5
      %v3973 = vsel %vm1988, %v3968, %v3972
      %v3974 = vshrl.u32 %v3766, 16
      %v3976 = vrot.slane %v3974, 4
      %v3977 = vor.u32 %v3976, %v3972
      %v3978 = vrot.slane %v3977, 4
      %v3980 = vshll.u32 %v3767, 16
      %v3982 = vrot.slane %v3980, 5
      %v3983 = vsel %vm1988, %v3978, %v3982
      %v3985 = vshrl.u32 %v3768, 16
      %v3987 = vrot.slane %v3985, 4
      %v3988 = vshll.u32 %v3768, 16
      %v3990 = vrot.slane %v3988, 5
      %v3991 = vor.u32 %v3987, %v3990
      %v3992 = vrot.slane %v3991, 4
      %v3994 = vshll.u32 %v3769, 16
      %v3996 = vrot.slane %v3994, 5
      %v3997 = vsel %vm1988, %v3992, %v3996
      %v3998 = vshrl.u32 %v3769, 16
      %v4000 = vrot.slane %v3998, 4
      %v4001 = vor.u32 %v4000, %v3996
      %v4002 = vrot.slane %v4001, 4
      %v4004 = vshll.u32 %v3770, 16
      %v4006 = vrot.slane %v4004, 5
      %v4007 = vsel %vm1988, %v4002, %v4006
      %v4009 = vshrl.u32 %v3771, 16
      %v4011 = vrot.slane %v4009, 4
      %v4012 = vshll.u32 %v3771, 16
      %v4014 = vrot.slane %v4012, 5
      %v4015 = vor.u32 %v4011, %v4014
      %v4016 = vrot.slane %v4015, 4
      %v4018 = vshll.u32 %v3772, 16
      %v4020 = vrot.slane %v4018, 5
      %v4021 = vsel %vm1988, %v4016, %v4020
      %v4022 = vshrl.u32 %v3772, 16
      %v4024 = vrot.slane %v4022, 4
      %v4025 = vor.u32 %v4024, %v4020
      %v4026 = vrot.slane %v4025, 4
      %v4028 = vshll.u32 %v3773, 16
      %v4030 = vrot.slane %v4028, 5
      %v4031 = vsel %vm1988, %v4026, %v4030
      %v4033 = vshrl.u32 %v3774, 16
      %v4035 = vrot.slane %v4033, 4
      %v4036 = vshll.u32 %v3774, 16
      %v4038 = vrot.slane %v4036, 5
      %v4039 = vor.u32 %v4035, %v4038
      %v4040 = vrot.slane %v4039, 4
      %v4042 = vshll.u32 %v3775, 16
      %v4044 = vrot.slane %v4042, 5
      %v4045 = vsel %vm1988, %v4040, %v4044
      %v4046 = vshrl.u32 %v3775, 16
      %v4048 = vrot.slane %v4046, 4
      %v4049 = vor.u32 %v4048, %v4044
      %v4050 = vrot.slane %v4049, 4
      %v4052 = vshll.u32 %v3776, 16
      %v4054 = vrot.slane %v4052, 5
      %v4055 = vsel %vm1988, %v4050, %v4054
      %v4057 = vshrl.u32 %v3777, 16
      %v4059 = vrot.slane %v4057, 4
      %v4060 = vshll.u32 %v3777, 16
      %v4062 = vrot.slane %v4060, 5
      %v4063 = vor.u32 %v4059, %v4062
      %v4064 = vrot.slane %v4063, 4
      %v4066 = vshll.u32 %v3778, 16
      %v4068 = vrot.slane %v4066, 5
      %v4069 = vsel %vm1988, %v4064, %v4068
      %v4070 = vshrl.u32 %v3778, 16
      %v4072 = vrot.slane %v4070, 4
      %v4073 = vor.u32 %v4072, %v4068
      %v4074 = vrot.slane %v4073, 4
      %v4076 = vshll.u32 %v3779, 16
      %v4078 = vrot.slane %v4076, 5
      %v4079 = vsel %vm1988, %v4074, %v4078
      %v4081 = vshrl.u32 %v3780, 16
      %v4083 = vrot.slane %v4081, 4
      %v4084 = vshll.u32 %v3780, 16
      %v4086 = vrot.slane %v4084, 5
      %v4087 = vor.u32 %v4083, %v4086
      %v4088 = vrot.slane %v4087, 4
      %v4090 = vshll.u32 %v3781, 16
      %v4092 = vrot.slane %v4090, 5
      %v4093 = vsel %vm1988, %v4088, %v4092
      %v4094 = vshrl.u32 %v3781, 16
      %v4096 = vrot.slane %v4094, 4
      %v4097 = vor.u32 %v4096, %v4092
      %v4098 = vrot.slane %v4097, 4
      %v4100 = vshll.u32 %v3782, 16
      %v4102 = vrot.slane %v4100, 5
      %v4103 = vsel %vm1988, %v4098, %v4102
      %v4105 = vshrl.u32 %v3783, 16
      %v4107 = vrot.slane %v4105, 4
      %v4108 = vshll.u32 %v3783, 16
      %v4110 = vrot.slane %v4108, 5
      %v4111 = vor.u32 %v4107, %v4110
      %v4112 = vrot.slane %v4111, 4
      %v4114 = vshll.u32 %v3784, 16
      %v4116 = vrot.slane %v4114, 5
      %v4117 = vsel %vm1988, %v4112, %v4116
      %v4118 = vshrl.u32 %v3784, 16
      %v4120 = vrot.slane %v4118, 4
      %v4121 = vor.u32 %v4120, %v4116
      %v4122 = vrot.slane %v4121, 4
      %v4124 = vshll.u32 %v3785, 16
      %v4126 = vrot.slane %v4124, 5
      %v4127 = vsel %vm1988, %v4122, %v4126
      %v4129 = vshrl.u32 %v3786, 16
      %v4131 = vrot.slane %v4129, 4
      %v4132 = vshll.u32 %v3786, 16
      %v4134 = vrot.slane %v4132, 5
      %v4135 = vor.u32 %v4131, %v4134
      %v4136 = vrot.slane %v4135, 4
      %v4138 = vshll.u32 %v3787, 16
      %v4140 = vrot.slane %v4138, 5
      %v4141 = vsel %vm1988, %v4136, %v4140
      %v4142 = vshrl.u32 %v3787, 16
      %v4144 = vrot.slane %v4142, 4
      %v4145 = vor.u32 %v4144, %v4140
      %v4146 = vrot.slane %v4145, 4
      %v4148 = vshll.u32 %v3788, 16
      %v4150 = vrot.slane %v4148, 5
      %v4151 = vsel %vm1988, %v4146, %v4150
      %v4153 = vshrl.u32 %v3789, 16
      %v4155 = vrot.slane %v4153, 4
      %v4156 = vshll.u32 %v3789, 16
      %v4158 = vrot.slane %v4156, 5
      %v4159 = vor.u32 %v4155, %v4158
      %v4160 = vrot.slane %v4159, 4
      %v4162 = vshll.u32 %v3790, 16
      %v4164 = vrot.slane %v4162, 5
      %v4165 = vsel %vm1988, %v4160, %v4164
      %v4166 = vshrl.u32 %v3790, 16
      %v4168 = vrot.slane %v4166, 4
      %v4169 = vor.u32 %v4168, %v4164
      %v4170 = vrot.slane %v4169, 4
      %v4172 = vshll.u32 %v3791, 16
      %v4174 = vrot.slane %v4172, 5
      %v4175 = vsel %vm1988, %v4170, %v4174
      %s4176 = scalar_lea.vmem %s2, 16
      %v4177 = vld [vmem:[%s4176] sm:$0xf]
      %v4178 = vunpack.c.l.b16 %v3805
      %v4179 = vunpack.c.l.b16 %v3815
      %v4180 = vunpack.c.l.b16 %v3829
      %v4181 = vunpack.c.l.b16 %v3839
      %v4182 = vunpack.c.l.b16 %v3853
      %v4183 = vunpack.c.l.b16 %v3863
      %v4184 = vunpack.c.l.b16 %v3877
      %v4185 = vunpack.c.l.b16 %v3887
      %v4186 = vunpack.c.l.b16 %v3901
      %v4187 = vunpack.c.l.b16 %v3911
      %v4188 = vunpack.c.l.b16 %v3925
      %v4189 = vunpack.c.l.b16 %v3935
      %v4190 = vunpack.c.l.b16 %v3949
      %v4191 = vunpack.c.l.b16 %v3959
      %v4192 = vunpack.c.l.b16 %v3973
      %v4193 = vunpack.c.l.b16 %v3983
      %v4194 = vunpack.c.l.b16 %v3997
      %v4195 = vunpack.c.l.b16 %v4007
      %v4196 = vunpack.c.l.b16 %v4021
      %v4197 = vunpack.c.l.b16 %v4031
      %v4198 = vunpack.c.l.b16 %v4045
      %v4199 = vunpack.c.l.b16 %v4055
      %v4200 = vunpack.c.l.b16 %v4069
      %v4201 = vunpack.c.l.b16 %v4079
      %v4202 = vunpack.c.l.b16 %v4093
      %v4203 = vunpack.c.l.b16 %v4103
      %v4204 = vunpack.c.l.b16 %v4117
      %v4205 = vunpack.c.l.b16 %v4127
      %v4206 = vunpack.c.l.b16 %v4141
      %v4207 = vunpack.c.l.b16 %v4151
      %v4208 = vunpack.c.l.b16 %v4165
      %v4209 = vunpack.c.l.b16 %v4175
      %v4210 = vpack.c.b16 %v4179, %v4178
      %v4211 = vpack.c.b16 %v4181, %v4180
      %v4212 = vpack.c.b16 %v4183, %v4182
      %v4213 = vpack.c.b16 %v4185, %v4184
      %v4214 = vpack.c.b16 %v4187, %v4186
      %v4215 = vpack.c.b16 %v4189, %v4188
      %v4216 = vpack.c.b16 %v4191, %v4190
      %v4217 = vpack.c.b16 %v4193, %v4192
      %v4218 = vpack.c.b16 %v4195, %v4194
      %v4219 = vpack.c.b16 %v4197, %v4196
      %v4220 = vpack.c.b16 %v4199, %v4198
      %v4221 = vpack.c.b16 %v4201, %v4200
      %v4222 = vpack.c.b16 %v4203, %v4202
      %v4223 = vpack.c.b16 %v4205, %v4204
      %v4224 = vpack.c.b16 %v4207, %v4206
      %v4225 = vpack.c.b16 %v4209, %v4208
      %v4227 = vsel %vm2423, %v4210, 0
      %v4230 = vsel %vm2423, %v4211, 0
      %v4233 = vsel %vm2423, %v4212, 0
      %v4236 = vsel %vm2423, %v4213, 0
      %v4239 = vsel %vm2423, %v4214, 0
      %v4242 = vsel %vm2423, %v4215, 0
      %v4245 = vsel %vm2423, %v4216, 0
      %v4248 = vsel %vm2423, %v4217, 0
      %v4251 = vsel %vm2423, %v4218, 0
      %v4254 = vsel %vm2423, %v4219, 0
      %v4257 = vsel %vm2423, %v4220, 0
      %v4260 = vsel %vm2423, %v4221, 0
      %v4263 = vsel %vm2423, %v4222, 0
      %v4266 = vsel %vm2423, %v4223, 0
      %v4269 = vsel %vm2423, %v4224, 0
      %v4272 = vsel %vm2423, %v4225, 0
      %v4275 = vsel %vm2472, %v4177, 0
      %4277 = vmatprep.subr.bf16.mxu0 0
      %4278 = vmatpush1.bf16.msra.mxu0 %v4275
      %4279 = vmatprep.subr.bf16.mxu0 0
      %4280 = vmatpush1.bf16.msra.mxu0 0
      %4281 = vmatprep.subr.bf16.mxu0 0
      %4282 = vmatpush1.bf16.msra.mxu0 0
      %4283 = vmatprep.subr.bf16.mxu0 0
      %4284 = vmatpush1.bf16.msra.mxu0 0
      %4285 = vmatprep.subr.bf16.mxu0 0
      %4286 = vmatpush1.bf16.msra.mxu0 0
      %4287 = vmatprep.subr.bf16.mxu0 0
      %4288 = vmatpush1.bf16.msra.mxu0 0
      %4289 = vmatprep.subr.bf16.mxu0 0
      %4290 = vmatpush1.bf16.msra.mxu0 0
      %4291 = vmatprep.subr.bf16.mxu0 0
      %4292 = vmatpush1.bf16.msra.mxu0 0
      %4293 = vmatprep.subr.bf16.mxu0 0
      %4294 = vmatpush1.bf16.msra.mxu0 0
      %4295 = vmatprep.subr.bf16.mxu0 0
      %4296 = vmatpush1.bf16.msra.mxu0 0
      %4297 = vmatprep.subr.bf16.mxu0 0
      %4298 = vmatpush1.bf16.msra.mxu0 0
      %4299 = vmatprep.subr.bf16.mxu0 0
      %4300 = vmatpush1.bf16.msra.mxu0 0
      %4301 = vmatprep.subr.bf16.mxu0 0
      %4302 = vmatpush1.bf16.msra.mxu0 0
      %4303 = vmatprep.subr.bf16.mxu0 0
      %4304 = vmatpush1.bf16.msra.mxu0 0
      %4305 = vmatprep.subr.bf16.mxu0 0
      %4306 = vmatpush1.bf16.msra.mxu0 0
      %4307 = vmatprep.subr.bf16.mxu0 0
      %4308 = vmatpush1.bf16.msra.mxu0 0
      %4309 = vmatprep.mubr.bf16.mxu0 0
      %4310 = vmatmul.mubr.bf16.gmra.mrb[0].mxu0 %v4227
      %v4311 = vpop.f32.mrb[0].mxu0
      %v4312 = vadd.f32 0.0, %v4311
      %v4313 = vpop.f32.mrb[0].mxu0
      %v4314 = vpop.f32.mrb[0].mxu0
      %v4315 = vadd.f32 0.0, %v4314
      %v4316 = vpop.f32.mrb[0].mxu0
      %4317 = vmatprep.mubr.bf16.mxu0 0
      %4318 = vmatmul.mubr.bf16.gmra.mrb[0].mxu0 %v4230
      %v4319 = vpop.f32.mrb[0].mxu0
      %v4320 = vadd.f32 0.0, %v4319
      %v4321 = vpop.f32.mrb[0].mxu0
      %v4322 = vpop.f32.mrb[0].mxu0
      %v4323 = vadd.f32 0.0, %v4322
      %v4324 = vpop.f32.mrb[0].mxu0
      %4325 = vmatprep.mubr.bf16.mxu0 0
      %4326 = vmatmul.mubr.bf16.gmra.mrb[0].mxu0 %v4233
      %v4327 = vpop.f32.mrb[0].mxu0
      %v4328 = vadd.f32 0.0, %v4327
      %v4329 = vpop.f32.mrb[0].mxu0
      %v4330 = vpop.f32.mrb[0].mxu0
      %v4331 = vadd.f32 0.0, %v4330
      %v4332 = vpop.f32.mrb[0].mxu0
      %4333 = vmatprep.mubr.bf16.mxu0 0
      %4334 = vmatmul.mubr.bf16.gmra.mrb[0].mxu0 %v4236
      %v4335 = vpop.f32.mrb[0].mxu0
      %v4336 = vadd.f32 0.0, %v4335
      %v4337 = vpop.f32.mrb[0].mxu0
      %v4338 = vpop.f32.mrb[0].mxu0
      %v4339 = vadd.f32 0.0, %v4338
      %v4340 = vpop.f32.mrb[0].mxu0
      %4341 = vmatprep.mubr.bf16.mxu0 0
      %4342 = vmatmul.mubr.bf16.gmra.mrb[0].mxu0 %v4239
      %v4343 = vpop.f32.mrb[0].mxu0
      %v4344 = vadd.f32 0.0, %v4343
      %v4345 = vpop.f32.mrb[0].mxu0
      %v4346 = vpop.f32.mrb[0].mxu0
      %v4347 = vadd.f32 0.0, %v4346
      %v4348 = vpop.f32.mrb[0].mxu0
      %4349 = vmatprep.mubr.bf16.mxu0 0
      %4350 = vmatmul.mubr.bf16.gmra.mrb[0].mxu0 %v4242
      %v4351 = vpop.f32.mrb[0].mxu0
      %v4352 = vadd.f32 0.0, %v4351
      %v4353 = vpop.f32.mrb[0].mxu0
      %v4354 = vpop.f32.mrb[0].mxu0
      %v4355 = vadd.f32 0.0, %v4354
      %v4356 = vpop.f32.mrb[0].mxu0
      %4357 = vmatprep.mubr.bf16.mxu0 0
      %4358 = vmatmul.mubr.bf16.gmra.mrb[0].mxu0 %v4245
      %v4359 = vpop.f32.mrb[0].mxu0
      %v4360 = vadd.f32 0.0, %v4359
      %v4361 = vpop.f32.mrb[0].mxu0
      %v4362 = vpop.f32.mrb[0].mxu0
      %v4363 = vadd.f32 0.0, %v4362
      %v4364 = vpop.f32.mrb[0].mxu0
      %4365 = vmatprep.mubr.bf16.mxu0 0
      %4366 = vmatmul.mubr.bf16.gmra.mrb[0].mxu0 %v4248
      %v4367 = vpop.f32.mrb[0].mxu0
      %v4368 = vadd.f32 0.0, %v4367
      %v4369 = vpop.f32.mrb[0].mxu0
      %v4370 = vpop.f32.mrb[0].mxu0
      %v4371 = vadd.f32 0.0, %v4370
      %v4372 = vpop.f32.mrb[0].mxu0
      %4373 = vmatprep.mubr.bf16.mxu0 0
      %4374 = vmatmul.mubr.bf16.gmra.mrb[0].mxu0 %v4251
      %v4375 = vpop.f32.mrb[0].mxu0
      %v4376 = vadd.f32 0.0, %v4375
      %v4377 = vpop.f32.mrb[0].mxu0
      %v4378 = vpop.f32.mrb[0].mxu0
      %v4379 = vadd.f32 0.0, %v4378
      %v4380 = vpop.f32.mrb[0].mxu0
      %4381 = vmatprep.mubr.bf16.mxu0 0
      %4382 = vmatmul.mubr.bf16.gmra.mrb[0].mxu0 %v4254
      %v4383 = vpop.f32.mrb[0].mxu0
      %v4384 = vadd.f32 0.0, %v4383
      %v4385 = vpop.f32.mrb[0].mxu0
      %v4386 = vpop.f32.mrb[0].mxu0
      %v4387 = vadd.f32 0.0, %v4386
      %v4388 = vpop.f32.mrb[0].mxu0
      %4389 = vmatprep.mubr.bf16.mxu0 0
      %4390 = vmatmul.mubr.bf16.gmra.mrb[0].mxu0 %v4257
      %v4391 = vpop.f32.mrb[0].mxu0
      %v4392 = vadd.f32 0.0, %v4391
      %v4393 = vpop.f32.mrb[0].mxu0
      %v4394 = vpop.f32.mrb[0].mxu0
      %v4395 = vadd.f32 0.0, %v4394
      %v4396 = vpop.f32.mrb[0].mxu0
      %4397 = vmatprep.mubr.bf16.mxu0 0
      %4398 = vmatmul.mubr.bf16.gmra.mrb[0].mxu0 %v4260
      %v4399 = vpop.f32.mrb[0].mxu0
      %v4400 = vadd.f32 0.0, %v4399
      %v4401 = vpop.f32.mrb[0].mxu0
      %v4402 = vpop.f32.mrb[0].mxu0
      %v4403 = vadd.f32 0.0, %v4402
      %v4404 = vpop.f32.mrb[0].mxu0
      %4405 = vmatprep.mubr.bf16.mxu0 0
      %4406 = vmatmul.mubr.bf16.gmra.mrb[0].mxu0 %v4263
      %v4407 = vpop.f32.mrb[0].mxu0
      %v4408 = vadd.f32 0.0, %v4407
      %v4409 = vpop.f32.mrb[0].mxu0
      %v4410 = vpop.f32.mrb[0].mxu0
      %v4411 = vadd.f32 0.0, %v4410
      %v4412 = vpop.f32.mrb[0].mxu0
      %4413 = vmatprep.mubr.bf16.mxu0 0
      %4414 = vmatmul.mubr.bf16.gmra.mrb[0].mxu0 %v4266
      %v4415 = vpop.f32.mrb[0].mxu0
      %v4416 = vadd.f32 0.0, %v4415
      %v4417 = vpop.f32.mrb[0].mxu0
      %v4418 = vpop.f32.mrb[0].mxu0
      %v4419 = vadd.f32 0.0, %v4418
      %v4420 = vpop.f32.mrb[0].mxu0
      %4421 = vmatprep.mubr.bf16.mxu0 0
      %4422 = vmatmul.mubr.bf16.gmra.mrb[0].mxu0 %v4269
      %v4423 = vpop.f32.mrb[0].mxu0
      %v4424 = vadd.f32 0.0, %v4423
      %v4425 = vpop.f32.mrb[0].mxu0
      %v4426 = vpop.f32.mrb[0].mxu0
      %v4427 = vadd.f32 0.0, %v4426
      %v4428 = vpop.f32.mrb[0].mxu0
      %4429 = vmatprep.mubr.bf16.mxu0 0
      %4430 = vmatmul.mubr.bf16.gmra.mrb[0].mxu0 %v4272
      %v4431 = vpop.f32.mrb[0].mxu0
      %v4432 = vadd.f32 0.0, %v4431
      %v4433 = vpop.f32.mrb[0].mxu0
      %v4434 = vpop.f32.mrb[0].mxu0
      %v4435 = vadd.f32 0.0, %v4434
      %v4436 = vpop.f32.mrb[0].mxu0
      %4437 = vdwg.mxu0
      %v4438 = vadd.f32 %v3712, %v4312
      %v4439 = vadd.f32 %v3713, %v4315
      %v4440 = vadd.f32 %v3714, %v4320
      %v4441 = vadd.f32 %v3715, %v4323
      %v4442 = vadd.f32 %v3716, %v4328
      %v4443 = vadd.f32 %v3717, %v4331
      %v4444 = vadd.f32 %v3718, %v4336
      %v4445 = vadd.f32 %v3719, %v4339
      %v4446 = vadd.f32 %v3720, %v4344
      %v4447 = vadd.f32 %v3721, %v4347
      %v4448 = vadd.f32 %v3722, %v4352
      %v4449 = vadd.f32 %v3723, %v4355
      %v4450 = vadd.f32 %v3724, %v4360
      %v4451 = vadd.f32 %v3725, %v4363
      %v4452 = vadd.f32 %v3726, %v4368
      %v4453 = vadd.f32 %v3727, %v4371
      %v4454 = vadd.f32 %v3728, %v4376
      %v4455 = vadd.f32 %v3729, %v4379
      %v4456 = vadd.f32 %v3730, %v4384
      %v4457 = vadd.f32 %v3731, %v4387
      %v4458 = vadd.f32 %v3732, %v4392
      %v4459 = vadd.f32 %v3733, %v4395
      %v4460 = vadd.f32 %v3734, %v4400
      %v4461 = vadd.f32 %v3735, %v4403
      %v4462 = vadd.f32 %v3736, %v4408
      %v4463 = vadd.f32 %v3737, %v4411
      %v4464 = vadd.f32 %v3738, %v4416
      %v4465 = vadd.f32 %v3739, %v4419
      %v4466 = vadd.f32 %v3740, %v4424
      %v4467 = vadd.f32 %v3741, %v4427
      %v4468 = vadd.f32 %v3742, %v4432
      %v4469 = vadd.f32 %v3743, %v4435
      %v4470 = vld [vmem:[%s1820] sm:$0xe]
      %v4471 = vld [vmem:[%s1820 + $0xc] sm:$0xe]
      %v4472 = vld [vmem:[%s1820 + $0x18] sm:$0xe]
      %v4473 = vld [vmem:[%s1820 + $0x24] sm:$0xe]
      %v4474 = vld [vmem:[%s1820 + $0x30] sm:$0xe]
      %v4475 = vld [vmem:[%s1820 + $0x3c] sm:$0xe]
      %v4476 = vld [vmem:[%s1820 + $0x48] sm:$0xe]
      %v4477 = vld [vmem:[%s1820 + $0x54] sm:$0xe]
      %v4478 = vld [vmem:[%s1820 + $0x60] sm:$0xe]
      %v4479 = vld [vmem:[%s1820 + $0x6c] sm:$0xe]
      %v4480 = vld [vmem:[%s1820 + $0x78] sm:$0xe]
      %v4481 = vld [vmem:[%s1820 + $0x84] sm:$0xe]
      %v4482 = vld [vmem:[%s1820 + $0x90] sm:$0xe]
      %v4483 = vld [vmem:[%s1820 + $0x9c] sm:$0xe]
      %v4484 = vld [vmem:[%s1820 + $0xa8] sm:$0xe]
      %v4485 = vld [vmem:[%s1820 + $0xb4] sm:$0xe]
      %v4534 = vrot.slane %v4470, 5
      %v4535 = vrot.slane %v4534, 4
      %v4536 = vrot.slane %v3745, 5
      %v4537 = vsel %vm2979, %v4535, %v4536
      %v4538 = vrot.slane %v4536, 4
      %v4539 = vrot.slane %v3746, 5
      %v4540 = vsel %vm2979, %v4538, %v4539
      %v4541 = vrot.slane %v4471, 5
      %v4542 = vrot.slane %v4541, 4
      %v4543 = vrot.slane %v3748, 5
      %v4544 = vsel %vm2979, %v4542, %v4543
      %v4545 = vrot.slane %v4543, 4
      %v4546 = vrot.slane %v3749, 5
      %v4547 = vsel %vm2979, %v4545, %v4546
      %v4548 = vrot.slane %v4472, 5
      %v4549 = vrot.slane %v4548, 4
      %v4550 = vrot.slane %v3751, 5
      %v4551 = vsel %vm2979, %v4549, %v4550
      %v4552 = vrot.slane %v4550, 4
      %v4553 = vrot.slane %v3752, 5
      %v4554 = vsel %vm2979, %v4552, %v4553
      %v4555 = vrot.slane %v4473, 5
      %v4556 = vrot.slane %v4555, 4
      %v4557 = vrot.slane %v3754, 5
      %v4558 = vsel %vm2979, %v4556, %v4557
      %v4559 = vrot.slane %v4557, 4
      %v4560 = vrot.slane %v3755, 5
      %v4561 = vsel %vm2979, %v4559, %v4560
      %v4562 = vrot.slane %v4474, 5
      %v4563 = vrot.slane %v4562, 4
      %v4564 = vrot.slane %v3757, 5
      %v4565 = vsel %vm2979, %v4563, %v4564
      %v4566 = vrot.slane %v4564, 4
      %v4567 = vrot.slane %v3758, 5
      %v4568 = vsel %vm2979, %v4566, %v4567
      %v4569 = vrot.slane %v4475, 5
      %v4570 = vrot.slane %v4569, 4
      %v4571 = vrot.slane %v3760, 5
      %v4572 = vsel %vm2979, %v4570, %v4571
      %v4573 = vrot.slane %v4571, 4
      %v4574 = vrot.slane %v3761, 5
      %v4575 = vsel %vm2979, %v4573, %v4574
      %v4576 = vrot.slane %v4476, 5
      %v4577 = vrot.slane %v4576, 4
      %v4578 = vrot.slane %v3763, 5
      %v4579 = vsel %vm2979, %v4577, %v4578
      %v4580 = vrot.slane %v4578, 4
      %v4581 = vrot.slane %v3764, 5
      %v4582 = vsel %vm2979, %v4580, %v4581
      %v4583 = vrot.slane %v4477, 5
      %v4584 = vrot.slane %v4583, 4
      %v4585 = vrot.slane %v3766, 5
      %v4586 = vsel %vm2979, %v4584, %v4585
      %v4587 = vrot.slane %v4585, 4
      %v4588 = vrot.slane %v3767, 5
      %v4589 = vsel %vm2979, %v4587, %v4588
      %v4590 = vrot.slane %v4478, 5
      %v4591 = vrot.slane %v4590, 4
      %v4592 = vrot.slane %v3769, 5
      %v4593 = vsel %vm2979, %v4591, %v4592
      %v4594 = vrot.slane %v4592, 4
      %v4595 = vrot.slane %v3770, 5
      %v4596 = vsel %vm2979, %v4594, %v4595
      %v4597 = vrot.slane %v4479, 5
      %v4598 = vrot.slane %v4597, 4
      %v4599 = vrot.slane %v3772, 5
      %v4600 = vsel %vm2979, %v4598, %v4599
      %v4601 = vrot.slane %v4599, 4
      %v4602 = vrot.slane %v3773, 5
      %v4603 = vsel %vm2979, %v4601, %v4602
      %v4604 = vrot.slane %v4480, 5
      %v4605 = vrot.slane %v4604, 4
      %v4606 = vrot.slane %v3775, 5
      %v4607 = vsel %vm2979, %v4605, %v4606
      %v4608 = vrot.slane %v4606, 4
      %v4609 = vrot.slane %v3776, 5
      %v4610 = vsel %vm2979, %v4608, %v4609
      %v4611 = vrot.slane %v4481, 5
      %v4612 = vrot.slane %v4611, 4
      %v4613 = vrot.slane %v3778, 5
      %v4614 = vsel %vm2979, %v4612, %v4613
      %v4615 = vrot.slane %v4613, 4
      %v4616 = vrot.slane %v3779, 5
      %v4617 = vsel %vm2979, %v4615, %v4616
      %v4618 = vrot.slane %v4482, 5
      %v4619 = vrot.slane %v4618, 4
      %v4620 = vrot.slane %v3781, 5
      %v4621 = vsel %vm2979, %v4619, %v4620
      %v4622 = vrot.slane %v4620, 4
      %v4623 = vrot.slane %v3782, 5
      %v4624 = vsel %vm2979, %v4622, %v4623
      %v4625 = vrot.slane %v4483, 5
      %v4626 = vrot.slane %v4625, 4
      %v4627 = vrot.slane %v3784, 5
      %v4628 = vsel %vm2979, %v4626, %v4627
      %v4629 = vrot.slane %v4627, 4
      %v4630 = vrot.slane %v3785, 5
      %v4631 = vsel %vm2979, %v4629, %v4630
      %v4632 = vrot.slane %v4484, 5
      %v4633 = vrot.slane %v4632, 4
      %v4634 = vrot.slane %v3787, 5
      %v4635 = vsel %vm2979, %v4633, %v4634
      %v4636 = vrot.slane %v4634, 4
      %v4637 = vrot.slane %v3788, 5
      %v4638 = vsel %vm2979, %v4636, %v4637
      %v4639 = vrot.slane %v4485, 5
      %v4640 = vrot.slane %v4639, 4
      %v4641 = vrot.slane %v3790, 5
      %v4642 = vsel %vm2979, %v4640, %v4641
      %v4643 = vrot.slane %v4641, 4
      %v4644 = vrot.slane %v3791, 5
      %v4645 = vsel %vm2979, %v4643, %v4644
      %s4646 = scalar_lea.vmem %s2, 20
      %v4647 = vld [vmem:[%s4646] sm:$0xf]
      %v4648 = vunpack.c.l.b16 %v4537
      %v4649 = vunpack.c.l.b16 %v4540
      %v4650 = vunpack.c.l.b16 %v4544
      %v4651 = vunpack.c.l.b16 %v4547
      %v4652 = vunpack.c.l.b16 %v4551
      %v4653 = vunpack.c.l.b16 %v4554
      %v4654 = vunpack.c.l.b16 %v4558
      %v4655 = vunpack.c.l.b16 %v4561
      %v4656 = vunpack.c.l.b16 %v4565
      %v4657 = vunpack.c.l.b16 %v4568
      %v4658 = vunpack.c.l.b16 %v4572
      %v4659 = vunpack.c.l.b16 %v4575
      %v4660 = vunpack.c.l.b16 %v4579
      %v4661 = vunpack.c.l.b16 %v4582
      %v4662 = vunpack.c.l.b16 %v4586
      %v4663 = vunpack.c.l.b16 %v4589
      %v4664 = vunpack.c.l.b16 %v4593
      %v4665 = vunpack.c.l.b16 %v4596
      %v4666 = vunpack.c.l.b16 %v4600
      %v4667 = vunpack.c.l.b16 %v4603
      %v4668 = vunpack.c.l.b16 %v4607
      %v4669 = vunpack.c.l.b16 %v4610
      %v4670 = vunpack.c.l.b16 %v4614
      %v4671 = vunpack.c.l.b16 %v4617
      %v4672 = vunpack.c.l.b16 %v4621
      %v4673 = vunpack.c.l.b16 %v4624
      %v4674 = vunpack.c.l.b16 %v4628
      %v4675 = vunpack.c.l.b16 %v4631
      %v4676 = vunpack.c.l.b16 %v4635
      %v4677 = vunpack.c.l.b16 %v4638
      %v4678 = vunpack.c.l.b16 %v4642
      %v4679 = vunpack.c.l.b16 %v4645
      %v4680 = vpack.c.b16 %v4649, %v4648
      %v4681 = vpack.c.b16 %v4651, %v4650
      %v4682 = vpack.c.b16 %v4653, %v4652
      %v4683 = vpack.c.b16 %v4655, %v4654
      %v4684 = vpack.c.b16 %v4657, %v4656
      %v4685 = vpack.c.b16 %v4659, %v4658
      %v4686 = vpack.c.b16 %v4661, %v4660
      %v4687 = vpack.c.b16 %v4663, %v4662
      %v4688 = vpack.c.b16 %v4665, %v4664
      %v4689 = vpack.c.b16 %v4667, %v4666
      %v4690 = vpack.c.b16 %v4669, %v4668
      %v4691 = vpack.c.b16 %v4671, %v4670
      %v4692 = vpack.c.b16 %v4673, %v4672
      %v4693 = vpack.c.b16 %v4675, %v4674
      %v4694 = vpack.c.b16 %v4677, %v4676
      %v4695 = vpack.c.b16 %v4679, %v4678
      %v4697 = vsel %vm2423, %v4680, 0
      %v4700 = vsel %vm2423, %v4681, 0
      %v4703 = vsel %vm2423, %v4682, 0
      %v4706 = vsel %vm2423, %v4683, 0
      %v4709 = vsel %vm2423, %v4684, 0
      %v4712 = vsel %vm2423, %v4685, 0
      %v4715 = vsel %vm2423, %v4686, 0
      %v4718 = vsel %vm2423, %v4687, 0
      %v4721 = vsel %vm2423, %v4688, 0
      %v4724 = vsel %vm2423, %v4689, 0
      %v4727 = vsel %vm2423, %v4690, 0
      %v4730 = vsel %vm2423, %v4691, 0
      %v4733 = vsel %vm2423, %v4692, 0
      %v4736 = vsel %vm2423, %v4693, 0
      %v4739 = vsel %vm2423, %v4694, 0
      %v4742 = vsel %vm2423, %v4695, 0
      %v4745 = vsel %vm2472, %v4647, 0
      %4747 = vmatprep.subr.bf16.mxu0 0
      %4748 = vmatpush1.bf16.msra.mxu0 %v4745
      %4749 = vmatprep.subr.bf16.mxu0 0
      %4750 = vmatpush1.bf16.msra.mxu0 0
      %4751 = vmatprep.subr.bf16.mxu0 0
      %4752 = vmatpush1.bf16.msra.mxu0 0
      %4753 = vmatprep.subr.bf16.mxu0 0
      %4754 = vmatpush1.bf16.msra.mxu0 0
      %4755 = vmatprep.subr.bf16.mxu0 0
      %4756 = vmatpush1.bf16.msra.mxu0 0
      %4757 = vmatprep.subr.bf16.mxu0 0
      %4758 = vmatpush1.bf16.msra.mxu0 0
      %4759 = vmatprep.subr.bf16.mxu0 0
      %4760 = vmatpush1.bf16.msra.mxu0 0
      %4761 = vmatprep.subr.bf16.mxu0 0
      %4762 = vmatpush1.bf16.msra.mxu0 0
      %4763 = vmatprep.subr.bf16.mxu0 0
      %4764 = vmatpush1.bf16.msra.mxu0 0
      %4765 = vmatprep.subr.bf16.mxu0 0
      %4766 = vmatpush1.bf16.msra.mxu0 0
      %4767 = vmatprep.subr.bf16.mxu0 0
      %4768 = vmatpush1.bf16.msra.mxu0 0
      %4769 = vmatprep.subr.bf16.mxu0 0
      %4770 = vmatpush1.bf16.msra.mxu0 0
      %4771 = vmatprep.subr.bf16.mxu0 0
      %4772 = vmatpush1.bf16.msra.mxu0 0
      %4773 = vmatprep.subr.bf16.mxu0 0
      %4774 = vmatpush1.bf16.msra.mxu0 0
      %4775 = vmatprep.subr.bf16.mxu0 0
      %4776 = vmatpush1.bf16.msra.mxu0 0
      %4777 = vmatprep.subr.bf16.mxu0 0
      %4778 = vmatpush1.bf16.msra.mxu0 0
      %4779 = vmatprep.mubr.bf16.mxu0 0
      %4780 = vmatmul.mubr.bf16.gmra.mrb[0].mxu0 %v4697
      %v4781 = vpop.f32.mrb[0].mxu0
      %v4782 = vadd.f32 0.0, %v4781
      %v4783 = vpop.f32.mrb[0].mxu0
      %v4784 = vpop.f32.mrb[0].mxu0
      %v4785 = vadd.f32 0.0, %v4784
      %v4786 = vpop.f32.mrb[0].mxu0
      %4787 = vmatprep.mubr.bf16.mxu0 0
      %4788 = vmatmul.mubr.bf16.gmra.mrb[0].mxu0 %v4700
      %v4789 = vpop.f32.mrb[0].mxu0
      %v4790 = vadd.f32 0.0, %v4789
      %v4791 = vpop.f32.mrb[0].mxu0
      %v4792 = vpop.f32.mrb[0].mxu0
      %v4793 = vadd.f32 0.0, %v4792
      %v4794 = vpop.f32.mrb[0].mxu0
      %4795 = vmatprep.mubr.bf16.mxu0 0
      %4796 = vmatmul.mubr.bf16.gmra.mrb[0].mxu0 %v4703
      %v4797 = vpop.f32.mrb[0].mxu0
      %v4798 = vadd.f32 0.0, %v4797
      %v4799 = vpop.f32.mrb[0].mxu0
      %v4800 = vpop.f32.mrb[0].mxu0
      %v4801 = vadd.f32 0.0, %v4800
      %v4802 = vpop.f32.mrb[0].mxu0
      %4803 = vmatprep.mubr.bf16.mxu0 0
      %4804 = vmatmul.mubr.bf16.gmra.mrb[0].mxu0 %v4706
      %v4805 = vpop.f32.mrb[0].mxu0
      %v4806 = vadd.f32 0.0, %v4805
      %v4807 = vpop.f32.mrb[0].mxu0
      %v4808 = vpop.f32.mrb[0].mxu0
      %v4809 = vadd.f32 0.0, %v4808
      %v4810 = vpop.f32.mrb[0].mxu0
      %4811 = vmatprep.mubr.bf16.mxu0 0
      %4812 = vmatmul.mubr.bf16.gmra.mrb[0].mxu0 %v4709
      %v4813 = vpop.f32.mrb[0].mxu0
      %v4814 = vadd.f32 0.0, %v4813
      %v4815 = vpop.f32.mrb[0].mxu0
      %v4816 = vpop.f32.mrb[0].mxu0
      %v4817 = vadd.f32 0.0, %v4816
      %v4818 = vpop.f32.mrb[0].mxu0
      %4819 = vmatprep.mubr.bf16.mxu0 0
      %4820 = vmatmul.mubr.bf16.gmra.mrb[0].mxu0 %v4712
      %v4821 = vpop.f32.mrb[0].mxu0
      %v4822 = vadd.f32 0.0, %v4821
      %v4823 = vpop.f32.mrb[0].mxu0
      %v4824 = vpop.f32.mrb[0].mxu0
      %v4825 = vadd.f32 0.0, %v4824
      %v4826 = vpop.f32.mrb[0].mxu0
      %4827 = vmatprep.mubr.bf16.mxu0 0
      %4828 = vmatmul.mubr.bf16.gmra.mrb[0].mxu0 %v4715
      %v4829 = vpop.f32.mrb[0].mxu0
      %v4830 = vadd.f32 0.0, %v4829
      %v4831 = vpop.f32.mrb[0].mxu0
      %v4832 = vpop.f32.mrb[0].mxu0
      %v4833 = vadd.f32 0.0, %v4832
      %v4834 = vpop.f32.mrb[0].mxu0
      %4835 = vmatprep.mubr.bf16.mxu0 0
      %4836 = vmatmul.mubr.bf16.gmra.mrb[0].mxu0 %v4718
      %v4837 = vpop.f32.mrb[0].mxu0
      %v4838 = vadd.f32 0.0, %v4837
      %v4839 = vpop.f32.mrb[0].mxu0
      %v4840 = vpop.f32.mrb[0].mxu0
      %v4841 = vadd.f32 0.0, %v4840
      %v4842 = vpop.f32.mrb[0].mxu0
      %4843 = vmatprep.mubr.bf16.mxu0 0
      %4844 = vmatmul.mubr.bf16.gmra.mrb[0].mxu0 %v4721
      %v4845 = vpop.f32.mrb[0].mxu0
      %v4846 = vadd.f32 0.0, %v4845
      %v4847 = vpop.f32.mrb[0].mxu0
      %v4848 = vpop.f32.mrb[0].mxu0
      %v4849 = vadd.f32 0.0, %v4848
      %v4850 = vpop.f32.mrb[0].mxu0
      %4851 = vmatprep.mubr.bf16.mxu0 0
      %4852 = vmatmul.mubr.bf16.gmra.mrb[0].mxu0 %v4724
      %v4853 = vpop.f32.mrb[0].mxu0
      %v4854 = vadd.f32 0.0, %v4853
      %v4855 = vpop.f32.mrb[0].mxu0
      %v4856 = vpop.f32.mrb[0].mxu0
      %v4857 = vadd.f32 0.0, %v4856
      %v4858 = vpop.f32.mrb[0].mxu0
      %4859 = vmatprep.mubr.bf16.mxu0 0
      %4860 = vmatmul.mubr.bf16.gmra.mrb[0].mxu0 %v4727
      %v4861 = vpop.f32.mrb[0].mxu0
      %v4862 = vadd.f32 0.0, %v4861
      %v4863 = vpop.f32.mrb[0].mxu0
      %v4864 = vpop.f32.mrb[0].mxu0
      %v4865 = vadd.f32 0.0, %v4864
      %v4866 = vpop.f32.mrb[0].mxu0
      %4867 = vmatprep.mubr.bf16.mxu0 0
      %4868 = vmatmul.mubr.bf16.gmra.mrb[0].mxu0 %v4730
      %v4869 = vpop.f32.mrb[0].mxu0
      %v4870 = vadd.f32 0.0, %v4869
      %v4871 = vpop.f32.mrb[0].mxu0
      %v4872 = vpop.f32.mrb[0].mxu0
      %v4873 = vadd.f32 0.0, %v4872
      %v4874 = vpop.f32.mrb[0].mxu0
      %4875 = vmatprep.mubr.bf16.mxu0 0
      %4876 = vmatmul.mubr.bf16.gmra.mrb[0].mxu0 %v4733
      %v4877 = vpop.f32.mrb[0].mxu0
      %v4878 = vadd.f32 0.0, %v4877
      %v4879 = vpop.f32.mrb[0].mxu0
      %v4880 = vpop.f32.mrb[0].mxu0
      %v4881 = vadd.f32 0.0, %v4880
      %v4882 = vpop.f32.mrb[0].mxu0
      %4883 = vmatprep.mubr.bf16.mxu0 0
      %4884 = vmatmul.mubr.bf16.gmra.mrb[0].mxu0 %v4736
      %v4885 = vpop.f32.mrb[0].mxu0
      %v4886 = vadd.f32 0.0, %v4885
      %v4887 = vpop.f32.mrb[0].mxu0
      %v4888 = vpop.f32.mrb[0].mxu0
      %v4889 = vadd.f32 0.0, %v4888
      %v4890 = vpop.f32.mrb[0].mxu0
      %4891 = vmatprep.mubr.bf16.mxu0 0
      %4892 = vmatmul.mubr.bf16.gmra.mrb[0].mxu0 %v4739
      %v4893 = vpop.f32.mrb[0].mxu0
      %v4894 = vadd.f32 0.0, %v4893
      %v4895 = vpop.f32.mrb[0].mxu0
      %v4896 = vpop.f32.mrb[0].mxu0
      %v4897 = vadd.f32 0.0, %v4896
      %v4898 = vpop.f32.mrb[0].mxu0
      %4899 = vmatprep.mubr.bf16.mxu0 0
      %4900 = vmatmul.mubr.bf16.gmra.mrb[0].mxu0 %v4742
      %v4901 = vpop.f32.mrb[0].mxu0
      %v4902 = vadd.f32 0.0, %v4901
      %v4903 = vpop.f32.mrb[0].mxu0
      %v4904 = vpop.f32.mrb[0].mxu0
      %v4905 = vadd.f32 0.0, %v4904
      %v4906 = vpop.f32.mrb[0].mxu0
      %4907 = vdwg.mxu0
      %v4908 = vadd.f32 %v4438, %v4782
      %v4909 = vadd.f32 %v4439, %v4785
      %v4910 = vadd.f32 %v4440, %v4790
      %v4911 = vadd.f32 %v4441, %v4793
      %v4912 = vadd.f32 %v4442, %v4798
      %v4913 = vadd.f32 %v4443, %v4801
      %v4914 = vadd.f32 %v4444, %v4806
      %v4915 = vadd.f32 %v4445, %v4809
      %v4916 = vadd.f32 %v4446, %v4814
      %v4917 = vadd.f32 %v4447, %v4817
      %v4918 = vadd.f32 %v4448, %v4822
      %v4919 = vadd.f32 %v4449, %v4825
      %v4920 = vadd.f32 %v4450, %v4830
      %v4921 = vadd.f32 %v4451, %v4833
      %v4922 = vadd.f32 %v4452, %v4838
      %v4923 = vadd.f32 %v4453, %v4841
      %v4924 = vadd.f32 %v4454, %v4846
      %v4925 = vadd.f32 %v4455, %v4849
      %v4926 = vadd.f32 %v4456, %v4854
      %v4927 = vadd.f32 %v4457, %v4857
      %v4928 = vadd.f32 %v4458, %v4862
      %v4929 = vadd.f32 %v4459, %v4865
      %v4930 = vadd.f32 %v4460, %v4870
      %v4931 = vadd.f32 %v4461, %v4873
      %v4932 = vadd.f32 %v4462, %v4878
      %v4933 = vadd.f32 %v4463, %v4881
      %v4934 = vadd.f32 %v4464, %v4886
      %v4935 = vadd.f32 %v4465, %v4889
      %v4936 = vadd.f32 %v4466, %v4894
      %v4937 = vadd.f32 %v4467, %v4897
      %v4938 = vadd.f32 %v4468, %v4902
      %v4939 = vadd.f32 %v4469, %v4905
      %s4940 = scalar_lea.vmem [#allocation3], 24
      %v4941 = vld [vmem:[%s4940] sm:$0xf]
      %v4942 = vld [vmem:[%s4940 + $0x4] sm:$0xf]
      %v4943 = vld [vmem:[%s4940 + $0xc] sm:$0xf]
      %v4944 = vld [vmem:[%s4940 + $0x10] sm:$0xf]
      %v4945 = vld [vmem:[%s4940 + $0x18] sm:$0xf]
      %v4946 = vld [vmem:[%s4940 + $0x1c] sm:$0xf]
      %v4947 = vld [vmem:[%s4940 + $0x24] sm:$0xf]
      %v4948 = vld [vmem:[%s4940 + $0x28] sm:$0xf]
      %v4949 = vld [vmem:[%s4940 + $0x30] sm:$0xf]
      %v4950 = vld [vmem:[%s4940 + $0x34] sm:$0xf]
      %v4951 = vld [vmem:[%s4940 + $0x3c] sm:$0xf]
      %v4952 = vld [vmem:[%s4940 + $0x40] sm:$0xf]
      %v4953 = vld [vmem:[%s4940 + $0x48] sm:$0xf]
      %v4954 = vld [vmem:[%s4940 + $0x4c] sm:$0xf]
      %v4955 = vld [vmem:[%s4940 + $0x54] sm:$0xf]
      %v4956 = vld [vmem:[%s4940 + $0x58] sm:$0xf]
      %v4957 = vld [vmem:[%s4940 + $0x60] sm:$0xf]
      %v4958 = vld [vmem:[%s4940 + $0x64] sm:$0xf]
      %v4959 = vld [vmem:[%s4940 + $0x6c] sm:$0xf]
      %v4960 = vld [vmem:[%s4940 + $0x70] sm:$0xf]
      %v4961 = vld [vmem:[%s4940 + $0x78] sm:$0xf]
      %v4962 = vld [vmem:[%s4940 + $0x7c] sm:$0xf]
      %v4963 = vld [vmem:[%s4940 + $0x84] sm:$0xf]
      %v4964 = vld [vmem:[%s4940 + $0x88] sm:$0xf]
      %v4965 = vld [vmem:[%s4940 + $0x90] sm:$0xf]
      %v4966 = vld [vmem:[%s4940 + $0x94] sm:$0xf]
      %v4967 = vld [vmem:[%s4940 + $0x9c] sm:$0xf]
      %v4968 = vld [vmem:[%s4940 + $0xa0] sm:$0xf]
      %v4969 = vld [vmem:[%s4940 + $0xa8] sm:$0xf]
      %v4970 = vld [vmem:[%s4940 + $0xac] sm:$0xf]
      %v4971 = vld [vmem:[%s4940 + $0xb4] sm:$0xf]
      %v4972 = vld [vmem:[%s4940 + $0xb8] sm:$0xf]
      %s4973 = scalar_lea.vmem %s2, 24
      %v4974 = vld [vmem:[%s4973] sm:$0xf]
      %v5007 = vunpack.c.l.b16 %v4941
      %v5008 = vunpack.c.l.b16 %v4942
      %v5009 = vunpack.c.l.b16 %v4943
      %v5010 = vunpack.c.l.b16 %v4944
      %v5011 = vunpack.c.l.b16 %v4945
      %v5012 = vunpack.c.l.b16 %v4946
      %v5013 = vunpack.c.l.b16 %v4947
      %v5014 = vunpack.c.l.b16 %v4948
      %v5015 = vunpack.c.l.b16 %v4949
      %v5016 = vunpack.c.l.b16 %v4950
      %v5017 = vunpack.c.l.b16 %v4951
      %v5018 = vunpack.c.l.b16 %v4952
      %v5019 = vunpack.c.l.b16 %v4953
      %v5020 = vunpack.c.l.b16 %v4954
      %v5021 = vunpack.c.l.b16 %v4955
      %v5022 = vunpack.c.l.b16 %v4956
      %v5023 = vunpack.c.l.b16 %v4957
      %v5024 = vunpack.c.l.b16 %v4958
      %v5025 = vunpack.c.l.b16 %v4959
      %v5026 = vunpack.c.l.b16 %v4960
      %v5027 = vunpack.c.l.b16 %v4961
      %v5028 = vunpack.c.l.b16 %v4962
      %v5029 = vunpack.c.l.b16 %v4963
      %v5030 = vunpack.c.l.b16 %v4964
      %v5031 = vunpack.c.l.b16 %v4965
      %v5032 = vunpack.c.l.b16 %v4966
      %v5033 = vunpack.c.l.b16 %v4967
      %v5034 = vunpack.c.l.b16 %v4968
      %v5035 = vunpack.c.l.b16 %v4969
      %v5036 = vunpack.c.l.b16 %v4970
      %v5037 = vunpack.c.l.b16 %v4971
      %v5038 = vunpack.c.l.b16 %v4972
      %v5039 = vpack.c.b16 %v5008, %v5007
      %v5040 = vpack.c.b16 %v5010, %v5009
      %v5041 = vpack.c.b16 %v5012, %v5011
      %v5042 = vpack.c.b16 %v5014, %v5013
      %v5043 = vpack.c.b16 %v5016, %v5015
      %v5044 = vpack.c.b16 %v5018, %v5017
      %v5045 = vpack.c.b16 %v5020, %v5019
      %v5046 = vpack.c.b16 %v5022, %v5021
      %v5047 = vpack.c.b16 %v5024, %v5023
      %v5048 = vpack.c.b16 %v5026, %v5025
      %v5049 = vpack.c.b16 %v5028, %v5027
      %v5050 = vpack.c.b16 %v5030, %v5029
      %v5051 = vpack.c.b16 %v5032, %v5031
      %v5052 = vpack.c.b16 %v5034, %v5033
      %v5053 = vpack.c.b16 %v5036, %v5035
      %v5054 = vpack.c.b16 %v5038, %v5037
      %v5056 = vsel %vm2423, %v5039, 0
      %v5059 = vsel %vm2423, %v5040, 0
      %v5062 = vsel %vm2423, %v5041, 0
      %v5065 = vsel %vm2423, %v5042, 0
      %v5068 = vsel %vm2423, %v5043, 0
      %v5071 = vsel %vm2423, %v5044, 0
      %v5074 = vsel %vm2423, %v5045, 0
      %v5077 = vsel %vm2423, %v5046, 0
      %v5080 = vsel %vm2423, %v5047, 0
      %v5083 = vsel %vm2423, %v5048, 0
      %v5086 = vsel %vm2423, %v5049, 0
      %v5089 = vsel %vm2423, %v5050, 0
      %v5092 = vsel %vm2423, %v5051, 0
      %v5095 = vsel %vm2423, %v5052, 0
      %v5098 = vsel %vm2423, %v5053, 0
      %v5101 = vsel %vm2423, %v5054, 0
      %v5104 = vsel %vm2472, %v4974, 0
      %5106 = vmatprep.subr.bf16.mxu0 0
      %5107 = vmatpush1.bf16.msra.mxu0 %v5104
      %5108 = vmatprep.subr.bf16.mxu0 0
      %5109 = vmatpush1.bf16.msra.mxu0 0
      %5110 = vmatprep.subr.bf16.mxu0 0
      %5111 = vmatpush1.bf16.msra.mxu0 0
      %5112 = vmatprep.subr.bf16.mxu0 0
      %5113 = vmatpush1.bf16.msra.mxu0 0
      %5114 = vmatprep.subr.bf16.mxu0 0
      %5115 = vmatpush1.bf16.msra.mxu0 0
      %5116 = vmatprep.subr.bf16.mxu0 0
      %5117 = vmatpush1.bf16.msra.mxu0 0
      %5118 = vmatprep.subr.bf16.mxu0 0
      %5119 = vmatpush1.bf16.msra.mxu0 0
      %5120 = vmatprep.subr.bf16.mxu0 0
      %5121 = vmatpush1.bf16.msra.mxu0 0
      %5122 = vmatprep.subr.bf16.mxu0 0
      %5123 = vmatpush1.bf16.msra.mxu0 0
      %5124 = vmatprep.subr.bf16.mxu0 0
      %5125 = vmatpush1.bf16.msra.mxu0 0
      %5126 = vmatprep.subr.bf16.mxu0 0
      %5127 = vmatpush1.bf16.msra.mxu0 0
      %5128 = vmatprep.subr.bf16.mxu0 0
      %5129 = vmatpush1.bf16.msra.mxu0 0
      %5130 = vmatprep.subr.bf16.mxu0 0
      %5131 = vmatpush1.bf16.msra.mxu0 0
      %5132 = vmatprep.subr.bf16.mxu0 0
      %5133 = vmatpush1.bf16.msra.mxu0 0
      %5134 = vmatprep.subr.bf16.mxu0 0
      %5135 = vmatpush1.bf16.msra.mxu0 0
      %5136 = vmatprep.subr.bf16.mxu0 0
      %5137 = vmatpush1.bf16.msra.mxu0 0
      %5138 = vmatprep.mubr.bf16.mxu0 0
      %5139 = vmatmul.mubr.bf16.gmra.mrb[0].mxu0 %v5056
      %v5140 = vpop.f32.mrb[0].mxu0
      %v5141 = vadd.f32 0.0, %v5140
      %v5142 = vpop.f32.mrb[0].mxu0
      %v5143 = vpop.f32.mrb[0].mxu0
      %v5144 = vadd.f32 0.0, %v5143
      %v5145 = vpop.f32.mrb[0].mxu0
      %5146 = vmatprep.mubr.bf16.mxu0 0
      %5147 = vmatmul.mubr.bf16.gmra.mrb[0].mxu0 %v5059
      %v5148 = vpop.f32.mrb[0].mxu0
      %v5149 = vadd.f32 0.0, %v5148
      %v5150 = vpop.f32.mrb[0].mxu0
      %v5151 = vpop.f32.mrb[0].mxu0
      %v5152 = vadd.f32 0.0, %v5151
      %v5153 = vpop.f32.mrb[0].mxu0
      %5154 = vmatprep.mubr.bf16.mxu0 0
      %5155 = vmatmul.mubr.bf16.gmra.mrb[0].mxu0 %v5062
      %v5156 = vpop.f32.mrb[0].mxu0
      %v5157 = vadd.f32 0.0, %v5156
      %v5158 = vpop.f32.mrb[0].mxu0
      %v5159 = vpop.f32.mrb[0].mxu0
      %v5160 = vadd.f32 0.0, %v5159
      %v5161 = vpop.f32.mrb[0].mxu0
      %5162 = vmatprep.mubr.bf16.mxu0 0
      %5163 = vmatmul.mubr.bf16.gmra.mrb[0].mxu0 %v5065
      %v5164 = vpop.f32.mrb[0].mxu0
      %v5165 = vadd.f32 0.0, %v5164
      %v5166 = vpop.f32.mrb[0].mxu0
      %v5167 = vpop.f32.mrb[0].mxu0
      %v5168 = vadd.f32 0.0, %v5167
      %v5169 = vpop.f32.mrb[0].mxu0
      %5170 = vmatprep.mubr.bf16.mxu0 0
      %5171 = vmatmul.mubr.bf16.gmra.mrb[0].mxu0 %v5068
      %v5172 = vpop.f32.mrb[0].mxu0
      %v5173 = vadd.f32 0.0, %v5172
      %v5174 = vpop.f32.mrb[0].mxu0
      %v5175 = vpop.f32.mrb[0].mxu0
      %v5176 = vadd.f32 0.0, %v5175
      %v5177 = vpop.f32.mrb[0].mxu0
      %5178 = vmatprep.mubr.bf16.mxu0 0
      %5179 = vmatmul.mubr.bf16.gmra.mrb[0].mxu0 %v5071
      %v5180 = vpop.f32.mrb[0].mxu0
      %v5181 = vadd.f32 0.0, %v5180
      %v5182 = vpop.f32.mrb[0].mxu0
      %v5183 = vpop.f32.mrb[0].mxu0
      %v5184 = vadd.f32 0.0, %v5183
      %v5185 = vpop.f32.mrb[0].mxu0
      %5186 = vmatprep.mubr.bf16.mxu0 0
      %5187 = vmatmul.mubr.bf16.gmra.mrb[0].mxu0 %v5074
      %v5188 = vpop.f32.mrb[0].mxu0
      %v5189 = vadd.f32 0.0, %v5188
      %v5190 = vpop.f32.mrb[0].mxu0
      %v5191 = vpop.f32.mrb[0].mxu0
      %v5192 = vadd.f32 0.0, %v5191
      %v5193 = vpop.f32.mrb[0].mxu0
      %5194 = vmatprep.mubr.bf16.mxu0 0
      %5195 = vmatmul.mubr.bf16.gmra.mrb[0].mxu0 %v5077
      %v5196 = vpop.f32.mrb[0].mxu0
      %v5197 = vadd.f32 0.0, %v5196
      %v5198 = vpop.f32.mrb[0].mxu0
      %v5199 = vpop.f32.mrb[0].mxu0
      %v5200 = vadd.f32 0.0, %v5199
      %v5201 = vpop.f32.mrb[0].mxu0
      %5202 = vmatprep.mubr.bf16.mxu0 0
      %5203 = vmatmul.mubr.bf16.gmra.mrb[0].mxu0 %v5080
      %v5204 = vpop.f32.mrb[0].mxu0
      %v5205 = vadd.f32 0.0, %v5204
      %v5206 = vpop.f32.mrb[0].mxu0
      %v5207 = vpop.f32.mrb[0].mxu0
      %v5208 = vadd.f32 0.0, %v5207
      %v5209 = vpop.f32.mrb[0].mxu0
      %5210 = vmatprep.mubr.bf16.mxu0 0
      %5211 = vmatmul.mubr.bf16.gmra.mrb[0].mxu0 %v5083
      %v5212 = vpop.f32.mrb[0].mxu0
      %v5213 = vadd.f32 0.0, %v5212
      %v5214 = vpop.f32.mrb[0].mxu0
      %v5215 = vpop.f32.mrb[0].mxu0
      %v5216 = vadd.f32 0.0, %v5215
      %v5217 = vpop.f32.mrb[0].mxu0
      %5218 = vmatprep.mubr.bf16.mxu0 0
      %5219 = vmatmul.mubr.bf16.gmra.mrb[0].mxu0 %v5086
      %v5220 = vpop.f32.mrb[0].mxu0
      %v5221 = vadd.f32 0.0, %v5220
      %v5222 = vpop.f32.mrb[0].mxu0
      %v5223 = vpop.f32.mrb[0].mxu0
      %v5224 = vadd.f32 0.0, %v5223
      %v5225 = vpop.f32.mrb[0].mxu0
      %5226 = vmatprep.mubr.bf16.mxu0 0
      %5227 = vmatmul.mubr.bf16.gmra.mrb[0].mxu0 %v5089
      %v5228 = vpop.f32.mrb[0].mxu0
      %v5229 = vadd.f32 0.0, %v5228
      %v5230 = vpop.f32.mrb[0].mxu0
      %v5231 = vpop.f32.mrb[0].mxu0
      %v5232 = vadd.f32 0.0, %v5231
      %v5233 = vpop.f32.mrb[0].mxu0
      %5234 = vmatprep.mubr.bf16.mxu0 0
      %5235 = vmatmul.mubr.bf16.gmra.mrb[0].mxu0 %v5092
      %v5236 = vpop.f32.mrb[0].mxu0
      %v5237 = vadd.f32 0.0, %v5236
      %v5238 = vpop.f32.mrb[0].mxu0
      %v5239 = vpop.f32.mrb[0].mxu0
      %v5240 = vadd.f32 0.0, %v5239
      %v5241 = vpop.f32.mrb[0].mxu0
      %5242 = vmatprep.mubr.bf16.mxu0 0
      %5243 = vmatmul.mubr.bf16.gmra.mrb[0].mxu0 %v5095
      %v5244 = vpop.f32.mrb[0].mxu0
      %v5245 = vadd.f32 0.0, %v5244
      %v5246 = vpop.f32.mrb[0].mxu0
      %v5247 = vpop.f32.mrb[0].mxu0
      %v5248 = vadd.f32 0.0, %v5247
      %v5249 = vpop.f32.mrb[0].mxu0
      %5250 = vmatprep.mubr.bf16.mxu0 0
      %5251 = vmatmul.mubr.bf16.gmra.mrb[0].mxu0 %v5098
      %v5252 = vpop.f32.mrb[0].mxu0
      %v5253 = vadd.f32 0.0, %v5252
      %v5254 = vpop.f32.mrb[0].mxu0
      %v5255 = vpop.f32.mrb[0].mxu0
      %v5256 = vadd.f32 0.0, %v5255
      %v5257 = vpop.f32.mrb[0].mxu0
      %5258 = vmatprep.mubr.bf16.mxu0 0
      %5259 = vmatmul.mubr.bf16.gmra.mrb[0].mxu0 %v5101
      %v5260 = vpop.f32.mrb[0].mxu0
      %v5261 = vadd.f32 0.0, %v5260
      %v5262 = vpop.f32.mrb[0].mxu0
      %v5263 = vpop.f32.mrb[0].mxu0
      %v5264 = vadd.f32 0.0, %v5263
      %v5265 = vpop.f32.mrb[0].mxu0
      %5266 = vdwg.mxu0
      %v5267 = vadd.f32 %v4908, %v5141
      %v5268 = vadd.f32 %v4909, %v5144
      %v5269 = vadd.f32 %v4910, %v5149
      %v5270 = vadd.f32 %v4911, %v5152
      %v5271 = vadd.f32 %v4912, %v5157
      %v5272 = vadd.f32 %v4913, %v5160
      %v5273 = vadd.f32 %v4914, %v5165
      %v5274 = vadd.f32 %v4915, %v5168
      %v5275 = vadd.f32 %v4916, %v5173
      %v5276 = vadd.f32 %v4917, %v5176
      %v5277 = vadd.f32 %v4918, %v5181
      %v5278 = vadd.f32 %v4919, %v5184
      %v5279 = vadd.f32 %v4920, %v5189
      %v5280 = vadd.f32 %v4921, %v5192
      %v5281 = vadd.f32 %v4922, %v5197
      %v5282 = vadd.f32 %v4923, %v5200
      %v5283 = vadd.f32 %v4924, %v5205
      %v5284 = vadd.f32 %v4925, %v5208
      %v5285 = vadd.f32 %v4926, %v5213
      %v5286 = vadd.f32 %v4927, %v5216
      %v5287 = vadd.f32 %v4928, %v5221
      %v5288 = vadd.f32 %v4929, %v5224
      %v5289 = vadd.f32 %v4930, %v5229
      %v5290 = vadd.f32 %v4931, %v5232
      %v5291 = vadd.f32 %v4932, %v5237
      %v5292 = vadd.f32 %v4933, %v5240
      %v5293 = vadd.f32 %v4934, %v5245
      %v5294 = vadd.f32 %v4935, %v5248
      %v5295 = vadd.f32 %v4936, %v5253
      %v5296 = vadd.f32 %v4937, %v5256
      %v5297 = vadd.f32 %v4938, %v5261
      %v5298 = vadd.f32 %v4939, %v5264
      %v5299 = vld [vmem:[%s4940] sm:$0xf]
      %v5300 = vld [vmem:[%s4940 + $0x4] sm:$0xf]
      %v5301 = vld [vmem:[%s4940 + $0x8] sm:$0x1]
      %v5302 = vld [vmem:[%s4940 + $0xc] sm:$0xf]
      %v5303 = vld [vmem:[%s4940 + $0x10] sm:$0xf]
      %v5304 = vld [vmem:[%s4940 + $0x14] sm:$0x1]
      %v5305 = vld [vmem:[%s4940 + $0x18] sm:$0xf]
      %v5306 = vld [vmem:[%s4940 + $0x1c] sm:$0xf]
      %v5307 = vld [vmem:[%s4940 + $0x20] sm:$0x1]
      %v5308 = vld [vmem:[%s4940 + $0x24] sm:$0xf]
      %v5309 = vld [vmem:[%s4940 + $0x28] sm:$0xf]
      %v5310 = vld [vmem:[%s4940 + $0x2c] sm:$0x1]
      %v5311 = vld [vmem:[%s4940 + $0x30] sm:$0xf]
      %v5312 = vld [vmem:[%s4940 + $0x34] sm:$0xf]
      %v5313 = vld [vmem:[%s4940 + $0x38] sm:$0x1]
      %v5314 = vld [vmem:[%s4940 + $0x3c] sm:$0xf]
      %v5315 = vld [vmem:[%s4940 + $0x40] sm:$0xf]
      %v5316 = vld [vmem:[%s4940 + $0x44] sm:$0x1]
      %v5317 = vld [vmem:[%s4940 + $0x48] sm:$0xf]
      %v5318 = vld [vmem:[%s4940 + $0x4c] sm:$0xf]
      %v5319 = vld [vmem:[%s4940 + $0x50] sm:$0x1]
      %v5320 = vld [vmem:[%s4940 + $0x54] sm:$0xf]
      %v5321 = vld [vmem:[%s4940 + $0x58] sm:$0xf]
      %v5322 = vld [vmem:[%s4940 + $0x5c] sm:$0x1]
      %v5323 = vld [vmem:[%s4940 + $0x60] sm:$0xf]
      %v5324 = vld [vmem:[%s4940 + $0x64] sm:$0xf]
      %v5325 = vld [vmem:[%s4940 + $0x68] sm:$0x1]
      %v5326 = vld [vmem:[%s4940 + $0x6c] sm:$0xf]
      %v5327 = vld [vmem:[%s4940 + $0x70] sm:$0xf]
      %v5328 = vld [vmem:[%s4940 + $0x74] sm:$0x1]
      %v5329 = vld [vmem:[%s4940 + $0x78] sm:$0xf]
      %v5330 = vld [vmem:[%s4940 + $0x7c] sm:$0xf]
      %v5331 = vld [vmem:[%s4940 + $0x80] sm:$0x1]
      %v5332 = vld [vmem:[%s4940 + $0x84] sm:$0xf]
      %v5333 = vld [vmem:[%s4940 + $0x88] sm:$0xf]
      %v5334 = vld [vmem:[%s4940 + $0x8c] sm:$0x1]
      %v5335 = vld [vmem:[%s4940 + $0x90] sm:$0xf]
      %v5336 = vld [vmem:[%s4940 + $0x94] sm:$0xf]
      %v5337 = vld [vmem:[%s4940 + $0x98] sm:$0x1]
      %v5338 = vld [vmem:[%s4940 + $0x9c] sm:$0xf]
      %v5339 = vld [vmem:[%s4940 + $0xa0] sm:$0xf]
      %v5340 = vld [vmem:[%s4940 + $0xa4] sm:$0x1]
      %v5341 = vld [vmem:[%s4940 + $0xa8] sm:$0xf]
      %v5342 = vld [vmem:[%s4940 + $0xac] sm:$0xf]
      %v5343 = vld [vmem:[%s4940 + $0xb0] sm:$0x1]
      %v5344 = vld [vmem:[%s4940 + $0xb4] sm:$0xf]
      %v5345 = vld [vmem:[%s4940 + $0xb8] sm:$0xf]
      %v5346 = vld [vmem:[%s4940 + $0xbc] sm:$0x1]
      %v5348 = vshrl.u32 %v5299, 16
      %v5350 = vrot.slane %v5348, 4
      %v5351 = vshll.u32 %v5299, 16
      %v5353 = vrot.slane %v5351, 5
      %v5354 = vor.u32 %v5350, %v5353
      %v5355 = vrot.slane %v5354, 4
      %v5357 = vshll.u32 %v5300, 16
      %v5359 = vrot.slane %v5357, 5
      %v5360 = vsel %vm1988, %v5355, %v5359
      %v5361 = vshrl.u32 %v5300, 16
      %v5363 = vrot.slane %v5361, 4
      %v5364 = vor.u32 %v5363, %v5359
      %v5365 = vrot.slane %v5364, 4
      %v5367 = vshll.u32 %v5301, 16
      %v5369 = vrot.slane %v5367, 5
      %v5370 = vsel %vm1988, %v5365, %v5369
      %v5372 = vshrl.u32 %v5302, 16
      %v5374 = vrot.slane %v5372, 4
      %v5375 = vshll.u32 %v5302, 16
      %v5377 = vrot.slane %v5375, 5
      %v5378 = vor.u32 %v5374, %v5377
      %v5379 = vrot.slane %v5378, 4
      %v5381 = vshll.u32 %v5303, 16
      %v5383 = vrot.slane %v5381, 5
      %v5384 = vsel %vm1988, %v5379, %v5383
      %v5385 = vshrl.u32 %v5303, 16
      %v5387 = vrot.slane %v5385, 4
      %v5388 = vor.u32 %v5387, %v5383
      %v5389 = vrot.slane %v5388, 4
      %v5391 = vshll.u32 %v5304, 16
      %v5393 = vrot.slane %v5391, 5
      %v5394 = vsel %vm1988, %v5389, %v5393
      %v5396 = vshrl.u32 %v5305, 16
      %v5398 = vrot.slane %v5396, 4
      %v5399 = vshll.u32 %v5305, 16
      %v5401 = vrot.slane %v5399, 5
      %v5402 = vor.u32 %v5398, %v5401
      %v5403 = vrot.slane %v5402, 4
      %v5405 = vshll.u32 %v5306, 16
      %v5407 = vrot.slane %v5405, 5
      %v5408 = vsel %vm1988, %v5403, %v5407
      %v5409 = vshrl.u32 %v5306, 16
      %v5411 = vrot.slane %v5409, 4
      %v5412 = vor.u32 %v5411, %v5407
      %v5413 = vrot.slane %v5412, 4
      %v5415 = vshll.u32 %v5307, 16
      %v5417 = vrot.slane %v5415, 5
      %v5418 = vsel %vm1988, %v5413, %v5417
      %v5420 = vshrl.u32 %v5308, 16
      %v5422 = vrot.slane %v5420, 4
      %v5423 = vshll.u32 %v5308, 16
      %v5425 = vrot.slane %v5423, 5
      %v5426 = vor.u32 %v5422, %v5425
      %v5427 = vrot.slane %v5426, 4
      %v5429 = vshll.u32 %v5309, 16
      %v5431 = vrot.slane %v5429, 5
      %v5432 = vsel %vm1988, %v5427, %v5431
      %v5433 = vshrl.u32 %v5309, 16
      %v5435 = vrot.slane %v5433, 4
      %v5436 = vor.u32 %v5435, %v5431
      %v5437 = vrot.slane %v5436, 4
      %v5439 = vshll.u32 %v5310, 16
      %v5441 = vrot.slane %v5439, 5
      %v5442 = vsel %vm1988, %v5437, %v5441
      %v5444 = vshrl.u32 %v5311, 16
      %v5446 = vrot.slane %v5444, 4
      %v5447 = vshll.u32 %v5311, 16
      %v5449 = vrot.slane %v5447, 5
      %v5450 = vor.u32 %v5446, %v5449
      %v5451 = vrot.slane %v5450, 4
      %v5453 = vshll.u32 %v5312, 16
      %v5455 = vrot.slane %v5453, 5
      %v5456 = vsel %vm1988, %v5451, %v5455
      %v5457 = vshrl.u32 %v5312, 16
      %v5459 = vrot.slane %v5457, 4
      %v5460 = vor.u32 %v5459, %v5455
      %v5461 = vrot.slane %v5460, 4
      %v5463 = vshll.u32 %v5313, 16
      %v5465 = vrot.slane %v5463, 5
      %v5466 = vsel %vm1988, %v5461, %v5465
      %v5468 = vshrl.u32 %v5314, 16
      %v5470 = vrot.slane %v5468, 4
      %v5471 = vshll.u32 %v5314, 16
      %v5473 = vrot.slane %v5471, 5
      %v5474 = vor.u32 %v5470, %v5473
      %v5475 = vrot.slane %v5474, 4
      %v5477 = vshll.u32 %v5315, 16
      %v5479 = vrot.slane %v5477, 5
      %v5480 = vsel %vm1988, %v5475, %v5479
      %v5481 = vshrl.u32 %v5315, 16
      %v5483 = vrot.slane %v5481, 4
      %v5484 = vor.u32 %v5483, %v5479
      %v5485 = vrot.slane %v5484, 4
      %v5487 = vshll.u32 %v5316, 16
      %v5489 = vrot.slane %v5487, 5
      %v5490 = vsel %vm1988, %v5485, %v5489
      %v5492 = vshrl.u32 %v5317, 16
      %v5494 = vrot.slane %v5492, 4
      %v5495 = vshll.u32 %v5317, 16
      %v5497 = vrot.slane %v5495, 5
      %v5498 = vor.u32 %v5494, %v5497
      %v5499 = vrot.slane %v5498, 4
      %v5501 = vshll.u32 %v5318, 16
      %v5503 = vrot.slane %v5501, 5
      %v5504 = vsel %vm1988, %v5499, %v5503
      %v5505 = vshrl.u32 %v5318, 16
      %v5507 = vrot.slane %v5505, 4
      %v5508 = vor.u32 %v5507, %v5503
      %v5509 = vrot.slane %v5508, 4
      %v5511 = vshll.u32 %v5319, 16
      %v5513 = vrot.slane %v5511, 5
      %v5514 = vsel %vm1988, %v5509, %v5513
      %v5516 = vshrl.u32 %v5320, 16
      %v5518 = vrot.slane %v5516, 4
      %v5519 = vshll.u32 %v5320, 16
      %v5521 = vrot.slane %v5519, 5
      %v5522 = vor.u32 %v5518, %v5521
      %v5523 = vrot.slane %v5522, 4
      %v5525 = vshll.u32 %v5321, 16
      %v5527 = vrot.slane %v5525, 5
      %v5528 = vsel %vm1988, %v5523, %v5527
      %v5529 = vshrl.u32 %v5321, 16
      %v5531 = vrot.slane %v5529, 4
      %v5532 = vor.u32 %v5531, %v5527
      %v5533 = vrot.slane %v5532, 4
      %v5535 = vshll.u32 %v5322, 16
      %v5537 = vrot.slane %v5535, 5
      %v5538 = vsel %vm1988, %v5533, %v5537
      %v5540 = vshrl.u32 %v5323, 16
      %v5542 = vrot.slane %v5540, 4
      %v5543 = vshll.u32 %v5323, 16
      %v5545 = vrot.slane %v5543, 5
      %v5546 = vor.u32 %v5542, %v5545
      %v5547 = vrot.slane %v5546, 4
      %v5549 = vshll.u32 %v5324, 16
      %v5551 = vrot.slane %v5549, 5
      %v5552 = vsel %vm1988, %v5547, %v5551
      %v5553 = vshrl.u32 %v5324, 16
      %v5555 = vrot.slane %v5553, 4
      %v5556 = vor.u32 %v5555, %v5551
      %v5557 = vrot.slane %v5556, 4
      %v5559 = vshll.u32 %v5325, 16
      %v5561 = vrot.slane %v5559, 5
      %v5562 = vsel %vm1988, %v5557, %v5561
      %v5564 = vshrl.u32 %v5326, 16
      %v5566 = vrot.slane %v5564, 4
      %v5567 = vshll.u32 %v5326, 16
      %v5569 = vrot.slane %v5567, 5
      %v5570 = vor.u32 %v5566, %v5569
      %v5571 = vrot.slane %v5570, 4
      %v5573 = vshll.u32 %v5327, 16
      %v5575 = vrot.slane %v5573, 5
      %v5576 = vsel %vm1988, %v5571, %v5575
      %v5577 = vshrl.u32 %v5327, 16
      %v5579 = vrot.slane %v5577, 4
      %v5580 = vor.u32 %v5579, %v5575
      %v5581 = vrot.slane %v5580, 4
      %v5583 = vshll.u32 %v5328, 16
      %v5585 = vrot.slane %v5583, 5
      %v5586 = vsel %vm1988, %v5581, %v5585
      %v5588 = vshrl.u32 %v5329, 16
      %v5590 = vrot.slane %v5588, 4
      %v5591 = vshll.u32 %v5329, 16
      %v5593 = vrot.slane %v5591, 5
      %v5594 = vor.u32 %v5590, %v5593
      %v5595 = vrot.slane %v5594, 4
      %v5597 = vshll.u32 %v5330, 16
      %v5599 = vrot.slane %v5597, 5
      %v5600 = vsel %vm1988, %v5595, %v5599
      %v5601 = vshrl.u32 %v5330, 16
      %v5603 = vrot.slane %v5601, 4
      %v5604 = vor.u32 %v5603, %v5599
      %v5605 = vrot.slane %v5604, 4
      %v5607 = vshll.u32 %v5331, 16
      %v5609 = vrot.slane %v5607, 5
      %v5610 = vsel %vm1988, %v5605, %v5609
      %v5612 = vshrl.u32 %v5332, 16
      %v5614 = vrot.slane %v5612, 4
      %v5615 = vshll.u32 %v5332, 16
      %v5617 = vrot.slane %v5615, 5
      %v5618 = vor.u32 %v5614, %v5617
      %v5619 = vrot.slane %v5618, 4
      %v5621 = vshll.u32 %v5333, 16
      %v5623 = vrot.slane %v5621, 5
      %v5624 = vsel %vm1988, %v5619, %v5623
      %v5625 = vshrl.u32 %v5333, 16
      %v5627 = vrot.slane %v5625, 4
      %v5628 = vor.u32 %v5627, %v5623
      %v5629 = vrot.slane %v5628, 4
      %v5631 = vshll.u32 %v5334, 16
      %v5633 = vrot.slane %v5631, 5
      %v5634 = vsel %vm1988, %v5629, %v5633
      %v5636 = vshrl.u32 %v5335, 16
      %v5638 = vrot.slane %v5636, 4
      %v5639 = vshll.u32 %v5335, 16
      %v5641 = vrot.slane %v5639, 5
      %v5642 = vor.u32 %v5638, %v5641
      %v5643 = vrot.slane %v5642, 4
      %v5645 = vshll.u32 %v5336, 16
      %v5647 = vrot.slane %v5645, 5
      %v5648 = vsel %vm1988, %v5643, %v5647
      %v5649 = vshrl.u32 %v5336, 16
      %v5651 = vrot.slane %v5649, 4
      %v5652 = vor.u32 %v5651, %v5647
      %v5653 = vrot.slane %v5652, 4
      %v5655 = vshll.u32 %v5337, 16
      %v5657 = vrot.slane %v5655, 5
      %v5658 = vsel %vm1988, %v5653, %v5657
      %v5660 = vshrl.u32 %v5338, 16
      %v5662 = vrot.slane %v5660, 4
      %v5663 = vshll.u32 %v5338, 16
      %v5665 = vrot.slane %v5663, 5
      %v5666 = vor.u32 %v5662, %v5665
      %v5667 = vrot.slane %v5666, 4
      %v5669 = vshll.u32 %v5339, 16
      %v5671 = vrot.slane %v5669, 5
      %v5672 = vsel %vm1988, %v5667, %v5671
      %v5673 = vshrl.u32 %v5339, 16
      %v5675 = vrot.slane %v5673, 4
      %v5676 = vor.u32 %v5675, %v5671
      %v5677 = vrot.slane %v5676, 4
      %v5679 = vshll.u32 %v5340, 16
      %v5681 = vrot.slane %v5679, 5
      %v5682 = vsel %vm1988, %v5677, %v5681
      %v5684 = vshrl.u32 %v5341, 16
      %v5686 = vrot.slane %v5684, 4
      %v5687 = vshll.u32 %v5341, 16
      %v5689 = vrot.slane %v5687, 5
      %v5690 = vor.u32 %v5686, %v5689
      %v5691 = vrot.slane %v5690, 4
      %v5693 = vshll.u32 %v5342, 16
      %v5695 = vrot.slane %v5693, 5
      %v5696 = vsel %vm1988, %v5691, %v5695
      %v5697 = vshrl.u32 %v5342, 16
      %v5699 = vrot.slane %v5697, 4
      %v5700 = vor.u32 %v5699, %v5695
      %v5701 = vrot.slane %v5700, 4
      %v5703 = vshll.u32 %v5343, 16
      %v5705 = vrot.slane %v5703, 5
      %v5706 = vsel %vm1988, %v5701, %v5705
      %v5708 = vshrl.u32 %v5344, 16
      %v5710 = vrot.slane %v5708, 4
      %v5711 = vshll.u32 %v5344, 16
      %v5713 = vrot.slane %v5711, 5
      %v5714 = vor.u32 %v5710, %v5713
      %v5715 = vrot.slane %v5714, 4
      %v5717 = vshll.u32 %v5345, 16
      %v5719 = vrot.slane %v5717, 5
      %v5720 = vsel %vm1988, %v5715, %v5719
      %v5721 = vshrl.u32 %v5345, 16
      %v5723 = vrot.slane %v5721, 4
      %v5724 = vor.u32 %v5723, %v5719
      %v5725 = vrot.slane %v5724, 4
      %v5727 = vshll.u32 %v5346, 16
      %v5729 = vrot.slane %v5727, 5
      %v5730 = vsel %vm1988, %v5725, %v5729
      %s5731 = scalar_lea.vmem %s2, 28
      %v5732 = vld [vmem:[%s5731] sm:$0xf]
      %v5733 = vunpack.c.l.b16 %v5360
      %v5734 = vunpack.c.l.b16 %v5370
      %v5735 = vunpack.c.l.b16 %v5384
      %v5736 = vunpack.c.l.b16 %v5394
      %v5737 = vunpack.c.l.b16 %v5408
      %v5738 = vunpack.c.l.b16 %v5418
      %v5739 = vunpack.c.l.b16 %v5432
      %v5740 = vunpack.c.l.b16 %v5442
      %v5741 = vunpack.c.l.b16 %v5456
      %v5742 = vunpack.c.l.b16 %v5466
      %v5743 = vunpack.c.l.b16 %v5480
      %v5744 = vunpack.c.l.b16 %v5490
      %v5745 = vunpack.c.l.b16 %v5504
      %v5746 = vunpack.c.l.b16 %v5514
      %v5747 = vunpack.c.l.b16 %v5528
      %v5748 = vunpack.c.l.b16 %v5538
      %v5749 = vunpack.c.l.b16 %v5552
      %v5750 = vunpack.c.l.b16 %v5562
      %v5751 = vunpack.c.l.b16 %v5576
      %v5752 = vunpack.c.l.b16 %v5586
      %v5753 = vunpack.c.l.b16 %v5600
      %v5754 = vunpack.c.l.b16 %v5610
      %v5755 = vunpack.c.l.b16 %v5624
      %v5756 = vunpack.c.l.b16 %v5634
      %v5757 = vunpack.c.l.b16 %v5648
      %v5758 = vunpack.c.l.b16 %v5658
      %v5759 = vunpack.c.l.b16 %v5672
      %v5760 = vunpack.c.l.b16 %v5682
      %v5761 = vunpack.c.l.b16 %v5696
      %v5762 = vunpack.c.l.b16 %v5706
      %v5763 = vunpack.c.l.b16 %v5720
      %v5764 = vunpack.c.l.b16 %v5730
      %v5765 = vpack.c.b16 %v5734, %v5733
      %v5766 = vpack.c.b16 %v5736, %v5735
      %v5767 = vpack.c.b16 %v5738, %v5737
      %v5768 = vpack.c.b16 %v5740, %v5739
      %v5769 = vpack.c.b16 %v5742, %v5741
      %v5770 = vpack.c.b16 %v5744, %v5743
      %v5771 = vpack.c.b16 %v5746, %v5745
      %v5772 = vpack.c.b16 %v5748, %v5747
      %v5773 = vpack.c.b16 %v5750, %v5749
      %v5774 = vpack.c.b16 %v5752, %v5751
      %v5775 = vpack.c.b16 %v5754, %v5753
      %v5776 = vpack.c.b16 %v5756, %v5755
      %v5777 = vpack.c.b16 %v5758, %v5757
      %v5778 = vpack.c.b16 %v5760, %v5759
      %v5779 = vpack.c.b16 %v5762, %v5761
      %v5780 = vpack.c.b16 %v5764, %v5763
      %v5782 = vsel %vm2423, %v5765, 0
      %v5785 = vsel %vm2423, %v5766, 0
      %v5788 = vsel %vm2423, %v5767, 0
      %v5791 = vsel %vm2423, %v5768, 0
      %v5794 = vsel %vm2423, %v5769, 0
      %v5797 = vsel %vm2423, %v5770, 0
      %v5800 = vsel %vm2423, %v5771, 0
      %v5803 = vsel %vm2423, %v5772, 0
      %v5806 = vsel %vm2423, %v5773, 0
      %v5809 = vsel %vm2423, %v5774, 0
      %v5812 = vsel %vm2423, %v5775, 0
      %v5815 = vsel %vm2423, %v5776, 0
      %v5818 = vsel %vm2423, %v5777, 0
      %v5821 = vsel %vm2423, %v5778, 0
      %v5824 = vsel %vm2423, %v5779, 0
      %v5827 = vsel %vm2423, %v5780, 0
      %v5830 = vsel %vm2472, %v5732, 0
      %5832 = vmatprep.subr.bf16.mxu0 0
      %5833 = vmatpush1.bf16.msra.mxu0 %v5830
      %5834 = vmatprep.subr.bf16.mxu0 0
      %5835 = vmatpush1.bf16.msra.mxu0 0
      %5836 = vmatprep.subr.bf16.mxu0 0
      %5837 = vmatpush1.bf16.msra.mxu0 0
      %5838 = vmatprep.subr.bf16.mxu0 0
      %5839 = vmatpush1.bf16.msra.mxu0 0
      %5840 = vmatprep.subr.bf16.mxu0 0
      %5841 = vmatpush1.bf16.msra.mxu0 0
      %5842 = vmatprep.subr.bf16.mxu0 0
      %5843 = vmatpush1.bf16.msra.mxu0 0
      %5844 = vmatprep.subr.bf16.mxu0 0
      %5845 = vmatpush1.bf16.msra.mxu0 0
      %5846 = vmatprep.subr.bf16.mxu0 0
      %5847 = vmatpush1.bf16.msra.mxu0 0
      %5848 = vmatprep.subr.bf16.mxu0 0
      %5849 = vmatpush1.bf16.msra.mxu0 0
      %5850 = vmatprep.subr.bf16.mxu0 0
      %5851 = vmatpush1.bf16.msra.mxu0 0
      %5852 = vmatprep.subr.bf16.mxu0 0
      %5853 = vmatpush1.bf16.msra.mxu0 0
      %5854 = vmatprep.subr.bf16.mxu0 0
      %5855 = vmatpush1.bf16.msra.mxu0 0
      %5856 = vmatprep.subr.bf16.mxu0 0
      %5857 = vmatpush1.bf16.msra.mxu0 0
      %5858 = vmatprep.subr.bf16.mxu0 0
      %5859 = vmatpush1.bf16.msra.mxu0 0
      %5860 = vmatprep.subr.bf16.mxu0 0
      %5861 = vmatpush1.bf16.msra.mxu0 0
      %5862 = vmatprep.subr.bf16.mxu0 0
      %5863 = vmatpush1.bf16.msra.mxu0 0
      %5864 = vmatprep.mubr.bf16.mxu0 0
      %5865 = vmatmul.mubr.bf16.gmra.mrb[0].mxu0 %v5782
      %v5866 = vpop.f32.mrb[0].mxu0
      %v5867 = vadd.f32 0.0, %v5866
      %v5868 = vpop.f32.mrb[0].mxu0
      %v5869 = vpop.f32.mrb[0].mxu0
      %v5870 = vadd.f32 0.0, %v5869
      %v5871 = vpop.f32.mrb[0].mxu0
      %5872 = vmatprep.mubr.bf16.mxu0 0
      %5873 = vmatmul.mubr.bf16.gmra.mrb[0].mxu0 %v5785
      %v5874 = vpop.f32.mrb[0].mxu0
      %v5875 = vadd.f32 0.0, %v5874
      %v5876 = vpop.f32.mrb[0].mxu0
      %v5877 = vpop.f32.mrb[0].mxu0
      %v5878 = vadd.f32 0.0, %v5877
      %v5879 = vpop.f32.mrb[0].mxu0
      %5880 = vmatprep.mubr.bf16.mxu0 0
      %5881 = vmatmul.mubr.bf16.gmra.mrb[0].mxu0 %v5788
      %v5882 = vpop.f32.mrb[0].mxu0
      %v5883 = vadd.f32 0.0, %v5882
      %v5884 = vpop.f32.mrb[0].mxu0
      %v5885 = vpop.f32.mrb[0].mxu0
      %v5886 = vadd.f32 0.0, %v5885
      %v5887 = vpop.f32.mrb[0].mxu0
      %5888 = vmatprep.mubr.bf16.mxu0 0
      %5889 = vmatmul.mubr.bf16.gmra.mrb[0].mxu0 %v5791
      %v5890 = vpop.f32.mrb[0].mxu0
      %v5891 = vadd.f32 0.0, %v5890
      %v5892 = vpop.f32.mrb[0].mxu0
      %v5893 = vpop.f32.mrb[0].mxu0
      %v5894 = vadd.f32 0.0, %v5893
      %v5895 = vpop.f32.mrb[0].mxu0
      %5896 = vmatprep.mubr.bf16.mxu0 0
      %5897 = vmatmul.mubr.bf16.gmra.mrb[0].mxu0 %v5794
      %v5898 = vpop.f32.mrb[0].mxu0
      %v5899 = vadd.f32 0.0, %v5898
      %v5900 = vpop.f32.mrb[0].mxu0
      %v5901 = vpop.f32.mrb[0].mxu0
      %v5902 = vadd.f32 0.0, %v5901
      %v5903 = vpop.f32.mrb[0].mxu0
      %5904 = vmatprep.mubr.bf16.mxu0 0
      %5905 = vmatmul.mubr.bf16.gmra.mrb[0].mxu0 %v5797
      %v5906 = vpop.f32.mrb[0].mxu0
      %v5907 = vadd.f32 0.0, %v5906
      %v5908 = vpop.f32.mrb[0].mxu0
      %v5909 = vpop.f32.mrb[0].mxu0
      %v5910 = vadd.f32 0.0, %v5909
      %v5911 = vpop.f32.mrb[0].mxu0
      %5912 = vmatprep.mubr.bf16.mxu0 0
      %5913 = vmatmul.mubr.bf16.gmra.mrb[0].mxu0 %v5800
      %v5914 = vpop.f32.mrb[0].mxu0
      %v5915 = vadd.f32 0.0, %v5914
      %v5916 = vpop.f32.mrb[0].mxu0
      %v5917 = vpop.f32.mrb[0].mxu0
      %v5918 = vadd.f32 0.0, %v5917
      %v5919 = vpop.f32.mrb[0].mxu0
      %5920 = vmatprep.mubr.bf16.mxu0 0
      %5921 = vmatmul.mubr.bf16.gmra.mrb[0].mxu0 %v5803
      %v5922 = vpop.f32.mrb[0].mxu0
      %v5923 = vadd.f32 0.0, %v5922
      %v5924 = vpop.f32.mrb[0].mxu0
      %v5925 = vpop.f32.mrb[0].mxu0
      %v5926 = vadd.f32 0.0, %v5925
      %v5927 = vpop.f32.mrb[0].mxu0
      %5928 = vmatprep.mubr.bf16.mxu0 0
      %5929 = vmatmul.mubr.bf16.gmra.mrb[0].mxu0 %v5806
      %v5930 = vpop.f32.mrb[0].mxu0
      %v5931 = vadd.f32 0.0, %v5930
      %v5932 = vpop.f32.mrb[0].mxu0
      %v5933 = vpop.f32.mrb[0].mxu0
      %v5934 = vadd.f32 0.0, %v5933
      %v5935 = vpop.f32.mrb[0].mxu0
      %5936 = vmatprep.mubr.bf16.mxu0 0
      %5937 = vmatmul.mubr.bf16.gmra.mrb[0].mxu0 %v5809
      %v5938 = vpop.f32.mrb[0].mxu0
      %v5939 = vadd.f32 0.0, %v5938
      %v5940 = vpop.f32.mrb[0].mxu0
      %v5941 = vpop.f32.mrb[0].mxu0
      %v5942 = vadd.f32 0.0, %v5941
      %v5943 = vpop.f32.mrb[0].mxu0
      %5944 = vmatprep.mubr.bf16.mxu0 0
      %5945 = vmatmul.mubr.bf16.gmra.mrb[0].mxu0 %v5812
      %v5946 = vpop.f32.mrb[0].mxu0
      %v5947 = vadd.f32 0.0, %v5946
      %v5948 = vpop.f32.mrb[0].mxu0
      %v5949 = vpop.f32.mrb[0].mxu0
      %v5950 = vadd.f32 0.0, %v5949
      %v5951 = vpop.f32.mrb[0].mxu0
      %5952 = vmatprep.mubr.bf16.mxu0 0
      %5953 = vmatmul.mubr.bf16.gmra.mrb[0].mxu0 %v5815
      %v5954 = vpop.f32.mrb[0].mxu0
      %v5955 = vadd.f32 0.0, %v5954
      %v5956 = vpop.f32.mrb[0].mxu0
      %v5957 = vpop.f32.mrb[0].mxu0
      %v5958 = vadd.f32 0.0, %v5957
      %v5959 = vpop.f32.mrb[0].mxu0
      %5960 = vmatprep.mubr.bf16.mxu0 0
      %5961 = vmatmul.mubr.bf16.gmra.mrb[0].mxu0 %v5818
      %v5962 = vpop.f32.mrb[0].mxu0
      %v5963 = vadd.f32 0.0, %v5962
      %v5964 = vpop.f32.mrb[0].mxu0
      %v5965 = vpop.f32.mrb[0].mxu0
      %v5966 = vadd.f32 0.0, %v5965
      %v5967 = vpop.f32.mrb[0].mxu0
      %5968 = vmatprep.mubr.bf16.mxu0 0
      %5969 = vmatmul.mubr.bf16.gmra.mrb[0].mxu0 %v5821
      %v5970 = vpop.f32.mrb[0].mxu0
      %v5971 = vadd.f32 0.0, %v5970
      %v5972 = vpop.f32.mrb[0].mxu0
      %v5973 = vpop.f32.mrb[0].mxu0
      %v5974 = vadd.f32 0.0, %v5973
      %v5975 = vpop.f32.mrb[0].mxu0
      %5976 = vmatprep.mubr.bf16.mxu0 0
      %5977 = vmatmul.mubr.bf16.gmra.mrb[0].mxu0 %v5824
      %v5978 = vpop.f32.mrb[0].mxu0
      %v5979 = vadd.f32 0.0, %v5978
      %v5980 = vpop.f32.mrb[0].mxu0
      %v5981 = vpop.f32.mrb[0].mxu0
      %v5982 = vadd.f32 0.0, %v5981
      %v5983 = vpop.f32.mrb[0].mxu0
      %5984 = vmatprep.mubr.bf16.mxu0 0
      %5985 = vmatmul.mubr.bf16.gmra.mrb[0].mxu0 %v5827
      %v5986 = vpop.f32.mrb[0].mxu0
      %v5987 = vadd.f32 0.0, %v5986
      %v5988 = vpop.f32.mrb[0].mxu0
      %v5989 = vpop.f32.mrb[0].mxu0
      %v5990 = vadd.f32 0.0, %v5989
      %v5991 = vpop.f32.mrb[0].mxu0
      %5992 = vdwg.mxu0
      %v5993 = vadd.f32 %v5267, %v5867
      %v5994 = vadd.f32 %v5268, %v5870
      %v5995 = vadd.f32 %v5269, %v5875
      %v5996 = vadd.f32 %v5270, %v5878
      %v5997 = vadd.f32 %v5271, %v5883
      %v5998 = vadd.f32 %v5272, %v5886
      %v5999 = vadd.f32 %v5273, %v5891
      %v6000 = vadd.f32 %v5274, %v5894
      %v6001 = vadd.f32 %v5275, %v5899
      %v6002 = vadd.f32 %v5276, %v5902
      %v6003 = vadd.f32 %v5277, %v5907
      %v6004 = vadd.f32 %v5278, %v5910
      %v6005 = vadd.f32 %v5279, %v5915
      %v6006 = vadd.f32 %v5280, %v5918
      %v6007 = vadd.f32 %v5281, %v5923
      %v6008 = vadd.f32 %v5282, %v5926
      %v6009 = vadd.f32 %v5283, %v5931
      %v6010 = vadd.f32 %v5284, %v5934
      %v6011 = vadd.f32 %v5285, %v5939
      %v6012 = vadd.f32 %v5286, %v5942
      %v6013 = vadd.f32 %v5287, %v5947
      %v6014 = vadd.f32 %v5288, %v5950
      %v6015 = vadd.f32 %v5289, %v5955
      %v6016 = vadd.f32 %v5290, %v5958
      %v6017 = vadd.f32 %v5291, %v5963
      %v6018 = vadd.f32 %v5292, %v5966
      %v6019 = vadd.f32 %v5293, %v5971
      %v6020 = vadd.f32 %v5294, %v5974
      %v6021 = vadd.f32 %v5295, %v5979
      %v6022 = vadd.f32 %v5296, %v5982
      %v6023 = vadd.f32 %v5297, %v5987
      %v6024 = vadd.f32 %v5298, %v5990
      %v6025 = vld [vmem:[%s4940] sm:$0xe]
      %v6026 = vld [vmem:[%s4940 + $0xc] sm:$0xe]
      %v6027 = vld [vmem:[%s4940 + $0x18] sm:$0xe]
      %v6028 = vld [vmem:[%s4940 + $0x24] sm:$0xe]
      %v6029 = vld [vmem:[%s4940 + $0x30] sm:$0xe]
      %v6030 = vld [vmem:[%s4940 + $0x3c] sm:$0xe]
      %v6031 = vld [vmem:[%s4940 + $0x48] sm:$0xe]
      %v6032 = vld [vmem:[%s4940 + $0x54] sm:$0xe]
      %v6033 = vld [vmem:[%s4940 + $0x60] sm:$0xe]
      %v6034 = vld [vmem:[%s4940 + $0x6c] sm:$0xe]
      %v6035 = vld [vmem:[%s4940 + $0x78] sm:$0xe]
      %v6036 = vld [vmem:[%s4940 + $0x84] sm:$0xe]
      %v6037 = vld [vmem:[%s4940 + $0x90] sm:$0xe]
      %v6038 = vld [vmem:[%s4940 + $0x9c] sm:$0xe]
      %v6039 = vld [vmem:[%s4940 + $0xa8] sm:$0xe]
      %v6040 = vld [vmem:[%s4940 + $0xb4] sm:$0xe]
      %v6089 = vrot.slane %v6025, 5
      %v6090 = vrot.slane %v6089, 4
      %v6091 = vrot.slane %v5300, 5
      %v6092 = vsel %vm2979, %v6090, %v6091
      %v6093 = vrot.slane %v6091, 4
      %v6094 = vrot.slane %v5301, 5
      %v6095 = vsel %vm2979, %v6093, %v6094
      %v6096 = vrot.slane %v6026, 5
      %v6097 = vrot.slane %v6096, 4
      %v6098 = vrot.slane %v5303, 5
      %v6099 = vsel %vm2979, %v6097, %v6098
      %v6100 = vrot.slane %v6098, 4
      %v6101 = vrot.slane %v5304, 5
      %v6102 = vsel %vm2979, %v6100, %v6101
      %v6103 = vrot.slane %v6027, 5
      %v6104 = vrot.slane %v6103, 4
      %v6105 = vrot.slane %v5306, 5
      %v6106 = vsel %vm2979, %v6104, %v6105
      %v6107 = vrot.slane %v6105, 4
      %v6108 = vrot.slane %v5307, 5
      %v6109 = vsel %vm2979, %v6107, %v6108
      %v6110 = vrot.slane %v6028, 5
      %v6111 = vrot.slane %v6110, 4
      %v6112 = vrot.slane %v5309, 5
      %v6113 = vsel %vm2979, %v6111, %v6112
      %v6114 = vrot.slane %v6112, 4
      %v6115 = vrot.slane %v5310, 5
      %v6116 = vsel %vm2979, %v6114, %v6115
      %v6117 = vrot.slane %v6029, 5
      %v6118 = vrot.slane %v6117, 4
      %v6119 = vrot.slane %v5312, 5
      %v6120 = vsel %vm2979, %v6118, %v6119
      %v6121 = vrot.slane %v6119, 4
      %v6122 = vrot.slane %v5313, 5
      %v6123 = vsel %vm2979, %v6121, %v6122
      %v6124 = vrot.slane %v6030, 5
      %v6125 = vrot.slane %v6124, 4
      %v6126 = vrot.slane %v5315, 5
      %v6127 = vsel %vm2979, %v6125, %v6126
      %v6128 = vrot.slane %v6126, 4
      %v6129 = vrot.slane %v5316, 5
      %v6130 = vsel %vm2979, %v6128, %v6129
      %v6131 = vrot.slane %v6031, 5
      %v6132 = vrot.slane %v6131, 4
      %v6133 = vrot.slane %v5318, 5
      %v6134 = vsel %vm2979, %v6132, %v6133
      %v6135 = vrot.slane %v6133, 4
      %v6136 = vrot.slane %v5319, 5
      %v6137 = vsel %vm2979, %v6135, %v6136
      %v6138 = vrot.slane %v6032, 5
      %v6139 = vrot.slane %v6138, 4
      %v6140 = vrot.slane %v5321, 5
      %v6141 = vsel %vm2979, %v6139, %v6140
      %v6142 = vrot.slane %v6140, 4
      %v6143 = vrot.slane %v5322, 5
      %v6144 = vsel %vm2979, %v6142, %v6143
      %v6145 = vrot.slane %v6033, 5
      %v6146 = vrot.slane %v6145, 4
      %v6147 = vrot.slane %v5324, 5
      %v6148 = vsel %vm2979, %v6146, %v6147
      %v6149 = vrot.slane %v6147, 4
      %v6150 = vrot.slane %v5325, 5
      %v6151 = vsel %vm2979, %v6149, %v6150
      %v6152 = vrot.slane %v6034, 5
      %v6153 = vrot.slane %v6152, 4
      %v6154 = vrot.slane %v5327, 5
      %v6155 = vsel %vm2979, %v6153, %v6154
      %v6156 = vrot.slane %v6154, 4
      %v6157 = vrot.slane %v5328, 5
      %v6158 = vsel %vm2979, %v6156, %v6157
      %v6159 = vrot.slane %v6035, 5
      %v6160 = vrot.slane %v6159, 4
      %v6161 = vrot.slane %v5330, 5
      %v6162 = vsel %vm2979, %v6160, %v6161
      %v6163 = vrot.slane %v6161, 4
      %v6164 = vrot.slane %v5331, 5
      %v6165 = vsel %vm2979, %v6163, %v6164
      %v6166 = vrot.slane %v6036, 5
      %v6167 = vrot.slane %v6166, 4
      %v6168 = vrot.slane %v5333, 5
      %v6169 = vsel %vm2979, %v6167, %v6168
      %v6170 = vrot.slane %v6168, 4
      %v6171 = vrot.slane %v5334, 5
      %v6172 = vsel %vm2979, %v6170, %v6171
      %v6173 = vrot.slane %v6037, 5
      %v6174 = vrot.slane %v6173, 4
      %v6175 = vrot.slane %v5336, 5
      %v6176 = vsel %vm2979, %v6174, %v6175
      %v6177 = vrot.slane %v6175, 4
      %v6178 = vrot.slane %v5337, 5
      %v6179 = vsel %vm2979, %v6177, %v6178
      %v6180 = vrot.slane %v6038, 5
      %v6181 = vrot.slane %v6180, 4
      %v6182 = vrot.slane %v5339, 5
      %v6183 = vsel %vm2979, %v6181, %v6182
      %v6184 = vrot.slane %v6182, 4
      %v6185 = vrot.slane %v5340, 5
      %v6186 = vsel %vm2979, %v6184, %v6185
      %v6187 = vrot.slane %v6039, 5
      %v6188 = vrot.slane %v6187, 4
      %v6189 = vrot.slane %v5342, 5
      %v6190 = vsel %vm2979, %v6188, %v6189
      %v6191 = vrot.slane %v6189, 4
      %v6192 = vrot.slane %v5343, 5
      %v6193 = vsel %vm2979, %v6191, %v6192
      %v6194 = vrot.slane %v6040, 5
      %v6195 = vrot.slane %v6194, 4
      %v6196 = vrot.slane %v5345, 5
      %v6197 = vsel %vm2979, %v6195, %v6196
      %v6198 = vrot.slane %v6196, 4
      %v6199 = vrot.slane %v5346, 5
      %v6200 = vsel %vm2979, %v6198, %v6199
      %s6201 = scalar_lea.vmem %s2, 32
      %v6202 = vld [vmem:[%s6201] sm:$0xf]
      %v6203 = vunpack.c.l.b16 %v6092
      %v6204 = vunpack.c.l.b16 %v6095
      %v6205 = vunpack.c.l.b16 %v6099
      %v6206 = vunpack.c.l.b16 %v6102
      %v6207 = vunpack.c.l.b16 %v6106
      %v6208 = vunpack.c.l.b16 %v6109
      %v6209 = vunpack.c.l.b16 %v6113
      %v6210 = vunpack.c.l.b16 %v6116
      %v6211 = vunpack.c.l.b16 %v6120
      %v6212 = vunpack.c.l.b16 %v6123
      %v6213 = vunpack.c.l.b16 %v6127
      %v6214 = vunpack.c.l.b16 %v6130
      %v6215 = vunpack.c.l.b16 %v6134
      %v6216 = vunpack.c.l.b16 %v6137
      %v6217 = vunpack.c.l.b16 %v6141
      %v6218 = vunpack.c.l.b16 %v6144
      %v6219 = vunpack.c.l.b16 %v6148
      %v6220 = vunpack.c.l.b16 %v6151
      %v6221 = vunpack.c.l.b16 %v6155
      %v6222 = vunpack.c.l.b16 %v6158
      %v6223 = vunpack.c.l.b16 %v6162
      %v6224 = vunpack.c.l.b16 %v6165
      %v6225 = vunpack.c.l.b16 %v6169
      %v6226 = vunpack.c.l.b16 %v6172
      %v6227 = vunpack.c.l.b16 %v6176
      %v6228 = vunpack.c.l.b16 %v6179
      %v6229 = vunpack.c.l.b16 %v6183
      %v6230 = vunpack.c.l.b16 %v6186
      %v6231 = vunpack.c.l.b16 %v6190
      %v6232 = vunpack.c.l.b16 %v6193
      %v6233 = vunpack.c.l.b16 %v6197
      %v6234 = vunpack.c.l.b16 %v6200
      %v6235 = vpack.c.b16 %v6204, %v6203
      %v6236 = vpack.c.b16 %v6206, %v6205
      %v6237 = vpack.c.b16 %v6208, %v6207
      %v6238 = vpack.c.b16 %v6210, %v6209
      %v6239 = vpack.c.b16 %v6212, %v6211
      %v6240 = vpack.c.b16 %v6214, %v6213
      %v6241 = vpack.c.b16 %v6216, %v6215
      %v6242 = vpack.c.b16 %v6218, %v6217
      %v6243 = vpack.c.b16 %v6220, %v6219
      %v6244 = vpack.c.b16 %v6222, %v6221
      %v6245 = vpack.c.b16 %v6224, %v6223
      %v6246 = vpack.c.b16 %v6226, %v6225
      %v6247 = vpack.c.b16 %v6228, %v6227
      %v6248 = vpack.c.b16 %v6230, %v6229
      %v6249 = vpack.c.b16 %v6232, %v6231
      %v6250 = vpack.c.b16 %v6234, %v6233
      %v6252 = vsel %vm2423, %v6235, 0
      %v6255 = vsel %vm2423, %v6236, 0
      %v6258 = vsel %vm2423, %v6237, 0
      %v6261 = vsel %vm2423, %v6238, 0
      %v6264 = vsel %vm2423, %v6239, 0
      %v6267 = vsel %vm2423, %v6240, 0
      %v6270 = vsel %vm2423, %v6241, 0
      %v6273 = vsel %vm2423, %v6242, 0
      %v6276 = vsel %vm2423, %v6243, 0
      %v6279 = vsel %vm2423, %v6244, 0
      %v6282 = vsel %vm2423, %v6245, 0
      %v6285 = vsel %vm2423, %v6246, 0
      %v6288 = vsel %vm2423, %v6247, 0
      %v6291 = vsel %vm2423, %v6248, 0
      %v6294 = vsel %vm2423, %v6249, 0
      %v6297 = vsel %vm2423, %v6250, 0
      %v6300 = vsel %vm2472, %v6202, 0
      %6302 = vmatprep.subr.bf16.mxu0 0
      %6303 = vmatpush1.bf16.msra.mxu0 %v6300
      %6304 = vmatprep.subr.bf16.mxu0 0
      %6305 = vmatpush1.bf16.msra.mxu0 0
      %6306 = vmatprep.subr.bf16.mxu0 0
      %6307 = vmatpush1.bf16.msra.mxu0 0
      %6308 = vmatprep.subr.bf16.mxu0 0
      %6309 = vmatpush1.bf16.msra.mxu0 0
      %6310 = vmatprep.subr.bf16.mxu0 0
      %6311 = vmatpush1.bf16.msra.mxu0 0
      %6312 = vmatprep.subr.bf16.mxu0 0
      %6313 = vmatpush1.bf16.msra.mxu0 0
      %6314 = vmatprep.subr.bf16.mxu0 0
      %6315 = vmatpush1.bf16.msra.mxu0 0
      %6316 = vmatprep.subr.bf16.mxu0 0
      %6317 = vmatpush1.bf16.msra.mxu0 0
      %6318 = vmatprep.subr.bf16.mxu0 0
      %6319 = vmatpush1.bf16.msra.mxu0 0
      %6320 = vmatprep.subr.bf16.mxu0 0
      %6321 = vmatpush1.bf16.msra.mxu0 0
      %6322 = vmatprep.subr.bf16.mxu0 0
      %6323 = vmatpush1.bf16.msra.mxu0 0
      %6324 = vmatprep.subr.bf16.mxu0 0
      %6325 = vmatpush1.bf16.msra.mxu0 0
      %6326 = vmatprep.subr.bf16.mxu0 0
      %6327 = vmatpush1.bf16.msra.mxu0 0
      %6328 = vmatprep.subr.bf16.mxu0 0
      %6329 = vmatpush1.bf16.msra.mxu0 0
      %6330 = vmatprep.subr.bf16.mxu0 0
      %6331 = vmatpush1.bf16.msra.mxu0 0
      %6332 = vmatprep.subr.bf16.mxu0 0
      %6333 = vmatpush1.bf16.msra.mxu0 0
      %6334 = vmatprep.mubr.bf16.mxu0 0
      %6335 = vmatmul.mubr.bf16.gmra.mrb[0].mxu0 %v6252
      %v6336 = vpop.f32.mrb[0].mxu0
      %v6337 = vadd.f32 0.0, %v6336
      %v6338 = vpop.f32.mrb[0].mxu0
      %v6339 = vpop.f32.mrb[0].mxu0
      %v6340 = vadd.f32 0.0, %v6339
      %v6341 = vpop.f32.mrb[0].mxu0
      %6342 = vmatprep.mubr.bf16.mxu0 0
      %6343 = vmatmul.mubr.bf16.gmra.mrb[0].mxu0 %v6255
      %v6344 = vpop.f32.mrb[0].mxu0
      %v6345 = vadd.f32 0.0, %v6344
      %v6346 = vpop.f32.mrb[0].mxu0
      %v6347 = vpop.f32.mrb[0].mxu0
      %v6348 = vadd.f32 0.0, %v6347
      %v6349 = vpop.f32.mrb[0].mxu0
      %6350 = vmatprep.mubr.bf16.mxu0 0
      %6351 = vmatmul.mubr.bf16.gmra.mrb[0].mxu0 %v6258
      %v6352 = vpop.f32.mrb[0].mxu0
      %v6353 = vadd.f32 0.0, %v6352
      %v6354 = vpop.f32.mrb[0].mxu0
      %v6355 = vpop.f32.mrb[0].mxu0
      %v6356 = vadd.f32 0.0, %v6355
      %v6357 = vpop.f32.mrb[0].mxu0
      %6358 = vmatprep.mubr.bf16.mxu0 0
      %6359 = vmatmul.mubr.bf16.gmra.mrb[0].mxu0 %v6261
      %v6360 = vpop.f32.mrb[0].mxu0
      %v6361 = vadd.f32 0.0, %v6360
      %v6362 = vpop.f32.mrb[0].mxu0
      %v6363 = vpop.f32.mrb[0].mxu0
      %v6364 = vadd.f32 0.0, %v6363
      %v6365 = vpop.f32.mrb[0].mxu0
      %6366 = vmatprep.mubr.bf16.mxu0 0
      %6367 = vmatmul.mubr.bf16.gmra.mrb[0].mxu0 %v6264
      %v6368 = vpop.f32.mrb[0].mxu0
      %v6369 = vadd.f32 0.0, %v6368
      %v6370 = vpop.f32.mrb[0].mxu0
      %v6371 = vpop.f32.mrb[0].mxu0
      %v6372 = vadd.f32 0.0, %v6371
      %v6373 = vpop.f32.mrb[0].mxu0
      %6374 = vmatprep.mubr.bf16.mxu0 0
      %6375 = vmatmul.mubr.bf16.gmra.mrb[0].mxu0 %v6267
      %v6376 = vpop.f32.mrb[0].mxu0
      %v6377 = vadd.f32 0.0, %v6376
      %v6378 = vpop.f32.mrb[0].mxu0
      %v6379 = vpop.f32.mrb[0].mxu0
      %v6380 = vadd.f32 0.0, %v6379
      %v6381 = vpop.f32.mrb[0].mxu0
      %6382 = vmatprep.mubr.bf16.mxu0 0
      %6383 = vmatmul.mubr.bf16.gmra.mrb[0].mxu0 %v6270
      %v6384 = vpop.f32.mrb[0].mxu0
      %v6385 = vadd.f32 0.0, %v6384
      %v6386 = vpop.f32.mrb[0].mxu0
      %v6387 = vpop.f32.mrb[0].mxu0
      %v6388 = vadd.f32 0.0, %v6387
      %v6389 = vpop.f32.mrb[0].mxu0
      %6390 = vmatprep.mubr.bf16.mxu0 0
      %6391 = vmatmul.mubr.bf16.gmra.mrb[0].mxu0 %v6273
      %v6392 = vpop.f32.mrb[0].mxu0
      %v6393 = vadd.f32 0.0, %v6392
      %v6394 = vpop.f32.mrb[0].mxu0
      %v6395 = vpop.f32.mrb[0].mxu0
      %v6396 = vadd.f32 0.0, %v6395
      %v6397 = vpop.f32.mrb[0].mxu0
      %6398 = vmatprep.mubr.bf16.mxu0 0
      %6399 = vmatmul.mubr.bf16.gmra.mrb[0].mxu0 %v6276
      %v6400 = vpop.f32.mrb[0].mxu0
      %v6401 = vadd.f32 0.0, %v6400
      %v6402 = vpop.f32.mrb[0].mxu0
      %v6403 = vpop.f32.mrb[0].mxu0
      %v6404 = vadd.f32 0.0, %v6403
      %v6405 = vpop.f32.mrb[0].mxu0
      %6406 = vmatprep.mubr.bf16.mxu0 0
      %6407 = vmatmul.mubr.bf16.gmra.mrb[0].mxu0 %v6279
      %v6408 = vpop.f32.mrb[0].mxu0
      %v6409 = vadd.f32 0.0, %v6408
      %v6410 = vpop.f32.mrb[0].mxu0
      %v6411 = vpop.f32.mrb[0].mxu0
      %v6412 = vadd.f32 0.0, %v6411
      %v6413 = vpop.f32.mrb[0].mxu0
      %6414 = vmatprep.mubr.bf16.mxu0 0
      %6415 = vmatmul.mubr.bf16.gmra.mrb[0].mxu0 %v6282
      %v6416 = vpop.f32.mrb[0].mxu0
      %v6417 = vadd.f32 0.0, %v6416
      %v6418 = vpop.f32.mrb[0].mxu0
      %v6419 = vpop.f32.mrb[0].mxu0
      %v6420 = vadd.f32 0.0, %v6419
      %v6421 = vpop.f32.mrb[0].mxu0
      %6422 = vmatprep.mubr.bf16.mxu0 0
      %6423 = vmatmul.mubr.bf16.gmra.mrb[0].mxu0 %v6285
      %v6424 = vpop.f32.mrb[0].mxu0
      %v6425 = vadd.f32 0.0, %v6424
      %v6426 = vpop.f32.mrb[0].mxu0
      %v6427 = vpop.f32.mrb[0].mxu0
      %v6428 = vadd.f32 0.0, %v6427
      %v6429 = vpop.f32.mrb[0].mxu0
      %6430 = vmatprep.mubr.bf16.mxu0 0
      %6431 = vmatmul.mubr.bf16.gmra.mrb[0].mxu0 %v6288
      %v6432 = vpop.f32.mrb[0].mxu0
      %v6433 = vadd.f32 0.0, %v6432
      %v6434 = vpop.f32.mrb[0].mxu0
      %v6435 = vpop.f32.mrb[0].mxu0
      %v6436 = vadd.f32 0.0, %v6435
      %v6437 = vpop.f32.mrb[0].mxu0
      %6438 = vmatprep.mubr.bf16.mxu0 0
      %6439 = vmatmul.mubr.bf16.gmra.mrb[0].mxu0 %v6291
      %v6440 = vpop.f32.mrb[0].mxu0
      %v6441 = vadd.f32 0.0, %v6440
      %v6442 = vpop.f32.mrb[0].mxu0
      %v6443 = vpop.f32.mrb[0].mxu0
      %v6444 = vadd.f32 0.0, %v6443
      %v6445 = vpop.f32.mrb[0].mxu0
      %6446 = vmatprep.mubr.bf16.mxu0 0
      %6447 = vmatmul.mubr.bf16.gmra.mrb[0].mxu0 %v6294
      %v6448 = vpop.f32.mrb[0].mxu0
      %v6449 = vadd.f32 0.0, %v6448
      %v6450 = vpop.f32.mrb[0].mxu0
      %v6451 = vpop.f32.mrb[0].mxu0
      %v6452 = vadd.f32 0.0, %v6451
      %v6453 = vpop.f32.mrb[0].mxu0
      %6454 = vmatprep.mubr.bf16.mxu0 0
      %6455 = vmatmul.mubr.bf16.gmra.mrb[0].mxu0 %v6297
      %v6456 = vpop.f32.mrb[0].mxu0
      %v6457 = vadd.f32 0.0, %v6456
      %v6458 = vpop.f32.mrb[0].mxu0
      %v6459 = vpop.f32.mrb[0].mxu0
      %v6460 = vadd.f32 0.0, %v6459
      %v6461 = vpop.f32.mrb[0].mxu0
      %6462 = vdwg.mxu0
      %v6463 = vadd.f32 %v5993, %v6337
      %v6464 = vadd.f32 %v5994, %v6340
      %v6465 = vadd.f32 %v5995, %v6345
      %v6466 = vadd.f32 %v5996, %v6348
      %v6467 = vadd.f32 %v5997, %v6353
      %v6468 = vadd.f32 %v5998, %v6356
      %v6469 = vadd.f32 %v5999, %v6361
      %v6470 = vadd.f32 %v6000, %v6364
      %v6471 = vadd.f32 %v6001, %v6369
      %v6472 = vadd.f32 %v6002, %v6372
      %v6473 = vadd.f32 %v6003, %v6377
      %v6474 = vadd.f32 %v6004, %v6380
      %v6475 = vadd.f32 %v6005, %v6385
      %v6476 = vadd.f32 %v6006, %v6388
      %v6477 = vadd.f32 %v6007, %v6393
      %v6478 = vadd.f32 %v6008, %v6396
      %v6479 = vadd.f32 %v6009, %v6401
      %v6480 = vadd.f32 %v6010, %v6404
      %v6481 = vadd.f32 %v6011, %v6409
      %v6482 = vadd.f32 %v6012, %v6412
      %v6483 = vadd.f32 %v6013, %v6417
      %v6484 = vadd.f32 %v6014, %v6420
      %v6485 = vadd.f32 %v6015, %v6425
      %v6486 = vadd.f32 %v6016, %v6428
      %v6487 = vadd.f32 %v6017, %v6433
      %v6488 = vadd.f32 %v6018, %v6436
      %v6489 = vadd.f32 %v6019, %v6441
      %v6490 = vadd.f32 %v6020, %v6444
      %v6491 = vadd.f32 %v6021, %v6449
      %v6492 = vadd.f32 %v6022, %v6452
      %v6493 = vadd.f32 %v6023, %v6457
      %v6494 = vadd.f32 %v6024, %v6460
      %v6495 = vld [vmem:[%s4] sm:$0x1]
      %v6497 = vlaneseq
      %v6498 = vshrl.u32 %v6497, 7
      %v6499 = vsub.s32 0, %v6498
      %v6500 = vrot.slane %v6495, %v6499
      %6501 = vrot.lane.b32.xlu0 %v6500, 112
      %v6502 = vpop.permute.xlu0 %6501
      %v6504 = vmul.f32 %v6463, %v6502
      %v6505 = vmul.f32 %v6464, %v6502
      %v6506 = vmul.f32 %v6465, %v6502
      %v6507 = vmul.f32 %v6466, %v6502
      %v6508 = vmul.f32 %v6467, %v6502
      %v6509 = vmul.f32 %v6468, %v6502
      %v6510 = vmul.f32 %v6469, %v6502
      %v6511 = vmul.f32 %v6470, %v6502
      %v6512 = vmul.f32 %v6471, %v6502
      %v6513 = vmul.f32 %v6472, %v6502
      %v6514 = vmul.f32 %v6473, %v6502
      %v6515 = vmul.f32 %v6474, %v6502
      %v6516 = vmul.f32 %v6475, %v6502
      %v6517 = vmul.f32 %v6476, %v6502
      %v6518 = vmul.f32 %v6477, %v6502
      %v6519 = vmul.f32 %v6478, %v6502
      %v6520 = vmul.f32 %v6479, %v6502
      %v6521 = vmul.f32 %v6480, %v6502
      %v6522 = vmul.f32 %v6481, %v6502
      %v6523 = vmul.f32 %v6482, %v6502
      %v6524 = vmul.f32 %v6483, %v6502
      %v6525 = vmul.f32 %v6484, %v6502
      %v6526 = vmul.f32 %v6485, %v6502
      %v6527 = vmul.f32 %v6486, %v6502
      %v6528 = vmul.f32 %v6487, %v6502
      %v6529 = vmul.f32 %v6488, %v6502
      %v6530 = vmul.f32 %v6489, %v6502
      %v6531 = vmul.f32 %v6490, %v6502
      %v6532 = vmul.f32 %v6491, %v6502
      %v6533 = vmul.f32 %v6492, %v6502
      %v6534 = vmul.f32 %v6493, %v6502
      %v6535 = vmul.f32 %v6494, %v6502
      %v6536 = vld [vmem:[%s5] sm:$0x1]
      %v6538 = vlaneseq
      %v6539 = vshrl.u32 %v6538, 7
      %v6540 = vsub.s32 0, %v6539
      %v6541 = vrot.slane %v6536, %v6540
      %6542 = vrot.lane.b32.xlu0 %v6541, 112
      %v6543 = vpop.permute.xlu0 %6542
      %v6545 = vadd.f32 %v6504, %v6543
      %v6546 = vadd.f32 %v6505, %v6543
      %v6547 = vadd.f32 %v6506, %v6543
      %v6548 = vadd.f32 %v6507, %v6543
      %v6549 = vadd.f32 %v6508, %v6543
      %v6550 = vadd.f32 %v6509, %v6543
      %v6551 = vadd.f32 %v6510, %v6543
      %v6552 = vadd.f32 %v6511, %v6543
      %v6553 = vadd.f32 %v6512, %v6543
      %v6554 = vadd.f32 %v6513, %v6543
      %v6555 = vadd.f32 %v6514, %v6543
      %v6556 = vadd.f32 %v6515, %v6543
      %v6557 = vadd.f32 %v6516, %v6543
      %v6558 = vadd.f32 %v6517, %v6543
      %v6559 = vadd.f32 %v6518, %v6543
      %v6560 = vadd.f32 %v6519, %v6543
      %v6561 = vadd.f32 %v6520, %v6543
      %v6562 = vadd.f32 %v6521, %v6543
      %v6563 = vadd.f32 %v6522, %v6543
      %v6564 = vadd.f32 %v6523, %v6543
      %v6565 = vadd.f32 %v6524, %v6543
      %v6566 = vadd.f32 %v6525, %v6543
      %v6567 = vadd.f32 %v6526, %v6543
      %v6568 = vadd.f32 %v6527, %v6543
      %v6569 = vadd.f32 %v6528, %v6543
      %v6570 = vadd.f32 %v6529, %v6543
      %v6571 = vadd.f32 %v6530, %v6543
      %v6572 = vadd.f32 %v6531, %v6543
      %v6573 = vadd.f32 %v6532, %v6543
      %v6574 = vadd.f32 %v6533, %v6543
      %v6575 = vadd.f32 %v6534, %v6543
      %v6576 = vadd.f32 %v6535, %v6543
      %v6577 = vmax.f32 %v6545, 0.0
      %v6578 = vmax.f32 %v6546, 0.0
      %v6579 = vmax.f32 %v6547, 0.0
      %v6580 = vmax.f32 %v6548, 0.0
      %v6581 = vmax.f32 %v6549, 0.0
      %v6582 = vmax.f32 %v6550, 0.0
      %v6583 = vmax.f32 %v6551, 0.0
      %v6584 = vmax.f32 %v6552, 0.0
      %v6585 = vmax.f32 %v6553, 0.0
      %v6586 = vmax.f32 %v6554, 0.0
      %v6587 = vmax.f32 %v6555, 0.0
      %v6588 = vmax.f32 %v6556, 0.0
      %v6589 = vmax.f32 %v6557, 0.0
      %v6590 = vmax.f32 %v6558, 0.0
      %v6591 = vmax.f32 %v6559, 0.0
      %v6592 = vmax.f32 %v6560, 0.0
      %v6593 = vmax.f32 %v6561, 0.0
      %v6594 = vmax.f32 %v6562, 0.0
      %v6595 = vmax.f32 %v6563, 0.0
      %v6596 = vmax.f32 %v6564, 0.0
      %v6597 = vmax.f32 %v6565, 0.0
      %v6598 = vmax.f32 %v6566, 0.0
      %v6599 = vmax.f32 %v6567, 0.0
      %v6600 = vmax.f32 %v6568, 0.0
      %v6601 = vmax.f32 %v6569, 0.0
      %v6602 = vmax.f32 %v6570, 0.0
      %v6603 = vmax.f32 %v6571, 0.0
      %v6604 = vmax.f32 %v6572, 0.0
      %v6605 = vmax.f32 %v6573, 0.0
      %v6606 = vmax.f32 %v6574, 0.0
      %v6607 = vmax.f32 %v6575, 0.0
      %v6608 = vmax.f32 %v6576, 0.0
      %v6609 = vpack.c.bf16 %v6578, %v6577
      %v6610 = vpack.c.bf16 %v6580, %v6579
      %v6611 = vpack.c.bf16 %v6582, %v6581
      %v6612 = vpack.c.bf16 %v6584, %v6583
      %v6613 = vpack.c.bf16 %v6586, %v6585
      %v6614 = vpack.c.bf16 %v6588, %v6587
      %v6615 = vpack.c.bf16 %v6590, %v6589
      %v6616 = vpack.c.bf16 %v6592, %v6591
      %v6617 = vpack.c.bf16 %v6594, %v6593
      %v6618 = vpack.c.bf16 %v6596, %v6595
      %v6619 = vpack.c.bf16 %v6598, %v6597
      %v6620 = vpack.c.bf16 %v6600, %v6599
      %v6621 = vpack.c.bf16 %v6602, %v6601
      %v6622 = vpack.c.bf16 %v6604, %v6603
      %v6623 = vpack.c.bf16 %v6606, %v6605
      %v6624 = vpack.c.bf16 %v6608, %v6607
      %v6641 = vunpack.c.l.b16 %v6609
      %v6642 = vunpack.c.h.b16 %v6609
      %v6643 = vunpack.c.l.b16 %v6610
      %v6644 = vunpack.c.h.b16 %v6610
      %v6645 = vunpack.c.l.b16 %v6611
      %v6646 = vunpack.c.h.b16 %v6611
      %v6647 = vunpack.c.l.b16 %v6612
      %v6648 = vunpack.c.h.b16 %v6612
      %v6649 = vunpack.c.l.b16 %v6613
      %v6650 = vunpack.c.h.b16 %v6613
      %v6651 = vunpack.c.l.b16 %v6614
      %v6652 = vunpack.c.h.b16 %v6614
      %v6653 = vunpack.c.l.b16 %v6615
      %v6654 = vunpack.c.h.b16 %v6615
      %v6655 = vunpack.c.l.b16 %v6616
      %v6656 = vunpack.c.h.b16 %v6616
      %v6657 = vunpack.c.l.b16 %v6617
      %v6658 = vunpack.c.h.b16 %v6617
      %v6659 = vunpack.c.l.b16 %v6618
      %v6660 = vunpack.c.h.b16 %v6618
      %v6661 = vunpack.c.l.b16 %v6619
      %v6662 = vunpack.c.h.b16 %v6619
      %v6663 = vunpack.c.l.b16 %v6620
      %v6664 = vunpack.c.h.b16 %v6620
      %v6665 = vunpack.c.l.b16 %v6621
      %v6666 = vunpack.c.h.b16 %v6621
      %v6667 = vunpack.c.l.b16 %v6622
      %v6668 = vunpack.c.h.b16 %v6622
      %v6669 = vunpack.c.l.b16 %v6623
      %v6670 = vunpack.c.h.b16 %v6623
      %v6671 = vunpack.c.l.b16 %v6624
      %v6672 = vunpack.c.h.b16 %v6624
      %v6673 = vpack.c.b16 %v6641, %v6641
      %v6674 = vpack.c.b16 %v6642, %v6642
      %v6675 = vpack.c.b16 %v6643, %v6643
      %v6676 = vpack.c.b16 %v6644, %v6644
      %v6677 = vpack.c.b16 %v6645, %v6645
      %v6678 = vpack.c.b16 %v6646, %v6646
      %v6679 = vpack.c.b16 %v6647, %v6647
      %v6680 = vpack.c.b16 %v6648, %v6648
      %v6681 = vpack.c.b16 %v6649, %v6649
      %v6682 = vpack.c.b16 %v6650, %v6650
      %v6683 = vpack.c.b16 %v6651, %v6651
      %v6684 = vpack.c.b16 %v6652, %v6652
      %v6685 = vpack.c.b16 %v6653, %v6653
      %v6686 = vpack.c.b16 %v6654, %v6654
      %v6687 = vpack.c.b16 %v6655, %v6655
      %v6688 = vpack.c.b16 %v6656, %v6656
      %v6689 = vpack.c.b16 %v6657, %v6657
      %v6690 = vpack.c.b16 %v6658, %v6658
      %v6691 = vpack.c.b16 %v6659, %v6659
      %v6692 = vpack.c.b16 %v6660, %v6660
      %v6693 = vpack.c.b16 %v6661, %v6661
      %v6694 = vpack.c.b16 %v6662, %v6662
      %v6695 = vpack.c.b16 %v6663, %v6663
      %v6696 = vpack.c.b16 %v6664, %v6664
      %v6697 = vpack.c.b16 %v6665, %v6665
      %v6698 = vpack.c.b16 %v6666, %v6666
      %v6699 = vpack.c.b16 %v6667, %v6667
      %v6700 = vpack.c.b16 %v6668, %v6668
      %v6701 = vpack.c.b16 %v6669, %v6669
      %v6702 = vpack.c.b16 %v6670, %v6670
      %v6703 = vpack.c.b16 %v6671, %v6671
      %v6704 = vpack.c.b16 %v6672, %v6672
      %6705 = vrot.lane.b32.xlu0 %v6673, 8
      %v6706 = vpop.permute.xlu0 %6705
      %6707 = vrot.lane.b32.xlu0 %v6674, 8
      %v6708 = vpop.permute.xlu0 %6707
      %6709 = vrot.lane.b32.xlu0 %v6675, 8
      %v6710 = vpop.permute.xlu0 %6709
      %6711 = vrot.lane.b32.xlu0 %v6676, 8
      %v6712 = vpop.permute.xlu0 %6711
      %6713 = vrot.lane.b32.xlu0 %v6677, 8
      %v6714 = vpop.permute.xlu0 %6713
      %6715 = vrot.lane.b32.xlu0 %v6678, 8
      %v6716 = vpop.permute.xlu0 %6715
      %6717 = vrot.lane.b32.xlu0 %v6679, 8
      %v6718 = vpop.permute.xlu0 %6717
      %6719 = vrot.lane.b32.xlu0 %v6680, 8
      %v6720 = vpop.permute.xlu0 %6719
      %6721 = vrot.lane.b32.xlu0 %v6681, 8
      %v6722 = vpop.permute.xlu0 %6721
      %6723 = vrot.lane.b32.xlu0 %v6682, 8
      %v6724 = vpop.permute.xlu0 %6723
      %6725 = vrot.lane.b32.xlu0 %v6683, 8
      %v6726 = vpop.permute.xlu0 %6725
      %6727 = vrot.lane.b32.xlu0 %v6684, 8
      %v6728 = vpop.permute.xlu0 %6727
      %6729 = vrot.lane.b32.xlu0 %v6685, 8
      %v6730 = vpop.permute.xlu0 %6729
      %6731 = vrot.lane.b32.xlu0 %v6686, 8
      %v6732 = vpop.permute.xlu0 %6731
      %6733 = vrot.lane.b32.xlu0 %v6687, 8
      %v6734 = vpop.permute.xlu0 %6733
      %6735 = vrot.lane.b32.xlu0 %v6688, 8
      %v6736 = vpop.permute.xlu0 %6735
      %6737 = vrot.lane.b32.xlu0 %v6689, 8
      %v6738 = vpop.permute.xlu0 %6737
      %6739 = vrot.lane.b32.xlu0 %v6690, 8
      %v6740 = vpop.permute.xlu0 %6739
      %6741 = vrot.lane.b32.xlu0 %v6691, 8
      %v6742 = vpop.permute.xlu0 %6741
      %6743 = vrot.lane.b32.xlu0 %v6692, 8
      %v6744 = vpop.permute.xlu0 %6743
      %6745 = vrot.lane.b32.xlu0 %v6693, 8
      %v6746 = vpop.permute.xlu0 %6745
      %6747 = vrot.lane.b32.xlu0 %v6694, 8
      %v6748 = vpop.permute.xlu0 %6747
      %6749 = vrot.lane.b32.xlu0 %v6695, 8
      %v6750 = vpop.permute.xlu0 %6749
      %6751 = vrot.lane.b32.xlu0 %v6696, 8
      %v6752 = vpop.permute.xlu0 %6751
      %6753 = vrot.lane.b32.xlu0 %v6697, 8
      %v6754 = vpop.permute.xlu0 %6753
      %6755 = vrot.lane.b32.xlu0 %v6698, 8
      %v6756 = vpop.permute.xlu0 %6755
      %6757 = vrot.lane.b32.xlu0 %v6699, 8
      %v6758 = vpop.permute.xlu0 %6757
      %6759 = vrot.lane.b32.xlu0 %v6700, 8
      %v6760 = vpop.permute.xlu0 %6759
      %6761 = vrot.lane.b32.xlu0 %v6701, 8
      %v6762 = vpop.permute.xlu0 %6761
      %6763 = vrot.lane.b32.xlu0 %v6702, 8
      %v6764 = vpop.permute.xlu0 %6763
      %6765 = vrot.lane.b32.xlu0 %v6703, 8
      %v6766 = vpop.permute.xlu0 %6765
      %6767 = vrot.lane.b32.xlu0 %v6704, 8
      %v6768 = vpop.permute.xlu0 %6767
      %vm6801 = vcmask 191552
      %6802 = vst.msk [vmem:[%s251] sm:$0xf] %vm6801, %v6706
      %6803 = vst.msk [vmem:[%s251 + $0x4] sm:$0xf] %vm6801, %v6708
      %6804 = vst.msk [vmem:[%s251 + $0x8] sm:$0xf] %vm6801, %v6710
      %6805 = vst.msk [vmem:[%s251 + $0xc] sm:$0xf] %vm6801, %v6712
      %6806 = vst.msk [vmem:[%s251 + $0x10] sm:$0xf] %vm6801, %v6714
      %6807 = vst.msk [vmem:[%s251 + $0x14] sm:$0xf] %vm6801, %v6716
      %6808 = vst.msk [vmem:[%s251 + $0x18] sm:$0xf] %vm6801, %v6718
      %6809 = vst.msk [vmem:[%s251 + $0x1c] sm:$0xf] %vm6801, %v6720
      %6810 = vst.msk [vmem:[%s251 + $0x20] sm:$0xf] %vm6801, %v6722
      %6811 = vst.msk [vmem:[%s251 + $0x24] sm:$0xf] %vm6801, %v6724
      %6812 = vst.msk [vmem:[%s251 + $0x28] sm:$0xf] %vm6801, %v6726
      %6813 = vst.msk [vmem:[%s251 + $0x2c] sm:$0xf] %vm6801, %v6728
      %6814 = vst.msk [vmem:[%s251 + $0x30] sm:$0xf] %vm6801, %v6730
      %6815 = vst.msk [vmem:[%s251 + $0x34] sm:$0xf] %vm6801, %v6732
      %6816 = vst.msk [vmem:[%s251 + $0x38] sm:$0xf] %vm6801, %v6734
      %6817 = vst.msk [vmem:[%s251 + $0x3c] sm:$0xf] %vm6801, %v6736
      %6818 = vst.msk [vmem:[%s251 + $0x40] sm:$0xf] %vm6801, %v6738
      %6819 = vst.msk [vmem:[%s251 + $0x44] sm:$0xf] %vm6801, %v6740
      %6820 = vst.msk [vmem:[%s251 + $0x48] sm:$0xf] %vm6801, %v6742
      %6821 = vst.msk [vmem:[%s251 + $0x4c] sm:$0xf] %vm6801, %v6744
      %6822 = vst.msk [vmem:[%s251 + $0x50] sm:$0xf] %vm6801, %v6746
      %6823 = vst.msk [vmem:[%s251 + $0x54] sm:$0xf] %vm6801, %v6748
      %6824 = vst.msk [vmem:[%s251 + $0x58] sm:$0xf] %vm6801, %v6750
      %6825 = vst.msk [vmem:[%s251 + $0x5c] sm:$0xf] %vm6801, %v6752
      %6826 = vst.msk [vmem:[%s251 + $0x60] sm:$0xf] %vm6801, %v6754
      %6827 = vst.msk [vmem:[%s251 + $0x64] sm:$0xf] %vm6801, %v6756
      %6828 = vst.msk [vmem:[%s251 + $0x68] sm:$0xf] %vm6801, %v6758
      %6829 = vst.msk [vmem:[%s251 + $0x6c] sm:$0xf] %vm6801, %v6760
      %6830 = vst.msk [vmem:[%s251 + $0x70] sm:$0xf] %vm6801, %v6762
      %6831 = vst.msk [vmem:[%s251 + $0x74] sm:$0xf] %vm6801, %v6764
      %6832 = vst.msk [vmem:[%s251 + $0x78] sm:$0xf] %vm6801, %v6766
      %6833 = vst.msk [vmem:[%s251 + $0x7c] sm:$0xf] %vm6801, %v6768
      %v6834 = vld [vmem:[%s721] sm:$0xf]
      %v6835 = vld [vmem:[%s721 + $0x4] sm:$0xf]
      %v6836 = vld [vmem:[%s721 + $0x8] sm:$0x1]
      %v6837 = vld [vmem:[%s721 + $0xc] sm:$0xf]
      %v6838 = vld [vmem:[%s721 + $0x10] sm:$0xf]
      %v6839 = vld [vmem:[%s721 + $0x14] sm:$0x1]
      %v6840 = vld [vmem:[%s721 + $0x18] sm:$0xf]
      %v6841 = vld [vmem:[%s721 + $0x1c] sm:$0xf]
      %v6842 = vld [vmem:[%s721 + $0x20] sm:$0x1]
      %v6843 = vld [vmem:[%s721 + $0x24] sm:$0xf]
      %v6844 = vld [vmem:[%s721 + $0x28] sm:$0xf]
      %v6845 = vld [vmem:[%s721 + $0x2c] sm:$0x1]
      %v6846 = vld [vmem:[%s721 + $0x30] sm:$0xf]
      %v6847 = vld [vmem:[%s721 + $0x34] sm:$0xf]
      %v6848 = vld [vmem:[%s721 + $0x38] sm:$0x1]
      %v6849 = vld [vmem:[%s721 + $0x3c] sm:$0xf]
      %v6850 = vld [vmem:[%s721 + $0x40] sm:$0xf]
      %v6851 = vld [vmem:[%s721 + $0x44] sm:$0x1]
      %v6852 = vld [vmem:[%s721 + $0x48] sm:$0xf]
      %v6853 = vld [vmem:[%s721 + $0x4c] sm:$0xf]
      %v6854 = vld [vmem:[%s721 + $0x50] sm:$0x1]
      %v6855 = vld [vmem:[%s721 + $0x54] sm:$0xf]
      %v6856 = vld [vmem:[%s721 + $0x58] sm:$0xf]
      %v6857 = vld [vmem:[%s721 + $0x5c] sm:$0x1]
      %v6858 = vld [vmem:[%s721 + $0x60] sm:$0xf]
      %v6859 = vld [vmem:[%s721 + $0x64] sm:$0xf]
      %v6860 = vld [vmem:[%s721 + $0x68] sm:$0x1]
      %v6861 = vld [vmem:[%s721 + $0x6c] sm:$0xf]
      %v6862 = vld [vmem:[%s721 + $0x70] sm:$0xf]
      %v6863 = vld [vmem:[%s721 + $0x74] sm:$0x1]
      %v6864 = vld [vmem:[%s721 + $0x78] sm:$0xf]
      %v6865 = vld [vmem:[%s721 + $0x7c] sm:$0xf]
      %v6866 = vld [vmem:[%s721 + $0x80] sm:$0x1]
      %v6867 = vld [vmem:[%s721 + $0x84] sm:$0xf]
      %v6868 = vld [vmem:[%s721 + $0x88] sm:$0xf]
      %v6869 = vld [vmem:[%s721 + $0x8c] sm:$0x1]
      %v6870 = vld [vmem:[%s721 + $0x90] sm:$0xf]
      %v6871 = vld [vmem:[%s721 + $0x94] sm:$0xf]
      %v6872 = vld [vmem:[%s721 + $0x98] sm:$0x1]
      %v6873 = vld [vmem:[%s721 + $0x9c] sm:$0xf]
      %v6874 = vld [vmem:[%s721 + $0xa0] sm:$0xf]
      %v6875 = vld [vmem:[%s721 + $0xa4] sm:$0x1]
      %v6876 = vld [vmem:[%s721 + $0xa8] sm:$0xf]
      %v6877 = vld [vmem:[%s721 + $0xac] sm:$0xf]
      %v6878 = vld [vmem:[%s721 + $0xb0] sm:$0x1]
      %v6879 = vld [vmem:[%s721 + $0xb4] sm:$0xf]
      %v6880 = vld [vmem:[%s721 + $0xb8] sm:$0xf]
      %v6881 = vld [vmem:[%s721 + $0xbc] sm:$0x1]
      %v6882 = vld [vmem:[#allocation2] sm:$0xf]
      %v6883 = vld [vmem:[#allocation2 + $0x4] sm:$0xf]
      %v6884 = vld [vmem:[#allocation2 + $0xc] sm:$0xf]
      %v6885 = vld [vmem:[#allocation2 + $0x10] sm:$0xf]
      %v6886 = vld [vmem:[#allocation2 + $0x18] sm:$0xf]
      %v6887 = vld [vmem:[#allocation2 + $0x1c] sm:$0xf]
      %v6888 = vld [vmem:[#allocation2 + $0x24] sm:$0xf]
      %v6889 = vld [vmem:[#allocation2 + $0x28] sm:$0xf]
      %v6890 = vld [vmem:[#allocation2 + $0x30] sm:$0xf]
      %v6891 = vld [vmem:[#allocation2 + $0x34] sm:$0xf]
      %v6892 = vld [vmem:[#allocation2 + $0x3c] sm:$0xf]
      %v6893 = vld [vmem:[#allocation2 + $0x40] sm:$0xf]
      %v6894 = vld [vmem:[#allocation2 + $0x48] sm:$0xf]
      %v6895 = vld [vmem:[#allocation2 + $0x4c] sm:$0xf]
      %v6896 = vld [vmem:[#allocation2 + $0x54] sm:$0xf]
      %v6897 = vld [vmem:[#allocation2 + $0x58] sm:$0xf]
      %v6898 = vld [vmem:[#allocation2 + $0x60] sm:$0xf]
      %v6899 = vld [vmem:[#allocation2 + $0x64] sm:$0xf]
      %v6900 = vld [vmem:[#allocation2 + $0x6c] sm:$0xf]
      %v6901 = vld [vmem:[#allocation2 + $0x70] sm:$0xf]
      %v6902 = vld [vmem:[#allocation2 + $0x78] sm:$0xf]
      %v6903 = vld [vmem:[#allocation2 + $0x7c] sm:$0xf]
      %v6904 = vld [vmem:[#allocation2 + $0x84] sm:$0xf]
      %v6905 = vld [vmem:[#allocation2 + $0x88] sm:$0xf]
      %v6906 = vld [vmem:[#allocation2 + $0x90] sm:$0xf]
      %v6907 = vld [vmem:[#allocation2 + $0x94] sm:$0xf]
      %v6908 = vld [vmem:[#allocation2 + $0x9c] sm:$0xf]
      %v6909 = vld [vmem:[#allocation2 + $0xa0] sm:$0xf]
      %v6910 = vld [vmem:[#allocation2 + $0xa8] sm:$0xf]
      %v6911 = vld [vmem:[#allocation2 + $0xac] sm:$0xf]
      %v6912 = vld [vmem:[#allocation2 + $0xb4] sm:$0xf]
      %v6913 = vld [vmem:[#allocation2 + $0xb8] sm:$0xf]
      %v6915 = vshrl.u32 %v6882, 16
      %v6917 = vrot.slane %v6915, 7
      %v6918 = vshll.u32 %v6882, 16
      %v6920 = vor.u32 %v6917, %v6918
      %v6921 = vrot.slane %v6917, 4
      %v6923 = vshrl.u32 %v6883, 16
      %v6925 = vrot.slane %v6923, 7
      %v6926 = vshll.u32 %v6883, 16
      %v6928 = vor.u32 %v6925, %v6926
      %v6929 = vsel %vm400, %v6921, %v6928
      %v6930 = vrot.slane %v6925, 4
      %v6932 = vshrl.u32 %v6884, 16
      %v6934 = vrot.slane %v6932, 7
      %v6935 = vshll.u32 %v6884, 16
      %v6937 = vor.u32 %v6934, %v6935
      %v6938 = vrot.slane %v6934, 4
      %v6940 = vshrl.u32 %v6885, 16
      %v6942 = vrot.slane %v6940, 7
      %v6943 = vshll.u32 %v6885, 16
      %v6945 = vor.u32 %v6942, %v6943
      %v6946 = vsel %vm400, %v6938, %v6945
      %v6947 = vrot.slane %v6942, 4
      %v6949 = vshrl.u32 %v6886, 16
      %v6951 = vrot.slane %v6949, 7
      %v6952 = vshll.u32 %v6886, 16
      %v6954 = vor.u32 %v6951, %v6952
      %v6955 = vrot.slane %v6951, 4
      %v6957 = vshrl.u32 %v6887, 16
      %v6959 = vrot.slane %v6957, 7
      %v6960 = vshll.u32 %v6887, 16
      %v6962 = vor.u32 %v6959, %v6960
      %v6963 = vsel %vm400, %v6955, %v6962
      %v6964 = vrot.slane %v6959, 4
      %v6966 = vshrl.u32 %v6888, 16
      %v6968 = vrot.slane %v6966, 7
      %v6969 = vshll.u32 %v6888, 16
      %v6971 = vor.u32 %v6968, %v6969
      %v6972 = vrot.slane %v6968, 4
      %v6974 = vshrl.u32 %v6889, 16
      %v6976 = vrot.slane %v6974, 7
      %v6977 = vshll.u32 %v6889, 16
      %v6979 = vor.u32 %v6976, %v6977
      %v6980 = vsel %vm400, %v6972, %v6979
      %v6981 = vrot.slane %v6976, 4
      %v6983 = vshrl.u32 %v6890, 16
      %v6985 = vrot.slane %v6983, 7
      %v6986 = vshll.u32 %v6890, 16
      %v6988 = vor.u32 %v6985, %v6986
      %v6989 = vrot.slane %v6985, 4
      %v6991 = vshrl.u32 %v6891, 16
      %v6993 = vrot.slane %v6991, 7
      %v6994 = vshll.u32 %v6891, 16
      %v6996 = vor.u32 %v6993, %v6994
      %v6997 = vsel %vm400, %v6989, %v6996
      %v6998 = vrot.slane %v6993, 4
      %v7000 = vshrl.u32 %v6892, 16
      %v7002 = vrot.slane %v7000, 7
      %v7003 = vshll.u32 %v6892, 16
      %v7005 = vor.u32 %v7002, %v7003
      %v7006 = vrot.slane %v7002, 4
      %v7008 = vshrl.u32 %v6893, 16
      %v7010 = vrot.slane %v7008, 7
      %v7011 = vshll.u32 %v6893, 16
      %v7013 = vor.u32 %v7010, %v7011
      %v7014 = vsel %vm400, %v7006, %v7013
      %v7015 = vrot.slane %v7010, 4
      %v7017 = vshrl.u32 %v6894, 16
      %v7019 = vrot.slane %v7017, 7
      %v7020 = vshll.u32 %v6894, 16
      %v7022 = vor.u32 %v7019, %v7020
      %v7023 = vrot.slane %v7019, 4
      %v7025 = vshrl.u32 %v6895, 16
      %v7027 = vrot.slane %v7025, 7
      %v7028 = vshll.u32 %v6895, 16
      %v7030 = vor.u32 %v7027, %v7028
      %v7031 = vsel %vm400, %v7023, %v7030
      %v7032 = vrot.slane %v7027, 4
      %v7034 = vshrl.u32 %v6896, 16
      %v7036 = vrot.slane %v7034, 7
      %v7037 = vshll.u32 %v6896, 16
      %v7039 = vor.u32 %v7036, %v7037
      %v7040 = vrot.slane %v7036, 4
      %v7042 = vshrl.u32 %v6897, 16
      %v7044 = vrot.slane %v7042, 7
      %v7045 = vshll.u32 %v6897, 16
      %v7047 = vor.u32 %v7044, %v7045
      %v7048 = vsel %vm400, %v7040, %v7047
      %v7049 = vrot.slane %v7044, 4
      %v7051 = vshrl.u32 %v6898, 16
      %v7053 = vrot.slane %v7051, 7
      %v7054 = vshll.u32 %v6898, 16
      %v7056 = vor.u32 %v7053, %v7054
      %v7057 = vrot.slane %v7053, 4
      %v7059 = vshrl.u32 %v6899, 16
      %v7061 = vrot.slane %v7059, 7
      %v7062 = vshll.u32 %v6899, 16
      %v7064 = vor.u32 %v7061, %v7062
      %v7065 = vsel %vm400, %v7057, %v7064
      %v7066 = vrot.slane %v7061, 4
      %v7068 = vshrl.u32 %v6900, 16
      %v7070 = vrot.slane %v7068, 7
      %v7071 = vshll.u32 %v6900, 16
      %v7073 = vor.u32 %v7070, %v7071
      %v7074 = vrot.slane %v7070, 4
      %v7076 = vshrl.u32 %v6901, 16
      %v7078 = vrot.slane %v7076, 7
      %v7079 = vshll.u32 %v6901, 16
      %v7081 = vor.u32 %v7078, %v7079
      %v7082 = vsel %vm400, %v7074, %v7081
      %v7083 = vrot.slane %v7078, 4
      %v7085 = vshrl.u32 %v6902, 16
      %v7087 = vrot.slane %v7085, 7
      %v7088 = vshll.u32 %v6902, 16
      %v7090 = vor.u32 %v7087, %v7088
      %v7091 = vrot.slane %v7087, 4
      %v7093 = vshrl.u32 %v6903, 16
      %v7095 = vrot.slane %v7093, 7
      %v7096 = vshll.u32 %v6903, 16
      %v7098 = vor.u32 %v7095, %v7096
      %v7099 = vsel %vm400, %v7091, %v7098
      %v7100 = vrot.slane %v7095, 4
      %v7102 = vshrl.u32 %v6904, 16
      %v7104 = vrot.slane %v7102, 7
      %v7105 = vshll.u32 %v6904, 16
      %v7107 = vor.u32 %v7104, %v7105
      %v7108 = vrot.slane %v7104, 4
      %v7110 = vshrl.u32 %v6905, 16
      %v7112 = vrot.slane %v7110, 7
      %v7113 = vshll.u32 %v6905, 16
      %v7115 = vor.u32 %v7112, %v7113
      %v7116 = vsel %vm400, %v7108, %v7115
      %v7117 = vrot.slane %v7112, 4
      %v7119 = vshrl.u32 %v6906, 16
      %v7121 = vrot.slane %v7119, 7
      %v7122 = vshll.u32 %v6906, 16
      %v7124 = vor.u32 %v7121, %v7122
      %v7125 = vrot.slane %v7121, 4
      %v7127 = vshrl.u32 %v6907, 16
      %v7129 = vrot.slane %v7127, 7
      %v7130 = vshll.u32 %v6907, 16
      %v7132 = vor.u32 %v7129, %v7130
      %v7133 = vsel %vm400, %v7125, %v7132
      %v7134 = vrot.slane %v7129, 4
      %v7136 = vshrl.u32 %v6908, 16
      %v7138 = vrot.slane %v7136, 7
      %v7139 = vshll.u32 %v6908, 16
      %v7141 = vor.u32 %v7138, %v7139
      %v7142 = vrot.slane %v7138, 4
      %v7144 = vshrl.u32 %v6909, 16
      %v7146 = vrot.slane %v7144, 7
      %v7147 = vshll.u32 %v6909, 16
      %v7149 = vor.u32 %v7146, %v7147
      %v7150 = vsel %vm400, %v7142, %v7149
      %v7151 = vrot.slane %v7146, 4
      %v7153 = vshrl.u32 %v6910, 16
      %v7155 = vrot.slane %v7153, 7
      %v7156 = vshll.u32 %v6910, 16
      %v7158 = vor.u32 %v7155, %v7156
      %v7159 = vrot.slane %v7155, 4
      %v7161 = vshrl.u32 %v6911, 16
      %v7163 = vrot.slane %v7161, 7
      %v7164 = vshll.u32 %v6911, 16
      %v7166 = vor.u32 %v7163, %v7164
      %v7167 = vsel %vm400, %v7159, %v7166
      %v7168 = vrot.slane %v7163, 4
      %v7170 = vshrl.u32 %v6912, 16
      %v7172 = vrot.slane %v7170, 7
      %v7173 = vshll.u32 %v6912, 16
      %v7175 = vor.u32 %v7172, %v7173
      %v7176 = vrot.slane %v7172, 4
      %v7178 = vshrl.u32 %v6913, 16
      %v7180 = vrot.slane %v7178, 7
      %v7181 = vshll.u32 %v6913, 16
      %v7183 = vor.u32 %v7180, %v7181
      %v7184 = vsel %vm400, %v7176, %v7183
      %v7185 = vrot.slane %v7180, 4
      %v7234 = vmax.bf16 %v6834, %v6920
      %v7235 = vmax.bf16 %v6835, %v6929
      %v7236 = vmax.bf16 %v6836, %v6930
      %v7237 = vmax.bf16 %v6837, %v6937
      %v7238 = vmax.bf16 %v6838, %v6946
      %v7239 = vmax.bf16 %v6839, %v6947
      %v7240 = vmax.bf16 %v6840, %v6954
      %v7241 = vmax.bf16 %v6841, %v6963
      %v7242 = vmax.bf16 %v6842, %v6964
      %v7243 = vmax.bf16 %v6843, %v6971
      %v7244 = vmax.bf16 %v6844, %v6980
      %v7245 = vmax.bf16 %v6845, %v6981
      %v7246 = vmax.bf16 %v6846, %v6988
      %v7247 = vmax.bf16 %v6847, %v6997
      %v7248 = vmax.bf16 %v6848, %v6998
      %v7249 = vmax.bf16 %v6849, %v7005
      %v7250 = vmax.bf16 %v6850, %v7014
      %v7251 = vmax.bf16 %v6851, %v7015
      %v7252 = vmax.bf16 %v6852, %v7022
      %v7253 = vmax.bf16 %v6853, %v7031
      %v7254 = vmax.bf16 %v6854, %v7032
      %v7255 = vmax.bf16 %v6855, %v7039
      %v7256 = vmax.bf16 %v6856, %v7048
      %v7257 = vmax.bf16 %v6857, %v7049
      %v7258 = vmax.bf16 %v6858, %v7056
      %v7259 = vmax.bf16 %v6859, %v7065
      %v7260 = vmax.bf16 %v6860, %v7066
      %v7261 = vmax.bf16 %v6861, %v7073
      %v7262 = vmax.bf16 %v6862, %v7082
      %v7263 = vmax.bf16 %v6863, %v7083
      %v7264 = vmax.bf16 %v6864, %v7090
      %v7265 = vmax.bf16 %v6865, %v7099
      %v7266 = vmax.bf16 %v6866, %v7100
      %v7267 = vmax.bf16 %v6867, %v7107
      %v7268 = vmax.bf16 %v6868, %v7116
      %v7269 = vmax.bf16 %v6869, %v7117
      %v7270 = vmax.bf16 %v6870, %v7124
      %v7271 = vmax.bf16 %v6871, %v7133
      %v7272 = vmax.bf16 %v6872, %v7134
      %v7273 = vmax.bf16 %v6873, %v7141
      %v7274 = vmax.bf16 %v6874, %v7150
      %v7275 = vmax.bf16 %v6875, %v7151
      %v7276 = vmax.bf16 %v6876, %v7158
      %v7277 = vmax.bf16 %v6877, %v7167
      %v7278 = vmax.bf16 %v6878, %v7168
      %v7279 = vmax.bf16 %v6879, %v7175
      %v7280 = vmax.bf16 %v6880, %v7184
      %v7281 = vmax.bf16 %v6881, %v7185
      %v7282 = vld [vmem:[#allocation2 + $0x8] sm:$0x1]
      %v7283 = vld [vmem:[#allocation2 + $0x14] sm:$0x1]
      %v7284 = vld [vmem:[#allocation2 + $0x20] sm:$0x1]
      %v7285 = vld [vmem:[#allocation2 + $0x2c] sm:$0x1]
      %v7286 = vld [vmem:[#allocation2 + $0x38] sm:$0x1]
      %v7287 = vld [vmem:[#allocation2 + $0x44] sm:$0x1]
      %v7288 = vld [vmem:[#allocation2 + $0x50] sm:$0x1]
      %v7289 = vld [vmem:[#allocation2 + $0x5c] sm:$0x1]
      %v7290 = vld [vmem:[#allocation2 + $0x68] sm:$0x1]
      %v7291 = vld [vmem:[#allocation2 + $0x74] sm:$0x1]
      %v7292 = vld [vmem:[#allocation2 + $0x80] sm:$0x1]
      %v7293 = vld [vmem:[#allocation2 + $0x8c] sm:$0x1]
      %v7294 = vld [vmem:[#allocation2 + $0x98] sm:$0x1]
      %v7295 = vld [vmem:[#allocation2 + $0xa4] sm:$0x1]
      %v7296 = vld [vmem:[#allocation2 + $0xb0] sm:$0x1]
      %v7297 = vld [vmem:[#allocation2 + $0xbc] sm:$0x1]
      %v7298 = vmax.bf16 %v7234, %v6882
      %v7299 = vmax.bf16 %v7235, %v6883
      %v7300 = vmax.bf16 %v7236, %v7282
      %v7301 = vmax.bf16 %v7237, %v6884
      %v7302 = vmax.bf16 %v7238, %v6885
      %v7303 = vmax.bf16 %v7239, %v7283
      %v7304 = vmax.bf16 %v7240, %v6886
      %v7305 = vmax.bf16 %v7241, %v6887
      %v7306 = vmax.bf16 %v7242, %v7284
      %v7307 = vmax.bf16 %v7243, %v6888
      %v7308 = vmax.bf16 %v7244, %v6889
      %v7309 = vmax.bf16 %v7245, %v7285
      %v7310 = vmax.bf16 %v7246, %v6890
      %v7311 = vmax.bf16 %v7247, %v6891
      %v7312 = vmax.bf16 %v7248, %v7286
      %v7313 = vmax.bf16 %v7249, %v6892
      %v7314 = vmax.bf16 %v7250, %v6893
      %v7315 = vmax.bf16 %v7251, %v7287
      %v7316 = vmax.bf16 %v7252, %v6894
      %v7317 = vmax.bf16 %v7253, %v6895
      %v7318 = vmax.bf16 %v7254, %v7288
      %v7319 = vmax.bf16 %v7255, %v6896
      %v7320 = vmax.bf16 %v7256, %v6897
      %v7321 = vmax.bf16 %v7257, %v7289
      %v7322 = vmax.bf16 %v7258, %v6898
      %v7323 = vmax.bf16 %v7259, %v6899
      %v7324 = vmax.bf16 %v7260, %v7290
      %v7325 = vmax.bf16 %v7261, %v6900
      %v7326 = vmax.bf16 %v7262, %v6901
      %v7327 = vmax.bf16 %v7263, %v7291
      %v7328 = vmax.bf16 %v7264, %v6902
      %v7329 = vmax.bf16 %v7265, %v6903
      %v7330 = vmax.bf16 %v7266, %v7292
      %v7331 = vmax.bf16 %v7267, %v6904
      %v7332 = vmax.bf16 %v7268, %v6905
      %v7333 = vmax.bf16 %v7269, %v7293
      %v7334 = vmax.bf16 %v7270, %v6906
      %v7335 = vmax.bf16 %v7271, %v6907
      %v7336 = vmax.bf16 %v7272, %v7294
      %v7337 = vmax.bf16 %v7273, %v6908
      %v7338 = vmax.bf16 %v7274, %v6909
      %v7339 = vmax.bf16 %v7275, %v7295
      %v7340 = vmax.bf16 %v7276, %v6910
      %v7341 = vmax.bf16 %v7277, %v6911
      %v7342 = vmax.bf16 %v7278, %v7296
      %v7343 = vmax.bf16 %v7279, %v6912
      %v7344 = vmax.bf16 %v7280, %v6913
      %v7345 = vmax.bf16 %v7281, %v7297
      %v7346 = vld [vmem:[#allocation2] sm:$0xe]
      %v7347 = vld [vmem:[#allocation2 + $0xc] sm:$0xe]
      %v7348 = vld [vmem:[#allocation2 + $0x18] sm:$0xe]
      %v7349 = vld [vmem:[#allocation2 + $0x24] sm:$0xe]
      %v7350 = vld [vmem:[#allocation2 + $0x30] sm:$0xe]
      %v7351 = vld [vmem:[#allocation2 + $0x3c] sm:$0xe]
      %v7352 = vld [vmem:[#allocation2 + $0x48] sm:$0xe]
      %v7353 = vld [vmem:[#allocation2 + $0x54] sm:$0xe]
      %v7354 = vld [vmem:[#allocation2 + $0x60] sm:$0xe]
      %v7355 = vld [vmem:[#allocation2 + $0x6c] sm:$0xe]
      %v7356 = vld [vmem:[#allocation2 + $0x78] sm:$0xe]
      %v7357 = vld [vmem:[#allocation2 + $0x84] sm:$0xe]
      %v7358 = vld [vmem:[#allocation2 + $0x90] sm:$0xe]
      %v7359 = vld [vmem:[#allocation2 + $0x9c] sm:$0xe]
      %v7360 = vld [vmem:[#allocation2 + $0xa8] sm:$0xe]
      %v7361 = vld [vmem:[#allocation2 + $0xb4] sm:$0xe]
      %v7363 = vshrl.u32 %v7346, 16
      %v7365 = vrot.slane %v7363, 4
      %v7366 = vshll.u32 %v7346, 16
      %v7368 = vrot.slane %v7366, 5
      %v7369 = vor.u32 %v7365, %v7368
      %v7370 = vrot.slane %v7369, 4
      %v7371 = vrot.slane %v6926, 5
      %v7372 = vsel %vm1988, %v7370, %v7371
      %v7373 = vrot.slane %v6923, 4
      %v7374 = vor.u32 %v7373, %v7371
      %v7375 = vrot.slane %v7374, 4
      %v7377 = vshll.u32 %v7282, 16
      %v7379 = vrot.slane %v7377, 5
      %v7380 = vsel %vm1988, %v7375, %v7379
      %v7381 = vshrl.u32 %v7282, 16
      %v7383 = vrot.slane %v7381, 4
      %v7384 = vrot.slane %v7383, 4
      %v7386 = vshrl.u32 %v7347, 16
      %v7388 = vrot.slane %v7386, 4
      %v7389 = vshll.u32 %v7347, 16
      %v7391 = vrot.slane %v7389, 5
      %v7392 = vor.u32 %v7388, %v7391
      %v7393 = vrot.slane %v7392, 4
      %v7394 = vrot.slane %v6943, 5
      %v7395 = vsel %vm1988, %v7393, %v7394
      %v7396 = vrot.slane %v6940, 4
      %v7397 = vor.u32 %v7396, %v7394
      %v7398 = vrot.slane %v7397, 4
      %v7400 = vshll.u32 %v7283, 16
      %v7402 = vrot.slane %v7400, 5
      %v7403 = vsel %vm1988, %v7398, %v7402
      %v7404 = vshrl.u32 %v7283, 16
      %v7406 = vrot.slane %v7404, 4
      %v7407 = vrot.slane %v7406, 4
      %v7409 = vshrl.u32 %v7348, 16
      %v7411 = vrot.slane %v7409, 4
      %v7412 = vshll.u32 %v7348, 16
      %v7414 = vrot.slane %v7412, 5
      %v7415 = vor.u32 %v7411, %v7414
      %v7416 = vrot.slane %v7415, 4
      %v7417 = vrot.slane %v6960, 5
      %v7418 = vsel %vm1988, %v7416, %v7417
      %v7419 = vrot.slane %v6957, 4
      %v7420 = vor.u32 %v7419, %v7417
      %v7421 = vrot.slane %v7420, 4
      %v7423 = vshll.u32 %v7284, 16
      %v7425 = vrot.slane %v7423, 5
      %v7426 = vsel %vm1988, %v7421, %v7425
      %v7427 = vshrl.u32 %v7284, 16
      %v7429 = vrot.slane %v7427, 4
      %v7430 = vrot.slane %v7429, 4
      %v7432 = vshrl.u32 %v7349, 16
      %v7434 = vrot.slane %v7432, 4
      %v7435 = vshll.u32 %v7349, 16
      %v7437 = vrot.slane %v7435, 5
      %v7438 = vor.u32 %v7434, %v7437
      %v7439 = vrot.slane %v7438, 4
      %v7440 = vrot.slane %v6977, 5
      %v7441 = vsel %vm1988, %v7439, %v7440
      %v7442 = vrot.slane %v6974, 4
      %v7443 = vor.u32 %v7442, %v7440
      %v7444 = vrot.slane %v7443, 4
      %v7446 = vshll.u32 %v7285, 16
      %v7448 = vrot.slane %v7446, 5
      %v7449 = vsel %vm1988, %v7444, %v7448
      %v7450 = vshrl.u32 %v7285, 16
      %v7452 = vrot.slane %v7450, 4
      %v7453 = vrot.slane %v7452, 4
      %v7455 = vshrl.u32 %v7350, 16
      %v7457 = vrot.slane %v7455, 4
      %v7458 = vshll.u32 %v7350, 16
      %v7460 = vrot.slane %v7458, 5
      %v7461 = vor.u32 %v7457, %v7460
      %v7462 = vrot.slane %v7461, 4
      %v7463 = vrot.slane %v6994, 5
      %v7464 = vsel %vm1988, %v7462, %v7463
      %v7465 = vrot.slane %v6991, 4
      %v7466 = vor.u32 %v7465, %v7463
      %v7467 = vrot.slane %v7466, 4
      %v7469 = vshll.u32 %v7286, 16
      %v7471 = vrot.slane %v7469, 5
      %v7472 = vsel %vm1988, %v7467, %v7471
      %v7473 = vshrl.u32 %v7286, 16
      %v7475 = vrot.slane %v7473, 4
      %v7476 = vrot.slane %v7475, 4
      %v7478 = vshrl.u32 %v7351, 16
      %v7480 = vrot.slane %v7478, 4
      %v7481 = vshll.u32 %v7351, 16
      %v7483 = vrot.slane %v7481, 5
      %v7484 = vor.u32 %v7480, %v7483
      %v7485 = vrot.slane %v7484, 4
      %v7486 = vrot.slane %v7011, 5
      %v7487 = vsel %vm1988, %v7485, %v7486
      %v7488 = vrot.slane %v7008, 4
      %v7489 = vor.u32 %v7488, %v7486
      %v7490 = vrot.slane %v7489, 4
      %v7492 = vshll.u32 %v7287, 16
      %v7494 = vrot.slane %v7492, 5
      %v7495 = vsel %vm1988, %v7490, %v7494
      %v7496 = vshrl.u32 %v7287, 16
      %v7498 = vrot.slane %v7496, 4
      %v7499 = vrot.slane %v7498, 4
      %v7501 = vshrl.u32 %v7352, 16
      %v7503 = vrot.slane %v7501, 4
      %v7504 = vshll.u32 %v7352, 16
      %v7506 = vrot.slane %v7504, 5
      %v7507 = vor.u32 %v7503, %v7506
      %v7508 = vrot.slane %v7507, 4
      %v7509 = vrot.slane %v7028, 5
      %v7510 = vsel %vm1988, %v7508, %v7509
      %v7511 = vrot.slane %v7025, 4
      %v7512 = vor.u32 %v7511, %v7509
      %v7513 = vrot.slane %v7512, 4
      %v7515 = vshll.u32 %v7288, 16
      %v7517 = vrot.slane %v7515, 5
      %v7518 = vsel %vm1988, %v7513, %v7517
      %v7519 = vshrl.u32 %v7288, 16
      %v7521 = vrot.slane %v7519, 4
      %v7522 = vrot.slane %v7521, 4
      %v7524 = vshrl.u32 %v7353, 16
      %v7526 = vrot.slane %v7524, 4
      %v7527 = vshll.u32 %v7353, 16
      %v7529 = vrot.slane %v7527, 5
      %v7530 = vor.u32 %v7526, %v7529
      %v7531 = vrot.slane %v7530, 4
      %v7532 = vrot.slane %v7045, 5
      %v7533 = vsel %vm1988, %v7531, %v7532
      %v7534 = vrot.slane %v7042, 4
      %v7535 = vor.u32 %v7534, %v7532
      %v7536 = vrot.slane %v7535, 4
      %v7538 = vshll.u32 %v7289, 16
      %v7540 = vrot.slane %v7538, 5
      %v7541 = vsel %vm1988, %v7536, %v7540
      %v7542 = vshrl.u32 %v7289, 16
      %v7544 = vrot.slane %v7542, 4
      %v7545 = vrot.slane %v7544, 4
      %v7547 = vshrl.u32 %v7354, 16
      %v7549 = vrot.slane %v7547, 4
      %v7550 = vshll.u32 %v7354, 16
      %v7552 = vrot.slane %v7550, 5
      %v7553 = vor.u32 %v7549, %v7552
      %v7554 = vrot.slane %v7553, 4
      %v7555 = vrot.slane %v7062, 5
      %v7556 = vsel %vm1988, %v7554, %v7555
      %v7557 = vrot.slane %v7059, 4
      %v7558 = vor.u32 %v7557, %v7555
      %v7559 = vrot.slane %v7558, 4
      %v7561 = vshll.u32 %v7290, 16
      %v7563 = vrot.slane %v7561, 5
      %v7564 = vsel %vm1988, %v7559, %v7563
      %v7565 = vshrl.u32 %v7290, 16
      %v7567 = vrot.slane %v7565, 4
      %v7568 = vrot.slane %v7567, 4
      %v7570 = vshrl.u32 %v7355, 16
      %v7572 = vrot.slane %v7570, 4
      %v7573 = vshll.u32 %v7355, 16
      %v7575 = vrot.slane %v7573, 5
      %v7576 = vor.u32 %v7572, %v7575
      %v7577 = vrot.slane %v7576, 4
      %v7578 = vrot.slane %v7079, 5
      %v7579 = vsel %vm1988, %v7577, %v7578
      %v7580 = vrot.slane %v7076, 4
      %v7581 = vor.u32 %v7580, %v7578
      %v7582 = vrot.slane %v7581, 4
      %v7584 = vshll.u32 %v7291, 16
      %v7586 = vrot.slane %v7584, 5
      %v7587 = vsel %vm1988, %v7582, %v7586
      %v7588 = vshrl.u32 %v7291, 16
      %v7590 = vrot.slane %v7588, 4
      %v7591 = vrot.slane %v7590, 4
      %v7593 = vshrl.u32 %v7356, 16
      %v7595 = vrot.slane %v7593, 4
      %v7596 = vshll.u32 %v7356, 16
      %v7598 = vrot.slane %v7596, 5
      %v7599 = vor.u32 %v7595, %v7598
      %v7600 = vrot.slane %v7599, 4
      %v7601 = vrot.slane %v7096, 5
      %v7602 = vsel %vm1988, %v7600, %v7601
      %v7603 = vrot.slane %v7093, 4
      %v7604 = vor.u32 %v7603, %v7601
      %v7605 = vrot.slane %v7604, 4
      %v7607 = vshll.u32 %v7292, 16
      %v7609 = vrot.slane %v7607, 5
      %v7610 = vsel %vm1988, %v7605, %v7609
      %v7611 = vshrl.u32 %v7292, 16
      %v7613 = vrot.slane %v7611, 4
      %v7614 = vrot.slane %v7613, 4
      %v7616 = vshrl.u32 %v7357, 16
      %v7618 = vrot.slane %v7616, 4
      %v7619 = vshll.u32 %v7357, 16
      %v7621 = vrot.slane %v7619, 5
      %v7622 = vor.u32 %v7618, %v7621
      %v7623 = vrot.slane %v7622, 4
      %v7624 = vrot.slane %v7113, 5
      %v7625 = vsel %vm1988, %v7623, %v7624
      %v7626 = vrot.slane %v7110, 4
      %v7627 = vor.u32 %v7626, %v7624
      %v7628 = vrot.slane %v7627, 4
      %v7630 = vshll.u32 %v7293, 16
      %v7632 = vrot.slane %v7630, 5
      %v7633 = vsel %vm1988, %v7628, %v7632
      %v7634 = vshrl.u32 %v7293, 16
      %v7636 = vrot.slane %v7634, 4
      %v7637 = vrot.slane %v7636, 4
      %v7639 = vshrl.u32 %v7358, 16
      %v7641 = vrot.slane %v7639, 4
      %v7642 = vshll.u32 %v7358, 16
      %v7644 = vrot.slane %v7642, 5
      %v7645 = vor.u32 %v7641, %v7644
      %v7646 = vrot.slane %v7645, 4
      %v7647 = vrot.slane %v7130, 5
      %v7648 = vsel %vm1988, %v7646, %v7647
      %v7649 = vrot.slane %v7127, 4
      %v7650 = vor.u32 %v7649, %v7647
      %v7651 = vrot.slane %v7650, 4
      %v7653 = vshll.u32 %v7294, 16
      %v7655 = vrot.slane %v7653, 5
      %v7656 = vsel %vm1988, %v7651, %v7655
      %v7657 = vshrl.u32 %v7294, 16
      %v7659 = vrot.slane %v7657, 4
      %v7660 = vrot.slane %v7659, 4
      %v7662 = vshrl.u32 %v7359, 16
      %v7664 = vrot.slane %v7662, 4
      %v7665 = vshll.u32 %v7359, 16
      %v7667 = vrot.slane %v7665, 5
      %v7668 = vor.u32 %v7664, %v7667
      %v7669 = vrot.slane %v7668, 4
      %v7670 = vrot.slane %v7147, 5
      %v7671 = vsel %vm1988, %v7669, %v7670
      %v7672 = vrot.slane %v7144, 4
      %v7673 = vor.u32 %v7672, %v7670
      %v7674 = vrot.slane %v7673, 4
      %v7676 = vshll.u32 %v7295, 16
      %v7678 = vrot.slane %v7676, 5
      %v7679 = vsel %vm1988, %v7674, %v7678
      %v7680 = vshrl.u32 %v7295, 16
      %v7682 = vrot.slane %v7680, 4
      %v7683 = vrot.slane %v7682, 4
      %v7685 = vshrl.u32 %v7360, 16
      %v7687 = vrot.slane %v7685, 4
      %v7688 = vshll.u32 %v7360, 16
      %v7690 = vrot.slane %v7688, 5
      %v7691 = vor.u32 %v7687, %v7690
      %v7692 = vrot.slane %v7691, 4
      %v7693 = vrot.slane %v7164, 5
      %v7694 = vsel %vm1988, %v7692, %v7693
      %v7695 = vrot.slane %v7161, 4
      %v7696 = vor.u32 %v7695, %v7693
      %v7697 = vrot.slane %v7696, 4
      %v7699 = vshll.u32 %v7296, 16
      %v7701 = vrot.slane %v7699, 5
      %v7702 = vsel %vm1988, %v7697, %v7701
      %v7703 = vshrl.u32 %v7296, 16
      %v7705 = vrot.slane %v7703, 4
      %v7706 = vrot.slane %v7705, 4
      %v7708 = vshrl.u32 %v7361, 16
      %v7710 = vrot.slane %v7708, 4
      %v7711 = vshll.u32 %v7361, 16
      %v7713 = vrot.slane %v7711, 5
      %v7714 = vor.u32 %v7710, %v7713
      %v7715 = vrot.slane %v7714, 4
      %v7716 = vrot.slane %v7181, 5
      %v7717 = vsel %vm1988, %v7715, %v7716
      %v7718 = vrot.slane %v7178, 4
      %v7719 = vor.u32 %v7718, %v7716
      %v7720 = vrot.slane %v7719, 4
      %v7722 = vshll.u32 %v7297, 16
      %v7724 = vrot.slane %v7722, 5
      %v7725 = vsel %vm1988, %v7720, %v7724
      %v7726 = vshrl.u32 %v7297, 16
      %v7728 = vrot.slane %v7726, 4
      %v7729 = vrot.slane %v7728, 4
      %v7778 = vmax.bf16 %v7298, %v7372
      %v7779 = vmax.bf16 %v7299, %v7380
      %v7780 = vmax.bf16 %v7300, %v7384
      %v7781 = vmax.bf16 %v7301, %v7395
      %v7782 = vmax.bf16 %v7302, %v7403
      %v7783 = vmax.bf16 %v7303, %v7407
      %v7784 = vmax.bf16 %v7304, %v7418
      %v7785 = vmax.bf16 %v7305, %v7426
      %v7786 = vmax.bf16 %v7306, %v7430
      %v7787 = vmax.bf16 %v7307, %v7441
      %v7788 = vmax.bf16 %v7308, %v7449
      %v7789 = vmax.bf16 %v7309, %v7453
      %v7790 = vmax.bf16 %v7310, %v7464
      %v7791 = vmax.bf16 %v7311, %v7472
      %v7792 = vmax.bf16 %v7312, %v7476
      %v7793 = vmax.bf16 %v7313, %v7487
      %v7794 = vmax.bf16 %v7314, %v7495
      %v7795 = vmax.bf16 %v7315, %v7499
      %v7796 = vmax.bf16 %v7316, %v7510
      %v7797 = vmax.bf16 %v7317, %v7518
      %v7798 = vmax.bf16 %v7318, %v7522
      %v7799 = vmax.bf16 %v7319, %v7533
      %v7800 = vmax.bf16 %v7320, %v7541
      %v7801 = vmax.bf16 %v7321, %v7545
      %v7802 = vmax.bf16 %v7322, %v7556
      %v7803 = vmax.bf16 %v7323, %v7564
      %v7804 = vmax.bf16 %v7324, %v7568
      %v7805 = vmax.bf16 %v7325, %v7579
      %v7806 = vmax.bf16 %v7326, %v7587
      %v7807 = vmax.bf16 %v7327, %v7591
      %v7808 = vmax.bf16 %v7328, %v7602
      %v7809 = vmax.bf16 %v7329, %v7610
      %v7810 = vmax.bf16 %v7330, %v7614
      %v7811 = vmax.bf16 %v7331, %v7625
      %v7812 = vmax.bf16 %v7332, %v7633
      %v7813 = vmax.bf16 %v7333, %v7637
      %v7814 = vmax.bf16 %v7334, %v7648
      %v7815 = vmax.bf16 %v7335, %v7656
      %v7816 = vmax.bf16 %v7336, %v7660
      %v7817 = vmax.bf16 %v7337, %v7671
      %v7818 = vmax.bf16 %v7338, %v7679
      %v7819 = vmax.bf16 %v7339, %v7683
      %v7820 = vmax.bf16 %v7340, %v7694
      %v7821 = vmax.bf16 %v7341, %v7702
      %v7822 = vmax.bf16 %v7342, %v7706
      %v7823 = vmax.bf16 %v7343, %v7717
      %v7824 = vmax.bf16 %v7344, %v7725
      %v7825 = vmax.bf16 %v7345, %v7729
      %v7827 = vshrl.u32 %v6834, 16
      %v7829 = vrot.slane %v7827, 7
      %v7830 = vshll.u32 %v6834, 16
      %v7832 = vor.u32 %v7829, %v7830
      %v7833 = vrot.slane %v7829, 4
      %v7835 = vshrl.u32 %v6835, 16
      %v7837 = vrot.slane %v7835, 7
      %v7838 = vshll.u32 %v6835, 16
      %v7840 = vor.u32 %v7837, %v7838
      %v7841 = vsel %vm400, %v7833, %v7840
      %v7842 = vrot.slane %v7837, 4
      %v7844 = vshrl.u32 %v6837, 16
      %v7846 = vrot.slane %v7844, 7
      %v7847 = vshll.u32 %v6837, 16
      %v7849 = vor.u32 %v7846, %v7847
      %v7850 = vrot.slane %v7846, 4
      %v7852 = vshrl.u32 %v6838, 16
      %v7854 = vrot.slane %v7852, 7
      %v7855 = vshll.u32 %v6838, 16
      %v7857 = vor.u32 %v7854, %v7855
      %v7858 = vsel %vm400, %v7850, %v7857
      %v7859 = vrot.slane %v7854, 4
      %v7861 = vshrl.u32 %v6840, 16
      %v7863 = vrot.slane %v7861, 7
      %v7864 = vshll.u32 %v6840, 16
      %v7866 = vor.u32 %v7863, %v7864
      %v7867 = vrot.slane %v7863, 4
      %v7869 = vshrl.u32 %v6841, 16
      %v7871 = vrot.slane %v7869, 7
      %v7872 = vshll.u32 %v6841, 16
      %v7874 = vor.u32 %v7871, %v7872
      %v7875 = vsel %vm400, %v7867, %v7874
      %v7876 = vrot.slane %v7871, 4
      %v7878 = vshrl.u32 %v6843, 16
      %v7880 = vrot.slane %v7878, 7
      %v7881 = vshll.u32 %v6843, 16
      %v7883 = vor.u32 %v7880, %v7881
      %v7884 = vrot.slane %v7880, 4
      %v7886 = vshrl.u32 %v6844, 16
      %v7888 = vrot.slane %v7886, 7
      %v7889 = vshll.u32 %v6844, 16
      %v7891 = vor.u32 %v7888, %v7889
      %v7892 = vsel %vm400, %v7884, %v7891
      %v7893 = vrot.slane %v7888, 4
      %v7895 = vshrl.u32 %v6846, 16
      %v7897 = vrot.slane %v7895, 7
      %v7898 = vshll.u32 %v6846, 16
      %v7900 = vor.u32 %v7897, %v7898
      %v7901 = vrot.slane %v7897, 4
      %v7903 = vshrl.u32 %v6847, 16
      %v7905 = vrot.slane %v7903, 7
      %v7906 = vshll.u32 %v6847, 16
      %v7908 = vor.u32 %v7905, %v7906
      %v7909 = vsel %vm400, %v7901, %v7908
      %v7910 = vrot.slane %v7905, 4
      %v7912 = vshrl.u32 %v6849, 16
      %v7914 = vrot.slane %v7912, 7
      %v7915 = vshll.u32 %v6849, 16
      %v7917 = vor.u32 %v7914, %v7915
      %v7918 = vrot.slane %v7914, 4
      %v7920 = vshrl.u32 %v6850, 16
      %v7922 = vrot.slane %v7920, 7
      %v7923 = vshll.u32 %v6850, 16
      %v7925 = vor.u32 %v7922, %v7923
      %v7926 = vsel %vm400, %v7918, %v7925
      %v7927 = vrot.slane %v7922, 4
      %v7929 = vshrl.u32 %v6852, 16
      %v7931 = vrot.slane %v7929, 7
      %v7932 = vshll.u32 %v6852, 16
      %v7934 = vor.u32 %v7931, %v7932
      %v7935 = vrot.slane %v7931, 4
      %v7937 = vshrl.u32 %v6853, 16
      %v7939 = vrot.slane %v7937, 7
      %v7940 = vshll.u32 %v6853, 16
      %v7942 = vor.u32 %v7939, %v7940
      %v7943 = vsel %vm400, %v7935, %v7942
      %v7944 = vrot.slane %v7939, 4
      %v7946 = vshrl.u32 %v6855, 16
      %v7948 = vrot.slane %v7946, 7
      %v7949 = vshll.u32 %v6855, 16
      %v7951 = vor.u32 %v7948, %v7949
      %v7952 = vrot.slane %v7948, 4
      %v7954 = vshrl.u32 %v6856, 16
      %v7956 = vrot.slane %v7954, 7
      %v7957 = vshll.u32 %v6856, 16
      %v7959 = vor.u32 %v7956, %v7957
      %v7960 = vsel %vm400, %v7952, %v7959
      %v7961 = vrot.slane %v7956, 4
      %v7963 = vshrl.u32 %v6858, 16
      %v7965 = vrot.slane %v7963, 7
      %v7966 = vshll.u32 %v6858, 16
      %v7968 = vor.u32 %v7965, %v7966
      %v7969 = vrot.slane %v7965, 4
      %v7971 = vshrl.u32 %v6859, 16
      %v7973 = vrot.slane %v7971, 7
      %v7974 = vshll.u32 %v6859, 16
      %v7976 = vor.u32 %v7973, %v7974
      %v7977 = vsel %vm400, %v7969, %v7976
      %v7978 = vrot.slane %v7973, 4
      %v7980 = vshrl.u32 %v6861, 16
      %v7982 = vrot.slane %v7980, 7
      %v7983 = vshll.u32 %v6861, 16
      %v7985 = vor.u32 %v7982, %v7983
      %v7986 = vrot.slane %v7982, 4
      %v7988 = vshrl.u32 %v6862, 16
      %v7990 = vrot.slane %v7988, 7
      %v7991 = vshll.u32 %v6862, 16
      %v7993 = vor.u32 %v7990, %v7991
      %v7994 = vsel %vm400, %v7986, %v7993
      %v7995 = vrot.slane %v7990, 4
      %v7997 = vshrl.u32 %v6864, 16
      %v7999 = vrot.slane %v7997, 7
      %v8000 = vshll.u32 %v6864, 16
      %v8002 = vor.u32 %v7999, %v8000
      %v8003 = vrot.slane %v7999, 4
      %v8005 = vshrl.u32 %v6865, 16
      %v8007 = vrot.slane %v8005, 7
      %v8008 = vshll.u32 %v6865, 16
      %v8010 = vor.u32 %v8007, %v8008
      %v8011 = vsel %vm400, %v8003, %v8010
      %v8012 = vrot.slane %v8007, 4
      %v8014 = vshrl.u32 %v6867, 16
      %v8016 = vrot.slane %v8014, 7
      %v8017 = vshll.u32 %v6867, 16
      %v8019 = vor.u32 %v8016, %v8017
      %v8020 = vrot.slane %v8016, 4
      %v8022 = vshrl.u32 %v6868, 16
      %v8024 = vrot.slane %v8022, 7
      %v8025 = vshll.u32 %v6868, 16
      %v8027 = vor.u32 %v8024, %v8025
      %v8028 = vsel %vm400, %v8020, %v8027
      %v8029 = vrot.slane %v8024, 4
      %v8031 = vshrl.u32 %v6870, 16
      %v8033 = vrot.slane %v8031, 7
      %v8034 = vshll.u32 %v6870, 16
      %v8036 = vor.u32 %v8033, %v8034
      %v8037 = vrot.slane %v8033, 4
      %v8039 = vshrl.u32 %v6871, 16
      %v8041 = vrot.slane %v8039, 7
      %v8042 = vshll.u32 %v6871, 16
      %v8044 = vor.u32 %v8041, %v8042
      %v8045 = vsel %vm400, %v8037, %v8044
      %v8046 = vrot.slane %v8041, 4
      %v8048 = vshrl.u32 %v6873, 16
      %v8050 = vrot.slane %v8048, 7
      %v8051 = vshll.u32 %v6873, 16
      %v8053 = vor.u32 %v8050, %v8051
      %v8054 = vrot.slane %v8050, 4
      %v8056 = vshrl.u32 %v6874, 16
      %v8058 = vrot.slane %v8056, 7
      %v8059 = vshll.u32 %v6874, 16
      %v8061 = vor.u32 %v8058, %v8059
      %v8062 = vsel %vm400, %v8054, %v8061
      %v8063 = vrot.slane %v8058, 4
      %v8065 = vshrl.u32 %v6876, 16
      %v8067 = vrot.slane %v8065, 7
      %v8068 = vshll.u32 %v6876, 16
      %v8070 = vor.u32 %v8067, %v8068
      %v8071 = vrot.slane %v8067, 4
      %v8073 = vshrl.u32 %v6877, 16
      %v8075 = vrot.slane %v8073, 7
      %v8076 = vshll.u32 %v6877, 16
      %v8078 = vor.u32 %v8075, %v8076
      %v8079 = vsel %vm400, %v8071, %v8078
      %v8080 = vrot.slane %v8075, 4
      %v8082 = vshrl.u32 %v6879, 16
      %v8084 = vrot.slane %v8082, 7
      %v8085 = vshll.u32 %v6879, 16
      %v8087 = vor.u32 %v8084, %v8085
      %v8088 = vrot.slane %v8084, 4
      %v8090 = vshrl.u32 %v6880, 16
      %v8092 = vrot.slane %v8090, 7
      %v8093 = vshll.u32 %v6880, 16
      %v8095 = vor.u32 %v8092, %v8093
      %v8096 = vsel %vm400, %v8088, %v8095
      %v8097 = vrot.slane %v8092, 4
      %v8146 = vmax.bf16 %v7778, %v7832
      %v8147 = vmax.bf16 %v7779, %v7841
      %v8148 = vmax.bf16 %v7780, %v7842
      %v8149 = vmax.bf16 %v7781, %v7849
      %v8150 = vmax.bf16 %v7782, %v7858
      %v8151 = vmax.bf16 %v7783, %v7859
      %v8152 = vmax.bf16 %v7784, %v7866
      %v8153 = vmax.bf16 %v7785, %v7875
      %v8154 = vmax.bf16 %v7786, %v7876
      %v8155 = vmax.bf16 %v7787, %v7883
      %v8156 = vmax.bf16 %v7788, %v7892
      %v8157 = vmax.bf16 %v7789, %v7893
      %v8158 = vmax.bf16 %v7790, %v7900
      %v8159 = vmax.bf16 %v7791, %v7909
      %v8160 = vmax.bf16 %v7792, %v7910
      %v8161 = vmax.bf16 %v7793, %v7917
      %v8162 = vmax.bf16 %v7794, %v7926
      %v8163 = vmax.bf16 %v7795, %v7927
      %v8164 = vmax.bf16 %v7796, %v7934
      %v8165 = vmax.bf16 %v7797, %v7943
      %v8166 = vmax.bf16 %v7798, %v7944
      %v8167 = vmax.bf16 %v7799, %v7951
      %v8168 = vmax.bf16 %v7800, %v7960
      %v8169 = vmax.bf16 %v7801, %v7961
      %v8170 = vmax.bf16 %v7802, %v7968
      %v8171 = vmax.bf16 %v7803, %v7977
      %v8172 = vmax.bf16 %v7804, %v7978
      %v8173 = vmax.bf16 %v7805, %v7985
      %v8174 = vmax.bf16 %v7806, %v7994
      %v8175 = vmax.bf16 %v7807, %v7995
      %v8176 = vmax.bf16 %v7808, %v8002
      %v8177 = vmax.bf16 %v7809, %v8011
      %v8178 = vmax.bf16 %v7810, %v8012
      %v8179 = vmax.bf16 %v7811, %v8019
      %v8180 = vmax.bf16 %v7812, %v8028
      %v8181 = vmax.bf16 %v7813, %v8029
      %v8182 = vmax.bf16 %v7814, %v8036
      %v8183 = vmax.bf16 %v7815, %v8045
      %v8184 = vmax.bf16 %v7816, %v8046
      %v8185 = vmax.bf16 %v7817, %v8053
      %v8186 = vmax.bf16 %v7818, %v8062
      %v8187 = vmax.bf16 %v7819, %v8063
      %v8188 = vmax.bf16 %v7820, %v8070
      %v8189 = vmax.bf16 %v7821, %v8079
      %v8190 = vmax.bf16 %v7822, %v8080
      %v8191 = vmax.bf16 %v7823, %v8087
      %v8192 = vmax.bf16 %v7824, %v8096
      %v8193 = vmax.bf16 %v7825, %v8097
      %v8194 = vld [vmem:[%s721] sm:$0xe]
      %v8195 = vld [vmem:[%s721 + $0xc] sm:$0xe]
      %v8196 = vld [vmem:[%s721 + $0x18] sm:$0xe]
      %v8197 = vld [vmem:[%s721 + $0x24] sm:$0xe]
      %v8198 = vld [vmem:[%s721 + $0x30] sm:$0xe]
      %v8199 = vld [vmem:[%s721 + $0x3c] sm:$0xe]
      %v8200 = vld [vmem:[%s721 + $0x48] sm:$0xe]
      %v8201 = vld [vmem:[%s721 + $0x54] sm:$0xe]
      %v8202 = vld [vmem:[%s721 + $0x60] sm:$0xe]
      %v8203 = vld [vmem:[%s721 + $0x6c] sm:$0xe]
      %v8204 = vld [vmem:[%s721 + $0x78] sm:$0xe]
      %v8205 = vld [vmem:[%s721 + $0x84] sm:$0xe]
      %v8206 = vld [vmem:[%s721 + $0x90] sm:$0xe]
      %v8207 = vld [vmem:[%s721 + $0x9c] sm:$0xe]
      %v8208 = vld [vmem:[%s721 + $0xa8] sm:$0xe]
      %v8209 = vld [vmem:[%s721 + $0xb4] sm:$0xe]
      %v8211 = vshrl.u32 %v8194, 16
      %v8213 = vrot.slane %v8211, 4
      %v8214 = vshll.u32 %v8194, 16
      %v8216 = vrot.slane %v8214, 5
      %v8217 = vor.u32 %v8213, %v8216
      %v8218 = vrot.slane %v8217, 4
      %v8219 = vrot.slane %v7838, 5
      %v8220 = vsel %vm1988, %v8218, %v8219
      %v8221 = vrot.slane %v7835, 4
      %v8222 = vor.u32 %v8221, %v8219
      %v8223 = vrot.slane %v8222, 4
      %v8225 = vshll.u32 %v6836, 16
      %v8227 = vrot.slane %v8225, 5
      %v8228 = vsel %vm1988, %v8223, %v8227
      %v8229 = vshrl.u32 %v6836, 16
      %v8231 = vrot.slane %v8229, 4
      %v8232 = vrot.slane %v8231, 4
      %v8234 = vshrl.u32 %v8195, 16
      %v8236 = vrot.slane %v8234, 4
      %v8237 = vshll.u32 %v8195, 16
      %v8239 = vrot.slane %v8237, 5
      %v8240 = vor.u32 %v8236, %v8239
      %v8241 = vrot.slane %v8240, 4
      %v8242 = vrot.slane %v7855, 5
      %v8243 = vsel %vm1988, %v8241, %v8242
      %v8244 = vrot.slane %v7852, 4
      %v8245 = vor.u32 %v8244, %v8242
      %v8246 = vrot.slane %v8245, 4
      %v8248 = vshll.u32 %v6839, 16
      %v8250 = vrot.slane %v8248, 5
      %v8251 = vsel %vm1988, %v8246, %v8250
      %v8252 = vshrl.u32 %v6839, 16
      %v8254 = vrot.slane %v8252, 4
      %v8255 = vrot.slane %v8254, 4
      %v8257 = vshrl.u32 %v8196, 16
      %v8259 = vrot.slane %v8257, 4
      %v8260 = vshll.u32 %v8196, 16
      %v8262 = vrot.slane %v8260, 5
      %v8263 = vor.u32 %v8259, %v8262
      %v8264 = vrot.slane %v8263, 4
      %v8265 = vrot.slane %v7872, 5
      %v8266 = vsel %vm1988, %v8264, %v8265
      %v8267 = vrot.slane %v7869, 4
      %v8268 = vor.u32 %v8267, %v8265
      %v8269 = vrot.slane %v8268, 4
      %v8271 = vshll.u32 %v6842, 16
      %v8273 = vrot.slane %v8271, 5
      %v8274 = vsel %vm1988, %v8269, %v8273
      %v8275 = vshrl.u32 %v6842, 16
      %v8277 = vrot.slane %v8275, 4
      %v8278 = vrot.slane %v8277, 4
      %v8280 = vshrl.u32 %v8197, 16
      %v8282 = vrot.slane %v8280, 4
      %v8283 = vshll.u32 %v8197, 16
      %v8285 = vrot.slane %v8283, 5
      %v8286 = vor.u32 %v8282, %v8285
      %v8287 = vrot.slane %v8286, 4
      %v8288 = vrot.slane %v7889, 5
      %v8289 = vsel %vm1988, %v8287, %v8288
      %v8290 = vrot.slane %v7886, 4
      %v8291 = vor.u32 %v8290, %v8288
      %v8292 = vrot.slane %v8291, 4
      %v8294 = vshll.u32 %v6845, 16
      %v8296 = vrot.slane %v8294, 5
      %v8297 = vsel %vm1988, %v8292, %v8296
      %v8298 = vshrl.u32 %v6845, 16
      %v8300 = vrot.slane %v8298, 4
      %v8301 = vrot.slane %v8300, 4
      %v8303 = vshrl.u32 %v8198, 16
      %v8305 = vrot.slane %v8303, 4
      %v8306 = vshll.u32 %v8198, 16
      %v8308 = vrot.slane %v8306, 5
      %v8309 = vor.u32 %v8305, %v8308
      %v8310 = vrot.slane %v8309, 4
      %v8311 = vrot.slane %v7906, 5
      %v8312 = vsel %vm1988, %v8310, %v8311
      %v8313 = vrot.slane %v7903, 4
      %v8314 = vor.u32 %v8313, %v8311
      %v8315 = vrot.slane %v8314, 4
      %v8317 = vshll.u32 %v6848, 16
      %v8319 = vrot.slane %v8317, 5
      %v8320 = vsel %vm1988, %v8315, %v8319
      %v8321 = vshrl.u32 %v6848, 16
      %v8323 = vrot.slane %v8321, 4
      %v8324 = vrot.slane %v8323, 4
      %v8326 = vshrl.u32 %v8199, 16
      %v8328 = vrot.slane %v8326, 4
      %v8329 = vshll.u32 %v8199, 16
      %v8331 = vrot.slane %v8329, 5
      %v8332 = vor.u32 %v8328, %v8331
      %v8333 = vrot.slane %v8332, 4
      %v8334 = vrot.slane %v7923, 5
      %v8335 = vsel %vm1988, %v8333, %v8334
      %v8336 = vrot.slane %v7920, 4
      %v8337 = vor.u32 %v8336, %v8334
      %v8338 = vrot.slane %v8337, 4
      %v8340 = vshll.u32 %v6851, 16
      %v8342 = vrot.slane %v8340, 5
      %v8343 = vsel %vm1988, %v8338, %v8342
      %v8344 = vshrl.u32 %v6851, 16
      %v8346 = vrot.slane %v8344, 4
      %v8347 = vrot.slane %v8346, 4
      %v8349 = vshrl.u32 %v8200, 16
      %v8351 = vrot.slane %v8349, 4
      %v8352 = vshll.u32 %v8200, 16
      %v8354 = vrot.slane %v8352, 5
      %v8355 = vor.u32 %v8351, %v8354
      %v8356 = vrot.slane %v8355, 4
      %v8357 = vrot.slane %v7940, 5
      %v8358 = vsel %vm1988, %v8356, %v8357
      %v8359 = vrot.slane %v7937, 4
      %v8360 = vor.u32 %v8359, %v8357
      %v8361 = vrot.slane %v8360, 4
      %v8363 = vshll.u32 %v6854, 16
      %v8365 = vrot.slane %v8363, 5
      %v8366 = vsel %vm1988, %v8361, %v8365
      %v8367 = vshrl.u32 %v6854, 16
      %v8369 = vrot.slane %v8367, 4
      %v8370 = vrot.slane %v8369, 4
      %v8372 = vshrl.u32 %v8201, 16
      %v8374 = vrot.slane %v8372, 4
      %v8375 = vshll.u32 %v8201, 16
      %v8377 = vrot.slane %v8375, 5
      %v8378 = vor.u32 %v8374, %v8377
      %v8379 = vrot.slane %v8378, 4
      %v8380 = vrot.slane %v7957, 5
      %v8381 = vsel %vm1988, %v8379, %v8380
      %v8382 = vrot.slane %v7954, 4
      %v8383 = vor.u32 %v8382, %v8380
      %v8384 = vrot.slane %v8383, 4
      %v8386 = vshll.u32 %v6857, 16
      %v8388 = vrot.slane %v8386, 5
      %v8389 = vsel %vm1988, %v8384, %v8388
      %v8390 = vshrl.u32 %v6857, 16
      %v8392 = vrot.slane %v8390, 4
      %v8393 = vrot.slane %v8392, 4
      %v8395 = vshrl.u32 %v8202, 16
      %v8397 = vrot.slane %v8395, 4
      %v8398 = vshll.u32 %v8202, 16
      %v8400 = vrot.slane %v8398, 5
      %v8401 = vor.u32 %v8397, %v8400
      %v8402 = vrot.slane %v8401, 4
      %v8403 = vrot.slane %v7974, 5
      %v8404 = vsel %vm1988, %v8402, %v8403
      %v8405 = vrot.slane %v7971, 4
      %v8406 = vor.u32 %v8405, %v8403
      %v8407 = vrot.slane %v8406, 4
      %v8409 = vshll.u32 %v6860, 16
      %v8411 = vrot.slane %v8409, 5
      %v8412 = vsel %vm1988, %v8407, %v8411
      %v8413 = vshrl.u32 %v6860, 16
      %v8415 = vrot.slane %v8413, 4
      %v8416 = vrot.slane %v8415, 4
      %v8418 = vshrl.u32 %v8203, 16
      %v8420 = vrot.slane %v8418, 4
      %v8421 = vshll.u32 %v8203, 16
      %v8423 = vrot.slane %v8421, 5
      %v8424 = vor.u32 %v8420, %v8423
      %v8425 = vrot.slane %v8424, 4
      %v8426 = vrot.slane %v7991, 5
      %v8427 = vsel %vm1988, %v8425, %v8426
      %v8428 = vrot.slane %v7988, 4
      %v8429 = vor.u32 %v8428, %v8426
      %v8430 = vrot.slane %v8429, 4
      %v8432 = vshll.u32 %v6863, 16
      %v8434 = vrot.slane %v8432, 5
      %v8435 = vsel %vm1988, %v8430, %v8434
      %v8436 = vshrl.u32 %v6863, 16
      %v8438 = vrot.slane %v8436, 4
      %v8439 = vrot.slane %v8438, 4
      %v8441 = vshrl.u32 %v8204, 16
      %v8443 = vrot.slane %v8441, 4
      %v8444 = vshll.u32 %v8204, 16
      %v8446 = vrot.slane %v8444, 5
      %v8447 = vor.u32 %v8443, %v8446
      %v8448 = vrot.slane %v8447, 4
      %v8449 = vrot.slane %v8008, 5
      %v8450 = vsel %vm1988, %v8448, %v8449
      %v8451 = vrot.slane %v8005, 4
      %v8452 = vor.u32 %v8451, %v8449
      %v8453 = vrot.slane %v8452, 4
      %v8455 = vshll.u32 %v6866, 16
      %v8457 = vrot.slane %v8455, 5
      %v8458 = vsel %vm1988, %v8453, %v8457
      %v8459 = vshrl.u32 %v6866, 16
      %v8461 = vrot.slane %v8459, 4
      %v8462 = vrot.slane %v8461, 4
      %v8464 = vshrl.u32 %v8205, 16
      %v8466 = vrot.slane %v8464, 4
      %v8467 = vshll.u32 %v8205, 16
      %v8469 = vrot.slane %v8467, 5
      %v8470 = vor.u32 %v8466, %v8469
      %v8471 = vrot.slane %v8470, 4
      %v8472 = vrot.slane %v8025, 5
      %v8473 = vsel %vm1988, %v8471, %v8472
      %v8474 = vrot.slane %v8022, 4
      %v8475 = vor.u32 %v8474, %v8472
      %v8476 = vrot.slane %v8475, 4
      %v8478 = vshll.u32 %v6869, 16
      %v8480 = vrot.slane %v8478, 5
      %v8481 = vsel %vm1988, %v8476, %v8480
      %v8482 = vshrl.u32 %v6869, 16
      %v8484 = vrot.slane %v8482, 4
      %v8485 = vrot.slane %v8484, 4
      %v8487 = vshrl.u32 %v8206, 16
      %v8489 = vrot.slane %v8487, 4
      %v8490 = vshll.u32 %v8206, 16
      %v8492 = vrot.slane %v8490, 5
      %v8493 = vor.u32 %v8489, %v8492
      %v8494 = vrot.slane %v8493, 4
      %v8495 = vrot.slane %v8042, 5
      %v8496 = vsel %vm1988, %v8494, %v8495
      %v8497 = vrot.slane %v8039, 4
      %v8498 = vor.u32 %v8497, %v8495
      %v8499 = vrot.slane %v8498, 4
      %v8501 = vshll.u32 %v6872, 16
      %v8503 = vrot.slane %v8501, 5
      %v8504 = vsel %vm1988, %v8499, %v8503
      %v8505 = vshrl.u32 %v6872, 16
      %v8507 = vrot.slane %v8505, 4
      %v8508 = vrot.slane %v8507, 4
      %v8510 = vshrl.u32 %v8207, 16
      %v8512 = vrot.slane %v8510, 4
      %v8513 = vshll.u32 %v8207, 16
      %v8515 = vrot.slane %v8513, 5
      %v8516 = vor.u32 %v8512, %v8515
      %v8517 = vrot.slane %v8516, 4
      %v8518 = vrot.slane %v8059, 5
      %v8519 = vsel %vm1988, %v8517, %v8518
      %v8520 = vrot.slane %v8056, 4
      %v8521 = vor.u32 %v8520, %v8518
      %v8522 = vrot.slane %v8521, 4
      %v8524 = vshll.u32 %v6875, 16
      %v8526 = vrot.slane %v8524, 5
      %v8527 = vsel %vm1988, %v8522, %v8526
      %v8528 = vshrl.u32 %v6875, 16
      %v8530 = vrot.slane %v8528, 4
      %v8531 = vrot.slane %v8530, 4
      %v8533 = vshrl.u32 %v8208, 16
      %v8535 = vrot.slane %v8533, 4
      %v8536 = vshll.u32 %v8208, 16
      %v8538 = vrot.slane %v8536, 5
      %v8539 = vor.u32 %v8535, %v8538
      %v8540 = vrot.slane %v8539, 4
      %v8541 = vrot.slane %v8076, 5
      %v8542 = vsel %vm1988, %v8540, %v8541
      %v8543 = vrot.slane %v8073, 4
      %v8544 = vor.u32 %v8543, %v8541
      %v8545 = vrot.slane %v8544, 4
      %v8547 = vshll.u32 %v6878, 16
      %v8549 = vrot.slane %v8547, 5
      %v8550 = vsel %vm1988, %v8545, %v8549
      %v8551 = vshrl.u32 %v6878, 16
      %v8553 = vrot.slane %v8551, 4
      %v8554 = vrot.slane %v8553, 4
      %v8556 = vshrl.u32 %v8209, 16
      %v8558 = vrot.slane %v8556, 4
      %v8559 = vshll.u32 %v8209, 16
      %v8561 = vrot.slane %v8559, 5
      %v8562 = vor.u32 %v8558, %v8561
      %v8563 = vrot.slane %v8562, 4
      %v8564 = vrot.slane %v8093, 5
      %v8565 = vsel %vm1988, %v8563, %v8564
      %v8566 = vrot.slane %v8090, 4
      %v8567 = vor.u32 %v8566, %v8564
      %v8568 = vrot.slane %v8567, 4
      %v8570 = vshll.u32 %v6881, 16
      %v8572 = vrot.slane %v8570, 5
      %v8573 = vsel %vm1988, %v8568, %v8572
      %v8574 = vshrl.u32 %v6881, 16
      %v8576 = vrot.slane %v8574, 4
      %v8577 = vrot.slane %v8576, 4
      %v8626 = vmax.bf16 %v8146, %v8220
      %v8627 = vmax.bf16 %v8147, %v8228
      %v8628 = vmax.bf16 %v8148, %v8232
      %v8629 = vmax.bf16 %v8149, %v8243
      %v8630 = vmax.bf16 %v8150, %v8251
      %v8631 = vmax.bf16 %v8151, %v8255
      %v8632 = vmax.bf16 %v8152, %v8266
      %v8633 = vmax.bf16 %v8153, %v8274
      %v8634 = vmax.bf16 %v8154, %v8278
      %v8635 = vmax.bf16 %v8155, %v8289
      %v8636 = vmax.bf16 %v8156, %v8297
      %v8637 = vmax.bf16 %v8157, %v8301
      %v8638 = vmax.bf16 %v8158, %v8312
      %v8639 = vmax.bf16 %v8159, %v8320
      %v8640 = vmax.bf16 %v8160, %v8324
      %v8641 = vmax.bf16 %v8161, %v8335
      %v8642 = vmax.bf16 %v8162, %v8343
      %v8643 = vmax.bf16 %v8163, %v8347
      %v8644 = vmax.bf16 %v8164, %v8358
      %v8645 = vmax.bf16 %v8165, %v8366
      %v8646 = vmax.bf16 %v8166, %v8370
      %v8647 = vmax.bf16 %v8167, %v8381
      %v8648 = vmax.bf16 %v8168, %v8389
      %v8649 = vmax.bf16 %v8169, %v8393
      %v8650 = vmax.bf16 %v8170, %v8404
      %v8651 = vmax.bf16 %v8171, %v8412
      %v8652 = vmax.bf16 %v8172, %v8416
      %v8653 = vmax.bf16 %v8173, %v8427
      %v8654 = vmax.bf16 %v8174, %v8435
      %v8655 = vmax.bf16 %v8175, %v8439
      %v8656 = vmax.bf16 %v8176, %v8450
      %v8657 = vmax.bf16 %v8177, %v8458
      %v8658 = vmax.bf16 %v8178, %v8462
      %v8659 = vmax.bf16 %v8179, %v8473
      %v8660 = vmax.bf16 %v8180, %v8481
      %v8661 = vmax.bf16 %v8181, %v8485
      %v8662 = vmax.bf16 %v8182, %v8496
      %v8663 = vmax.bf16 %v8183, %v8504
      %v8664 = vmax.bf16 %v8184, %v8508
      %v8665 = vmax.bf16 %v8185, %v8519
      %v8666 = vmax.bf16 %v8186, %v8527
      %v8667 = vmax.bf16 %v8187, %v8531
      %v8668 = vmax.bf16 %v8188, %v8542
      %v8669 = vmax.bf16 %v8189, %v8550
      %v8670 = vmax.bf16 %v8190, %v8554
      %v8671 = vmax.bf16 %v8191, %v8565
      %v8672 = vmax.bf16 %v8192, %v8573
      %v8673 = vmax.bf16 %v8193, %v8577
      %s8674 = scalar_lea.vmem [#allocation2], 24
      %v8675 = vld [vmem:[%s8674] sm:$0xf]
      %v8676 = vld [vmem:[%s8674 + $0x4] sm:$0xf]
      %v8677 = vld [vmem:[%s8674 + $0xc] sm:$0xf]
      %v8678 = vld [vmem:[%s8674 + $0x10] sm:$0xf]
      %v8679 = vld [vmem:[%s8674 + $0x18] sm:$0xf]
      %v8680 = vld [vmem:[%s8674 + $0x1c] sm:$0xf]
      %v8681 = vld [vmem:[%s8674 + $0x24] sm:$0xf]
      %v8682 = vld [vmem:[%s8674 + $0x28] sm:$0xf]
      %v8683 = vld [vmem:[%s8674 + $0x30] sm:$0xf]
      %v8684 = vld [vmem:[%s8674 + $0x34] sm:$0xf]
      %v8685 = vld [vmem:[%s8674 + $0x3c] sm:$0xf]
      %v8686 = vld [vmem:[%s8674 + $0x40] sm:$0xf]
      %v8687 = vld [vmem:[%s8674 + $0x48] sm:$0xf]
      %v8688 = vld [vmem:[%s8674 + $0x4c] sm:$0xf]
      %v8689 = vld [vmem:[%s8674 + $0x54] sm:$0xf]
      %v8690 = vld [vmem:[%s8674 + $0x58] sm:$0xf]
      %v8691 = vld [vmem:[%s8674 + $0x60] sm:$0xf]
      %v8692 = vld [vmem:[%s8674 + $0x64] sm:$0xf]
      %v8693 = vld [vmem:[%s8674 + $0x6c] sm:$0xf]
      %v8694 = vld [vmem:[%s8674 + $0x70] sm:$0xf]
      %v8695 = vld [vmem:[%s8674 + $0x78] sm:$0xf]
      %v8696 = vld [vmem:[%s8674 + $0x7c] sm:$0xf]
      %v8697 = vld [vmem:[%s8674 + $0x84] sm:$0xf]
      %v8698 = vld [vmem:[%s8674 + $0x88] sm:$0xf]
      %v8699 = vld [vmem:[%s8674 + $0x90] sm:$0xf]
      %v8700 = vld [vmem:[%s8674 + $0x94] sm:$0xf]
      %v8701 = vld [vmem:[%s8674 + $0x9c] sm:$0xf]
      %v8702 = vld [vmem:[%s8674 + $0xa0] sm:$0xf]
      %v8703 = vld [vmem:[%s8674 + $0xa8] sm:$0xf]
      %v8704 = vld [vmem:[%s8674 + $0xac] sm:$0xf]
      %v8705 = vld [vmem:[%s8674 + $0xb4] sm:$0xf]
      %v8706 = vld [vmem:[%s8674 + $0xb8] sm:$0xf]
      %v8708 = vshrl.u32 %v8675, 16
      %v8710 = vrot.slane %v8708, 7
      %v8711 = vshll.u32 %v8675, 16
      %v8713 = vor.u32 %v8710, %v8711
      %v8714 = vrot.slane %v8710, 4
      %v8716 = vshrl.u32 %v8676, 16
      %v8718 = vrot.slane %v8716, 7
      %v8719 = vshll.u32 %v8676, 16
      %v8721 = vor.u32 %v8718, %v8719
      %v8722 = vsel %vm400, %v8714, %v8721
      %v8723 = vrot.slane %v8718, 4
      %v8725 = vshrl.u32 %v8677, 16
      %v8727 = vrot.slane %v8725, 7
      %v8728 = vshll.u32 %v8677, 16
      %v8730 = vor.u32 %v8727, %v8728
      %v8731 = vrot.slane %v8727, 4
      %v8733 = vshrl.u32 %v8678, 16
      %v8735 = vrot.slane %v8733, 7
      %v8736 = vshll.u32 %v8678, 16
      %v8738 = vor.u32 %v8735, %v8736
      %v8739 = vsel %vm400, %v8731, %v8738
      %v8740 = vrot.slane %v8735, 4
      %v8742 = vshrl.u32 %v8679, 16
      %v8744 = vrot.slane %v8742, 7
      %v8745 = vshll.u32 %v8679, 16
      %v8747 = vor.u32 %v8744, %v8745
      %v8748 = vrot.slane %v8744, 4
      %v8750 = vshrl.u32 %v8680, 16
      %v8752 = vrot.slane %v8750, 7
      %v8753 = vshll.u32 %v8680, 16
      %v8755 = vor.u32 %v8752, %v8753
      %v8756 = vsel %vm400, %v8748, %v8755
      %v8757 = vrot.slane %v8752, 4
      %v8759 = vshrl.u32 %v8681, 16
      %v8761 = vrot.slane %v8759, 7
      %v8762 = vshll.u32 %v8681, 16
      %v8764 = vor.u32 %v8761, %v8762
      %v8765 = vrot.slane %v8761, 4
      %v8767 = vshrl.u32 %v8682, 16
      %v8769 = vrot.slane %v8767, 7
      %v8770 = vshll.u32 %v8682, 16
      %v8772 = vor.u32 %v8769, %v8770
      %v8773 = vsel %vm400, %v8765, %v8772
      %v8774 = vrot.slane %v8769, 4
      %v8776 = vshrl.u32 %v8683, 16
      %v8778 = vrot.slane %v8776, 7
      %v8779 = vshll.u32 %v8683, 16
      %v8781 = vor.u32 %v8778, %v8779
      %v8782 = vrot.slane %v8778, 4
      %v8784 = vshrl.u32 %v8684, 16
      %v8786 = vrot.slane %v8784, 7
      %v8787 = vshll.u32 %v8684, 16
      %v8789 = vor.u32 %v8786, %v8787
      %v8790 = vsel %vm400, %v8782, %v8789
      %v8791 = vrot.slane %v8786, 4
      %v8793 = vshrl.u32 %v8685, 16
      %v8795 = vrot.slane %v8793, 7
      %v8796 = vshll.u32 %v8685, 16
      %v8798 = vor.u32 %v8795, %v8796
      %v8799 = vrot.slane %v8795, 4
      %v8801 = vshrl.u32 %v8686, 16
      %v8803 = vrot.slane %v8801, 7
      %v8804 = vshll.u32 %v8686, 16
      %v8806 = vor.u32 %v8803, %v8804
      %v8807 = vsel %vm400, %v8799, %v8806
      %v8808 = vrot.slane %v8803, 4
      %v8810 = vshrl.u32 %v8687, 16
      %v8812 = vrot.slane %v8810, 7
      %v8813 = vshll.u32 %v8687, 16
      %v8815 = vor.u32 %v8812, %v8813
      %v8816 = vrot.slane %v8812, 4
      %v8818 = vshrl.u32 %v8688, 16
      %v8820 = vrot.slane %v8818, 7
      %v8821 = vshll.u32 %v8688, 16
      %v8823 = vor.u32 %v8820, %v8821
      %v8824 = vsel %vm400, %v8816, %v8823
      %v8825 = vrot.slane %v8820, 4
      %v8827 = vshrl.u32 %v8689, 16
      %v8829 = vrot.slane %v8827, 7
      %v8830 = vshll.u32 %v8689, 16
      %v8832 = vor.u32 %v8829, %v8830
      %v8833 = vrot.slane %v8829, 4
      %v8835 = vshrl.u32 %v8690, 16
      %v8837 = vrot.slane %v8835, 7
      %v8838 = vshll.u32 %v8690, 16
      %v8840 = vor.u32 %v8837, %v8838
      %v8841 = vsel %vm400, %v8833, %v8840
      %v8842 = vrot.slane %v8837, 4
      %v8844 = vshrl.u32 %v8691, 16
      %v8846 = vrot.slane %v8844, 7
      %v8847 = vshll.u32 %v8691, 16
      %v8849 = vor.u32 %v8846, %v8847
      %v8850 = vrot.slane %v8846, 4
      %v8852 = vshrl.u32 %v8692, 16
      %v8854 = vrot.slane %v8852, 7
      %v8855 = vshll.u32 %v8692, 16
      %v8857 = vor.u32 %v8854, %v8855
      %v8858 = vsel %vm400, %v8850, %v8857
      %v8859 = vrot.slane %v8854, 4
      %v8861 = vshrl.u32 %v8693, 16
      %v8863 = vrot.slane %v8861, 7
      %v8864 = vshll.u32 %v8693, 16
      %v8866 = vor.u32 %v8863, %v8864
      %v8867 = vrot.slane %v8863, 4
      %v8869 = vshrl.u32 %v8694, 16
      %v8871 = vrot.slane %v8869, 7
      %v8872 = vshll.u32 %v8694, 16
      %v8874 = vor.u32 %v8871, %v8872
      %v8875 = vsel %vm400, %v8867, %v8874
      %v8876 = vrot.slane %v8871, 4
      %v8878 = vshrl.u32 %v8695, 16
      %v8880 = vrot.slane %v8878, 7
      %v8881 = vshll.u32 %v8695, 16
      %v8883 = vor.u32 %v8880, %v8881
      %v8884 = vrot.slane %v8880, 4
      %v8886 = vshrl.u32 %v8696, 16
      %v8888 = vrot.slane %v8886, 7
      %v8889 = vshll.u32 %v8696, 16
      %v8891 = vor.u32 %v8888, %v8889
      %v8892 = vsel %vm400, %v8884, %v8891
      %v8893 = vrot.slane %v8888, 4
      %v8895 = vshrl.u32 %v8697, 16
      %v8897 = vrot.slane %v8895, 7
      %v8898 = vshll.u32 %v8697, 16
      %v8900 = vor.u32 %v8897, %v8898
      %v8901 = vrot.slane %v8897, 4
      %v8903 = vshrl.u32 %v8698, 16
      %v8905 = vrot.slane %v8903, 7
      %v8906 = vshll.u32 %v8698, 16
      %v8908 = vor.u32 %v8905, %v8906
      %v8909 = vsel %vm400, %v8901, %v8908
      %v8910 = vrot.slane %v8905, 4
      %v8912 = vshrl.u32 %v8699, 16
      %v8914 = vrot.slane %v8912, 7
      %v8915 = vshll.u32 %v8699, 16
      %v8917 = vor.u32 %v8914, %v8915
      %v8918 = vrot.slane %v8914, 4
      %v8920 = vshrl.u32 %v8700, 16
      %v8922 = vrot.slane %v8920, 7
      %v8923 = vshll.u32 %v8700, 16
      %v8925 = vor.u32 %v8922, %v8923
      %v8926 = vsel %vm400, %v8918, %v8925
      %v8927 = vrot.slane %v8922, 4
      %v8929 = vshrl.u32 %v8701, 16
      %v8931 = vrot.slane %v8929, 7
      %v8932 = vshll.u32 %v8701, 16
      %v8934 = vor.u32 %v8931, %v8932
      %v8935 = vrot.slane %v8931, 4
      %v8937 = vshrl.u32 %v8702, 16
      %v8939 = vrot.slane %v8937, 7
      %v8940 = vshll.u32 %v8702, 16
      %v8942 = vor.u32 %v8939, %v8940
      %v8943 = vsel %vm400, %v8935, %v8942
      %v8944 = vrot.slane %v8939, 4
      %v8946 = vshrl.u32 %v8703, 16
      %v8948 = vrot.slane %v8946, 7
      %v8949 = vshll.u32 %v8703, 16
      %v8951 = vor.u32 %v8948, %v8949
      %v8952 = vrot.slane %v8948, 4
      %v8954 = vshrl.u32 %v8704, 16
      %v8956 = vrot.slane %v8954, 7
      %v8957 = vshll.u32 %v8704, 16
      %v8959 = vor.u32 %v8956, %v8957
      %v8960 = vsel %vm400, %v8952, %v8959
      %v8961 = vrot.slane %v8956, 4
      %v8963 = vshrl.u32 %v8705, 16
      %v8965 = vrot.slane %v8963, 7
      %v8966 = vshll.u32 %v8705, 16
      %v8968 = vor.u32 %v8965, %v8966
      %v8969 = vrot.slane %v8965, 4
      %v8971 = vshrl.u32 %v8706, 16
      %v8973 = vrot.slane %v8971, 7
      %v8974 = vshll.u32 %v8706, 16
      %v8976 = vor.u32 %v8973, %v8974
      %v8977 = vsel %vm400, %v8969, %v8976
      %v8978 = vrot.slane %v8973, 4
      %v9027 = vmax.bf16 %v8626, %v8713
      %v9028 = vmax.bf16 %v8627, %v8722
      %v9029 = vmax.bf16 %v8628, %v8723
      %v9030 = vmax.bf16 %v8629, %v8730
      %v9031 = vmax.bf16 %v8630, %v8739
      %v9032 = vmax.bf16 %v8631, %v8740
      %v9033 = vmax.bf16 %v8632, %v8747
      %v9034 = vmax.bf16 %v8633, %v8756
      %v9035 = vmax.bf16 %v8634, %v8757
      %v9036 = vmax.bf16 %v8635, %v8764
      %v9037 = vmax.bf16 %v8636, %v8773
      %v9038 = vmax.bf16 %v8637, %v8774
      %v9039 = vmax.bf16 %v8638, %v8781
      %v9040 = vmax.bf16 %v8639, %v8790
      %v9041 = vmax.bf16 %v8640, %v8791
      %v9042 = vmax.bf16 %v8641, %v8798
      %v9043 = vmax.bf16 %v8642, %v8807
      %v9044 = vmax.bf16 %v8643, %v8808
      %v9045 = vmax.bf16 %v8644, %v8815
      %v9046 = vmax.bf16 %v8645, %v8824
      %v9047 = vmax.bf16 %v8646, %v8825
      %v9048 = vmax.bf16 %v8647, %v8832
      %v9049 = vmax.bf16 %v8648, %v8841
      %v9050 = vmax.bf16 %v8649, %v8842
      %v9051 = vmax.bf16 %v8650, %v8849
      %v9052 = vmax.bf16 %v8651, %v8858
      %v9053 = vmax.bf16 %v8652, %v8859
      %v9054 = vmax.bf16 %v8653, %v8866
      %v9055 = vmax.bf16 %v8654, %v8875
      %v9056 = vmax.bf16 %v8655, %v8876
      %v9057 = vmax.bf16 %v8656, %v8883
      %v9058 = vmax.bf16 %v8657, %v8892
      %v9059 = vmax.bf16 %v8658, %v8893
      %v9060 = vmax.bf16 %v8659, %v8900
      %v9061 = vmax.bf16 %v8660, %v8909
      %v9062 = vmax.bf16 %v8661, %v8910
      %v9063 = vmax.bf16 %v8662, %v8917
      %v9064 = vmax.bf16 %v8663, %v8926
      %v9065 = vmax.bf16 %v8664, %v8927
      %v9066 = vmax.bf16 %v8665, %v8934
      %v9067 = vmax.bf16 %v8666, %v8943
      %v9068 = vmax.bf16 %v8667, %v8944
      %v9069 = vmax.bf16 %v8668, %v8951
      %v9070 = vmax.bf16 %v8669, %v8960
      %v9071 = vmax.bf16 %v8670, %v8961
      %v9072 = vmax.bf16 %v8671, %v8968
      %v9073 = vmax.bf16 %v8672, %v8977
      %v9074 = vmax.bf16 %v8673, %v8978
      %v9075 = vld [vmem:[%s8674 + $0x8] sm:$0x1]
      %v9076 = vld [vmem:[%s8674 + $0x14] sm:$0x1]
      %v9077 = vld [vmem:[%s8674 + $0x20] sm:$0x1]
      %v9078 = vld [vmem:[%s8674 + $0x2c] sm:$0x1]
      %v9079 = vld [vmem:[%s8674 + $0x38] sm:$0x1]
      %v9080 = vld [vmem:[%s8674 + $0x44] sm:$0x1]
      %v9081 = vld [vmem:[%s8674 + $0x50] sm:$0x1]
      %v9082 = vld [vmem:[%s8674 + $0x5c] sm:$0x1]
      %v9083 = vld [vmem:[%s8674 + $0x68] sm:$0x1]
      %v9084 = vld [vmem:[%s8674 + $0x74] sm:$0x1]
      %v9085 = vld [vmem:[%s8674 + $0x80] sm:$0x1]
      %v9086 = vld [vmem:[%s8674 + $0x8c] sm:$0x1]
      %v9087 = vld [vmem:[%s8674 + $0x98] sm:$0x1]
      %v9088 = vld [vmem:[%s8674 + $0xa4] sm:$0x1]
      %v9089 = vld [vmem:[%s8674 + $0xb0] sm:$0x1]
      %v9090 = vld [vmem:[%s8674 + $0xbc] sm:$0x1]
      %v9091 = vmax.bf16 %v9027, %v8675
      %v9092 = vmax.bf16 %v9028, %v8676
      %v9093 = vmax.bf16 %v9029, %v9075
      %v9094 = vmax.bf16 %v9030, %v8677
      %v9095 = vmax.bf16 %v9031, %v8678
      %v9096 = vmax.bf16 %v9032, %v9076
      %v9097 = vmax.bf16 %v9033, %v8679
      %v9098 = vmax.bf16 %v9034, %v8680
      %v9099 = vmax.bf16 %v9035, %v9077
      %v9100 = vmax.bf16 %v9036, %v8681
      %v9101 = vmax.bf16 %v9037, %v8682
      %v9102 = vmax.bf16 %v9038, %v9078
      %v9103 = vmax.bf16 %v9039, %v8683
      %v9104 = vmax.bf16 %v9040, %v8684
      %v9105 = vmax.bf16 %v9041, %v9079
      %v9106 = vmax.bf16 %v9042, %v8685
      %v9107 = vmax.bf16 %v9043, %v8686
      %v9108 = vmax.bf16 %v9044, %v9080
      %v9109 = vmax.bf16 %v9045, %v8687
      %v9110 = vmax.bf16 %v9046, %v8688
      %v9111 = vmax.bf16 %v9047, %v9081
      %v9112 = vmax.bf16 %v9048, %v8689
      %v9113 = vmax.bf16 %v9049, %v8690
      %v9114 = vmax.bf16 %v9050, %v9082
      %v9115 = vmax.bf16 %v9051, %v8691
      %v9116 = vmax.bf16 %v9052, %v8692
      %v9117 = vmax.bf16 %v9053, %v9083
      %v9118 = vmax.bf16 %v9054, %v8693
      %v9119 = vmax.bf16 %v9055, %v8694
      %v9120 = vmax.bf16 %v9056, %v9084
      %v9121 = vmax.bf16 %v9057, %v8695
      %v9122 = vmax.bf16 %v9058, %v8696
      %v9123 = vmax.bf16 %v9059, %v9085
      %v9124 = vmax.bf16 %v9060, %v8697
      %v9125 = vmax.bf16 %v9061, %v8698
      %v9126 = vmax.bf16 %v9062, %v9086
      %v9127 = vmax.bf16 %v9063, %v8699
      %v9128 = vmax.bf16 %v9064, %v8700
      %v9129 = vmax.bf16 %v9065, %v9087
      %v9130 = vmax.bf16 %v9066, %v8701
      %v9131 = vmax.bf16 %v9067, %v8702
      %v9132 = vmax.bf16 %v9068, %v9088
      %v9133 = vmax.bf16 %v9069, %v8703
      %v9134 = vmax.bf16 %v9070, %v8704
      %v9135 = vmax.bf16 %v9071, %v9089
      %v9136 = vmax.bf16 %v9072, %v8705
      %v9137 = vmax.bf16 %v9073, %v8706
      %v9138 = vmax.bf16 %v9074, %v9090
      %v9139 = vld [vmem:[%s8674] sm:$0xe]
      %v9140 = vld [vmem:[%s8674 + $0xc] sm:$0xe]
      %v9141 = vld [vmem:[%s8674 + $0x18] sm:$0xe]
      %v9142 = vld [vmem:[%s8674 + $0x24] sm:$0xe]
      %v9143 = vld [vmem:[%s8674 + $0x30] sm:$0xe]
      %v9144 = vld [vmem:[%s8674 + $0x3c] sm:$0xe]
      %v9145 = vld [vmem:[%s8674 + $0x48] sm:$0xe]
      %v9146 = vld [vmem:[%s8674 + $0x54] sm:$0xe]
      %v9147 = vld [vmem:[%s8674 + $0x60] sm:$0xe]
      %v9148 = vld [vmem:[%s8674 + $0x6c] sm:$0xe]
      %v9149 = vld [vmem:[%s8674 + $0x78] sm:$0xe]
      %v9150 = vld [vmem:[%s8674 + $0x84] sm:$0xe]
      %v9151 = vld [vmem:[%s8674 + $0x90] sm:$0xe]
      %v9152 = vld [vmem:[%s8674 + $0x9c] sm:$0xe]
      %v9153 = vld [vmem:[%s8674 + $0xa8] sm:$0xe]
      %v9154 = vld [vmem:[%s8674 + $0xb4] sm:$0xe]
      %v9156 = vshrl.u32 %v9139, 16
      %v9158 = vrot.slane %v9156, 4
      %v9159 = vshll.u32 %v9139, 16
      %v9161 = vrot.slane %v9159, 5
      %v9162 = vor.u32 %v9158, %v9161
      %v9163 = vrot.slane %v9162, 4
      %v9164 = vrot.slane %v8719, 5
      %v9165 = vsel %vm1988, %v9163, %v9164
      %v9166 = vrot.slane %v8716, 4
      %v9167 = vor.u32 %v9166, %v9164
      %v9168 = vrot.slane %v9167, 4
      %v9170 = vshll.u32 %v9075, 16
      %v9172 = vrot.slane %v9170, 5
      %v9173 = vsel %vm1988, %v9168, %v9172
      %v9174 = vshrl.u32 %v9075, 16
      %v9176 = vrot.slane %v9174, 4
      %v9177 = vrot.slane %v9176, 4
      %v9179 = vshrl.u32 %v9140, 16
      %v9181 = vrot.slane %v9179, 4
      %v9182 = vshll.u32 %v9140, 16
      %v9184 = vrot.slane %v9182, 5
      %v9185 = vor.u32 %v9181, %v9184
      %v9186 = vrot.slane %v9185, 4
      %v9187 = vrot.slane %v8736, 5
      %v9188 = vsel %vm1988, %v9186, %v9187
      %v9189 = vrot.slane %v8733, 4
      %v9190 = vor.u32 %v9189, %v9187
      %v9191 = vrot.slane %v9190, 4
      %v9193 = vshll.u32 %v9076, 16
      %v9195 = vrot.slane %v9193, 5
      %v9196 = vsel %vm1988, %v9191, %v9195
      %v9197 = vshrl.u32 %v9076, 16
      %v9199 = vrot.slane %v9197, 4
      %v9200 = vrot.slane %v9199, 4
      %v9202 = vshrl.u32 %v9141, 16
      %v9204 = vrot.slane %v9202, 4
      %v9205 = vshll.u32 %v9141, 16
      %v9207 = vrot.slane %v9205, 5
      %v9208 = vor.u32 %v9204, %v9207
      %v9209 = vrot.slane %v9208, 4
      %v9210 = vrot.slane %v8753, 5
      %v9211 = vsel %vm1988, %v9209, %v9210
      %v9212 = vrot.slane %v8750, 4
      %v9213 = vor.u32 %v9212, %v9210
      %v9214 = vrot.slane %v9213, 4
      %v9216 = vshll.u32 %v9077, 16
      %v9218 = vrot.slane %v9216, 5
      %v9219 = vsel %vm1988, %v9214, %v9218
      %v9220 = vshrl.u32 %v9077, 16
      %v9222 = vrot.slane %v9220, 4
      %v9223 = vrot.slane %v9222, 4
      %v9225 = vshrl.u32 %v9142, 16
      %v9227 = vrot.slane %v9225, 4
      %v9228 = vshll.u32 %v9142, 16
      %v9230 = vrot.slane %v9228, 5
      %v9231 = vor.u32 %v9227, %v9230
      %v9232 = vrot.slane %v9231, 4
      %v9233 = vrot.slane %v8770, 5
      %v9234 = vsel %vm1988, %v9232, %v9233
      %v9235 = vrot.slane %v8767, 4
      %v9236 = vor.u32 %v9235, %v9233
      %v9237 = vrot.slane %v9236, 4
      %v9239 = vshll.u32 %v9078, 16
      %v9241 = vrot.slane %v9239, 5
      %v9242 = vsel %vm1988, %v9237, %v9241
      %v9243 = vshrl.u32 %v9078, 16
      %v9245 = vrot.slane %v9243, 4
      %v9246 = vrot.slane %v9245, 4
      %v9248 = vshrl.u32 %v9143, 16
      %v9250 = vrot.slane %v9248, 4
      %v9251 = vshll.u32 %v9143, 16
      %v9253 = vrot.slane %v9251, 5
      %v9254 = vor.u32 %v9250, %v9253
      %v9255 = vrot.slane %v9254, 4
      %v9256 = vrot.slane %v8787, 5
      %v9257 = vsel %vm1988, %v9255, %v9256
      %v9258 = vrot.slane %v8784, 4
      %v9259 = vor.u32 %v9258, %v9256
      %v9260 = vrot.slane %v9259, 4
      %v9262 = vshll.u32 %v9079, 16
      %v9264 = vrot.slane %v9262, 5
      %v9265 = vsel %vm1988, %v9260, %v9264
      %v9266 = vshrl.u32 %v9079, 16
      %v9268 = vrot.slane %v9266, 4
      %v9269 = vrot.slane %v9268, 4
      %v9271 = vshrl.u32 %v9144, 16
      %v9273 = vrot.slane %v9271, 4
      %v9274 = vshll.u32 %v9144, 16
      %v9276 = vrot.slane %v9274, 5
      %v9277 = vor.u32 %v9273, %v9276
      %v9278 = vrot.slane %v9277, 4
      %v9279 = vrot.slane %v8804, 5
      %v9280 = vsel %vm1988, %v9278, %v9279
      %v9281 = vrot.slane %v8801, 4
      %v9282 = vor.u32 %v9281, %v9279
      %v9283 = vrot.slane %v9282, 4
      %v9285 = vshll.u32 %v9080, 16
      %v9287 = vrot.slane %v9285, 5
      %v9288 = vsel %vm1988, %v9283, %v9287
      %v9289 = vshrl.u32 %v9080, 16
      %v9291 = vrot.slane %v9289, 4
      %v9292 = vrot.slane %v9291, 4
      %v9294 = vshrl.u32 %v9145, 16
      %v9296 = vrot.slane %v9294, 4
      %v9297 = vshll.u32 %v9145, 16
      %v9299 = vrot.slane %v9297, 5
      %v9300 = vor.u32 %v9296, %v9299
      %v9301 = vrot.slane %v9300, 4
      %v9302 = vrot.slane %v8821, 5
      %v9303 = vsel %vm1988, %v9301, %v9302
      %v9304 = vrot.slane %v8818, 4
      %v9305 = vor.u32 %v9304, %v9302
      %v9306 = vrot.slane %v9305, 4
      %v9308 = vshll.u32 %v9081, 16
      %v9310 = vrot.slane %v9308, 5
      %v9311 = vsel %vm1988, %v9306, %v9310
      %v9312 = vshrl.u32 %v9081, 16
      %v9314 = vrot.slane %v9312, 4
      %v9315 = vrot.slane %v9314, 4
      %v9317 = vshrl.u32 %v9146, 16
      %v9319 = vrot.slane %v9317, 4
      %v9320 = vshll.u32 %v9146, 16
      %v9322 = vrot.slane %v9320, 5
      %v9323 = vor.u32 %v9319, %v9322
      %v9324 = vrot.slane %v9323, 4
      %v9325 = vrot.slane %v8838, 5
      %v9326 = vsel %vm1988, %v9324, %v9325
      %v9327 = vrot.slane %v8835, 4
      %v9328 = vor.u32 %v9327, %v9325
      %v9329 = vrot.slane %v9328, 4
      %v9331 = vshll.u32 %v9082, 16
      %v9333 = vrot.slane %v9331, 5
      %v9334 = vsel %vm1988, %v9329, %v9333
      %v9335 = vshrl.u32 %v9082, 16
      %v9337 = vrot.slane %v9335, 4
      %v9338 = vrot.slane %v9337, 4
      %v9340 = vshrl.u32 %v9147, 16
      %v9342 = vrot.slane %v9340, 4
      %v9343 = vshll.u32 %v9147, 16
      %v9345 = vrot.slane %v9343, 5
      %v9346 = vor.u32 %v9342, %v9345
      %v9347 = vrot.slane %v9346, 4
      %v9348 = vrot.slane %v8855, 5
      %v9349 = vsel %vm1988, %v9347, %v9348
      %v9350 = vrot.slane %v8852, 4
      %v9351 = vor.u32 %v9350, %v9348
      %v9352 = vrot.slane %v9351, 4
      %v9354 = vshll.u32 %v9083, 16
      %v9356 = vrot.slane %v9354, 5
      %v9357 = vsel %vm1988, %v9352, %v9356
      %v9358 = vshrl.u32 %v9083, 16
      %v9360 = vrot.slane %v9358, 4
      %v9361 = vrot.slane %v9360, 4
      %v9363 = vshrl.u32 %v9148, 16
      %v9365 = vrot.slane %v9363, 4
      %v9366 = vshll.u32 %v9148, 16
      %v9368 = vrot.slane %v9366, 5
      %v9369 = vor.u32 %v9365, %v9368
      %v9370 = vrot.slane %v9369, 4
      %v9371 = vrot.slane %v8872, 5
      %v9372 = vsel %vm1988, %v9370, %v9371
      %v9373 = vrot.slane %v8869, 4
      %v9374 = vor.u32 %v9373, %v9371
      %v9375 = vrot.slane %v9374, 4
      %v9377 = vshll.u32 %v9084, 16
      %v9379 = vrot.slane %v9377, 5
      %v9380 = vsel %vm1988, %v9375, %v9379
      %v9381 = vshrl.u32 %v9084, 16
      %v9383 = vrot.slane %v9381, 4
      %v9384 = vrot.slane %v9383, 4
      %v9386 = vshrl.u32 %v9149, 16
      %v9388 = vrot.slane %v9386, 4
      %v9389 = vshll.u32 %v9149, 16
      %v9391 = vrot.slane %v9389, 5
      %v9392 = vor.u32 %v9388, %v9391
      %v9393 = vrot.slane %v9392, 4
      %v9394 = vrot.slane %v8889, 5
      %v9395 = vsel %vm1988, %v9393, %v9394
      %v9396 = vrot.slane %v8886, 4
      %v9397 = vor.u32 %v9396, %v9394
      %v9398 = vrot.slane %v9397, 4
      %v9400 = vshll.u32 %v9085, 16
      %v9402 = vrot.slane %v9400, 5
      %v9403 = vsel %vm1988, %v9398, %v9402
      %v9404 = vshrl.u32 %v9085, 16
      %v9406 = vrot.slane %v9404, 4
      %v9407 = vrot.slane %v9406, 4
      %v9409 = vshrl.u32 %v9150, 16
      %v9411 = vrot.slane %v9409, 4
      %v9412 = vshll.u32 %v9150, 16
      %v9414 = vrot.slane %v9412, 5
      %v9415 = vor.u32 %v9411, %v9414
      %v9416 = vrot.slane %v9415, 4
      %v9417 = vrot.slane %v8906, 5
      %v9418 = vsel %vm1988, %v9416, %v9417
      %v9419 = vrot.slane %v8903, 4
      %v9420 = vor.u32 %v9419, %v9417
      %v9421 = vrot.slane %v9420, 4
      %v9423 = vshll.u32 %v9086, 16
      %v9425 = vrot.slane %v9423, 5
      %v9426 = vsel %vm1988, %v9421, %v9425
      %v9427 = vshrl.u32 %v9086, 16
      %v9429 = vrot.slane %v9427, 4
      %v9430 = vrot.slane %v9429, 4
      %v9432 = vshrl.u32 %v9151, 16
      %v9434 = vrot.slane %v9432, 4
      %v9435 = vshll.u32 %v9151, 16
      %v9437 = vrot.slane %v9435, 5
      %v9438 = vor.u32 %v9434, %v9437
      %v9439 = vrot.slane %v9438, 4
      %v9440 = vrot.slane %v8923, 5
      %v9441 = vsel %vm1988, %v9439, %v9440
      %v9442 = vrot.slane %v8920, 4
      %v9443 = vor.u32 %v9442, %v9440
      %v9444 = vrot.slane %v9443, 4
      %v9446 = vshll.u32 %v9087, 16
      %v9448 = vrot.slane %v9446, 5
      %v9449 = vsel %vm1988, %v9444, %v9448
      %v9450 = vshrl.u32 %v9087, 16
      %v9452 = vrot.slane %v9450, 4
      %v9453 = vrot.slane %v9452, 4
      %v9455 = vshrl.u32 %v9152, 16
      %v9457 = vrot.slane %v9455, 4
      %v9458 = vshll.u32 %v9152, 16
      %v9460 = vrot.slane %v9458, 5
      %v9461 = vor.u32 %v9457, %v9460
      %v9462 = vrot.slane %v9461, 4
      %v9463 = vrot.slane %v8940, 5
      %v9464 = vsel %vm1988, %v9462, %v9463
      %v9465 = vrot.slane %v8937, 4
      %v9466 = vor.u32 %v9465, %v9463
      %v9467 = vrot.slane %v9466, 4
      %v9469 = vshll.u32 %v9088, 16
      %v9471 = vrot.slane %v9469, 5
      %v9472 = vsel %vm1988, %v9467, %v9471
      %v9473 = vshrl.u32 %v9088, 16
      %v9475 = vrot.slane %v9473, 4
      %v9476 = vrot.slane %v9475, 4
      %v9478 = vshrl.u32 %v9153, 16
      %v9480 = vrot.slane %v9478, 4
      %v9481 = vshll.u32 %v9153, 16
      %v9483 = vrot.slane %v9481, 5
      %v9484 = vor.u32 %v9480, %v9483
      %v9485 = vrot.slane %v9484, 4
      %v9486 = vrot.slane %v8957, 5
      %v9487 = vsel %vm1988, %v9485, %v9486
      %v9488 = vrot.slane %v8954, 4
      %v9489 = vor.u32 %v9488, %v9486
      %v9490 = vrot.slane %v9489, 4
      %v9492 = vshll.u32 %v9089, 16
      %v9494 = vrot.slane %v9492, 5
      %v9495 = vsel %vm1988, %v9490, %v9494
      %v9496 = vshrl.u32 %v9089, 16
      %v9498 = vrot.slane %v9496, 4
      %v9499 = vrot.slane %v9498, 4
      %v9501 = vshrl.u32 %v9154, 16
      %v9503 = vrot.slane %v9501, 4
      %v9504 = vshll.u32 %v9154, 16
      %v9506 = vrot.slane %v9504, 5
      %v9507 = vor.u32 %v9503, %v9506
      %v9508 = vrot.slane %v9507, 4
      %v9509 = vrot.slane %v8974, 5
      %v9510 = vsel %vm1988, %v9508, %v9509
      %v9511 = vrot.slane %v8971, 4
      %v9512 = vor.u32 %v9511, %v9509
      %v9513 = vrot.slane %v9512, 4
      %v9515 = vshll.u32 %v9090, 16
      %v9517 = vrot.slane %v9515, 5
      %v9518 = vsel %vm1988, %v9513, %v9517
      %v9519 = vshrl.u32 %v9090, 16
      %v9521 = vrot.slane %v9519, 4
      %v9522 = vrot.slane %v9521, 4
      %v9571 = vmax.bf16 %v9091, %v9165
      %v9572 = vmax.bf16 %v9092, %v9173
      %v9573 = vmax.bf16 %v9093, %v9177
      %v9574 = vmax.bf16 %v9094, %v9188
      %v9575 = vmax.bf16 %v9095, %v9196
      %v9576 = vmax.bf16 %v9096, %v9200
      %v9577 = vmax.bf16 %v9097, %v9211
      %v9578 = vmax.bf16 %v9098, %v9219
      %v9579 = vmax.bf16 %v9099, %v9223
      %v9580 = vmax.bf16 %v9100, %v9234
      %v9581 = vmax.bf16 %v9101, %v9242
      %v9582 = vmax.bf16 %v9102, %v9246
      %v9583 = vmax.bf16 %v9103, %v9257
      %v9584 = vmax.bf16 %v9104, %v9265
      %v9585 = vmax.bf16 %v9105, %v9269
      %v9586 = vmax.bf16 %v9106, %v9280
      %v9587 = vmax.bf16 %v9107, %v9288
      %v9588 = vmax.bf16 %v9108, %v9292
      %v9589 = vmax.bf16 %v9109, %v9303
      %v9590 = vmax.bf16 %v9110, %v9311
      %v9591 = vmax.bf16 %v9111, %v9315
      %v9592 = vmax.bf16 %v9112, %v9326
      %v9593 = vmax.bf16 %v9113, %v9334
      %v9594 = vmax.bf16 %v9114, %v9338
      %v9595 = vmax.bf16 %v9115, %v9349
      %v9596 = vmax.bf16 %v9116, %v9357
      %v9597 = vmax.bf16 %v9117, %v9361
      %v9598 = vmax.bf16 %v9118, %v9372
      %v9599 = vmax.bf16 %v9119, %v9380
      %v9600 = vmax.bf16 %v9120, %v9384
      %v9601 = vmax.bf16 %v9121, %v9395
      %v9602 = vmax.bf16 %v9122, %v9403
      %v9603 = vmax.bf16 %v9123, %v9407
      %v9604 = vmax.bf16 %v9124, %v9418
      %v9605 = vmax.bf16 %v9125, %v9426
      %v9606 = vmax.bf16 %v9126, %v9430
      %v9607 = vmax.bf16 %v9127, %v9441
      %v9608 = vmax.bf16 %v9128, %v9449
      %v9609 = vmax.bf16 %v9129, %v9453
      %v9610 = vmax.bf16 %v9130, %v9464
      %v9611 = vmax.bf16 %v9131, %v9472
      %v9612 = vmax.bf16 %v9132, %v9476
      %v9613 = vmax.bf16 %v9133, %v9487
      %v9614 = vmax.bf16 %v9134, %v9495
      %v9615 = vmax.bf16 %v9135, %v9499
      %v9616 = vmax.bf16 %v9136, %v9510
      %v9617 = vmax.bf16 %v9137, %v9518
      %v9618 = vmax.bf16 %v9138, %v9522
      %v9620 = vshrl.u32 %v9571, 16
      %v9622 = vrot.slane %v9620, 4
      %v9623 = vshll.u32 %v9571, 16
      %v9625 = vrot.slane %v9623, 5
      %v9626 = vor.u32 %v9622, %v9625
      %v9627 = vrot.slane %v9626, 4
      %v9629 = vshll.u32 %v9572, 16
      %v9631 = vrot.slane %v9629, 5
      %v9632 = vsel %vm1988, %v9627, %v9631
      %v9633 = vshrl.u32 %v9572, 16
      %v9635 = vrot.slane %v9633, 4
      %v9636 = vor.u32 %v9635, %v9631
      %v9637 = vrot.slane %v9636, 4
      %v9639 = vshll.u32 %v9573, 16
      %v9641 = vrot.slane %v9639, 5
      %v9642 = vsel %vm1988, %v9637, %v9641
      %v9644 = vshrl.u32 %v9574, 16
      %v9646 = vrot.slane %v9644, 4
      %v9647 = vshll.u32 %v9574, 16
      %v9649 = vrot.slane %v9647, 5
      %v9650 = vor.u32 %v9646, %v9649
      %v9651 = vrot.slane %v9650, 4
      %v9653 = vshll.u32 %v9575, 16
      %v9655 = vrot.slane %v9653, 5
      %v9656 = vsel %vm1988, %v9651, %v9655
      %v9657 = vshrl.u32 %v9575, 16
      %v9659 = vrot.slane %v9657, 4
      %v9660 = vor.u32 %v9659, %v9655
      %v9661 = vrot.slane %v9660, 4
      %v9663 = vshll.u32 %v9576, 16
      %v9665 = vrot.slane %v9663, 5
      %v9666 = vsel %vm1988, %v9661, %v9665
      %v9668 = vshrl.u32 %v9577, 16
      %v9670 = vrot.slane %v9668, 4
      %v9671 = vshll.u32 %v9577, 16
      %v9673 = vrot.slane %v9671, 5
      %v9674 = vor.u32 %v9670, %v9673
      %v9675 = vrot.slane %v9674, 4
      %v9677 = vshll.u32 %v9578, 16
      %v9679 = vrot.slane %v9677, 5
      %v9680 = vsel %vm1988, %v9675, %v9679
      %v9681 = vshrl.u32 %v9578, 16
      %v9683 = vrot.slane %v9681, 4
      %v9684 = vor.u32 %v9683, %v9679
      %v9685 = vrot.slane %v9684, 4
      %v9687 = vshll.u32 %v9579, 16
      %v9689 = vrot.slane %v9687, 5
      %v9690 = vsel %vm1988, %v9685, %v9689
      %v9692 = vshrl.u32 %v9580, 16
      %v9694 = vrot.slane %v9692, 4
      %v9695 = vshll.u32 %v9580, 16
      %v9697 = vrot.slane %v9695, 5
      %v9698 = vor.u32 %v9694, %v9697
      %v9699 = vrot.slane %v9698, 4
      %v9701 = vshll.u32 %v9581, 16
      %v9703 = vrot.slane %v9701, 5
      %v9704 = vsel %vm1988, %v9699, %v9703
      %v9705 = vshrl.u32 %v9581, 16
      %v9707 = vrot.slane %v9705, 4
      %v9708 = vor.u32 %v9707, %v9703
      %v9709 = vrot.slane %v9708, 4
      %v9711 = vshll.u32 %v9582, 16
      %v9713 = vrot.slane %v9711, 5
      %v9714 = vsel %vm1988, %v9709, %v9713
      %v9716 = vshrl.u32 %v9583, 16
      %v9718 = vrot.slane %v9716, 4
      %v9719 = vshll.u32 %v9583, 16
      %v9721 = vrot.slane %v9719, 5
      %v9722 = vor.u32 %v9718, %v9721
      %v9723 = vrot.slane %v9722, 4
      %v9725 = vshll.u32 %v9584, 16
      %v9727 = vrot.slane %v9725, 5
      %v9728 = vsel %vm1988, %v9723, %v9727
      %v9729 = vshrl.u32 %v9584, 16
      %v9731 = vrot.slane %v9729, 4
      %v9732 = vor.u32 %v9731, %v9727
      %v9733 = vrot.slane %v9732, 4
      %v9735 = vshll.u32 %v9585, 16
      %v9737 = vrot.slane %v9735, 5
      %v9738 = vsel %vm1988, %v9733, %v9737
      %v9740 = vshrl.u32 %v9586, 16
      %v9742 = vrot.slane %v9740, 4
      %v9743 = vshll.u32 %v9586, 16
      %v9745 = vrot.slane %v9743, 5
      %v9746 = vor.u32 %v9742, %v9745
      %v9747 = vrot.slane %v9746, 4
      %v9749 = vshll.u32 %v9587, 16
      %v9751 = vrot.slane %v9749, 5
      %v9752 = vsel %vm1988, %v9747, %v9751
      %v9753 = vshrl.u32 %v9587, 16
      %v9755 = vrot.slane %v9753, 4
      %v9756 = vor.u32 %v9755, %v9751
      %v9757 = vrot.slane %v9756, 4
      %v9759 = vshll.u32 %v9588, 16
      %v9761 = vrot.slane %v9759, 5
      %v9762 = vsel %vm1988, %v9757, %v9761
      %v9764 = vshrl.u32 %v9589, 16
      %v9766 = vrot.slane %v9764, 4
      %v9767 = vshll.u32 %v9589, 16
      %v9769 = vrot.slane %v9767, 5
      %v9770 = vor.u32 %v9766, %v9769
      %v9771 = vrot.slane %v9770, 4
      %v9773 = vshll.u32 %v9590, 16
      %v9775 = vrot.slane %v9773, 5
      %v9776 = vsel %vm1988, %v9771, %v9775
      %v9777 = vshrl.u32 %v9590, 16
      %v9779 = vrot.slane %v9777, 4
      %v9780 = vor.u32 %v9779, %v9775
      %v9781 = vrot.slane %v9780, 4
      %v9783 = vshll.u32 %v9591, 16
      %v9785 = vrot.slane %v9783, 5
      %v9786 = vsel %vm1988, %v9781, %v9785
      %v9788 = vshrl.u32 %v9592, 16
      %v9790 = vrot.slane %v9788, 4
      %v9791 = vshll.u32 %v9592, 16
      %v9793 = vrot.slane %v9791, 5
      %v9794 = vor.u32 %v9790, %v9793
      %v9795 = vrot.slane %v9794, 4
      %v9797 = vshll.u32 %v9593, 16
      %v9799 = vrot.slane %v9797, 5
      %v9800 = vsel %vm1988, %v9795, %v9799
      %v9801 = vshrl.u32 %v9593, 16
      %v9803 = vrot.slane %v9801, 4
      %v9804 = vor.u32 %v9803, %v9799
      %v9805 = vrot.slane %v9804, 4
      %v9807 = vshll.u32 %v9594, 16
      %v9809 = vrot.slane %v9807, 5
      %v9810 = vsel %vm1988, %v9805, %v9809
      %v9812 = vshrl.u32 %v9595, 16
      %v9814 = vrot.slane %v9812, 4
      %v9815 = vshll.u32 %v9595, 16
      %v9817 = vrot.slane %v9815, 5
      %v9818 = vor.u32 %v9814, %v9817
      %v9819 = vrot.slane %v9818, 4
      %v9821 = vshll.u32 %v9596, 16
      %v9823 = vrot.slane %v9821, 5
      %v9824 = vsel %vm1988, %v9819, %v9823
      %v9825 = vshrl.u32 %v9596, 16
      %v9827 = vrot.slane %v9825, 4
      %v9828 = vor.u32 %v9827, %v9823
      %v9829 = vrot.slane %v9828, 4
      %v9831 = vshll.u32 %v9597, 16
      %v9833 = vrot.slane %v9831, 5
      %v9834 = vsel %vm1988, %v9829, %v9833
      %v9836 = vshrl.u32 %v9598, 16
      %v9838 = vrot.slane %v9836, 4
      %v9839 = vshll.u32 %v9598, 16
      %v9841 = vrot.slane %v9839, 5
      %v9842 = vor.u32 %v9838, %v9841
      %v9843 = vrot.slane %v9842, 4
      %v9845 = vshll.u32 %v9599, 16
      %v9847 = vrot.slane %v9845, 5
      %v9848 = vsel %vm1988, %v9843, %v9847
      %v9849 = vshrl.u32 %v9599, 16
      %v9851 = vrot.slane %v9849, 4
      %v9852 = vor.u32 %v9851, %v9847
      %v9853 = vrot.slane %v9852, 4
      %v9855 = vshll.u32 %v9600, 16
      %v9857 = vrot.slane %v9855, 5
      %v9858 = vsel %vm1988, %v9853, %v9857
      %v9860 = vshrl.u32 %v9601, 16
      %v9862 = vrot.slane %v9860, 4
      %v9863 = vshll.u32 %v9601, 16
      %v9865 = vrot.slane %v9863, 5
      %v9866 = vor.u32 %v9862, %v9865
      %v9867 = vrot.slane %v9866, 4
      %v9869 = vshll.u32 %v9602, 16
      %v9871 = vrot.slane %v9869, 5
      %v9872 = vsel %vm1988, %v9867, %v9871
      %v9873 = vshrl.u32 %v9602, 16
      %v9875 = vrot.slane %v9873, 4
      %v9876 = vor.u32 %v9875, %v9871
      %v9877 = vrot.slane %v9876, 4
      %v9879 = vshll.u32 %v9603, 16
      %v9881 = vrot.slane %v9879, 5
      %v9882 = vsel %vm1988, %v9877, %v9881
      %v9884 = vshrl.u32 %v9604, 16
      %v9886 = vrot.slane %v9884, 4
      %v9887 = vshll.u32 %v9604, 16
      %v9889 = vrot.slane %v9887, 5
      %v9890 = vor.u32 %v9886, %v9889
      %v9891 = vrot.slane %v9890, 4
      %v9893 = vshll.u32 %v9605, 16
      %v9895 = vrot.slane %v9893, 5
      %v9896 = vsel %vm1988, %v9891, %v9895
      %v9897 = vshrl.u32 %v9605, 16
      %v9899 = vrot.slane %v9897, 4
      %v9900 = vor.u32 %v9899, %v9895
      %v9901 = vrot.slane %v9900, 4
      %v9903 = vshll.u32 %v9606, 16
      %v9905 = vrot.slane %v9903, 5
      %v9906 = vsel %vm1988, %v9901, %v9905
      %v9908 = vshrl.u32 %v9607, 16
      %v9910 = vrot.slane %v9908, 4
      %v9911 = vshll.u32 %v9607, 16
      %v9913 = vrot.slane %v9911, 5
      %v9914 = vor.u32 %v9910, %v9913
      %v9915 = vrot.slane %v9914, 4
      %v9917 = vshll.u32 %v9608, 16
      %v9919 = vrot.slane %v9917, 5
      %v9920 = vsel %vm1988, %v9915, %v9919
      %v9921 = vshrl.u32 %v9608, 16
      %v9923 = vrot.slane %v9921, 4
      %v9924 = vor.u32 %v9923, %v9919
      %v9925 = vrot.slane %v9924, 4
      %v9927 = vshll.u32 %v9609, 16
      %v9929 = vrot.slane %v9927, 5
      %v9930 = vsel %vm1988, %v9925, %v9929
      %v9932 = vshrl.u32 %v9610, 16
      %v9934 = vrot.slane %v9932, 4
      %v9935 = vshll.u32 %v9610, 16
      %v9937 = vrot.slane %v9935, 5
      %v9938 = vor.u32 %v9934, %v9937
      %v9939 = vrot.slane %v9938, 4
      %v9941 = vshll.u32 %v9611, 16
      %v9943 = vrot.slane %v9941, 5
      %v9944 = vsel %vm1988, %v9939, %v9943
      %v9945 = vshrl.u32 %v9611, 16
      %v9947 = vrot.slane %v9945, 4
      %v9948 = vor.u32 %v9947, %v9943
      %v9949 = vrot.slane %v9948, 4
      %v9951 = vshll.u32 %v9612, 16
      %v9953 = vrot.slane %v9951, 5
      %v9954 = vsel %vm1988, %v9949, %v9953
      %v9956 = vshrl.u32 %v9613, 16
      %v9958 = vrot.slane %v9956, 4
      %v9959 = vshll.u32 %v9613, 16
      %v9961 = vrot.slane %v9959, 5
      %v9962 = vor.u32 %v9958, %v9961
      %v9963 = vrot.slane %v9962, 4
      %v9965 = vshll.u32 %v9614, 16
      %v9967 = vrot.slane %v9965, 5
      %v9968 = vsel %vm1988, %v9963, %v9967
      %v9969 = vshrl.u32 %v9614, 16
      %v9971 = vrot.slane %v9969, 4
      %v9972 = vor.u32 %v9971, %v9967
      %v9973 = vrot.slane %v9972, 4
      %v9975 = vshll.u32 %v9615, 16
      %v9977 = vrot.slane %v9975, 5
      %v9978 = vsel %vm1988, %v9973, %v9977
      %v9980 = vshrl.u32 %v9616, 16
      %v9982 = vrot.slane %v9980, 4
      %v9983 = vshll.u32 %v9616, 16
      %v9985 = vrot.slane %v9983, 5
      %v9986 = vor.u32 %v9982, %v9985
      %v9987 = vrot.slane %v9986, 4
      %v9989 = vshll.u32 %v9617, 16
      %v9991 = vrot.slane %v9989, 5
      %v9992 = vsel %vm1988, %v9987, %v9991
      %v9993 = vshrl.u32 %v9617, 16
      %v9995 = vrot.slane %v9993, 4
      %v9996 = vor.u32 %v9995, %v9991
      %v9997 = vrot.slane %v9996, 4
      %v9999 = vshll.u32 %v9618, 16
      %v10001 = vrot.slane %v9999, 5
      %v10002 = vsel %vm1988, %v9997, %v10001
      %v10003 = vld [vmem:[%s3] sm:$0x3]
      %v10004 = vunpack.c.l.b16 %v9632
      %v10005 = vunpack.c.l.b16 %v9642
      %v10006 = vunpack.c.l.b16 %v9656
      %v10007 = vunpack.c.l.b16 %v9666
      %v10008 = vunpack.c.l.b16 %v9680
      %v10009 = vunpack.c.l.b16 %v9690
      %v10010 = vunpack.c.l.b16 %v9704
      %v10011 = vunpack.c.l.b16 %v9714
      %v10012 = vunpack.c.l.b16 %v9728
      %v10013 = vunpack.c.l.b16 %v9738
      %v10014 = vunpack.c.l.b16 %v9752
      %v10015 = vunpack.c.l.b16 %v9762
      %v10016 = vunpack.c.l.b16 %v9776
      %v10017 = vunpack.c.l.b16 %v9786
      %v10018 = vunpack.c.l.b16 %v9800
      %v10019 = vunpack.c.l.b16 %v9810
      %v10020 = vunpack.c.l.b16 %v9824
      %v10021 = vunpack.c.l.b16 %v9834
      %v10022 = vunpack.c.l.b16 %v9848
      %v10023 = vunpack.c.l.b16 %v9858
      %v10024 = vunpack.c.l.b16 %v9872
      %v10025 = vunpack.c.l.b16 %v9882
      %v10026 = vunpack.c.l.b16 %v9896
      %v10027 = vunpack.c.l.b16 %v9906
      %v10028 = vunpack.c.l.b16 %v9920
      %v10029 = vunpack.c.l.b16 %v9930
      %v10030 = vunpack.c.l.b16 %v9944
      %v10031 = vunpack.c.l.b16 %v9954
      %v10032 = vunpack.c.l.b16 %v9968
      %v10033 = vunpack.c.l.b16 %v9978
      %v10034 = vunpack.c.l.b16 %v9992
      %v10035 = vunpack.c.l.b16 %v10002
      %v10036 = vpack.c.b16 %v10005, %v10004
      %v10037 = vpack.c.b16 %v10007, %v10006
      %v10038 = vpack.c.b16 %v10009, %v10008
      %v10039 = vpack.c.b16 %v10011, %v10010
      %v10040 = vpack.c.b16 %v10013, %v10012
      %v10041 = vpack.c.b16 %v10015, %v10014
      %v10042 = vpack.c.b16 %v10017, %v10016
      %v10043 = vpack.c.b16 %v10019, %v10018
      %v10044 = vpack.c.b16 %v10021, %v10020
      %v10045 = vpack.c.b16 %v10023, %v10022
      %v10046 = vpack.c.b16 %v10025, %v10024
      %v10047 = vpack.c.b16 %v10027, %v10026
      %v10048 = vpack.c.b16 %v10029, %v10028
      %v10049 = vpack.c.b16 %v10031, %v10030
      %v10050 = vpack.c.b16 %v10033, %v10032
      %v10051 = vpack.c.b16 %v10035, %v10034
      %v10053 = vsel %vm920, %v10036, 0
      %v10056 = vsel %vm920, %v10037, 0
      %v10059 = vsel %vm920, %v10038, 0
      %v10062 = vsel %vm920, %v10039, 0
      %v10065 = vsel %vm920, %v10040, 0
      %v10068 = vsel %vm920, %v10041, 0
      %v10071 = vsel %vm920, %v10042, 0
      %v10074 = vsel %vm920, %v10043, 0
      %v10077 = vsel %vm920, %v10044, 0
      %v10080 = vsel %vm920, %v10045, 0
      %v10083 = vsel %vm920, %v10046, 0
      %v10086 = vsel %vm920, %v10047, 0
      %v10089 = vsel %vm920, %v10048, 0
      %v10092 = vsel %vm920, %v10049, 0
      %v10095 = vsel %vm920, %v10050, 0
      %v10098 = vsel %vm920, %v10051, 0
      %v10101 = vsel %vm969, %v10003, 0
      %10103 = vmatprep.subr.bf16.mxu0 0
      %10104 = vmatpush1.bf16.msra.mxu0 %v10101
      %10105 = vmatprep.subr.bf16.mxu0 0
      %10106 = vmatpush1.bf16.msra.mxu0 0
      %10107 = vmatprep.subr.bf16.mxu0 0
      %10108 = vmatpush1.bf16.msra.mxu0 0
      %10109 = vmatprep.subr.bf16.mxu0 0
      %10110 = vmatpush1.bf16.msra.mxu0 0
      %10111 = vmatprep.subr.bf16.mxu0 0
      %10112 = vmatpush1.bf16.msra.mxu0 0
      %10113 = vmatprep.subr.bf16.mxu0 0
      %10114 = vmatpush1.bf16.msra.mxu0 0
      %10115 = vmatprep.subr.bf16.mxu0 0
      %10116 = vmatpush1.bf16.msra.mxu0 0
      %10117 = vmatprep.subr.bf16.mxu0 0
      %10118 = vmatpush1.bf16.msra.mxu0 0
      %10119 = vmatprep.subr.bf16.mxu0 0
      %10120 = vmatpush1.bf16.msra.mxu0 0
      %10121 = vmatprep.subr.bf16.mxu0 0
      %10122 = vmatpush1.bf16.msra.mxu0 0
      %10123 = vmatprep.subr.bf16.mxu0 0
      %10124 = vmatpush1.bf16.msra.mxu0 0
      %10125 = vmatprep.subr.bf16.mxu0 0
      %10126 = vmatpush1.bf16.msra.mxu0 0
      %10127 = vmatprep.subr.bf16.mxu0 0
      %10128 = vmatpush1.bf16.msra.mxu0 0
      %10129 = vmatprep.subr.bf16.mxu0 0
      %10130 = vmatpush1.bf16.msra.mxu0 0
      %10131 = vmatprep.subr.bf16.mxu0 0
      %10132 = vmatpush1.bf16.msra.mxu0 0
      %10133 = vmatprep.subr.bf16.mxu0 0
      %10134 = vmatpush1.bf16.msra.mxu0 0
      %10135 = vmatprep.mubr.bf16.mxu0 0
      %10136 = vmatmul.mubr.bf16.gmra.mrb[0].mxu0 %v10053
      %v10137 = vpop.f32.mrb[0].mxu0
      %v10138 = vadd.f32 0.0, %v10137
      %v10139 = vpop.f32.mrb[0].mxu0
      %v10140 = vpop.f32.mrb[0].mxu0
      %v10141 = vadd.f32 0.0, %v10140
      %v10142 = vpop.f32.mrb[0].mxu0
      %10143 = vmatprep.mubr.bf16.mxu0 0
      %10144 = vmatmul.mubr.bf16.gmra.mrb[0].mxu0 %v10056
      %v10145 = vpop.f32.mrb[0].mxu0
      %v10146 = vadd.f32 0.0, %v10145
      %v10147 = vpop.f32.mrb[0].mxu0
      %v10148 = vpop.f32.mrb[0].mxu0
      %v10149 = vadd.f32 0.0, %v10148
      %v10150 = vpop.f32.mrb[0].mxu0
      %10151 = vmatprep.mubr.bf16.mxu0 0
      %10152 = vmatmul.mubr.bf16.gmra.mrb[0].mxu0 %v10059
      %v10153 = vpop.f32.mrb[0].mxu0
      %v10154 = vadd.f32 0.0, %v10153
      %v10155 = vpop.f32.mrb[0].mxu0
      %v10156 = vpop.f32.mrb[0].mxu0
      %v10157 = vadd.f32 0.0, %v10156
      %v10158 = vpop.f32.mrb[0].mxu0
      %10159 = vmatprep.mubr.bf16.mxu0 0
      %10160 = vmatmul.mubr.bf16.gmra.mrb[0].mxu0 %v10062
      %v10161 = vpop.f32.mrb[0].mxu0
      %v10162 = vadd.f32 0.0, %v10161
      %v10163 = vpop.f32.mrb[0].mxu0
      %v10164 = vpop.f32.mrb[0].mxu0
      %v10165 = vadd.f32 0.0, %v10164
      %v10166 = vpop.f32.mrb[0].mxu0
      %10167 = vmatprep.mubr.bf16.mxu0 0
      %10168 = vmatmul.mubr.bf16.gmra.mrb[0].mxu0 %v10065
      %v10169 = vpop.f32.mrb[0].mxu0
      %v10170 = vadd.f32 0.0, %v10169
      %v10171 = vpop.f32.mrb[0].mxu0
      %v10172 = vpop.f32.mrb[0].mxu0
      %v10173 = vadd.f32 0.0, %v10172
      %v10174 = vpop.f32.mrb[0].mxu0
      %10175 = vmatprep.mubr.bf16.mxu0 0
      %10176 = vmatmul.mubr.bf16.gmra.mrb[0].mxu0 %v10068
      %v10177 = vpop.f32.mrb[0].mxu0
      %v10178 = vadd.f32 0.0, %v10177
      %v10179 = vpop.f32.mrb[0].mxu0
      %v10180 = vpop.f32.mrb[0].mxu0
      %v10181 = vadd.f32 0.0, %v10180
      %v10182 = vpop.f32.mrb[0].mxu0
      %10183 = vmatprep.mubr.bf16.mxu0 0
      %10184 = vmatmul.mubr.bf16.gmra.mrb[0].mxu0 %v10071
      %v10185 = vpop.f32.mrb[0].mxu0
      %v10186 = vadd.f32 0.0, %v10185
      %v10187 = vpop.f32.mrb[0].mxu0
      %v10188 = vpop.f32.mrb[0].mxu0
      %v10189 = vadd.f32 0.0, %v10188
      %v10190 = vpop.f32.mrb[0].mxu0
      %10191 = vmatprep.mubr.bf16.mxu0 0
      %10192 = vmatmul.mubr.bf16.gmra.mrb[0].mxu0 %v10074
      %v10193 = vpop.f32.mrb[0].mxu0
      %v10194 = vadd.f32 0.0, %v10193
      %v10195 = vpop.f32.mrb[0].mxu0
      %v10196 = vpop.f32.mrb[0].mxu0
      %v10197 = vadd.f32 0.0, %v10196
      %v10198 = vpop.f32.mrb[0].mxu0
      %10199 = vmatprep.mubr.bf16.mxu0 0
      %10200 = vmatmul.mubr.bf16.gmra.mrb[0].mxu0 %v10077
      %v10201 = vpop.f32.mrb[0].mxu0
      %v10202 = vadd.f32 0.0, %v10201
      %v10203 = vpop.f32.mrb[0].mxu0
      %v10204 = vpop.f32.mrb[0].mxu0
      %v10205 = vadd.f32 0.0, %v10204
      %v10206 = vpop.f32.mrb[0].mxu0
      %10207 = vmatprep.mubr.bf16.mxu0 0
      %10208 = vmatmul.mubr.bf16.gmra.mrb[0].mxu0 %v10080
      %v10209 = vpop.f32.mrb[0].mxu0
      %v10210 = vadd.f32 0.0, %v10209
      %v10211 = vpop.f32.mrb[0].mxu0
      %v10212 = vpop.f32.mrb[0].mxu0
      %v10213 = vadd.f32 0.0, %v10212
      %v10214 = vpop.f32.mrb[0].mxu0
      %10215 = vmatprep.mubr.bf16.mxu0 0
      %10216 = vmatmul.mubr.bf16.gmra.mrb[0].mxu0 %v10083
      %v10217 = vpop.f32.mrb[0].mxu0
      %v10218 = vadd.f32 0.0, %v10217
      %v10219 = vpop.f32.mrb[0].mxu0
      %v10220 = vpop.f32.mrb[0].mxu0
      %v10221 = vadd.f32 0.0, %v10220
      %v10222 = vpop.f32.mrb[0].mxu0
      %10223 = vmatprep.mubr.bf16.mxu0 0
      %10224 = vmatmul.mubr.bf16.gmra.mrb[0].mxu0 %v10086
      %v10225 = vpop.f32.mrb[0].mxu0
      %v10226 = vadd.f32 0.0, %v10225
      %v10227 = vpop.f32.mrb[0].mxu0
      %v10228 = vpop.f32.mrb[0].mxu0
      %v10229 = vadd.f32 0.0, %v10228
      %v10230 = vpop.f32.mrb[0].mxu0
      %10231 = vmatprep.mubr.bf16.mxu0 0
      %10232 = vmatmul.mubr.bf16.gmra.mrb[0].mxu0 %v10089
      %v10233 = vpop.f32.mrb[0].mxu0
      %v10234 = vadd.f32 0.0, %v10233
      %v10235 = vpop.f32.mrb[0].mxu0
      %v10236 = vpop.f32.mrb[0].mxu0
      %v10237 = vadd.f32 0.0, %v10236
      %v10238 = vpop.f32.mrb[0].mxu0
      %10239 = vmatprep.mubr.bf16.mxu0 0
      %10240 = vmatmul.mubr.bf16.gmra.mrb[0].mxu0 %v10092
      %v10241 = vpop.f32.mrb[0].mxu0
      %v10242 = vadd.f32 0.0, %v10241
      %v10243 = vpop.f32.mrb[0].mxu0
      %v10244 = vpop.f32.mrb[0].mxu0
      %v10245 = vadd.f32 0.0, %v10244
      %v10246 = vpop.f32.mrb[0].mxu0
      %10247 = vmatprep.mubr.bf16.mxu0 0
      %10248 = vmatmul.mubr.bf16.gmra.mrb[0].mxu0 %v10095
      %v10249 = vpop.f32.mrb[0].mxu0
      %v10250 = vadd.f32 0.0, %v10249
      %v10251 = vpop.f32.mrb[0].mxu0
      %v10252 = vpop.f32.mrb[0].mxu0
      %v10253 = vadd.f32 0.0, %v10252
      %v10254 = vpop.f32.mrb[0].mxu0
      %10255 = vmatprep.mubr.bf16.mxu0 0
      %10256 = vmatmul.mubr.bf16.gmra.mrb[0].mxu0 %v10098
      %v10257 = vpop.f32.mrb[0].mxu0
      %v10258 = vadd.f32 0.0, %v10257
      %v10259 = vpop.f32.mrb[0].mxu0
      %v10260 = vpop.f32.mrb[0].mxu0
      %v10261 = vadd.f32 0.0, %v10260
      %v10262 = vpop.f32.mrb[0].mxu0
      %10263 = vdwg.mxu0
      %v10264 = vld [vmem:[%s4] sm:$0x1]
      %v10266 = vlaneseq
      %v10267 = vshrl.u32 %v10266, 7
      %v10268 = vsub.s32 0, %v10267
      %v10269 = vrot.slane %v10264, %v10268
      %10270 = vrot.lane.b32.xlu0 %v10269, 96
      %v10271 = vpop.permute.xlu0 %10270
      %v10273 = vmul.f32 %v10138, %v10271
      %v10274 = vmul.f32 %v10141, %v10271
      %v10275 = vmul.f32 %v10146, %v10271
      %v10276 = vmul.f32 %v10149, %v10271
      %v10277 = vmul.f32 %v10154, %v10271
      %v10278 = vmul.f32 %v10157, %v10271
      %v10279 = vmul.f32 %v10162, %v10271
      %v10280 = vmul.f32 %v10165, %v10271
      %v10281 = vmul.f32 %v10170, %v10271
      %v10282 = vmul.f32 %v10173, %v10271
      %v10283 = vmul.f32 %v10178, %v10271
      %v10284 = vmul.f32 %v10181, %v10271
      %v10285 = vmul.f32 %v10186, %v10271
      %v10286 = vmul.f32 %v10189, %v10271
      %v10287 = vmul.f32 %v10194, %v10271
      %v10288 = vmul.f32 %v10197, %v10271
      %v10289 = vmul.f32 %v10202, %v10271
      %v10290 = vmul.f32 %v10205, %v10271
      %v10291 = vmul.f32 %v10210, %v10271
      %v10292 = vmul.f32 %v10213, %v10271
      %v10293 = vmul.f32 %v10218, %v10271
      %v10294 = vmul.f32 %v10221, %v10271
      %v10295 = vmul.f32 %v10226, %v10271
      %v10296 = vmul.f32 %v10229, %v10271
      %v10297 = vmul.f32 %v10234, %v10271
      %v10298 = vmul.f32 %v10237, %v10271
      %v10299 = vmul.f32 %v10242, %v10271
      %v10300 = vmul.f32 %v10245, %v10271
      %v10301 = vmul.f32 %v10250, %v10271
      %v10302 = vmul.f32 %v10253, %v10271
      %v10303 = vmul.f32 %v10258, %v10271
      %v10304 = vmul.f32 %v10261, %v10271
      %v10305 = vld [vmem:[%s5] sm:$0x1]
      %v10307 = vlaneseq
      %v10308 = vshrl.u32 %v10307, 7
      %v10309 = vsub.s32 0, %v10308
      %v10310 = vrot.slane %v10305, %v10309
      %10311 = vrot.lane.b32.xlu0 %v10310, 96
      %v10312 = vpop.permute.xlu0 %10311
      %v10314 = vadd.f32 %v10273, %v10312
      %v10315 = vadd.f32 %v10274, %v10312
      %v10316 = vadd.f32 %v10275, %v10312
      %v10317 = vadd.f32 %v10276, %v10312
      %v10318 = vadd.f32 %v10277, %v10312
      %v10319 = vadd.f32 %v10278, %v10312
      %v10320 = vadd.f32 %v10279, %v10312
      %v10321 = vadd.f32 %v10280, %v10312
      %v10322 = vadd.f32 %v10281, %v10312
      %v10323 = vadd.f32 %v10282, %v10312
      %v10324 = vadd.f32 %v10283, %v10312
      %v10325 = vadd.f32 %v10284, %v10312
      %v10326 = vadd.f32 %v10285, %v10312
      %v10327 = vadd.f32 %v10286, %v10312
      %v10328 = vadd.f32 %v10287, %v10312
      %v10329 = vadd.f32 %v10288, %v10312
      %v10330 = vadd.f32 %v10289, %v10312
      %v10331 = vadd.f32 %v10290, %v10312
      %v10332 = vadd.f32 %v10291, %v10312
      %v10333 = vadd.f32 %v10292, %v10312
      %v10334 = vadd.f32 %v10293, %v10312
      %v10335 = vadd.f32 %v10294, %v10312
      %v10336 = vadd.f32 %v10295, %v10312
      %v10337 = vadd.f32 %v10296, %v10312
      %v10338 = vadd.f32 %v10297, %v10312
      %v10339 = vadd.f32 %v10298, %v10312
      %v10340 = vadd.f32 %v10299, %v10312
      %v10341 = vadd.f32 %v10300, %v10312
      %v10342 = vadd.f32 %v10301, %v10312
      %v10343 = vadd.f32 %v10302, %v10312
      %v10344 = vadd.f32 %v10303, %v10312
      %v10345 = vadd.f32 %v10304, %v10312
      %v10346 = vmax.f32 %v10314, 0.0
      %v10347 = vmax.f32 %v10315, 0.0
      %v10348 = vmax.f32 %v10316, 0.0
      %v10349 = vmax.f32 %v10317, 0.0
      %v10350 = vmax.f32 %v10318, 0.0
      %v10351 = vmax.f32 %v10319, 0.0
      %v10352 = vmax.f32 %v10320, 0.0
      %v10353 = vmax.f32 %v10321, 0.0
      %v10354 = vmax.f32 %v10322, 0.0
      %v10355 = vmax.f32 %v10323, 0.0
      %v10356 = vmax.f32 %v10324, 0.0
      %v10357 = vmax.f32 %v10325, 0.0
      %v10358 = vmax.f32 %v10326, 0.0
      %v10359 = vmax.f32 %v10327, 0.0
      %v10360 = vmax.f32 %v10328, 0.0
      %v10361 = vmax.f32 %v10329, 0.0
      %v10362 = vmax.f32 %v10330, 0.0
      %v10363 = vmax.f32 %v10331, 0.0
      %v10364 = vmax.f32 %v10332, 0.0
      %v10365 = vmax.f32 %v10333, 0.0
      %v10366 = vmax.f32 %v10334, 0.0
      %v10367 = vmax.f32 %v10335, 0.0
      %v10368 = vmax.f32 %v10336, 0.0
      %v10369 = vmax.f32 %v10337, 0.0
      %v10370 = vmax.f32 %v10338, 0.0
      %v10371 = vmax.f32 %v10339, 0.0
      %v10372 = vmax.f32 %v10340, 0.0
      %v10373 = vmax.f32 %v10341, 0.0
      %v10374 = vmax.f32 %v10342, 0.0
      %v10375 = vmax.f32 %v10343, 0.0
      %v10376 = vmax.f32 %v10344, 0.0
      %v10377 = vmax.f32 %v10345, 0.0
      %v10378 = vpack.c.bf16 %v10347, %v10346
      %v10379 = vpack.c.bf16 %v10349, %v10348
      %v10380 = vpack.c.bf16 %v10351, %v10350
      %v10381 = vpack.c.bf16 %v10353, %v10352
      %v10382 = vpack.c.bf16 %v10355, %v10354
      %v10383 = vpack.c.bf16 %v10357, %v10356
      %v10384 = vpack.c.bf16 %v10359, %v10358
      %v10385 = vpack.c.bf16 %v10361, %v10360
      %v10386 = vpack.c.bf16 %v10363, %v10362
      %v10387 = vpack.c.bf16 %v10365, %v10364
      %v10388 = vpack.c.bf16 %v10367, %v10366
      %v10389 = vpack.c.bf16 %v10369, %v10368
      %v10390 = vpack.c.bf16 %v10371, %v10370
      %v10391 = vpack.c.bf16 %v10373, %v10372
      %v10392 = vpack.c.bf16 %v10375, %v10374
      %v10393 = vpack.c.bf16 %v10377, %v10376
      %v10410 = vunpack.c.l.b16 %v10378
      %v10411 = vunpack.c.h.b16 %v10378
      %v10412 = vunpack.c.l.b16 %v10379
      %v10413 = vunpack.c.h.b16 %v10379
      %v10414 = vunpack.c.l.b16 %v10380
      %v10415 = vunpack.c.h.b16 %v10380
      %v10416 = vunpack.c.l.b16 %v10381
      %v10417 = vunpack.c.h.b16 %v10381
      %v10418 = vunpack.c.l.b16 %v10382
      %v10419 = vunpack.c.h.b16 %v10382
      %v10420 = vunpack.c.l.b16 %v10383
      %v10421 = vunpack.c.h.b16 %v10383
      %v10422 = vunpack.c.l.b16 %v10384
      %v10423 = vunpack.c.h.b16 %v10384
      %v10424 = vunpack.c.l.b16 %v10385
      %v10425 = vunpack.c.h.b16 %v10385
      %v10426 = vunpack.c.l.b16 %v10386
      %v10427 = vunpack.c.h.b16 %v10386
      %v10428 = vunpack.c.l.b16 %v10387
      %v10429 = vunpack.c.h.b16 %v10387
      %v10430 = vunpack.c.l.b16 %v10388
      %v10431 = vunpack.c.h.b16 %v10388
      %v10432 = vunpack.c.l.b16 %v10389
      %v10433 = vunpack.c.h.b16 %v10389
      %v10434 = vunpack.c.l.b16 %v10390
      %v10435 = vunpack.c.h.b16 %v10390
      %v10436 = vunpack.c.l.b16 %v10391
      %v10437 = vunpack.c.h.b16 %v10391
      %v10438 = vunpack.c.l.b16 %v10392
      %v10439 = vunpack.c.h.b16 %v10392
      %v10440 = vunpack.c.l.b16 %v10393
      %v10441 = vunpack.c.h.b16 %v10393
      %v10442 = vpack.c.b16 %v10410, %v10410
      %v10443 = vpack.c.b16 %v10411, %v10411
      %v10444 = vpack.c.b16 %v10412, %v10412
      %v10445 = vpack.c.b16 %v10413, %v10413
      %v10446 = vpack.c.b16 %v10414, %v10414
      %v10447 = vpack.c.b16 %v10415, %v10415
      %v10448 = vpack.c.b16 %v10416, %v10416
      %v10449 = vpack.c.b16 %v10417, %v10417
      %v10450 = vpack.c.b16 %v10418, %v10418
      %v10451 = vpack.c.b16 %v10419, %v10419
      %v10452 = vpack.c.b16 %v10420, %v10420
      %v10453 = vpack.c.b16 %v10421, %v10421
      %v10454 = vpack.c.b16 %v10422, %v10422
      %v10455 = vpack.c.b16 %v10423, %v10423
      %v10456 = vpack.c.b16 %v10424, %v10424
      %v10457 = vpack.c.b16 %v10425, %v10425
      %v10458 = vpack.c.b16 %v10426, %v10426
      %v10459 = vpack.c.b16 %v10427, %v10427
      %v10460 = vpack.c.b16 %v10428, %v10428
      %v10461 = vpack.c.b16 %v10429, %v10429
      %v10462 = vpack.c.b16 %v10430, %v10430
      %v10463 = vpack.c.b16 %v10431, %v10431
      %v10464 = vpack.c.b16 %v10432, %v10432
      %v10465 = vpack.c.b16 %v10433, %v10433
      %v10466 = vpack.c.b16 %v10434, %v10434
      %v10467 = vpack.c.b16 %v10435, %v10435
      %v10468 = vpack.c.b16 %v10436, %v10436
      %v10469 = vpack.c.b16 %v10437, %v10437
      %v10470 = vpack.c.b16 %v10438, %v10438
      %v10471 = vpack.c.b16 %v10439, %v10439
      %v10472 = vpack.c.b16 %v10440, %v10440
      %v10473 = vpack.c.b16 %v10441, %v10441
      %10474 = vrot.lane.b32.xlu0 %v10442, 24
      %v10475 = vpop.permute.xlu0 %10474
      %10476 = vrot.lane.b32.xlu0 %v10443, 24
      %v10477 = vpop.permute.xlu0 %10476
      %10478 = vrot.lane.b32.xlu0 %v10444, 24
      %v10479 = vpop.permute.xlu0 %10478
      %10480 = vrot.lane.b32.xlu0 %v10445, 24
      %v10481 = vpop.permute.xlu0 %10480
      %10482 = vrot.lane.b32.xlu0 %v10446, 24
      %v10483 = vpop.permute.xlu0 %10482
      %10484 = vrot.lane.b32.xlu0 %v10447, 24
      %v10485 = vpop.permute.xlu0 %10484
      %10486 = vrot.lane.b32.xlu0 %v10448, 24
      %v10487 = vpop.permute.xlu0 %10486
      %10488 = vrot.lane.b32.xlu0 %v10449, 24
      %v10489 = vpop.permute.xlu0 %10488
      %10490 = vrot.lane.b32.xlu0 %v10450, 24
      %v10491 = vpop.permute.xlu0 %10490
      %10492 = vrot.lane.b32.xlu0 %v10451, 24
      %v10493 = vpop.permute.xlu0 %10492
      %10494 = vrot.lane.b32.xlu0 %v10452, 24
      %v10495 = vpop.permute.xlu0 %10494
      %10496 = vrot.lane.b32.xlu0 %v10453, 24
      %v10497 = vpop.permute.xlu0 %10496
      %10498 = vrot.lane.b32.xlu0 %v10454, 24
      %v10499 = vpop.permute.xlu0 %10498
      %10500 = vrot.lane.b32.xlu0 %v10455, 24
      %v10501 = vpop.permute.xlu0 %10500
      %10502 = vrot.lane.b32.xlu0 %v10456, 24
      %v10503 = vpop.permute.xlu0 %10502
      %10504 = vrot.lane.b32.xlu0 %v10457, 24
      %v10505 = vpop.permute.xlu0 %10504
      %10506 = vrot.lane.b32.xlu0 %v10458, 24
      %v10507 = vpop.permute.xlu0 %10506
      %10508 = vrot.lane.b32.xlu0 %v10459, 24
      %v10509 = vpop.permute.xlu0 %10508
      %10510 = vrot.lane.b32.xlu0 %v10460, 24
      %v10511 = vpop.permute.xlu0 %10510
      %10512 = vrot.lane.b32.xlu0 %v10461, 24
      %v10513 = vpop.permute.xlu0 %10512
      %10514 = vrot.lane.b32.xlu0 %v10462, 24
      %v10515 = vpop.permute.xlu0 %10514
      %10516 = vrot.lane.b32.xlu0 %v10463, 24
      %v10517 = vpop.permute.xlu0 %10516
      %10518 = vrot.lane.b32.xlu0 %v10464, 24
      %v10519 = vpop.permute.xlu0 %10518
      %10520 = vrot.lane.b32.xlu0 %v10465, 24
      %v10521 = vpop.permute.xlu0 %10520
      %10522 = vrot.lane.b32.xlu0 %v10466, 24
      %v10523 = vpop.permute.xlu0 %10522
      %10524 = vrot.lane.b32.xlu0 %v10467, 24
      %v10525 = vpop.permute.xlu0 %10524
      %10526 = vrot.lane.b32.xlu0 %v10468, 24
      %v10527 = vpop.permute.xlu0 %10526
      %10528 = vrot.lane.b32.xlu0 %v10469, 24
      %v10529 = vpop.permute.xlu0 %10528
      %10530 = vrot.lane.b32.xlu0 %v10470, 24
      %v10531 = vpop.permute.xlu0 %10530
      %10532 = vrot.lane.b32.xlu0 %v10471, 24
      %v10533 = vpop.permute.xlu0 %10532
      %10534 = vrot.lane.b32.xlu0 %v10472, 24
      %v10535 = vpop.permute.xlu0 %10534
      %10536 = vrot.lane.b32.xlu0 %v10473, 24
      %v10537 = vpop.permute.xlu0 %10536
      %vm10570 = vcmask 257216
      %10571 = vst.msk [vmem:[%s251] sm:$0xf] %vm10570, %v10475
      %10572 = vst.msk [vmem:[%s251 + $0x4] sm:$0xf] %vm10570, %v10477
      %10573 = vst.msk [vmem:[%s251 + $0x8] sm:$0xf] %vm10570, %v10479
      %10574 = vst.msk [vmem:[%s251 + $0xc] sm:$0xf] %vm10570, %v10481
      %10575 = vst.msk [vmem:[%s251 + $0x10] sm:$0xf] %vm10570, %v10483
      %10576 = vst.msk [vmem:[%s251 + $0x14] sm:$0xf] %vm10570, %v10485
      %10577 = vst.msk [vmem:[%s251 + $0x18] sm:$0xf] %vm10570, %v10487
      %10578 = vst.msk [vmem:[%s251 + $0x1c] sm:$0xf] %vm10570, %v10489
      %10579 = vst.msk [vmem:[%s251 + $0x20] sm:$0xf] %vm10570, %v10491
      %10580 = vst.msk [vmem:[%s251 + $0x24] sm:$0xf] %vm10570, %v10493
      %10581 = vst.msk [vmem:[%s251 + $0x28] sm:$0xf] %vm10570, %v10495
      %10582 = vst.msk [vmem:[%s251 + $0x2c] sm:$0xf] %vm10570, %v10497
      %10583 = vst.msk [vmem:[%s251 + $0x30] sm:$0xf] %vm10570, %v10499
      %10584 = vst.msk [vmem:[%s251 + $0x34] sm:$0xf] %vm10570, %v10501
      %10585 = vst.msk [vmem:[%s251 + $0x38] sm:$0xf] %vm10570, %v10503
      %10586 = vst.msk [vmem:[%s251 + $0x3c] sm:$0xf] %vm10570, %v10505
      %10587 = vst.msk [vmem:[%s251 + $0x40] sm:$0xf] %vm10570, %v10507
      %10588 = vst.msk [vmem:[%s251 + $0x44] sm:$0xf] %vm10570, %v10509
      %10589 = vst.msk [vmem:[%s251 + $0x48] sm:$0xf] %vm10570, %v10511
      %10590 = vst.msk [vmem:[%s251 + $0x4c] sm:$0xf] %vm10570, %v10513
      %10591 = vst.msk [vmem:[%s251 + $0x50] sm:$0xf] %vm10570, %v10515
      %10592 = vst.msk [vmem:[%s251 + $0x54] sm:$0xf] %vm10570, %v10517
      %10593 = vst.msk [vmem:[%s251 + $0x58] sm:$0xf] %vm10570, %v10519
      %10594 = vst.msk [vmem:[%s251 + $0x5c] sm:$0xf] %vm10570, %v10521
      %10595 = vst.msk [vmem:[%s251 + $0x60] sm:$0xf] %vm10570, %v10523
      %10596 = vst.msk [vmem:[%s251 + $0x64] sm:$0xf] %vm10570, %v10525
      %10597 = vst.msk [vmem:[%s251 + $0x68] sm:$0xf] %vm10570, %v10527
      %10598 = vst.msk [vmem:[%s251 + $0x6c] sm:$0xf] %vm10570, %v10529
      %10599 = vst.msk [vmem:[%s251 + $0x70] sm:$0xf] %vm10570, %v10531
      %10600 = vst.msk [vmem:[%s251 + $0x74] sm:$0xf] %vm10570, %v10533
      %10601 = vst.msk [vmem:[%s251 + $0x78] sm:$0xf] %vm10570, %v10535
      %10602 = vst.msk [vmem:[%s251 + $0x7c] sm:$0xf] %vm10570, %v10537
      %p10603 = scmp.lt.s32.totalorder %s17, 1
      %s10604 = scalar_select %p10603, %s17, 1
      %s10605 = smul.addr %s10604, 32
      %s10606 = smul.addr %s10605, 4
      %s10607 = scalar_lea.vmem %s6, %s10606
      // Predicated region
      $region45: #{inception_forward.1} parent=43 // pred_check
        %p10608 = pneg %p166
      $region46: #{inception_forward.1} parent=43 // pred_check_branch
        %10610 = sbr.rel (%p10608) target = $region48
      $region47: #{inception_forward.1} parent=43 // pred_region
        _
      $region48: #{inception_forward.1} parent=43 // pred_fallthru
        _
    $region44: #{inception_forward.1} parent=5 // pred_fallthru
      _
    %p10611 = scmp.le.s32.totalorder 2, %s12
    // Predicated region
    $region49: #{inception_forward.1} parent=5 // pred_check
      %p10612 = pneg %p10611
    $region50: #{inception_forward.1} parent=5 // pred_check_branch
      %10614 = sbr.rel (%p10612) target = $region52
    $region51: #{inception_forward.1} parent=5 // pred_region
      %s10615 = ssub.s32 %s12, 2
      // Predicated region
      $region53: #{inception_forward.1} parent=51 // pred_check
        %p10616 = pneg %p172
      $region54: #{inception_forward.1} parent=51 // pred_check_branch
        %10618 = sbr.rel (%p10616) target = $region56
      $region55: #{inception_forward.1} parent=51 // pred_region
        %p10619 = scmp.lt.s32.totalorder %s18, 1
        %s10620 = scalar_select %p10619, %s18, 1
        %s10621 = smul.addr %s10620, 32
        %s10622 = smul.addr %s10621, 4
        %s10623 = scalar_lea.vmem %s6, %s10622
      $region56: #{inception_forward.1} parent=51 // pred_fallthru
        _
    $region52: #{inception_forward.1} parent=5 // pred_fallthru
      _
  $region6: #{inception_forward.1} parent=0 // loop_footer
    %s16 = sadd.s32 1, %s12
  $region7: #{inception_forward.1} parent=0 // loop_footer_branch
    %11 = sbr.rel target = $region3
  $region8: #{inception_forward.1} parent=0 // loop_exit
    _

</llo_original>
